<compile_context>
chip_gen: v6e
topology: v6e:2x2x1
jax: 0.10.0
libtpu: 0.0.40
codegen_flags: <defaults>
</compile_context>

<pallas_src>
import functools
import math

import jax
import jax.numpy as jnp
from jax import lax
from jax.experimental import pallas as pl
from jax.experimental.pallas import tpu as pltpu


# ----------------------------------------------------------------------------
# Canonical conv iteration order (resblock -> outer row -> inner conv).
# Used by param init, weight packing, the reference, and (implicitly, via the
# same nesting) the kernel's flat bias counter.
# ----------------------------------------------------------------------------
def _iter_convs(k_r, D_r):
    for r, (k, D) in enumerate(zip(k_r, D_r)):
        for i, dil_row in enumerate(D):
            for j, d in enumerate(dil_row):
                yield r, i, j, int(k), int(d)


# ----------------------------------------------------------------------------
# Fused Pallas kernel: full MRF forward for Nb batch rows (NCT layout).
# ----------------------------------------------------------------------------
def _mrf_kernel(x_ref, *refs, C, T, Nb, k_r, D_r):
    # x_ref : (Nb, C, T)   input block; channels on sublanes, time on lanes.
    # refs  : w_rb_0, ..., w_rb_{R-1},  b_all,  o_ref,  stk_ref
    #   w_rb_r : (n_convs_r, C, k_r*C) bf16   tap-stacked weights, VMEM-resident
    #   b_all  : (n_convs_total, C, 1) f32    biases
    #   o_ref  : (Nb, C, T)                   output block
    #   stk_ref: (k_max*C, Nb*T) bf16         persistent stacked-tap scratch
    n_rb = len(k_r)
    w_refs = refs[:n_rb]
    b_ref = refs[n_rb]
    o_ref = refs[n_rb + 1]
    stk_ref = refs[n_rb + 2]
    W = Nb * T

    # Wide activation layout: batch rows concatenated along the lane (time)
    # axis -> every conv is ONE (C, k*C) @ (k*C, Nb*T) matmul.
    x = jnp.concatenate([x_ref[b].astype(jnp.float32) for b in range(Nb)],
                        axis=1)                                   # (C, Nb*T)

    # Position within a batch row (hoisted; reused by every tap's boundary mask).
    pos = lax.broadcasted_iota(jnp.int32, (1, W), 1)
    if Nb > 1:
        pos = pos % T

    def lrelu_conv(h, w, b_col, k, d):
        """Conv1d(LeakyReLU(h), dilation=d, padding='same') as one MXU matmul.

        Tap j reads a[:, t + j*d - p] (zero outside the row).  Each tap is an
        XLU roll of the unpadded activation + a static boundary mask, stored
        (as bf16) into the persistent stacked scratch.
        """
        p = d * (k - 1) // 2
        a = jnp.where(h > 0, h, 0.1 * h)          # LeakyReLU(0.1) in f32
        for j in range(k):
            o = j * d - p                         # static tap offset
            if o == 0:
                tap = a
            else:
                tap = pltpu.roll(a, shift=(-o) % W, axis=1)
                # zero positions whose source index falls outside the row
                valid = (pos >= max(0, -o)) & (pos < T - max(0, o))
                tap = jnp.where(valid, tap, 0.0)
            # bf16 cast only at the matmul boundary (elementwise math stays f32)
            stk_ref[j * C:(j + 1) * C, :] = tap.astype(jnp.bfloat16)
        y = jnp.dot(w, stk_ref[0:k * C, :],       # (C,k*C)@(k*C,Nb*T), f32 acc
                    preferred_element_type=jnp.float32)
        return y + b_col                          # (C, 1) lane-broadcast bias

    out = None
    ci = 0                                        # flat bias index (canonical order)
    for r, (k, D) in enumerate(zip(k_r, D_r)):    # every ResBlock sees original x
        xr = x
        li = 0                                    # conv index within resblock r
        for dil_row in D:                         # outer cycle: xr = xr + Seq(xr)
            h = xr
            for d in dil_row:                     # inner cycle: chained lrelu+conv
                h = lrelu_conv(h, w_refs[r][li], b_ref[ci], k, d)
                li += 1
                ci += 1
            xr = xr + h
        out = xr if out is None else out + xr
    out = out * (1.0 / n_rb)

    # Unpack the wide layout back to (Nb, C, T); lane-aligned, full-width stores.
    for b in range(Nb):
        o_ref[b] = out[:, b * T:(b + 1) * T].astype(o_ref.dtype)


# ----------------------------------------------------------------------------
# Parameter init (PyTorch-default-style uniform) and packing for the kernel.
# ----------------------------------------------------------------------------
def init_mrf_params(key, channels, k_r, D_r):
    convs = []
    for r, i, j, k, d in _iter_convs(k_r, D_r):
        key, kw, kb = jax.random.split(key, 3)
        bound = 1.0 / math.sqrt(channels * k)
        w_oik = jax.random.uniform(kw, (channels, channels, k),
                                   minval=-bound, maxval=bound,
                                   dtype=jnp.float32)
        b = jax.random.uniform(kb, (channels,), minval=-bound, maxval=bound,
                               dtype=jnp.float32)
        convs.append(dict(r=r, i=i, j=j, k=k, d=d, w_oik=w_oik, b=b))
    return convs


def _pack_params(convs, k_r, D_r, channels):
    """Pack per-resblock tap-stacked bf16 weights and a single f32 bias array."""
    n_total = sum(len(D) * len(D[0]) for D in D_r)
    assert len(convs) == n_total
    packed_w = []
    for r, k in enumerate(k_r):
        ws = [c for c in convs if c["r"] == r]          # canonical (i, j) order
        # PyTorch (C_out, C_in, k) -> tap-stacked (C_out, k*C_in):
        #   w_stacked[co, j*C + ci] = w_oik[co, ci, j]
        w_stk = jnp.stack(
            [jnp.transpose(c["w_oik"], (0, 2, 1)).reshape(channels, k * channels)
             for c in ws], axis=0).astype(jnp.bfloat16)  # (n_r, C, k*C)
        packed_w.append(w_stk)
    packed_b = jnp.stack([c["b"].reshape(channels, 1) for c in convs],
                         axis=0)                         # (n_total, C, 1) f32
    return packed_w, packed_b


# ----------------------------------------------------------------------------
# Wrapper: one pallas_call for the whole MRF forward.
# ----------------------------------------------------------------------------
def mrf_forward(x_nct, convs, k_r, D_r, block_n=None):
    """y = mean_r ResBlock_r(x); x is (N, C, T) NCT, as for PyTorch Conv1d."""
    N, C, T = x_nct.shape
    assert T % 128 == 0, "pad T to a multiple of 128 to keep the lane axis dense"
    for k in k_r:
        assert k % 2 == 1, "even kernel size needs asymmetric 'same' padding"
    Nb = N if block_n is None else int(block_n)
    assert N % Nb == 0

    packed_w, packed_b = _pack_params(convs, k_r, D_r, C)

    in_specs = [pl.BlockSpec((Nb, C, T), lambda n: (n, 0, 0))]
    for w in packed_w:                                   # constant index maps:
        in_specs.append(pl.BlockSpec(w.shape, lambda n: (0, 0, 0)))
    in_specs.append(pl.BlockSpec(packed_b.shape, lambda n: (0, 0, 0)))

    kern = functools.partial(
        _mrf_kernel, C=C, T=T, Nb=Nb,
        k_r=tuple(int(k) for k in k_r),
        D_r=tuple(tuple(tuple(int(d) for d in row) for row in D) for D in D_r),
    )
    return pl.pallas_call(
        kern,
        out_shape=jax.ShapeDtypeStruct((N, C, T), x_nct.dtype),
        grid=(N // Nb,),
        in_specs=in_specs,
        out_specs=pl.BlockSpec((Nb, C, T), lambda n: (n, 0, 0)),
        scratch_shapes=[pltpu.VMEM((max(k_r) * C, Nb * T), jnp.bfloat16)],
        compiler_params=pltpu.CompilerParams(
            dimension_semantics=("parallel",)),
    )(x_nct, *packed_w, packed_b)


# ----------------------------------------------------------------------------
# Pure-JAX reference with matching numerics (bf16 matmul operands, f32 accum).
# ----------------------------------------------------------------------------
def _ref_lrelu_conv(x_nct, w_oik, b, d):
    a = jnp.where(x_nct > 0, x_nct, 0.1 * x_nct)
    k = w_oik.shape[-1]
    pad = d * (k - 1) // 2
    y = lax.conv_general_dilated(
        a.astype(jnp.bfloat16), w_oik.astype(jnp.bfloat16),
        window_strides=(1,), padding=[(pad, pad)],
        rhs_dilation=(d,), dimension_numbers=("NCW", "OIW", "NCW"),
        preferred_element_type=jnp.float32)
    return y + b[None, :, None]


def mrf_forward_ref(x_nct, convs, k_r, D_r):
    out = jnp.zeros_like(x_nct)
    ci = 0
    for r, (k, D) in enumerate(zip(k_r, D_r)):
        xb = x_nct
        for dil_row in D:
            h = xb
            for d in dil_row:
                c = convs[ci]; ci += 1
                assert c["r"] == r and c["k"] == k and c["d"] == d
                h = _ref_lrelu_conv(h, c["w_oik"], c["b"], d)
            xb = xb + h
        out = out + xb
    return out / len(k_r)


if __name__ == "__main__":
    # Small MRF config: 2 res-blocks (k=3 and k=5), each with 2 outer cycles of
    # 2 dilated convs; N=4 batch rows, 2 rows fused per grid step; T=256 keeps
    # the lane (time) axis fully dense.
    channels = 32
    k_r = [3, 5]
    D_r = [[[1, 2], [3, 1]], [[1, 1], [2, 1]]]
    N, T = 4, 256

    key = jax.random.PRNGKey(0)
    key, kx = jax.random.split(key)
    x_nct = jax.random.normal(kx, (N, channels, T), dtype=jnp.float32)
    convs = init_mrf_params(key, channels, k_r, D_r)

    out = jax.block_until_ready(mrf_forward(x_nct, convs, k_r, D_r, block_n=2))
    ref = jax.block_until_ready(mrf_forward_ref(x_nct, convs, k_r, D_r))

    assert out.shape == x_nct.shape and out.dtype == x_nct.dtype
    max_err = float(jnp.max(jnp.abs(out - ref)))
    # Kernel and reference both use bf16 matmul operands with f32 accumulation;
    # residual differences come only from accumulation order and occasional
    # bf16 rounding-boundary flips on intermediate activations (<~5e-3).
    # Genuine layout/shift bugs show up as O(0.1..1) errors.
    assert max_err < 5e-3, f"mismatch vs reference: {max_err}"

    print("KERNEL_OK")
</pallas_src>

<mosaic_0001>
module attributes {stable_mosaic.version = 11 : i64} {
  func.func @_mrf_kernel(%arg0: i32, %arg1: memref<2x32x256xf32, #tpu.memory_space<vmem>>, %arg2: memref<4x32x96xbf16, #tpu.memory_space<vmem>>, %arg3: memref<4x32x160xbf16, #tpu.memory_space<vmem>>, %arg4: memref<8x32x1xf32, #tpu.memory_space<vmem>>, %arg5: memref<2x32x256xf32, #tpu.memory_space<vmem>>, %arg6: memref<160x512xbf16, #tpu.memory_space<vmem>>) attributes {dimension_semantics = [#tpu.dimension_semantics<parallel>], iteration_bounds = array<i64: 2>, scalar_prefetch = 0 : i64, scratch_operands = 1 : i64, tpu.core_type = #tpu.core_type<tc>, window_params = [{transform_indices = @transform_0, window_bounds = array<i64: 2, 32, 256>}, {pipeline_mode = #tpu.pipeline_mode<synchronous>, transform_indices = @transform_1, window_bounds = array<i64: 4, 32, 96>}, {pipeline_mode = #tpu.pipeline_mode<synchronous>, transform_indices = @transform_2, window_bounds = array<i64: 4, 32, 160>}, {pipeline_mode = #tpu.pipeline_mode<synchronous>, transform_indices = @transform_3, window_bounds = array<i64: 8, 32, 1>}, {transform_indices = @transform_4, window_bounds = array<i64: 2, 32, 256>}]} {
    %c0 = arith.constant 0 : index
    %c0_0 = arith.constant 0 : index
    %c0_1 = arith.constant 0 : index
    %0 = vector.load %arg1[%c0, %c0_0, %c0_1] : memref<2x32x256xf32, #tpu.memory_space<vmem>>, vector<1x32x256xf32>
    %1 = vector.shape_cast %0 : vector<1x32x256xf32> to vector<32x256xf32>
    %c1 = arith.constant 1 : index
    %c0_2 = arith.constant 0 : index
    %c0_3 = arith.constant 0 : index
    %2 = vector.load %arg1[%c1, %c0_2, %c0_3] : memref<2x32x256xf32, #tpu.memory_space<vmem>>, vector<1x32x256xf32>
    %3 = vector.shape_cast %2 : vector<1x32x256xf32> to vector<32x256xf32>
    %4 = tpu.concatenate %1, %3 in 1 : vector<32x256xf32>, vector<32x256xf32> -> vector<32x512xf32>
    %5 = tpu.iota {dimensions = array<i32: 1>} : vector<1x512xi32>
    %c256_i32 = arith.constant 256 : i32
    %c0_i32 = arith.constant 0 : i32
    %6 = arith.cmpi eq, %c256_i32, %c0_i32 : i32
    %c1_i32 = arith.constant 1 : i32
    %7 = arith.select %6, %c1_i32, %c256_i32 : i32
    %8 = vector.broadcast %7 : i32 to vector<1x512xi32>
    %9 = arith.remsi %5, %8 : vector<1x512xi32>
    %c0_i32_4 = arith.constant 0 : i32
    %10 = vector.broadcast %c0_i32_4 : i32 to vector<1x512xi32>
    %11 = arith.cmpi ne, %9, %10 : vector<1x512xi32>
    %c0_i32_5 = arith.constant 0 : i32
    %12 = vector.broadcast %c0_i32_5 : i32 to vector<1x512xi32>
    %13 = arith.cmpi slt, %9, %12 : vector<1x512xi32>
    %c0_i32_6 = arith.constant 0 : i32
    %14 = arith.cmpi slt, %7, %c0_i32_6 : i32
    %15 = vector.broadcast %14 : i1 to vector<1x512xi1>
    %16 = vector.broadcast %15 : vector<1x512xi1> to vector<1x512xi1>
    %17 = arith.xori %13, %16 : vector<1x512xi1>
    %18 = arith.andi %17, %11 : vector<1x512xi1>
    %19 = vector.broadcast %7 : i32 to vector<1x512xi32>
    %20 = arith.addi %9, %19 : vector<1x512xi32>
    %21 = arith.select %18, %20, %9 : vector<1x512xi1>, vector<1x512xi32>
    %c0_7 = arith.constant 0 : index
    %c0_8 = arith.constant 0 : index
    %c0_9 = arith.constant 0 : index
    %22 = vector.load %arg2[%c0_7, %c0_8, %c0_9] : memref<4x32x96xbf16, #tpu.memory_space<vmem>>, vector<1x32x96xbf16>
    %23 = vector.shape_cast %22 : vector<1x32x96xbf16> to vector<32x96xbf16>
    %c0_10 = arith.constant 0 : index
    %c0_11 = arith.constant 0 : index
    %c0_12 = arith.constant 0 : index
    %24 = vector.load %arg4[%c0_10, %c0_11, %c0_12] : memref<8x32x1xf32, #tpu.memory_space<vmem>>, vector<1x32x1xf32>
    %25 = vector.shape_cast %24 : vector<1x32x1xf32> to vector<32x1xf32>
    %cst = arith.constant 0.000000e+00 : f32
    %26 = vector.broadcast %cst : f32 to vector<32x512xf32>
    %27 = arith.cmpf ogt, %4, %26 : vector<32x512xf32>
    %cst_13 = arith.constant 1.000000e-01 : f32
    %28 = vector.broadcast %cst_13 : f32 to vector<32x512xf32>
    %29 = arith.mulf %28, %4 : vector<32x512xf32>
    %30 = arith.select %27, %4, %29 : vector<32x512xi1>, vector<32x512xf32>
    %c1_i32_14 = arith.constant 1 : i32
    %31 = tpu.dynamic_rotate %30 by %c1_i32_14 dim 1 : vector<32x512xf32>, i32 -> vector<32x512xf32>
    %c1_i32_15 = arith.constant 1 : i32
    %32 = vector.broadcast %c1_i32_15 : i32 to vector<1x512xi32>
    %33 = arith.cmpi sge, %21, %32 : vector<1x512xi32>
    %c256_i32_16 = arith.constant 256 : i32
    %34 = vector.broadcast %c256_i32_16 : i32 to vector<1x512xi32>
    %35 = arith.cmpi slt, %21, %34 : vector<1x512xi32>
    %36 = arith.andi %33, %35 : vector<1x512xi1>
    %cst_17 = arith.constant 0.000000e+00 : f32
    %37 = vector.shape_cast %36 : vector<1x512xi1> to vector<1x512xi1>
    %38 = vector.broadcast %37 : vector<1x512xi1> to vector<32x512xi1>
    %39 = vector.broadcast %cst_17 : f32 to vector<32x512xf32>
    %40 = arith.select %38, %31, %39 : vector<32x512xi1>, vector<32x512xf32>
    %41 = arith.truncf %40 : vector<32x512xf32> to vector<32x512xbf16>
    %c0_18 = arith.constant 0 : index
    %c0_19 = arith.constant 0 : index
    %42 = vector.load %arg6[%c0_18, %c0_19] : memref<160x512xbf16, #tpu.memory_space<vmem>>, vector<32x512xbf16>
    tpu.vector_store %arg6[%c0_18, %c0_19], %41 {strides = array<i32>} : memref<160x512xbf16, #tpu.memory_space<vmem>>, vector<32x512xbf16>,
    %43 = arith.truncf %30 : vector<32x512xf32> to vector<32x512xbf16>
    %c32 = arith.constant 32 : index
    %c0_20 = arith.constant 0 : index
    %44 = vector.load %arg6[%c32, %c0_20] : memref<160x512xbf16, #tpu.memory_space<vmem>>, vector<32x512xbf16>
    tpu.vector_store %arg6[%c32, %c0_20], %43 {strides = array<i32>} : memref<160x512xbf16, #tpu.memory_space<vmem>>, vector<32x512xbf16>,
    %c511_i32 = arith.constant 511 : i32
    %45 = tpu.dynamic_rotate %30 by %c511_i32 dim 1 : vector<32x512xf32>, i32 -> vector<32x512xf32>
    %c0_i32_21 = arith.constant 0 : i32
    %46 = vector.broadcast %c0_i32_21 : i32 to vector<1x512xi32>
    %47 = arith.cmpi sge, %21, %46 : vector<1x512xi32>
    %c255_i32 = arith.constant 255 : i32
    %48 = vector.broadcast %c255_i32 : i32 to vector<1x512xi32>
    %49 = arith.cmpi slt, %21, %48 : vector<1x512xi32>
    %50 = arith.andi %47, %49 : vector<1x512xi1>
    %cst_22 = arith.constant 0.000000e+00 : f32
    %51 = vector.shape_cast %50 : vector<1x512xi1> to vector<1x512xi1>
    %52 = vector.broadcast %51 : vector<1x512xi1> to vector<32x512xi1>
    %53 = vector.broadcast %cst_22 : f32 to vector<32x512xf32>
    %54 = arith.select %52, %45, %53 : vector<32x512xi1>, vector<32x512xf32>
    %55 = arith.truncf %54 : vector<32x512xf32> to vector<32x512xbf16>
    %c64 = arith.constant 64 : index
    %c0_23 = arith.constant 0 : index
    %56 = vector.load %arg6[%c64, %c0_23] : memref<160x512xbf16, #tpu.memory_space<vmem>>, vector<32x512xbf16>
    tpu.vector_store %arg6[%c64, %c0_23], %55 {strides = array<i32>} : memref<160x512xbf16, #tpu.memory_space<vmem>>, vector<32x512xbf16>,
    %c0_24 = arith.constant 0 : index
    %c0_25 = arith.constant 0 : index
    %57 = vector.load %arg6[%c0_24, %c0_25] : memref<160x512xbf16, #tpu.memory_space<vmem>>, vector<96x512xbf16>
    %cst_26 = arith.constant dense<0.000000e+00> : vector<32x512xf32>
    %58 = tpu.matmul %23, %57, %cst_26 {dimension_numbers = #tpu.dot_dimension_numbers<[1], [0], [0], [1], [0, 0, 1, 1], [], []>} : vector<32x96xbf16>, vector<96x512xbf16>, vector<32x512xf32> -> vector<32x512xf32>
    %59 = vector.broadcast %25 : vector<32x1xf32> to vector<32x512xf32>
    %60 = arith.addf %58, %59 : vector<32x512xf32>
    %c1_27 = arith.constant 1 : index
    %c0_28 = arith.constant 0 : index
    %c0_29 = arith.constant 0 : index
    %61 = vector.load %arg2[%c1_27, %c0_28, %c0_29] : memref<4x32x96xbf16, #tpu.memory_space<vmem>>, vector<1x32x96xbf16>
    %62 = vector.shape_cast %61 : vector<1x32x96xbf16> to vector<32x96xbf16>
    %c1_30 = arith.constant 1 : index
    %c0_31 = arith.constant 0 : index
    %c0_32 = arith.constant 0 : index
    %63 = vector.load %arg4[%c1_30, %c0_31, %c0_32] : memref<8x32x1xf32, #tpu.memory_space<vmem>>, vector<1x32x1xf32>
    %64 = vector.shape_cast %63 : vector<1x32x1xf32> to vector<32x1xf32>
    %cst_33 = arith.constant 0.000000e+00 : f32
    %65 = vector.broadcast %cst_33 : f32 to vector<32x512xf32>
    %66 = arith.cmpf ogt, %60, %65 : vector<32x512xf32>
    %cst_34 = arith.constant 1.000000e-01 : f32
    %67 = vector.broadcast %cst_34 : f32 to vector<32x512xf32>
    %68 = arith.mulf %67, %60 : vector<32x512xf32>
    %69 = arith.select %66, %60, %68 : vector<32x512xi1>, vector<32x512xf32>
    %c2_i32 = arith.constant 2 : i32
    %70 = tpu.dynamic_rotate %69 by %c2_i32 dim 1 : vector<32x512xf32>, i32 -> vector<32x512xf32>
    %c2_i32_35 = arith.constant 2 : i32
    %71 = vector.broadcast %c2_i32_35 : i32 to vector<1x512xi32>
    %72 = arith.cmpi sge, %21, %71 : vector<1x512xi32>
    %c256_i32_36 = arith.constant 256 : i32
    %73 = vector.broadcast %c256_i32_36 : i32 to vector<1x512xi32>
    %74 = arith.cmpi slt, %21, %73 : vector<1x512xi32>
    %75 = arith.andi %72, %74 : vector<1x512xi1>
    %cst_37 = arith.constant 0.000000e+00 : f32
    %76 = vector.shape_cast %75 : vector<1x512xi1> to vector<1x512xi1>
    %77 = vector.broadcast %76 : vector<1x512xi1> to vector<32x512xi1>
    %78 = vector.broadcast %cst_37 : f32 to vector<32x512xf32>
    %79 = arith.select %77, %70, %78 : vector<32x512xi1>, vector<32x512xf32>
    %80 = arith.truncf %79 : vector<32x512xf32> to vector<32x512xbf16>
    %c0_38 = arith.constant 0 : index
    %c0_39 = arith.constant 0 : index
    %81 = vector.load %arg6[%c0_38, %c0_39] : memref<160x512xbf16, #tpu.memory_space<vmem>>, vector<32x512xbf16>
    tpu.vector_store %arg6[%c0_38, %c0_39], %80 {strides = array<i32>} : memref<160x512xbf16, #tpu.memory_space<vmem>>, vector<32x512xbf16>,
    %82 = arith.truncf %69 : vector<32x512xf32> to vector<32x512xbf16>
    %c32_40 = arith.constant 32 : index
    %c0_41 = arith.constant 0 : index
    %83 = vector.load %arg6[%c32_40, %c0_41] : memref<160x512xbf16, #tpu.memory_space<vmem>>, vector<32x512xbf16>
    tpu.vector_store %arg6[%c32_40, %c0_41], %82 {strides = array<i32>} : memref<160x512xbf16, #tpu.memory_space<vmem>>, vector<32x512xbf16>,
    %c510_i32 = arith.constant 510 : i32
    %84 = tpu.dynamic_rotate %69 by %c510_i32 dim 1 : vector<32x512xf32>, i32 -> vector<32x512xf32>
    %c0_i32_42 = arith.constant 0 : i32
    %85 = vector.broadcast %c0_i32_42 : i32 to vector<1x512xi32>
    %86 = arith.cmpi sge, %21, %85 : vector<1x512xi32>
    %c254_i32 = arith.constant 254 : i32
    %87 = vector.broadcast %c254_i32 : i32 to vector<1x512xi32>
    %88 = arith.cmpi slt, %21, %87 : vector<1x512xi32>
    %89 = arith.andi %86, %88 : vector<1x512xi1>
    %cst_43 = arith.constant 0.000000e+00 : f32
    %90 = vector.shape_cast %89 : vector<1x512xi1> to vector<1x512xi1>
    %91 = vector.broadcast %90 : vector<1x512xi1> to vector<32x512xi1>
    %92 = vector.broadcast %cst_43 : f32 to vector<32x512xf32>
    %93 = arith.select %91, %84, %92 : vector<32x512xi1>, vector<32x512xf32>
    %94 = arith.truncf %93 : vector<32x512xf32> to vector<32x512xbf16>
    %c64_44 = arith.constant 64 : index
    %c0_45 = arith.constant 0 : index
    %95 = vector.load %arg6[%c64_44, %c0_45] : memref<160x512xbf16, #tpu.memory_space<vmem>>, vector<32x512xbf16>
    tpu.vector_store %arg6[%c64_44, %c0_45], %94 {strides = array<i32>} : memref<160x512xbf16, #tpu.memory_space<vmem>>, vector<32x512xbf16>,
    %c0_46 = arith.constant 0 : index
    %c0_47 = arith.constant 0 : index
    %96 = vector.load %arg6[%c0_46, %c0_47] : memref<160x512xbf16, #tpu.memory_space<vmem>>, vector<96x512xbf16>
    %cst_48 = arith.constant dense<0.000000e+00> : vector<32x512xf32>
    %97 = tpu.matmul %62, %96, %cst_48 {dimension_numbers = #tpu.dot_dimension_numbers<[1], [0], [0], [1], [0, 0, 1, 1], [], []>} : vector<32x96xbf16>, vector<96x512xbf16>, vector<32x512xf32> -> vector<32x512xf32>
    %98 = vector.broadcast %64 : vector<32x1xf32> to vector<32x512xf32>
    %99 = arith.addf %97, %98 : vector<32x512xf32>
    %100 = arith.addf %4, %99 : vector<32x512xf32>
    %c2 = arith.constant 2 : index
    %c0_49 = arith.constant 0 : index
    %c0_50 = arith.constant 0 : index
    %101 = vector.load %arg2[%c2, %c0_49, %c0_50] : memref<4x32x96xbf16, #tpu.memory_space<vmem>>, vector<1x32x96xbf16>
    %102 = vector.shape_cast %101 : vector<1x32x96xbf16> to vector<32x96xbf16>
    %c2_51 = arith.constant 2 : index
    %c0_52 = arith.constant 0 : index
    %c0_53 = arith.constant 0 : index
    %103 = vector.load %arg4[%c2_51, %c0_52, %c0_53] : memref<8x32x1xf32, #tpu.memory_space<vmem>>, vector<1x32x1xf32>
    %104 = vector.shape_cast %103 : vector<1x32x1xf32> to vector<32x1xf32>
    %cst_54 = arith.constant 0.000000e+00 : f32
    %105 = vector.broadcast %cst_54 : f32 to vector<32x512xf32>
    %106 = arith.cmpf ogt, %100, %105 : vector<32x512xf32>
    %cst_55 = arith.constant 1.000000e-01 : f32
    %107 = vector.broadcast %cst_55 : f32 to vector<32x512xf32>
    %108 = arith.mulf %107, %100 : vector<32x512xf32>
    %109 = arith.select %106, %100, %108 : vector<32x512xi1>, vector<32x512xf32>
    %c3_i32 = arith.constant 3 : i32
    %110 = tpu.dynamic_rotate %109 by %c3_i32 dim 1 : vector<32x512xf32>, i32 -> vector<32x512xf32>
    %c3_i32_56 = arith.constant 3 : i32
    %111 = vector.broadcast %c3_i32_56 : i32 to vector<1x512xi32>
    %112 = arith.cmpi sge, %21, %111 : vector<1x512xi32>
    %c256_i32_57 = arith.constant 256 : i32
    %113 = vector.broadcast %c256_i32_57 : i32 to vector<1x512xi32>
    %114 = arith.cmpi slt, %21, %113 : vector<1x512xi32>
    %115 = arith.andi %112, %114 : vector<1x512xi1>
    %cst_58 = arith.constant 0.000000e+00 : f32
    %116 = vector.shape_cast %115 : vector<1x512xi1> to vector<1x512xi1>
    %117 = vector.broadcast %116 : vector<1x512xi1> to vector<32x512xi1>
    %118 = vector.broadcast %cst_58 : f32 to vector<32x512xf32>
    %119 = arith.select %117, %110, %118 : vector<32x512xi1>, vector<32x512xf32>
    %120 = arith.truncf %119 : vector<32x512xf32> to vector<32x512xbf16>
    %c0_59 = arith.constant 0 : index
    %c0_60 = arith.constant 0 : index
    %121 = vector.load %arg6[%c0_59, %c0_60] : memref<160x512xbf16, #tpu.memory_space<vmem>>, vector<32x512xbf16>
    tpu.vector_store %arg6[%c0_59, %c0_60], %120 {strides = array<i32>} : memref<160x512xbf16, #tpu.memory_space<vmem>>, vector<32x512xbf16>,
    %122 = arith.truncf %109 : vector<32x512xf32> to vector<32x512xbf16>
    %c32_61 = arith.constant 32 : index
    %c0_62 = arith.constant 0 : index
    %123 = vector.load %arg6[%c32_61, %c0_62] : memref<160x512xbf16, #tpu.memory_space<vmem>>, vector<32x512xbf16>
    tpu.vector_store %arg6[%c32_61, %c0_62], %122 {strides = array<i32>} : memref<160x512xbf16, #tpu.memory_space<vmem>>, vector<32x512xbf16>,
    %c509_i32 = arith.constant 509 : i32
    %124 = tpu.dynamic_rotate %109 by %c509_i32 dim 1 : vector<32x512xf32>, i32 -> vector<32x512xf32>
    %c0_i32_63 = arith.constant 0 : i32
    %125 = vector.broadcast %c0_i32_63 : i32 to vector<1x512xi32>
    %126 = arith.cmpi sge, %21, %125 : vector<1x512xi32>
    %c253_i32 = arith.constant 253 : i32
    %127 = vector.broadcast %c253_i32 : i32 to vector<1x512xi32>
    %128 = arith.cmpi slt, %21, %127 : vector<1x512xi32>
    %129 = arith.andi %126, %128 : vector<1x512xi1>
    %cst_64 = arith.constant 0.000000e+00 : f32
    %130 = vector.shape_cast %129 : vector<1x512xi1> to vector<1x512xi1>
    %131 = vector.broadcast %130 : vector<1x512xi1> to vector<32x512xi1>
    %132 = vector.broadcast %cst_64 : f32 to vector<32x512xf32>
    %133 = arith.select %131, %124, %132 : vector<32x512xi1>, vector<32x512xf32>
    %134 = arith.truncf %133 : vector<32x512xf32> to vector<32x512xbf16>
    %c64_65 = arith.constant 64 : index
    %c0_66 = arith.constant 0 : index
    %135 = vector.load %arg6[%c64_65, %c0_66] : memref<160x512xbf16, #tpu.memory_space<vmem>>, vector<32x512xbf16>
    tpu.vector_store %arg6[%c64_65, %c0_66], %134 {strides = array<i32>} : memref<160x512xbf16, #tpu.memory_space<vmem>>, vector<32x512xbf16>,
    %c0_67 = arith.constant 0 : index
    %c0_68 = arith.constant 0 : index
    %136 = vector.load %arg6[%c0_67, %c0_68] : memref<160x512xbf16, #tpu.memory_space<vmem>>, vector<96x512xbf16>
    %cst_69 = arith.constant dense<0.000000e+00> : vector<32x512xf32>
    %137 = tpu.matmul %102, %136, %cst_69 {dimension_numbers = #tpu.dot_dimension_numbers<[1], [0], [0], [1], [0, 0, 1, 1], [], []>} : vector<32x96xbf16>, vector<96x512xbf16>, vector<32x512xf32> -> vector<32x512xf32>
    %138 = vector.broadcast %104 : vector<32x1xf32> to vector<32x512xf32>
    %139 = arith.addf %137, %138 : vector<32x512xf32>
    %c3 = arith.constant 3 : index
    %c0_70 = arith.constant 0 : index
    %c0_71 = arith.constant 0 : index
    %140 = vector.load %arg2[%c3, %c0_70, %c0_71] : memref<4x32x96xbf16, #tpu.memory_space<vmem>>, vector<1x32x96xbf16>
    %141 = vector.shape_cast %140 : vector<1x32x96xbf16> to vector<32x96xbf16>
    %c3_72 = arith.constant 3 : index
    %c0_73 = arith.constant 0 : index
    %c0_74 = arith.constant 0 : index
    %142 = vector.load %arg4[%c3_72, %c0_73, %c0_74] : memref<8x32x1xf32, #tpu.memory_space<vmem>>, vector<1x32x1xf32>
    %143 = vector.shape_cast %142 : vector<1x32x1xf32> to vector<32x1xf32>
    %cst_75 = arith.constant 0.000000e+00 : f32
    %144 = vector.broadcast %cst_75 : f32 to vector<32x512xf32>
    %145 = arith.cmpf ogt, %139, %144 : vector<32x512xf32>
    %cst_76 = arith.constant 1.000000e-01 : f32
    %146 = vector.broadcast %cst_76 : f32 to vector<32x512xf32>
    %147 = arith.mulf %146, %139 : vector<32x512xf32>
    %148 = arith.select %145, %139, %147 : vector<32x512xi1>, vector<32x512xf32>
    %c1_i32_77 = arith.constant 1 : i32
    %149 = tpu.dynamic_rotate %148 by %c1_i32_77 dim 1 : vector<32x512xf32>, i32 -> vector<32x512xf32>
    %c1_i32_78 = arith.constant 1 : i32
    %150 = vector.broadcast %c1_i32_78 : i32 to vector<1x512xi32>
    %151 = arith.cmpi sge, %21, %150 : vector<1x512xi32>
    %c256_i32_79 = arith.constant 256 : i32
    %152 = vector.broadcast %c256_i32_79 : i32 to vector<1x512xi32>
    %153 = arith.cmpi slt, %21, %152 : vector<1x512xi32>
    %154 = arith.andi %151, %153 : vector<1x512xi1>
    %cst_80 = arith.constant 0.000000e+00 : f32
    %155 = vector.shape_cast %154 : vector<1x512xi1> to vector<1x512xi1>
    %156 = vector.broadcast %155 : vector<1x512xi1> to vector<32x512xi1>
    %157 = vector.broadcast %cst_80 : f32 to vector<32x512xf32>
    %158 = arith.select %156, %149, %157 : vector<32x512xi1>, vector<32x512xf32>
    %159 = arith.truncf %158 : vector<32x512xf32> to vector<32x512xbf16>
    %c0_81 = arith.constant 0 : index
    %c0_82 = arith.constant 0 : index
    %160 = vector.load %arg6[%c0_81, %c0_82] : memref<160x512xbf16, #tpu.memory_space<vmem>>, vector<32x512xbf16>
    tpu.vector_store %arg6[%c0_81, %c0_82], %159 {strides = array<i32>} : memref<160x512xbf16, #tpu.memory_space<vmem>>, vector<32x512xbf16>,
    %161 = arith.truncf %148 : vector<32x512xf32> to vector<32x512xbf16>
    %c32_83 = arith.constant 32 : index
    %c0_84 = arith.constant 0 : index
    %162 = vector.load %arg6[%c32_83, %c0_84] : memref<160x512xbf16, #tpu.memory_space<vmem>>, vector<32x512xbf16>
    tpu.vector_store %arg6[%c32_83, %c0_84], %161 {strides = array<i32>} : memref<160x512xbf16, #tpu.memory_space<vmem>>, vector<32x512xbf16>,
    %c511_i32_85 = arith.constant 511 : i32
    %163 = tpu.dynamic_rotate %148 by %c511_i32_85 dim 1 : vector<32x512xf32>, i32 -> vector<32x512xf32>
    %c0_i32_86 = arith.constant 0 : i32
    %164 = vector.broadcast %c0_i32_86 : i32 to vector<1x512xi32>
    %165 = arith.cmpi sge, %21, %164 : vector<1x512xi32>
    %c255_i32_87 = arith.constant 255 : i32
    %166 = vector.broadcast %c255_i32_87 : i32 to vector<1x512xi32>
    %167 = arith.cmpi slt, %21, %166 : vector<1x512xi32>
    %168 = arith.andi %165, %167 : vector<1x512xi1>
    %cst_88 = arith.constant 0.000000e+00 : f32
    %169 = vector.shape_cast %168 : vector<1x512xi1> to vector<1x512xi1>
    %170 = vector.broadcast %169 : vector<1x512xi1> to vector<32x512xi1>
    %171 = vector.broadcast %cst_88 : f32 to vector<32x512xf32>
    %172 = arith.select %170, %163, %171 : vector<32x512xi1>, vector<32x512xf32>
    %173 = arith.truncf %172 : vector<32x512xf32> to vector<32x512xbf16>
    %c64_89 = arith.constant 64 : index
    %c0_90 = arith.constant 0 : index
    %174 = vector.load %arg6[%c64_89, %c0_90] : memref<160x512xbf16, #tpu.memory_space<vmem>>, vector<32x512xbf16>
    tpu.vector_store %arg6[%c64_89, %c0_90], %173 {strides = array<i32>} : memref<160x512xbf16, #tpu.memory_space<vmem>>, vector<32x512xbf16>,
    %c0_91 = arith.constant 0 : index
    %c0_92 = arith.constant 0 : index
    %175 = vector.load %arg6[%c0_91, %c0_92] : memref<160x512xbf16, #tpu.memory_space<vmem>>, vector<96x512xbf16>
    %cst_93 = arith.constant dense<0.000000e+00> : vector<32x512xf32>
    %176 = tpu.matmul %141, %175, %cst_93 {dimension_numbers = #tpu.dot_dimension_numbers<[1], [0], [0], [1], [0, 0, 1, 1], [], []>} : vector<32x96xbf16>, vector<96x512xbf16>, vector<32x512xf32> -> vector<32x512xf32>
    %177 = vector.broadcast %143 : vector<32x1xf32> to vector<32x512xf32>
    %178 = arith.addf %176, %177 : vector<32x512xf32>
    %179 = arith.addf %100, %178 : vector<32x512xf32>
    %c0_94 = arith.constant 0 : index
    %c0_95 = arith.constant 0 : index
    %c0_96 = arith.constant 0 : index
    %180 = vector.load %arg3[%c0_94, %c0_95, %c0_96] : memref<4x32x160xbf16, #tpu.memory_space<vmem>>, vector<1x32x160xbf16>
    %181 = vector.shape_cast %180 : vector<1x32x160xbf16> to vector<32x160xbf16>
    %c4 = arith.constant 4 : index
    %c0_97 = arith.constant 0 : index
    %c0_98 = arith.constant 0 : index
    %182 = vector.load %arg4[%c4, %c0_97, %c0_98] : memref<8x32x1xf32, #tpu.memory_space<vmem>>, vector<1x32x1xf32>
    %183 = vector.shape_cast %182 : vector<1x32x1xf32> to vector<32x1xf32>
    %cst_99 = arith.constant 0.000000e+00 : f32
    %184 = vector.broadcast %cst_99 : f32 to vector<32x512xf32>
    %185 = arith.cmpf ogt, %4, %184 : vector<32x512xf32>
    %cst_100 = arith.constant 1.000000e-01 : f32
    %186 = vector.broadcast %cst_100 : f32 to vector<32x512xf32>
    %187 = arith.mulf %186, %4 : vector<32x512xf32>
    %188 = arith.select %185, %4, %187 : vector<32x512xi1>, vector<32x512xf32>
    %c2_i32_101 = arith.constant 2 : i32
    %189 = tpu.dynamic_rotate %188 by %c2_i32_101 dim 1 : vector<32x512xf32>, i32 -> vector<32x512xf32>
    %c2_i32_102 = arith.constant 2 : i32
    %190 = vector.broadcast %c2_i32_102 : i32 to vector<1x512xi32>
    %191 = arith.cmpi sge, %21, %190 : vector<1x512xi32>
    %c256_i32_103 = arith.constant 256 : i32
    %192 = vector.broadcast %c256_i32_103 : i32 to vector<1x512xi32>
    %193 = arith.cmpi slt, %21, %192 : vector<1x512xi32>
    %194 = arith.andi %191, %193 : vector<1x512xi1>
    %cst_104 = arith.constant 0.000000e+00 : f32
    %195 = vector.shape_cast %194 : vector<1x512xi1> to vector<1x512xi1>
    %196 = vector.broadcast %195 : vector<1x512xi1> to vector<32x512xi1>
    %197 = vector.broadcast %cst_104 : f32 to vector<32x512xf32>
    %198 = arith.select %196, %189, %197 : vector<32x512xi1>, vector<32x512xf32>
    %199 = arith.truncf %198 : vector<32x512xf32> to vector<32x512xbf16>
    %c0_105 = arith.constant 0 : index
    %c0_106 = arith.constant 0 : index
    %200 = vector.load %arg6[%c0_105, %c0_106] : memref<160x512xbf16, #tpu.memory_space<vmem>>, vector<32x512xbf16>
    tpu.vector_store %arg6[%c0_105, %c0_106], %199 {strides = array<i32>} : memref<160x512xbf16, #tpu.memory_space<vmem>>, vector<32x512xbf16>,
    %c1_i32_107 = arith.constant 1 : i32
    %201 = tpu.dynamic_rotate %188 by %c1_i32_107 dim 1 : vector<32x512xf32>, i32 -> vector<32x512xf32>
    %c1_i32_108 = arith.constant 1 : i32
    %202 = vector.broadcast %c1_i32_108 : i32 to vector<1x512xi32>
    %203 = arith.cmpi sge, %21, %202 : vector<1x512xi32>
    %c256_i32_109 = arith.constant 256 : i32
    %204 = vector.broadcast %c256_i32_109 : i32 to vector<1x512xi32>
    %205 = arith.cmpi slt, %21, %204 : vector<1x512xi32>
    %206 = arith.andi %203, %205 : vector<1x512xi1>
    %cst_110 = arith.constant 0.000000e+00 : f32
    %207 = vector.shape_cast %206 : vector<1x512xi1> to vector<1x512xi1>
    %208 = vector.broadcast %207 : vector<1x512xi1> to vector<32x512xi1>
    %209 = vector.broadcast %cst_110 : f32 to vector<32x512xf32>
    %210 = arith.select %208, %201, %209 : vector<32x512xi1>, vector<32x512xf32>
    %211 = arith.truncf %210 : vector<32x512xf32> to vector<32x512xbf16>
    %c32_111 = arith.constant 32 : index
    %c0_112 = arith.constant 0 : index
    %212 = vector.load %arg6[%c32_111, %c0_112] : memref<160x512xbf16, #tpu.memory_space<vmem>>, vector<32x512xbf16>
    tpu.vector_store %arg6[%c32_111, %c0_112], %211 {strides = array<i32>} : memref<160x512xbf16, #tpu.memory_space<vmem>>, vector<32x512xbf16>,
    %213 = arith.truncf %188 : vector<32x512xf32> to vector<32x512xbf16>
    %c64_113 = arith.constant 64 : index
    %c0_114 = arith.constant 0 : index
    %214 = vector.load %arg6[%c64_113, %c0_114] : memref<160x512xbf16, #tpu.memory_space<vmem>>, vector<32x512xbf16>
    tpu.vector_store %arg6[%c64_113, %c0_114], %213 {strides = array<i32>} : memref<160x512xbf16, #tpu.memory_space<vmem>>, vector<32x512xbf16>,
    %c511_i32_115 = arith.constant 511 : i32
    %215 = tpu.dynamic_rotate %188 by %c511_i32_115 dim 1 : vector<32x512xf32>, i32 -> vector<32x512xf32>
    %c0_i32_116 = arith.constant 0 : i32
    %216 = vector.broadcast %c0_i32_116 : i32 to vector<1x512xi32>
    %217 = arith.cmpi sge, %21, %216 : vector<1x512xi32>
    %c255_i32_117 = arith.constant 255 : i32
    %218 = vector.broadcast %c255_i32_117 : i32 to vector<1x512xi32>
    %219 = arith.cmpi slt, %21, %218 : vector<1x512xi32>
    %220 = arith.andi %217, %219 : vector<1x512xi1>
    %cst_118 = arith.constant 0.000000e+00 : f32
    %221 = vector.shape_cast %220 : vector<1x512xi1> to vector<1x512xi1>
    %222 = vector.broadcast %221 : vector<1x512xi1> to vector<32x512xi1>
    %223 = vector.broadcast %cst_118 : f32 to vector<32x512xf32>
    %224 = arith.select %222, %215, %223 : vector<32x512xi1>, vector<32x512xf32>
    %225 = arith.truncf %224 : vector<32x512xf32> to vector<32x512xbf16>
    %c96 = arith.constant 96 : index
    %c0_119 = arith.constant 0 : index
    %226 = vector.load %arg6[%c96, %c0_119] : memref<160x512xbf16, #tpu.memory_space<vmem>>, vector<32x512xbf16>
    tpu.vector_store %arg6[%c96, %c0_119], %225 {strides = array<i32>} : memref<160x512xbf16, #tpu.memory_space<vmem>>, vector<32x512xbf16>,
    %c510_i32_120 = arith.constant 510 : i32
    %227 = tpu.dynamic_rotate %188 by %c510_i32_120 dim 1 : vector<32x512xf32>, i32 -> vector<32x512xf32>
    %c0_i32_121 = arith.constant 0 : i32
    %228 = vector.broadcast %c0_i32_121 : i32 to vector<1x512xi32>
    %229 = arith.cmpi sge, %21, %228 : vector<1x512xi32>
    %c254_i32_122 = arith.constant 254 : i32
    %230 = vector.broadcast %c254_i32_122 : i32 to vector<1x512xi32>
    %231 = arith.cmpi slt, %21, %230 : vector<1x512xi32>
    %232 = arith.andi %229, %231 : vector<1x512xi1>
    %cst_123 = arith.constant 0.000000e+00 : f32
    %233 = vector.shape_cast %232 : vector<1x512xi1> to vector<1x512xi1>
    %234 = vector.broadcast %233 : vector<1x512xi1> to vector<32x512xi1>
    %235 = vector.broadcast %cst_123 : f32 to vector<32x512xf32>
    %236 = arith.select %234, %227, %235 : vector<32x512xi1>, vector<32x512xf32>
    %237 = arith.truncf %236 : vector<32x512xf32> to vector<32x512xbf16>
    %c128 = arith.constant 128 : index
    %c0_124 = arith.constant 0 : index
    %238 = vector.load %arg6[%c128, %c0_124] : memref<160x512xbf16, #tpu.memory_space<vmem>>, vector<32x512xbf16>
    tpu.vector_store %arg6[%c128, %c0_124], %237 {strides = array<i32>} : memref<160x512xbf16, #tpu.memory_space<vmem>>, vector<32x512xbf16>,
    %c0_125 = arith.constant 0 : index
    %c0_126 = arith.constant 0 : index
    %239 = vector.load %arg6[%c0_125, %c0_126] : memref<160x512xbf16, #tpu.memory_space<vmem>>, vector<160x512xbf16>
    %cst_127 = arith.constant dense<0.000000e+00> : vector<32x512xf32>
    %240 = tpu.matmul %181, %239, %cst_127 {dimension_numbers = #tpu.dot_dimension_numbers<[1], [0], [0], [1], [0, 0, 1, 1], [], []>} : vector<32x160xbf16>, vector<160x512xbf16>, vector<32x512xf32> -> vector<32x512xf32>
    %241 = vector.broadcast %183 : vector<32x1xf32> to vector<32x512xf32>
    %242 = arith.addf %240, %241 : vector<32x512xf32>
    %c1_128 = arith.constant 1 : index
    %c0_129 = arith.constant 0 : index
    %c0_130 = arith.constant 0 : index
    %243 = vector.load %arg3[%c1_128, %c0_129, %c0_130] : memref<4x32x160xbf16, #tpu.memory_space<vmem>>, vector<1x32x160xbf16>
    %244 = vector.shape_cast %243 : vector<1x32x160xbf16> to vector<32x160xbf16>
    %c5 = arith.constant 5 : index
    %c0_131 = arith.constant 0 : index
    %c0_132 = arith.constant 0 : index
    %245 = vector.load %arg4[%c5, %c0_131, %c0_132] : memref<8x32x1xf32, #tpu.memory_space<vmem>>, vector<1x32x1xf32>
    %246 = vector.shape_cast %245 : vector<1x32x1xf32> to vector<32x1xf32>
    %cst_133 = arith.constant 0.000000e+00 : f32
    %247 = vector.broadcast %cst_133 : f32 to vector<32x512xf32>
    %248 = arith.cmpf ogt, %242, %247 : vector<32x512xf32>
    %cst_134 = arith.constant 1.000000e-01 : f32
    %249 = vector.broadcast %cst_134 : f32 to vector<32x512xf32>
    %250 = arith.mulf %249, %242 : vector<32x512xf32>
    %251 = arith.select %248, %242, %250 : vector<32x512xi1>, vector<32x512xf32>
    %c2_i32_135 = arith.constant 2 : i32
    %252 = tpu.dynamic_rotate %251 by %c2_i32_135 dim 1 : vector<32x512xf32>, i32 -> vector<32x512xf32>
    %c2_i32_136 = arith.constant 2 : i32
    %253 = vector.broadcast %c2_i32_136 : i32 to vector<1x512xi32>
    %254 = arith.cmpi sge, %21, %253 : vector<1x512xi32>
    %c256_i32_137 = arith.constant 256 : i32
    %255 = vector.broadcast %c256_i32_137 : i32 to vector<1x512xi32>
    %256 = arith.cmpi slt, %21, %255 : vector<1x512xi32>
    %257 = arith.andi %254, %256 : vector<1x512xi1>
    %cst_138 = arith.constant 0.000000e+00 : f32
    %258 = vector.shape_cast %257 : vector<1x512xi1> to vector<1x512xi1>
    %259 = vector.broadcast %258 : vector<1x512xi1> to vector<32x512xi1>
    %260 = vector.broadcast %cst_138 : f32 to vector<32x512xf32>
    %261 = arith.select %259, %252, %260 : vector<32x512xi1>, vector<32x512xf32>
    %262 = arith.truncf %261 : vector<32x512xf32> to vector<32x512xbf16>
    %c0_139 = arith.constant 0 : index
    %c0_140 = arith.constant 0 : index
    %263 = vector.load %arg6[%c0_139, %c0_140] : memref<160x512xbf16, #tpu.memory_space<vmem>>, vector<32x512xbf16>
    tpu.vector_store %arg6[%c0_139, %c0_140], %262 {strides = array<i32>} : memref<160x512xbf16, #tpu.memory_space<vmem>>, vector<32x512xbf16>,
    %c1_i32_141 = arith.constant 1 : i32
    %264 = tpu.dynamic_rotate %251 by %c1_i32_141 dim 1 : vector<32x512xf32>, i32 -> vector<32x512xf32>
    %c1_i32_142 = arith.constant 1 : i32
    %265 = vector.broadcast %c1_i32_142 : i32 to vector<1x512xi32>
    %266 = arith.cmpi sge, %21, %265 : vector<1x512xi32>
    %c256_i32_143 = arith.constant 256 : i32
    %267 = vector.broadcast %c256_i32_143 : i32 to vector<1x512xi32>
    %268 = arith.cmpi slt, %21, %267 : vector<1x512xi32>
    %269 = arith.andi %266, %268 : vector<1x512xi1>
    %cst_144 = arith.constant 0.000000e+00 : f32
    %270 = vector.shape_cast %269 : vector<1x512xi1> to vector<1x512xi1>
    %271 = vector.broadcast %270 : vector<1x512xi1> to vector<32x512xi1>
    %272 = vector.broadcast %cst_144 : f32 to vector<32x512xf32>
    %273 = arith.select %271, %264, %272 : vector<32x512xi1>, vector<32x512xf32>
    %274 = arith.truncf %273 : vector<32x512xf32> to vector<32x512xbf16>
    %c32_145 = arith.constant 32 : index
    %c0_146 = arith.constant 0 : index
    %275 = vector.load %arg6[%c32_145, %c0_146] : memref<160x512xbf16, #tpu.memory_space<vmem>>, vector<32x512xbf16>
    tpu.vector_store %arg6[%c32_145, %c0_146], %274 {strides = array<i32>} : memref<160x512xbf16, #tpu.memory_space<vmem>>, vector<32x512xbf16>,
    %276 = arith.truncf %251 : vector<32x512xf32> to vector<32x512xbf16>
    %c64_147 = arith.constant 64 : index
    %c0_148 = arith.constant 0 : index
    %277 = vector.load %arg6[%c64_147, %c0_148] : memref<160x512xbf16, #tpu.memory_space<vmem>>, vector<32x512xbf16>
    tpu.vector_store %arg6[%c64_147, %c0_148], %276 {strides = array<i32>} : memref<160x512xbf16, #tpu.memory_space<vmem>>, vector<32x512xbf16>,
    %c511_i32_149 = arith.constant 511 : i32
    %278 = tpu.dynamic_rotate %251 by %c511_i32_149 dim 1 : vector<32x512xf32>, i32 -> vector<32x512xf32>
    %c0_i32_150 = arith.constant 0 : i32
    %279 = vector.broadcast %c0_i32_150 : i32 to vector<1x512xi32>
    %280 = arith.cmpi sge, %21, %279 : vector<1x512xi32>
    %c255_i32_151 = arith.constant 255 : i32
    %281 = vector.broadcast %c255_i32_151 : i32 to vector<1x512xi32>
    %282 = arith.cmpi slt, %21, %281 : vector<1x512xi32>
    %283 = arith.andi %280, %282 : vector<1x512xi1>
    %cst_152 = arith.constant 0.000000e+00 : f32
    %284 = vector.shape_cast %283 : vector<1x512xi1> to vector<1x512xi1>
    %285 = vector.broadcast %284 : vector<1x512xi1> to vector<32x512xi1>
    %286 = vector.broadcast %cst_152 : f32 to vector<32x512xf32>
    %287 = arith.select %285, %278, %286 : vector<32x512xi1>, vector<32x512xf32>
    %288 = arith.truncf %287 : vector<32x512xf32> to vector<32x512xbf16>
    %c96_153 = arith.constant 96 : index
    %c0_154 = arith.constant 0 : index
    %289 = vector.load %arg6[%c96_153, %c0_154] : memref<160x512xbf16, #tpu.memory_space<vmem>>, vector<32x512xbf16>
    tpu.vector_store %arg6[%c96_153, %c0_154], %288 {strides = array<i32>} : memref<160x512xbf16, #tpu.memory_space<vmem>>, vector<32x512xbf16>,
    %c510_i32_155 = arith.constant 510 : i32
    %290 = tpu.dynamic_rotate %251 by %c510_i32_155 dim 1 : vector<32x512xf32>, i32 -> vector<32x512xf32>
    %c0_i32_156 = arith.constant 0 : i32
    %291 = vector.broadcast %c0_i32_156 : i32 to vector<1x512xi32>
    %292 = arith.cmpi sge, %21, %291 : vector<1x512xi32>
    %c254_i32_157 = arith.constant 254 : i32
    %293 = vector.broadcast %c254_i32_157 : i32 to vector<1x512xi32>
    %294 = arith.cmpi slt, %21, %293 : vector<1x512xi32>
    %295 = arith.andi %292, %294 : vector<1x512xi1>
    %cst_158 = arith.constant 0.000000e+00 : f32
    %296 = vector.shape_cast %295 : vector<1x512xi1> to vector<1x512xi1>
    %297 = vector.broadcast %296 : vector<1x512xi1> to vector<32x512xi1>
    %298 = vector.broadcast %cst_158 : f32 to vector<32x512xf32>
    %299 = arith.select %297, %290, %298 : vector<32x512xi1>, vector<32x512xf32>
    %300 = arith.truncf %299 : vector<32x512xf32> to vector<32x512xbf16>
    %c128_159 = arith.constant 128 : index
    %c0_160 = arith.constant 0 : index
    %301 = vector.load %arg6[%c128_159, %c0_160] : memref<160x512xbf16, #tpu.memory_space<vmem>>, vector<32x512xbf16>
    tpu.vector_store %arg6[%c128_159, %c0_160], %300 {strides = array<i32>} : memref<160x512xbf16, #tpu.memory_space<vmem>>, vector<32x512xbf16>,
    %c0_161 = arith.constant 0 : index
    %c0_162 = arith.constant 0 : index
    %302 = vector.load %arg6[%c0_161, %c0_162] : memref<160x512xbf16, #tpu.memory_space<vmem>>, vector<160x512xbf16>
    %cst_163 = arith.constant dense<0.000000e+00> : vector<32x512xf32>
    %303 = tpu.matmul %244, %302, %cst_163 {dimension_numbers = #tpu.dot_dimension_numbers<[1], [0], [0], [1], [0, 0, 1, 1], [], []>} : vector<32x160xbf16>, vector<160x512xbf16>, vector<32x512xf32> -> vector<32x512xf32>
    %304 = vector.broadcast %246 : vector<32x1xf32> to vector<32x512xf32>
    %305 = arith.addf %303, %304 : vector<32x512xf32>
    %306 = arith.addf %4, %305 : vector<32x512xf32>
    %c2_164 = arith.constant 2 : index
    %c0_165 = arith.constant 0 : index
    %c0_166 = arith.constant 0 : index
    %307 = vector.load %arg3[%c2_164, %c0_165, %c0_166] : memref<4x32x160xbf16, #tpu.memory_space<vmem>>, vector<1x32x160xbf16>
    %308 = vector.shape_cast %307 : vector<1x32x160xbf16> to vector<32x160xbf16>
    %c6 = arith.constant 6 : index
    %c0_167 = arith.constant 0 : index
    %c0_168 = arith.constant 0 : index
    %309 = vector.load %arg4[%c6, %c0_167, %c0_168] : memref<8x32x1xf32, #tpu.memory_space<vmem>>, vector<1x32x1xf32>
    %310 = vector.shape_cast %309 : vector<1x32x1xf32> to vector<32x1xf32>
    %cst_169 = arith.constant 0.000000e+00 : f32
    %311 = vector.broadcast %cst_169 : f32 to vector<32x512xf32>
    %312 = arith.cmpf ogt, %306, %311 : vector<32x512xf32>
    %cst_170 = arith.constant 1.000000e-01 : f32
    %313 = vector.broadcast %cst_170 : f32 to vector<32x512xf32>
    %314 = arith.mulf %313, %306 : vector<32x512xf32>
    %315 = arith.select %312, %306, %314 : vector<32x512xi1>, vector<32x512xf32>
    %c4_i32 = arith.constant 4 : i32
    %316 = tpu.dynamic_rotate %315 by %c4_i32 dim 1 : vector<32x512xf32>, i32 -> vector<32x512xf32>
    %c4_i32_171 = arith.constant 4 : i32
    %317 = vector.broadcast %c4_i32_171 : i32 to vector<1x512xi32>
    %318 = arith.cmpi sge, %21, %317 : vector<1x512xi32>
    %c256_i32_172 = arith.constant 256 : i32
    %319 = vector.broadcast %c256_i32_172 : i32 to vector<1x512xi32>
    %320 = arith.cmpi slt, %21, %319 : vector<1x512xi32>
    %321 = arith.andi %318, %320 : vector<1x512xi1>
    %cst_173 = arith.constant 0.000000e+00 : f32
    %322 = vector.shape_cast %321 : vector<1x512xi1> to vector<1x512xi1>
    %323 = vector.broadcast %322 : vector<1x512xi1> to vector<32x512xi1>
    %324 = vector.broadcast %cst_173 : f32 to vector<32x512xf32>
    %325 = arith.select %323, %316, %324 : vector<32x512xi1>, vector<32x512xf32>
    %326 = arith.truncf %325 : vector<32x512xf32> to vector<32x512xbf16>
    %c0_174 = arith.constant 0 : index
    %c0_175 = arith.constant 0 : index
    %327 = vector.load %arg6[%c0_174, %c0_175] : memref<160x512xbf16, #tpu.memory_space<vmem>>, vector<32x512xbf16>
    tpu.vector_store %arg6[%c0_174, %c0_175], %326 {strides = array<i32>} : memref<160x512xbf16, #tpu.memory_space<vmem>>, vector<32x512xbf16>,
    %c2_i32_176 = arith.constant 2 : i32
    %328 = tpu.dynamic_rotate %315 by %c2_i32_176 dim 1 : vector<32x512xf32>, i32 -> vector<32x512xf32>
    %c2_i32_177 = arith.constant 2 : i32
    %329 = vector.broadcast %c2_i32_177 : i32 to vector<1x512xi32>
    %330 = arith.cmpi sge, %21, %329 : vector<1x512xi32>
    %c256_i32_178 = arith.constant 256 : i32
    %331 = vector.broadcast %c256_i32_178 : i32 to vector<1x512xi32>
    %332 = arith.cmpi slt, %21, %331 : vector<1x512xi32>
    %333 = arith.andi %330, %332 : vector<1x512xi1>
    %cst_179 = arith.constant 0.000000e+00 : f32
    %334 = vector.shape_cast %333 : vector<1x512xi1> to vector<1x512xi1>
    %335 = vector.broadcast %334 : vector<1x512xi1> to vector<32x512xi1>
    %336 = vector.broadcast %cst_179 : f32 to vector<32x512xf32>
    %337 = arith.select %335, %328, %336 : vector<32x512xi1>, vector<32x512xf32>
    %338 = arith.truncf %337 : vector<32x512xf32> to vector<32x512xbf16>
    %c32_180 = arith.constant 32 : index
    %c0_181 = arith.constant 0 : index
    %339 = vector.load %arg6[%c32_180, %c0_181] : memref<160x512xbf16, #tpu.memory_space<vmem>>, vector<32x512xbf16>
    tpu.vector_store %arg6[%c32_180, %c0_181], %338 {strides = array<i32>} : memref<160x512xbf16, #tpu.memory_space<vmem>>, vector<32x512xbf16>,
    %340 = arith.truncf %315 : vector<32x512xf32> to vector<32x512xbf16>
    %c64_182 = arith.constant 64 : index
    %c0_183 = arith.constant 0 : index
    %341 = vector.load %arg6[%c64_182, %c0_183] : memref<160x512xbf16, #tpu.memory_space<vmem>>, vector<32x512xbf16>
    tpu.vector_store %arg6[%c64_182, %c0_183], %340 {strides = array<i32>} : memref<160x512xbf16, #tpu.memory_space<vmem>>, vector<32x512xbf16>,
    %c510_i32_184 = arith.constant 510 : i32
    %342 = tpu.dynamic_rotate %315 by %c510_i32_184 dim 1 : vector<32x512xf32>, i32 -> vector<32x512xf32>
    %c0_i32_185 = arith.constant 0 : i32
    %343 = vector.broadcast %c0_i32_185 : i32 to vector<1x512xi32>
    %344 = arith.cmpi sge, %21, %343 : vector<1x512xi32>
    %c254_i32_186 = arith.constant 254 : i32
    %345 = vector.broadcast %c254_i32_186 : i32 to vector<1x512xi32>
    %346 = arith.cmpi slt, %21, %345 : vector<1x512xi32>
    %347 = arith.andi %344, %346 : vector<1x512xi1>
    %cst_187 = arith.constant 0.000000e+00 : f32
    %348 = vector.shape_cast %347 : vector<1x512xi1> to vector<1x512xi1>
    %349 = vector.broadcast %348 : vector<1x512xi1> to vector<32x512xi1>
    %350 = vector.broadcast %cst_187 : f32 to vector<32x512xf32>
    %351 = arith.select %349, %342, %350 : vector<32x512xi1>, vector<32x512xf32>
    %352 = arith.truncf %351 : vector<32x512xf32> to vector<32x512xbf16>
    %c96_188 = arith.constant 96 : index
    %c0_189 = arith.constant 0 : index
    %353 = vector.load %arg6[%c96_188, %c0_189] : memref<160x512xbf16, #tpu.memory_space<vmem>>, vector<32x512xbf16>
    tpu.vector_store %arg6[%c96_188, %c0_189], %352 {strides = array<i32>} : memref<160x512xbf16, #tpu.memory_space<vmem>>, vector<32x512xbf16>,
    %c508_i32 = arith.constant 508 : i32
    %354 = tpu.dynamic_rotate %315 by %c508_i32 dim 1 : vector<32x512xf32>, i32 -> vector<32x512xf32>
    %c0_i32_190 = arith.constant 0 : i32
    %355 = vector.broadcast %c0_i32_190 : i32 to vector<1x512xi32>
    %356 = arith.cmpi sge, %21, %355 : vector<1x512xi32>
    %c252_i32 = arith.constant 252 : i32
    %357 = vector.broadcast %c252_i32 : i32 to vector<1x512xi32>
    %358 = arith.cmpi slt, %21, %357 : vector<1x512xi32>
    %359 = arith.andi %356, %358 : vector<1x512xi1>
    %cst_191 = arith.constant 0.000000e+00 : f32
    %360 = vector.shape_cast %359 : vector<1x512xi1> to vector<1x512xi1>
    %361 = vector.broadcast %360 : vector<1x512xi1> to vector<32x512xi1>
    %362 = vector.broadcast %cst_191 : f32 to vector<32x512xf32>
    %363 = arith.select %361, %354, %362 : vector<32x512xi1>, vector<32x512xf32>
    %364 = arith.truncf %363 : vector<32x512xf32> to vector<32x512xbf16>
    %c128_192 = arith.constant 128 : index
    %c0_193 = arith.constant 0 : index
    %365 = vector.load %arg6[%c128_192, %c0_193] : memref<160x512xbf16, #tpu.memory_space<vmem>>, vector<32x512xbf16>
    tpu.vector_store %arg6[%c128_192, %c0_193], %364 {strides = array<i32>} : memref<160x512xbf16, #tpu.memory_space<vmem>>, vector<32x512xbf16>,
    %c0_194 = arith.constant 0 : index
    %c0_195 = arith.constant 0 : index
    %366 = vector.load %arg6[%c0_194, %c0_195] : memref<160x512xbf16, #tpu.memory_space<vmem>>, vector<160x512xbf16>
    %cst_196 = arith.constant dense<0.000000e+00> : vector<32x512xf32>
    %367 = tpu.matmul %308, %366, %cst_196 {dimension_numbers = #tpu.dot_dimension_numbers<[1], [0], [0], [1], [0, 0, 1, 1], [], []>} : vector<32x160xbf16>, vector<160x512xbf16>, vector<32x512xf32> -> vector<32x512xf32>
    %368 = vector.broadcast %310 : vector<32x1xf32> to vector<32x512xf32>
    %369 = arith.addf %367, %368 : vector<32x512xf32>
    %c3_197 = arith.constant 3 : index
    %c0_198 = arith.constant 0 : index
    %c0_199 = arith.constant 0 : index
    %370 = vector.load %arg3[%c3_197, %c0_198, %c0_199] : memref<4x32x160xbf16, #tpu.memory_space<vmem>>, vector<1x32x160xbf16>
    %371 = vector.shape_cast %370 : vector<1x32x160xbf16> to vector<32x160xbf16>
    %c7 = arith.constant 7 : index
    %c0_200 = arith.constant 0 : index
    %c0_201 = arith.constant 0 : index
    %372 = vector.load %arg4[%c7, %c0_200, %c0_201] : memref<8x32x1xf32, #tpu.memory_space<vmem>>, vector<1x32x1xf32>
    %373 = vector.shape_cast %372 : vector<1x32x1xf32> to vector<32x1xf32>
    %cst_202 = arith.constant 0.000000e+00 : f32
    %374 = vector.broadcast %cst_202 : f32 to vector<32x512xf32>
    %375 = arith.cmpf ogt, %369, %374 : vector<32x512xf32>
    %cst_203 = arith.constant 1.000000e-01 : f32
    %376 = vector.broadcast %cst_203 : f32 to vector<32x512xf32>
    %377 = arith.mulf %376, %369 : vector<32x512xf32>
    %378 = arith.select %375, %369, %377 : vector<32x512xi1>, vector<32x512xf32>
    %c2_i32_204 = arith.constant 2 : i32
    %379 = tpu.dynamic_rotate %378 by %c2_i32_204 dim 1 : vector<32x512xf32>, i32 -> vector<32x512xf32>
    %c2_i32_205 = arith.constant 2 : i32
    %380 = vector.broadcast %c2_i32_205 : i32 to vector<1x512xi32>
    %381 = arith.cmpi sge, %21, %380 : vector<1x512xi32>
    %c256_i32_206 = arith.constant 256 : i32
    %382 = vector.broadcast %c256_i32_206 : i32 to vector<1x512xi32>
    %383 = arith.cmpi slt, %21, %382 : vector<1x512xi32>
    %384 = arith.andi %381, %383 : vector<1x512xi1>
    %cst_207 = arith.constant 0.000000e+00 : f32
    %385 = vector.shape_cast %384 : vector<1x512xi1> to vector<1x512xi1>
    %386 = vector.broadcast %385 : vector<1x512xi1> to vector<32x512xi1>
    %387 = vector.broadcast %cst_207 : f32 to vector<32x512xf32>
    %388 = arith.select %386, %379, %387 : vector<32x512xi1>, vector<32x512xf32>
    %389 = arith.truncf %388 : vector<32x512xf32> to vector<32x512xbf16>
    %c0_208 = arith.constant 0 : index
    %c0_209 = arith.constant 0 : index
    %390 = vector.load %arg6[%c0_208, %c0_209] : memref<160x512xbf16, #tpu.memory_space<vmem>>, vector<32x512xbf16>
    tpu.vector_store %arg6[%c0_208, %c0_209], %389 {strides = array<i32>} : memref<160x512xbf16, #tpu.memory_space<vmem>>, vector<32x512xbf16>,
    %c1_i32_210 = arith.constant 1 : i32
    %391 = tpu.dynamic_rotate %378 by %c1_i32_210 dim 1 : vector<32x512xf32>, i32 -> vector<32x512xf32>
    %c1_i32_211 = arith.constant 1 : i32
    %392 = vector.broadcast %c1_i32_211 : i32 to vector<1x512xi32>
    %393 = arith.cmpi sge, %21, %392 : vector<1x512xi32>
    %c256_i32_212 = arith.constant 256 : i32
    %394 = vector.broadcast %c256_i32_212 : i32 to vector<1x512xi32>
    %395 = arith.cmpi slt, %21, %394 : vector<1x512xi32>
    %396 = arith.andi %393, %395 : vector<1x512xi1>
    %cst_213 = arith.constant 0.000000e+00 : f32
    %397 = vector.shape_cast %396 : vector<1x512xi1> to vector<1x512xi1>
    %398 = vector.broadcast %397 : vector<1x512xi1> to vector<32x512xi1>
    %399 = vector.broadcast %cst_213 : f32 to vector<32x512xf32>
    %400 = arith.select %398, %391, %399 : vector<32x512xi1>, vector<32x512xf32>
    %401 = arith.truncf %400 : vector<32x512xf32> to vector<32x512xbf16>
    %c32_214 = arith.constant 32 : index
    %c0_215 = arith.constant 0 : index
    %402 = vector.load %arg6[%c32_214, %c0_215] : memref<160x512xbf16, #tpu.memory_space<vmem>>, vector<32x512xbf16>
    tpu.vector_store %arg6[%c32_214, %c0_215], %401 {strides = array<i32>} : memref<160x512xbf16, #tpu.memory_space<vmem>>, vector<32x512xbf16>,
    %403 = arith.truncf %378 : vector<32x512xf32> to vector<32x512xbf16>
    %c64_216 = arith.constant 64 : index
    %c0_217 = arith.constant 0 : index
    %404 = vector.load %arg6[%c64_216, %c0_217] : memref<160x512xbf16, #tpu.memory_space<vmem>>, vector<32x512xbf16>
    tpu.vector_store %arg6[%c64_216, %c0_217], %403 {strides = array<i32>} : memref<160x512xbf16, #tpu.memory_space<vmem>>, vector<32x512xbf16>,
    %c511_i32_218 = arith.constant 511 : i32
    %405 = tpu.dynamic_rotate %378 by %c511_i32_218 dim 1 : vector<32x512xf32>, i32 -> vector<32x512xf32>
    %c0_i32_219 = arith.constant 0 : i32
    %406 = vector.broadcast %c0_i32_219 : i32 to vector<1x512xi32>
    %407 = arith.cmpi sge, %21, %406 : vector<1x512xi32>
    %c255_i32_220 = arith.constant 255 : i32
    %408 = vector.broadcast %c255_i32_220 : i32 to vector<1x512xi32>
    %409 = arith.cmpi slt, %21, %408 : vector<1x512xi32>
    %410 = arith.andi %407, %409 : vector<1x512xi1>
    %cst_221 = arith.constant 0.000000e+00 : f32
    %411 = vector.shape_cast %410 : vector<1x512xi1> to vector<1x512xi1>
    %412 = vector.broadcast %411 : vector<1x512xi1> to vector<32x512xi1>
    %413 = vector.broadcast %cst_221 : f32 to vector<32x512xf32>
    %414 = arith.select %412, %405, %413 : vector<32x512xi1>, vector<32x512xf32>
    %415 = arith.truncf %414 : vector<32x512xf32> to vector<32x512xbf16>
    %c96_222 = arith.constant 96 : index
    %c0_223 = arith.constant 0 : index
    %416 = vector.load %arg6[%c96_222, %c0_223] : memref<160x512xbf16, #tpu.memory_space<vmem>>, vector<32x512xbf16>
    tpu.vector_store %arg6[%c96_222, %c0_223], %415 {strides = array<i32>} : memref<160x512xbf16, #tpu.memory_space<vmem>>, vector<32x512xbf16>,
    %c510_i32_224 = arith.constant 510 : i32
    %417 = tpu.dynamic_rotate %378 by %c510_i32_224 dim 1 : vector<32x512xf32>, i32 -> vector<32x512xf32>
    %c0_i32_225 = arith.constant 0 : i32
    %418 = vector.broadcast %c0_i32_225 : i32 to vector<1x512xi32>
    %419 = arith.cmpi sge, %21, %418 : vector<1x512xi32>
    %c254_i32_226 = arith.constant 254 : i32
    %420 = vector.broadcast %c254_i32_226 : i32 to vector<1x512xi32>
    %421 = arith.cmpi slt, %21, %420 : vector<1x512xi32>
    %422 = arith.andi %419, %421 : vector<1x512xi1>
    %cst_227 = arith.constant 0.000000e+00 : f32
    %423 = vector.shape_cast %422 : vector<1x512xi1> to vector<1x512xi1>
    %424 = vector.broadcast %423 : vector<1x512xi1> to vector<32x512xi1>
    %425 = vector.broadcast %cst_227 : f32 to vector<32x512xf32>
    %426 = arith.select %424, %417, %425 : vector<32x512xi1>, vector<32x512xf32>
    %427 = arith.truncf %426 : vector<32x512xf32> to vector<32x512xbf16>
    %c128_228 = arith.constant 128 : index
    %c0_229 = arith.constant 0 : index
    %428 = vector.load %arg6[%c128_228, %c0_229] : memref<160x512xbf16, #tpu.memory_space<vmem>>, vector<32x512xbf16>
    tpu.vector_store %arg6[%c128_228, %c0_229], %427 {strides = array<i32>} : memref<160x512xbf16, #tpu.memory_space<vmem>>, vector<32x512xbf16>,
    %c0_230 = arith.constant 0 : index
    %c0_231 = arith.constant 0 : index
    %429 = vector.load %arg6[%c0_230, %c0_231] : memref<160x512xbf16, #tpu.memory_space<vmem>>, vector<160x512xbf16>
    %cst_232 = arith.constant dense<0.000000e+00> : vector<32x512xf32>
    %430 = tpu.matmul %371, %429, %cst_232 {dimension_numbers = #tpu.dot_dimension_numbers<[1], [0], [0], [1], [0, 0, 1, 1], [], []>} : vector<32x160xbf16>, vector<160x512xbf16>, vector<32x512xf32> -> vector<32x512xf32>
    %431 = vector.broadcast %373 : vector<32x1xf32> to vector<32x512xf32>
    %432 = arith.addf %430, %431 : vector<32x512xf32>
    %433 = arith.addf %306, %432 : vector<32x512xf32>
    %434 = arith.addf %179, %433 : vector<32x512xf32>
    %cst_233 = arith.constant 5.000000e-01 : f32
    %435 = vector.broadcast %cst_233 : f32 to vector<32x512xf32>
    %436 = arith.mulf %434, %435 : vector<32x512xf32>
    %437 = vector.extract_strided_slice %436 {offsets = [0, 0], sizes = [32, 256], strides = [1, 1]} : vector<32x512xf32> to vector<32x256xf32>
    %c0_234 = arith.constant 0 : index
    %c0_235 = arith.constant 0 : index
    %c0_236 = arith.constant 0 : index
    %438 = vector.load %arg5[%c0_234, %c0_235, %c0_236] : memref<2x32x256xf32, #tpu.memory_space<vmem>>, vector<1x32x256xf32>
    %439 = vector.shape_cast %438 : vector<1x32x256xf32> to vector<32x256xf32>
    %440 = vector.shape_cast %437 : vector<32x256xf32> to vector<1x32x256xf32>
    tpu.vector_store %arg5[%c0_234, %c0_235, %c0_236], %440 {strides = array<i32>} : memref<2x32x256xf32, #tpu.memory_space<vmem>>, vector<1x32x256xf32>,
    %441 = vector.extract_strided_slice %436 {offsets = [0, 256], sizes = [32, 256], strides = [1, 1]} : vector<32x512xf32> to vector<32x256xf32>
    %c1_237 = arith.constant 1 : index
    %c0_238 = arith.constant 0 : index
    %c0_239 = arith.constant 0 : index
    %442 = vector.load %arg5[%c1_237, %c0_238, %c0_239] : memref<2x32x256xf32, #tpu.memory_space<vmem>>, vector<1x32x256xf32>
    %443 = vector.shape_cast %442 : vector<1x32x256xf32> to vector<32x256xf32>
    %444 = vector.shape_cast %441 : vector<32x256xf32> to vector<1x32x256xf32>
    tpu.vector_store %arg5[%c1_237, %c0_238, %c0_239], %444 {strides = array<i32>} : memref<2x32x256xf32, #tpu.memory_space<vmem>>, vector<1x32x256xf32>,
    return
  }
  func.func @transform_0(%arg0: i32) -> (i32, i32, i32) {
    %c0_i32 = arith.constant 0 : i32
    %c0_i32_0 = arith.constant 0 : i32
    %c0_i32_1 = arith.constant 0 : i32
    return %arg0, %c0_i32, %c0_i32_0 : i32, i32, i32
  }
  func.func @transform_1(%arg0: i32) -> (i32, i32, i32) {
    %c0_i32 = arith.constant 0 : i32
    %c0_i32_0 = arith.constant 0 : i32
    %c0_i32_1 = arith.constant 0 : i32
    %c0_i32_2 = arith.constant 0 : i32
    return %c0_i32, %c0_i32_0, %c0_i32_1 : i32, i32, i32
  }
  func.func @transform_2(%arg0: i32) -> (i32, i32, i32) {
    %c0_i32 = arith.constant 0 : i32
    %c0_i32_0 = arith.constant 0 : i32
    %c0_i32_1 = arith.constant 0 : i32
    %c0_i32_2 = arith.constant 0 : i32
    return %c0_i32, %c0_i32_0, %c0_i32_1 : i32, i32, i32
  }
  func.func @transform_3(%arg0: i32) -> (i32, i32, i32) {
    %c0_i32 = arith.constant 0 : i32
    %c0_i32_0 = arith.constant 0 : i32
    %c0_i32_1 = arith.constant 0 : i32
    %c0_i32_2 = arith.constant 0 : i32
    return %c0_i32, %c0_i32_0, %c0_i32_1 : i32, i32, i32
  }
  func.func @transform_4(%arg0: i32) -> (i32, i32, i32) {
    %c0_i32 = arith.constant 0 : i32
    %c0_i32_0 = arith.constant 0 : i32
    %c0_i32_1 = arith.constant 0 : i32
    return %arg0, %c0_i32, %c0_i32_0 : i32, i32, i32
  }
}

</mosaic_0001>

<llo_original>
// kernel: tpu_custom_call.1
$region0: #{tpu_custom_call.1}
  #allocation0 [shape = 'u32[]', space=smem, size = 0x4, offset = 0x4, fixed_abs, tag = 'smem constant byte address 0x4 - core index']
  #allocation1 [shape = 'u32[144,128]{1,0:T(1,128)}', space=vmem, size = 0x12000, scoped, tag = 'internal scratch']
  #allocation2 [shape = 'bf16[160,512]{1,0:T(8,128)(2,1)}', space=vmem, size = 0x28000, scoped, tag = 'scratch operand']
  %s0 = inlined_call_operand.vmem [shape: f32[4,32,256], index: 0, kind: input, shape index: {}]
  %s1 = inlined_call_operand.hbm [shape: bf16[4,32,96], index: 1, kind: input, shape index: {}]
  %s2 = inlined_call_operand.hbm [shape: bf16[4,32,160], index: 2, kind: input, shape index: {}]
  %s3 = inlined_call_operand.vmem [shape: f32[8,32,1], index: 3, kind: input, shape index: {}]
  %s4 = inlined_call_operand.hbm [shape: f32[4,32,256], index: 4, kind: output, shape index: {}]
  %s5 = sld [smem:[#allocation0]]
  $region57: #{tpu_custom_call.1} parent=0
    _
  %s7 = ssub.s32 1, %s5
  %s8 = scalar_select 0, %s7, %s5
  $region1: #{tpu_custom_call.1} parent=0
    #allocation3 [shape = 'u8[32768]{0}', space=vmem, size = 0x8000, scoped, tag = 'input window, operand 1, single buffered']
    #allocation4 [shape = 's32[2]{0}', space=sflag, size = 0x8, scoped, tag = 'scoped memory for tpu_custom_call.1']
    #allocation5 [shape = 's32[2]{0}', space=sflag, size = 0x8, scoped, tag = 'scoped memory for tpu_custom_call.1']
    #allocation6 [shape = 'u8[65536]{0}', space=vmem, size = 0x10000, scoped, tag = 'input window, operand 2, single buffered']
    #allocation7 [shape = 's32[1]{0}', space=sflag, size = 0x4, scoped, tag = 'scoped memory for tpu_custom_call.1']
    #allocation8 [shape = 'u8[131072]{0}', space=vmem, size = 0x20000, scoped, tag = 'output window, operand 0']
    %9 = vsyncpa [#allocation4], 0
    %10 = vsyncpa [#allocation7], 0
    %11 = vsyncpa [#allocation5], 0
    %s12 = scalar_lea.sflag [#allocation5], 1
    %13 = vsyncpa %s12, 0
    loop: start=0, step=1, limit=4
    $region2: #{tpu_custom_call.1} parent=1 // loop_pre_header
      _
    $region3: #{tpu_custom_call.1} parent=1 // loop_header
      %s15 = sphi 0, %s19
      %p16 = scmp.ge.s32.totalorder %s15, 4
      %s25 = sphi 0, %s27
      %s28 = sphi 0, %s25
      %s29 = sphi 0, %s28
      %s45 = sphi 0, %s29
      %s49 = sphi 0, %s49
      %s51 = sphi 0, %s49
      %s52 = sphi 0, %s51
      %s66 = sphi 0, %s52
      %s70 = sphi 0, %s70
      %s72 = sphi 0, %s70
      %s73 = sphi 0, %s72
      %s87 = sphi 0, %s73
      %s91 = sphi 0, %s91
      %s93 = sphi 0, %s91
      %s94 = sphi 0, %s93
      %s108 = sphi 0, %s94
      %s114 = sphi 0, %s116
      %s117 = sphi 0, %s114
      %s118 = sphi 0, %s117
      %s134 = sphi 0, %s118
    $region4: #{tpu_custom_call.1} parent=1 // loop_header_branch
      %18 = sbr.rel (%p16) target = $region8
    $region5: #{tpu_custom_call.1} parent=1 // loop_body
      %s20 = ssub.s32 %s15, 1
      %s21 = ssub.s32 %s15, 2
      %s22 = sadd.s32 %s15, 1
      %s23 = ssub.s32 %s15, %s22
      %p24 = scmp.eq.s32.totalorder %s23, 0
      %s26 = sadd.s32 %s25, 1
      %s27 = scalar_select %p24, %s25, %s26
      %p30 = pneg %p24
      %p31 = scmp.eq.s32.totalorder %s15, 1
      %p32 = por %p30, %p31
      %p33 = scmp.ne.s32.totalorder %s25, %s28
      %p34 = scmp.eq.s32.totalorder %s15, 0
      %p35 = por %p33, %p34
      %p36 = scmp.ne.s32.totalorder %s25, %s28
      %p37 = scmp.eq.s32.totalorder %s20, 1
      %p38 = por %p36, %p37
      %p39 = scmp.ne.s32.totalorder %s28, %s29
      %p40 = scmp.eq.s32.totalorder %s20, 0
      %p41 = por %p39, %p40
      %p42 = scmp.ne.s32.totalorder %s28, %s29
      %p43 = scmp.eq.s32.totalorder %s21, 1
      %p44 = por %p42, %p43
      %p46 = scmp.ne.s32.totalorder %s29, %s45
      %p47 = scmp.eq.s32.totalorder %s21, 0
      %p48 = por %p46, %p47
      %s50 = sadd.s32 %s49, 1
      %p53 = scmp.eq.s32.totalorder %s15, 1
      %p54 = scmp.ne.s32.totalorder %s49, %s51
      %p55 = scmp.eq.s32.totalorder %s15, 0
      %p56 = por %p54, %p55
      %p57 = scmp.ne.s32.totalorder %s49, %s51
      %p58 = scmp.eq.s32.totalorder %s20, 1
      %p59 = por %p57, %p58
      %p60 = scmp.ne.s32.totalorder %s51, %s52
      %p61 = scmp.eq.s32.totalorder %s20, 0
      %p62 = por %p60, %p61
      %p63 = scmp.ne.s32.totalorder %s51, %s52
      %p64 = scmp.eq.s32.totalorder %s21, 1
      %p65 = por %p63, %p64
      %p67 = scmp.ne.s32.totalorder %s52, %s66
      %p68 = scmp.eq.s32.totalorder %s21, 0
      %p69 = por %p67, %p68
      %s71 = sadd.s32 %s70, 1
      %p74 = scmp.eq.s32.totalorder %s15, 1
      %p75 = scmp.ne.s32.totalorder %s70, %s72
      %p76 = scmp.eq.s32.totalorder %s15, 0
      %p77 = por %p75, %p76
      %p78 = scmp.ne.s32.totalorder %s70, %s72
      %p79 = scmp.eq.s32.totalorder %s20, 1
      %p80 = por %p78, %p79
      %p81 = scmp.ne.s32.totalorder %s72, %s73
      %p82 = scmp.eq.s32.totalorder %s20, 0
      %p83 = por %p81, %p82
      %p84 = scmp.ne.s32.totalorder %s72, %s73
      %p85 = scmp.eq.s32.totalorder %s21, 1
      %p86 = por %p84, %p85
      %p88 = scmp.ne.s32.totalorder %s73, %s87
      %p89 = scmp.eq.s32.totalorder %s21, 0
      %p90 = por %p88, %p89
      %s92 = sadd.s32 %s91, 1
      %p95 = scmp.eq.s32.totalorder %s15, 1
      %p96 = scmp.ne.s32.totalorder %s91, %s93
      %p97 = scmp.eq.s32.totalorder %s15, 0
      %p98 = por %p96, %p97
      %p99 = scmp.ne.s32.totalorder %s91, %s93
      %p100 = scmp.eq.s32.totalorder %s20, 1
      %p101 = por %p99, %p100
      %p102 = scmp.ne.s32.totalorder %s93, %s94
      %p103 = scmp.eq.s32.totalorder %s20, 0
      %p104 = por %p102, %p103
      %p105 = scmp.ne.s32.totalorder %s93, %s94
      %p106 = scmp.eq.s32.totalorder %s21, 1
      %p107 = por %p105, %p106
      %p109 = scmp.ne.s32.totalorder %s94, %s108
      %p110 = scmp.eq.s32.totalorder %s21, 0
      %p111 = por %p109, %p110
      %s112 = ssub.s32 %s15, %s22
      %p113 = scmp.eq.s32.totalorder %s112, 0
      %s115 = sadd.s32 %s114, 1
      %s116 = scalar_select %p113, %s114, %s115
      %p119 = pneg %p113
      %p120 = scmp.eq.s32.totalorder %s15, 1
      %p121 = por %p119, %p120
      %p122 = scmp.ne.s32.totalorder %s114, %s117
      %p123 = scmp.eq.s32.totalorder %s15, 0
      %p124 = por %p122, %p123
      %p125 = scmp.ne.s32.totalorder %s114, %s117
      %p126 = scmp.eq.s32.totalorder %s20, 1
      %p127 = por %p125, %p126
      %p128 = scmp.ne.s32.totalorder %s117, %s118
      %p129 = scmp.eq.s32.totalorder %s20, 0
      %p130 = por %p128, %p129
      %p131 = scmp.ne.s32.totalorder %s117, %s118
      %p132 = scmp.eq.s32.totalorder %s21, 1
      %p133 = por %p131, %p132
      %p135 = scmp.ne.s32.totalorder %s118, %s134
      %p136 = scmp.eq.s32.totalorder %s21, 0
      %p137 = por %p135, %p136
      %p138 = scmp.le.s32.totalorder 1, %s15
      %p139 = scmp.lt.s32.totalorder %s15, 3
      %p140 = pnand %p138, %p139
      %p141 = pneg %p140
      // Predicated region
      $region9: #{tpu_custom_call.1} parent=5 // pred_check
        _
      $region10: #{tpu_custom_call.1} parent=5 // pred_check_branch
        %143 = sbr.rel (%p140) target = $region12
      $region11: #{tpu_custom_call.1} parent=5 // pred_region
        %s144 = ssub.s32 %s15, 1
        // Predicated region
        $region13: #{tpu_custom_call.1} parent=11 // pred_check
          %p145 = pneg %p62
        $region14: #{tpu_custom_call.1} parent=11 // pred_check_branch
          %147 = sbr.rel (%p145) target = $region16
        $region15: #{tpu_custom_call.1} parent=11 // pred_region
          %s149 = ssub.s32 1024, 1024
          %150 = vsyncadd [#allocation4], %s149
          %s151 = sshll.u32 [#allocation3], 4
          %s152 = int_to_ptr.vmem [resolvable:$true] %s151
          %157 = dma.hbm_to_vmem [thread:$0]  %s1, 1024, %s152, [#allocation4], 64, 64, 4
        $region16: #{tpu_custom_call.1} parent=11 // pred_fallthru
          _
        // Predicated region
        $region17: #{tpu_custom_call.1} parent=11 // pred_check
          %p158 = pneg %p83
        $region18: #{tpu_custom_call.1} parent=11 // pred_check_branch
          %160 = sbr.rel (%p158) target = $region20
        $region19: #{tpu_custom_call.1} parent=11 // pred_region
          %s162 = ssub.s32 2048, 2048
          %163 = vsyncadd [#allocation7], %s162
          %s164 = sshll.u32 [#allocation6], 4
          %s165 = int_to_ptr.vmem [resolvable:$true] %s164
          %170 = dma.hbm_to_vmem [thread:$0]  %s2, 2048, %s165, [#allocation7], 128, 128, 8
        $region20: #{tpu_custom_call.1} parent=11 // pred_fallthru
          _
        // Predicated region
        $region21: #{tpu_custom_call.1} parent=11 // pred_check
          %p171 = pneg %p104
        $region22: #{tpu_custom_call.1} parent=11 // pred_check_branch
          %173 = sbr.rel (%p171) target = $region24
        $region23: #{tpu_custom_call.1} parent=11 // pred_region
          _
        $region24: #{tpu_custom_call.1} parent=11 // pred_fallthru
          _
      $region12: #{tpu_custom_call.1} parent=5 // pred_fallthru
        _
      %p174 = scmp.lt.s32.totalorder %s15, 2
      // Predicated region
      $region25: #{tpu_custom_call.1} parent=5 // pred_check
        %p175 = pneg %p174
      $region26: #{tpu_custom_call.1} parent=5 // pred_check_branch
        %177 = sbr.rel (%p175) target = $region28
      $region27: #{tpu_custom_call.1} parent=5 // pred_region
        // Predicated region
        $region29: #{tpu_custom_call.1} parent=27 // pred_check
          %p178 = pneg %p35
        $region30: #{tpu_custom_call.1} parent=27 // pred_check_branch
          %180 = sbr.rel (%p178) target = $region32
        $region31: #{tpu_custom_call.1} parent=27 // pred_region
          %s181 = smul.u32 2, %s15
          %p182 = scmp.lt.s32.totalorder %s181, 3
          %s183 = scalar_select %p182, %s181, 3
          %s184 = smul.addr %s183, 8
          %s185 = smul.addr %s184, 8
          %s186 = scalar_lea.vmem %s0, %s185
          %s187 = smul.u32 2, %s15
        $region32: #{tpu_custom_call.1} parent=27 // pred_fallthru
          _
      $region28: #{tpu_custom_call.1} parent=5 // pred_fallthru
        _
      %p188 = scmp.le.s32.totalorder 1, %s15
      %p189 = scmp.lt.s32.totalorder %s15, 3
      %p190 = pnand %p188, %p189
      %p191 = pneg %p190
      // Predicated region
      $region33: #{tpu_custom_call.1} parent=5 // pred_check
        _
      $region34: #{tpu_custom_call.1} parent=5 // pred_check_branch
        %193 = sbr.rel (%p190) target = $region36
      $region35: #{tpu_custom_call.1} parent=5 // pred_region
        %s194 = ssub.s32 %s15, 1
        // Predicated region
        $region37: #{tpu_custom_call.1} parent=35 // pred_check
          %p195 = pneg %p62
        $region38: #{tpu_custom_call.1} parent=35 // pred_check_branch
          %197 = sbr.rel (%p195) target = $region40
        $region39: #{tpu_custom_call.1} parent=35 // pred_region
          %198 = dma.done [#allocation4], 1024
        $region40: #{tpu_custom_call.1} parent=35 // pred_fallthru
          _
        // Predicated region
        $region41: #{tpu_custom_call.1} parent=35 // pred_check
          %p199 = pneg %p83
        $region42: #{tpu_custom_call.1} parent=35 // pred_check_branch
          %201 = sbr.rel (%p199) target = $region44
        $region43: #{tpu_custom_call.1} parent=35 // pred_region
          %202 = dma.done [#allocation7], 2048
        $region44: #{tpu_custom_call.1} parent=35 // pred_fallthru
          _
        %s203 = smul.u32 2, %s20
        %p204 = scmp.lt.s32.totalorder %s203, 3
        %s205 = scalar_select %p204, %s203, 3
        %s206 = smul.addr %s205, 8
        %s207 = smul.addr %s206, 8
        %s208 = scalar_lea.vmem %s0, %s207
        %p209 = pneg %p41
        %p210 = pneg %p38
        %p211 = pneg %p62
        %p212 = pneg %p59
        %p213 = pneg %p83
        %p214 = pneg %p80
        %p215 = pneg %p104
        %p216 = pneg %p101
        %p217 = pneg %p130
        %p218 = pneg %p127
        %s219 = sand.u32 %s117, 1
        %s220 = scalar_lea.sflag [#allocation5], %s219
        %s221 = sand.u32 %s117, 1
        %s222 = smul.addr %s221, 128
        %s223 = scalar_lea.vmem [#allocation8], %s222
        %s224 = smul.u32 2, %s20
        %p225 = scmp.lt.s32.totalorder %s224, 3
        %s226 = scalar_select %p225, %s224, 3
        %s227 = smul.addr %s226, 8
        %s228 = smul.addr %s227, 8
        %s229 = scalar_lea.vmem %s0, %s228
        %s230 = smul.u32 2, %s20
        %s231 = smul.u32 2, %s20
        %v233 = vld [vmem:[%s229] sm:$0xff]
        %v234 = vld [vmem:[%s229 + $0x8] sm:$0xff]
        %v235 = vld [vmem:[%s229 + $0x10] sm:$0xff]
        %v236 = vld [vmem:[%s229 + $0x18] sm:$0xff]
        %v237 = vld [vmem:[%s229 + $0x20] sm:$0xff]
        %v238 = vld [vmem:[%s229 + $0x28] sm:$0xff]
        %v239 = vld [vmem:[%s229 + $0x30] sm:$0xff]
        %v240 = vld [vmem:[%s229 + $0x38] sm:$0xff]
        %s241 = scalar_lea.vmem %s229, 64
        %v242 = vld [vmem:[%s241] sm:$0xff]
        %v243 = vld [vmem:[%s241 + $0x8] sm:$0xff]
        %v244 = vld [vmem:[%s241 + $0x10] sm:$0xff]
        %v245 = vld [vmem:[%s241 + $0x18] sm:$0xff]
        %v246 = vld [vmem:[%s241 + $0x20] sm:$0xff]
        %v247 = vld [vmem:[%s241 + $0x28] sm:$0xff]
        %v248 = vld [vmem:[%s241 + $0x30] sm:$0xff]
        %v249 = vld [vmem:[%s241 + $0x38] sm:$0xff]
        %v250 = vlaneseq
        %v251 = vand.u32 %v250, 127
        %v252 = vadd.s32 %v251, 128
        %v253 = vadd.s32 %v251, 256
        %v254 = vadd.s32 %v251, 384
        %vm255 = vcmp.lt.s32.totalorder %v251, 0
        %v256 = vsub.s32 0, %v251
        %v257 = vsel %vm255, %v256, %v251
        %v258 = vshrl.u32 %v257, 8
        %v259 = vand.u32 %v257, 255
        %v260 = vsub.s32 0, %v259
        %v261 = vsel %vm255, %v260, %v259
        %vm262 = vcmp.lt.s32.totalorder %v252, 0
        %v263 = vsub.s32 0, %v252
        %v264 = vsel %vm262, %v263, %v252
        %v265 = vshrl.u32 %v264, 8
        %v266 = vand.u32 %v264, 255
        %v267 = vsub.s32 0, %v266
        %v268 = vsel %vm262, %v267, %v266
        %vm269 = vcmp.lt.s32.totalorder %v253, 0
        %v270 = vsub.s32 0, %v253
        %v271 = vsel %vm269, %v270, %v253
        %v272 = vshrl.u32 %v271, 8
        %v273 = vand.u32 %v271, 255
        %v274 = vsub.s32 0, %v273
        %v275 = vsel %vm269, %v274, %v273
        %vm276 = vcmp.lt.s32.totalorder %v254, 0
        %v277 = vsub.s32 0, %v254
        %v278 = vsel %vm276, %v277, %v254
        %v279 = vshrl.u32 %v278, 8
        %v280 = vand.u32 %v278, 255
        %v281 = vsub.s32 0, %v280
        %v282 = vsel %vm276, %v281, %v280
        %vm283 = vcmp.ne.s32.totalorder %v261, 0
        %vm284 = vcmp.ne.s32.totalorder %v268, 0
        %vm285 = vcmp.ne.s32.totalorder %v275, 0
        %vm286 = vcmp.ne.s32.totalorder %v282, 0
        %vm287 = vcmp.lt.s32.totalorder %v261, 0
        %vm288 = vcmp.lt.s32.totalorder %v268, 0
        %vm289 = vcmp.lt.s32.totalorder %v275, 0
        %vm290 = vcmp.lt.s32.totalorder %v282, 0
        %vm291 = vmand %vm287, %vm283
        %vm292 = vmand %vm288, %vm284
        %vm293 = vmand %vm289, %vm285
        %vm294 = vmand %vm290, %vm286
        %v295 = vadd.s32 %v261, 256
        %v296 = vadd.s32 %v268, 256
        %v297 = vadd.s32 %v275, 256
        %v298 = vadd.s32 %v282, 256
        %v299 = vsel %vm291, %v295, %v261
        %v300 = vsel %vm292, %v296, %v268
        %v301 = vsel %vm293, %v297, %v275
        %v302 = vsel %vm294, %v298, %v282
        %v303 = vld [vmem:[#allocation3] sm:$0xf]
        %v304 = vld [vmem:[#allocation3 + $0x4] sm:$0xf]
        %v305 = vld [vmem:[#allocation3 + $0x8] sm:$0xf]
        %v306 = vld [vmem:[#allocation3 + $0xc] sm:$0xf]
        %v307 = vld [vmem:[%s3] sm:$0xff]
        %v308 = vld [vmem:[%s3 + $0x8] sm:$0xff]
        %v309 = vld [vmem:[%s3 + $0x10] sm:$0xff]
        %v310 = vld [vmem:[%s3 + $0x18] sm:$0xff]
        %vm311 = vcmp.gt.f32.partialorder %v233, 0.0
        %vm312 = vcmp.gt.f32.partialorder %v234, 0.0
        %vm313 = vcmp.gt.f32.partialorder %v242, 0.0
        %vm314 = vcmp.gt.f32.partialorder %v243, 0.0
        %vm315 = vcmp.gt.f32.partialorder %v235, 0.0
        %vm316 = vcmp.gt.f32.partialorder %v236, 0.0
        %vm317 = vcmp.gt.f32.partialorder %v244, 0.0
        %vm318 = vcmp.gt.f32.partialorder %v245, 0.0
        %vm319 = vcmp.gt.f32.partialorder %v237, 0.0
        %vm320 = vcmp.gt.f32.partialorder %v238, 0.0
        %vm321 = vcmp.gt.f32.partialorder %v246, 0.0
        %vm322 = vcmp.gt.f32.partialorder %v247, 0.0
        %vm323 = vcmp.gt.f32.partialorder %v239, 0.0
        %vm324 = vcmp.gt.f32.partialorder %v240, 0.0
        %vm325 = vcmp.gt.f32.partialorder %v248, 0.0
        %vm326 = vcmp.gt.f32.partialorder %v249, 0.0
        %v327 = vmul.f32 %v233, 0.1
        %v328 = vmul.f32 %v234, 0.1
        %v329 = vmul.f32 %v242, 0.1
        %v330 = vmul.f32 %v243, 0.1
        %v331 = vmul.f32 %v235, 0.1
        %v332 = vmul.f32 %v236, 0.1
        %v333 = vmul.f32 %v244, 0.1
        %v334 = vmul.f32 %v245, 0.1
        %v335 = vmul.f32 %v237, 0.1
        %v336 = vmul.f32 %v238, 0.1
        %v337 = vmul.f32 %v246, 0.1
        %v338 = vmul.f32 %v247, 0.1
        %v339 = vmul.f32 %v239, 0.1
        %v340 = vmul.f32 %v240, 0.1
        %v341 = vmul.f32 %v248, 0.1
        %v342 = vmul.f32 %v249, 0.1
        %v343 = vsel %vm311, %v233, %v327
        %v344 = vsel %vm312, %v234, %v328
        %v345 = vsel %vm313, %v242, %v329
        %v346 = vsel %vm314, %v243, %v330
        %v347 = vsel %vm315, %v235, %v331
        %v348 = vsel %vm316, %v236, %v332
        %v349 = vsel %vm317, %v244, %v333
        %v350 = vsel %vm318, %v245, %v334
        %v351 = vsel %vm319, %v237, %v335
        %v352 = vsel %vm320, %v238, %v336
        %v353 = vsel %vm321, %v246, %v337
        %v354 = vsel %vm322, %v247, %v338
        %v355 = vsel %vm323, %v239, %v339
        %v356 = vsel %vm324, %v240, %v340
        %v357 = vsel %vm325, %v248, %v341
        %v358 = vsel %vm326, %v249, %v342
        %359 = vrot.lane.b32.xlu0 %v343, 1
        %v360 = vpop.permute.xlu0 %359
        %361 = vrot.lane.b32.xlu0 %v347, 1
        %v362 = vpop.permute.xlu0 %361
        %363 = vrot.lane.b32.xlu0 %v351, 1
        %v364 = vpop.permute.xlu0 %363
        %365 = vrot.lane.b32.xlu0 %v355, 1
        %v366 = vpop.permute.xlu0 %365
        %367 = vrot.lane.b32.xlu0 %v344, 1
        %v368 = vpop.permute.xlu0 %367
        %369 = vrot.lane.b32.xlu0 %v348, 1
        %v370 = vpop.permute.xlu0 %369
        %371 = vrot.lane.b32.xlu0 %v352, 1
        %v372 = vpop.permute.xlu0 %371
        %373 = vrot.lane.b32.xlu0 %v356, 1
        %v374 = vpop.permute.xlu0 %373
        %375 = vrot.lane.b32.xlu0 %v345, 1
        %v376 = vpop.permute.xlu0 %375
        %377 = vrot.lane.b32.xlu0 %v349, 1
        %v378 = vpop.permute.xlu0 %377
        %379 = vrot.lane.b32.xlu0 %v353, 1
        %v380 = vpop.permute.xlu0 %379
        %381 = vrot.lane.b32.xlu0 %v357, 1
        %v382 = vpop.permute.xlu0 %381
        %383 = vrot.lane.b32.xlu0 %v346, 1
        %v384 = vpop.permute.xlu0 %383
        %385 = vrot.lane.b32.xlu0 %v350, 1
        %v386 = vpop.permute.xlu0 %385
        %387 = vrot.lane.b32.xlu0 %v354, 1
        %v388 = vpop.permute.xlu0 %387
        %389 = vrot.lane.b32.xlu0 %v358, 1
        %v390 = vpop.permute.xlu0 %389
        %vm391 = vcmp.lt.s32.totalorder %v251, 1
        %v392 = vsel %vm391, %v376, %v384
        %v393 = vsel %vm391, %v378, %v386
        %v394 = vsel %vm391, %v380, %v388
        %v395 = vsel %vm391, %v382, %v390
        %v396 = vsel %vm391, %v368, %v376
        %v397 = vsel %vm391, %v370, %v378
        %v398 = vsel %vm391, %v372, %v380
        %v399 = vsel %vm391, %v374, %v382
        %v400 = vsel %vm391, %v360, %v368
        %v401 = vsel %vm391, %v362, %v370
        %v402 = vsel %vm391, %v364, %v372
        %v403 = vsel %vm391, %v366, %v374
        %v404 = vsel %vm391, %v384, %v360
        %v405 = vsel %vm391, %v386, %v362
        %v406 = vsel %vm391, %v388, %v364
        %v407 = vsel %vm391, %v390, %v366
        %vm408 = vcmp.ge.s32.totalorder %v299, 1
        %vm409 = vcmp.ge.s32.totalorder %v300, 1
        %vm410 = vcmp.ge.s32.totalorder %v301, 1
        %vm411 = vcmp.ge.s32.totalorder %v302, 1
        %vm412 = vcmp.lt.s32.totalorder %v299, 256
        %vm413 = vcmp.lt.s32.totalorder %v300, 256
        %vm414 = vcmp.lt.s32.totalorder %v301, 256
        %vm415 = vcmp.lt.s32.totalorder %v302, 256
        %vm416 = vmand %vm408, %vm412
        %vm417 = vmand %vm409, %vm413
        %vm418 = vmand %vm410, %vm414
        %vm419 = vmand %vm411, %vm415
        %v420 = vsel %vm416, 1, 0
        %v421 = vsel %vm417, 1, 0
        %v422 = vsel %vm418, 1, 0
        %v423 = vsel %vm419, 1, 0
        %vm424 = vcmp.eq.s32.totalorder %v420, 1
        %vm425 = vcmp.eq.s32.totalorder %v421, 1
        %vm426 = vcmp.eq.s32.totalorder %v422, 1
        %vm427 = vcmp.eq.s32.totalorder %v423, 1
        %v428 = vsel %vm424, %v404, 0.0
        %v429 = vsel %vm425, %v400, 0.0
        %v430 = vsel %vm426, %v396, 0.0
        %v431 = vsel %vm427, %v392, 0.0
        %v432 = vsel %vm424, %v405, 0.0
        %v433 = vsel %vm425, %v401, 0.0
        %v434 = vsel %vm426, %v397, 0.0
        %v435 = vsel %vm427, %v393, 0.0
        %v436 = vsel %vm424, %v406, 0.0
        %v437 = vsel %vm425, %v402, 0.0
        %v438 = vsel %vm426, %v398, 0.0
        %v439 = vsel %vm427, %v394, 0.0
        %v440 = vsel %vm424, %v407, 0.0
        %v441 = vsel %vm425, %v403, 0.0
        %v442 = vsel %vm426, %v399, 0.0
        %v443 = vsel %vm427, %v395, 0.0
        %v444 = vpack.c.bf16 %v432, %v428
        %v445 = vpack.c.bf16 %v433, %v429
        %v446 = vpack.c.bf16 %v434, %v430
        %v447 = vpack.c.bf16 %v435, %v431
        %v448 = vpack.c.bf16 %v440, %v436
        %v449 = vpack.c.bf16 %v441, %v437
        %v450 = vpack.c.bf16 %v442, %v438
        %v451 = vpack.c.bf16 %v443, %v439
        %v460 = vunpack.c.l.b16 %v444
        %v461 = vunpack.c.l.b16 %v445
        %v462 = vunpack.c.l.b16 %v446
        %v463 = vunpack.c.l.b16 %v447
        %v464 = vunpack.c.h.b16 %v444
        %v465 = vunpack.c.h.b16 %v445
        %v466 = vunpack.c.h.b16 %v446
        %v467 = vunpack.c.h.b16 %v447
        %v468 = vunpack.c.l.b16 %v448
        %v469 = vunpack.c.l.b16 %v449
        %v470 = vunpack.c.l.b16 %v450
        %v471 = vunpack.c.l.b16 %v451
        %v472 = vunpack.c.h.b16 %v448
        %v473 = vunpack.c.h.b16 %v449
        %v474 = vunpack.c.h.b16 %v450
        %v475 = vunpack.c.h.b16 %v451
        %v476 = vpack.c.b16 %v461, %v460
        %v477 = vpack.c.b16 %v463, %v462
        %v478 = vpack.c.b16 %v465, %v464
        %v479 = vpack.c.b16 %v467, %v466
        %v480 = vpack.c.b16 %v469, %v468
        %v481 = vpack.c.b16 %v471, %v470
        %v482 = vpack.c.b16 %v473, %v472
        %v483 = vpack.c.b16 %v475, %v474
        %492 = vst [vmem:[#allocation2] sm:$0xff] %v476
        %493 = vst [vmem:[#allocation2 + $0x8] sm:$0xff] %v477
        %494 = vst [vmem:[#allocation2 + $0x10] sm:$0xff] %v478
        %495 = vst [vmem:[#allocation2 + $0x18] sm:$0xff] %v479
        %496 = vst [vmem:[#allocation2 + $0x20] sm:$0xff] %v480
        %497 = vst [vmem:[#allocation2 + $0x28] sm:$0xff] %v481
        %498 = vst [vmem:[#allocation2 + $0x30] sm:$0xff] %v482
        %499 = vst [vmem:[#allocation2 + $0x38] sm:$0xff] %v483
        %v500 = vpack.c.bf16 %v347, %v343
        %v501 = vpack.c.bf16 %v348, %v344
        %v502 = vpack.c.bf16 %v349, %v345
        %v503 = vpack.c.bf16 %v350, %v346
        %v504 = vpack.c.bf16 %v355, %v351
        %v505 = vpack.c.bf16 %v356, %v352
        %v506 = vpack.c.bf16 %v357, %v353
        %v507 = vpack.c.bf16 %v358, %v354
        %v516 = vunpack.c.l.b16 %v500
        %v517 = vunpack.c.l.b16 %v501
        %v518 = vunpack.c.l.b16 %v502
        %v519 = vunpack.c.l.b16 %v503
        %v520 = vunpack.c.h.b16 %v500
        %v521 = vunpack.c.h.b16 %v501
        %v522 = vunpack.c.h.b16 %v502
        %v523 = vunpack.c.h.b16 %v503
        %v524 = vunpack.c.l.b16 %v504
        %v525 = vunpack.c.l.b16 %v505
        %v526 = vunpack.c.l.b16 %v506
        %v527 = vunpack.c.l.b16 %v507
        %v528 = vunpack.c.h.b16 %v504
        %v529 = vunpack.c.h.b16 %v505
        %v530 = vunpack.c.h.b16 %v506
        %v531 = vunpack.c.h.b16 %v507
        %v532 = vpack.c.b16 %v517, %v516
        %v533 = vpack.c.b16 %v519, %v518
        %v534 = vpack.c.b16 %v521, %v520
        %v535 = vpack.c.b16 %v523, %v522
        %v536 = vpack.c.b16 %v525, %v524
        %v537 = vpack.c.b16 %v527, %v526
        %v538 = vpack.c.b16 %v529, %v528
        %v539 = vpack.c.b16 %v531, %v530
        %548 = vst [vmem:[#allocation2 + $0x40] sm:$0xff] %v532
        %549 = vst [vmem:[#allocation2 + $0x48] sm:$0xff] %v533
        %550 = vst [vmem:[#allocation2 + $0x50] sm:$0xff] %v534
        %551 = vst [vmem:[#allocation2 + $0x58] sm:$0xff] %v535
        %552 = vst [vmem:[#allocation2 + $0x60] sm:$0xff] %v536
        %553 = vst [vmem:[#allocation2 + $0x68] sm:$0xff] %v537
        %554 = vst [vmem:[#allocation2 + $0x70] sm:$0xff] %v538
        %555 = vst [vmem:[#allocation2 + $0x78] sm:$0xff] %v539
        %556 = vrot.lane.b32.xlu0 %v343, 127
        %v557 = vpop.permute.xlu0 %556
        %558 = vrot.lane.b32.xlu0 %v347, 127
        %v559 = vpop.permute.xlu0 %558
        %560 = vrot.lane.b32.xlu0 %v351, 127
        %v561 = vpop.permute.xlu0 %560
        %562 = vrot.lane.b32.xlu0 %v355, 127
        %v563 = vpop.permute.xlu0 %562
        %564 = vrot.lane.b32.xlu0 %v344, 127
        %v565 = vpop.permute.xlu0 %564
        %566 = vrot.lane.b32.xlu0 %v348, 127
        %v567 = vpop.permute.xlu0 %566
        %568 = vrot.lane.b32.xlu0 %v352, 127
        %v569 = vpop.permute.xlu0 %568
        %570 = vrot.lane.b32.xlu0 %v356, 127
        %v571 = vpop.permute.xlu0 %570
        %572 = vrot.lane.b32.xlu0 %v345, 127
        %v573 = vpop.permute.xlu0 %572
        %574 = vrot.lane.b32.xlu0 %v349, 127
        %v575 = vpop.permute.xlu0 %574
        %576 = vrot.lane.b32.xlu0 %v353, 127
        %v577 = vpop.permute.xlu0 %576
        %578 = vrot.lane.b32.xlu0 %v357, 127
        %v579 = vpop.permute.xlu0 %578
        %580 = vrot.lane.b32.xlu0 %v346, 127
        %v581 = vpop.permute.xlu0 %580
        %582 = vrot.lane.b32.xlu0 %v350, 127
        %v583 = vpop.permute.xlu0 %582
        %584 = vrot.lane.b32.xlu0 %v354, 127
        %v585 = vpop.permute.xlu0 %584
        %586 = vrot.lane.b32.xlu0 %v358, 127
        %v587 = vpop.permute.xlu0 %586
        %vm588 = vcmp.lt.s32.totalorder %v251, 127
        %v589 = vsel %vm588, %v573, %v581
        %v590 = vsel %vm588, %v575, %v583
        %v591 = vsel %vm588, %v577, %v585
        %v592 = vsel %vm588, %v579, %v587
        %v593 = vsel %vm588, %v565, %v573
        %v594 = vsel %vm588, %v567, %v575
        %v595 = vsel %vm588, %v569, %v577
        %v596 = vsel %vm588, %v571, %v579
        %v597 = vsel %vm588, %v557, %v565
        %v598 = vsel %vm588, %v559, %v567
        %v599 = vsel %vm588, %v561, %v569
        %v600 = vsel %vm588, %v563, %v571
        %v601 = vsel %vm588, %v581, %v557
        %v602 = vsel %vm588, %v583, %v559
        %v603 = vsel %vm588, %v585, %v561
        %v604 = vsel %vm588, %v587, %v563
        %vm605 = vcmp.ge.s32.totalorder %v299, 0
        %vm606 = vcmp.ge.s32.totalorder %v300, 0
        %vm607 = vcmp.ge.s32.totalorder %v301, 0
        %vm608 = vcmp.ge.s32.totalorder %v302, 0
        %vm609 = vcmp.lt.s32.totalorder %v299, 255
        %vm610 = vcmp.lt.s32.totalorder %v300, 255
        %vm611 = vcmp.lt.s32.totalorder %v301, 255
        %vm612 = vcmp.lt.s32.totalorder %v302, 255
        %vm613 = vmand %vm605, %vm609
        %vm614 = vmand %vm606, %vm610
        %vm615 = vmand %vm607, %vm611
        %vm616 = vmand %vm608, %vm612
        %v617 = vsel %vm613, 1, 0
        %v618 = vsel %vm614, 1, 0
        %v619 = vsel %vm615, 1, 0
        %v620 = vsel %vm616, 1, 0
        %vm621 = vcmp.eq.s32.totalorder %v617, 1
        %vm622 = vcmp.eq.s32.totalorder %v618, 1
        %vm623 = vcmp.eq.s32.totalorder %v619, 1
        %vm624 = vcmp.eq.s32.totalorder %v620, 1
        %v625 = vsel %vm621, %v597, 0.0
        %v626 = vsel %vm622, %v593, 0.0
        %v627 = vsel %vm623, %v589, 0.0
        %v628 = vsel %vm624, %v601, 0.0
        %v629 = vsel %vm621, %v598, 0.0
        %v630 = vsel %vm622, %v594, 0.0
        %v631 = vsel %vm623, %v590, 0.0
        %v632 = vsel %vm624, %v602, 0.0
        %v633 = vsel %vm621, %v599, 0.0
        %v634 = vsel %vm622, %v595, 0.0
        %v635 = vsel %vm623, %v591, 0.0
        %v636 = vsel %vm624, %v603, 0.0
        %v637 = vsel %vm621, %v600, 0.0
        %v638 = vsel %vm622, %v596, 0.0
        %v639 = vsel %vm623, %v592, 0.0
        %v640 = vsel %vm624, %v604, 0.0
        %v641 = vpack.c.bf16 %v629, %v625
        %v642 = vpack.c.bf16 %v630, %v626
        %v643 = vpack.c.bf16 %v631, %v627
        %v644 = vpack.c.bf16 %v632, %v628
        %v645 = vpack.c.bf16 %v637, %v633
        %v646 = vpack.c.bf16 %v638, %v634
        %v647 = vpack.c.bf16 %v639, %v635
        %v648 = vpack.c.bf16 %v640, %v636
        %v657 = vunpack.c.l.b16 %v641
        %v658 = vunpack.c.l.b16 %v642
        %v659 = vunpack.c.l.b16 %v643
        %v660 = vunpack.c.l.b16 %v644
        %v661 = vunpack.c.h.b16 %v641
        %v662 = vunpack.c.h.b16 %v642
        %v663 = vunpack.c.h.b16 %v643
        %v664 = vunpack.c.h.b16 %v644
        %v665 = vunpack.c.l.b16 %v645
        %v666 = vunpack.c.l.b16 %v646
        %v667 = vunpack.c.l.b16 %v647
        %v668 = vunpack.c.l.b16 %v648
        %v669 = vunpack.c.h.b16 %v645
        %v670 = vunpack.c.h.b16 %v646
        %v671 = vunpack.c.h.b16 %v647
        %v672 = vunpack.c.h.b16 %v648
        %v673 = vpack.c.b16 %v658, %v657
        %v674 = vpack.c.b16 %v660, %v659
        %v675 = vpack.c.b16 %v662, %v661
        %v676 = vpack.c.b16 %v664, %v663
        %v677 = vpack.c.b16 %v666, %v665
        %v678 = vpack.c.b16 %v668, %v667
        %v679 = vpack.c.b16 %v670, %v669
        %v680 = vpack.c.b16 %v672, %v671
        %689 = vst [vmem:[#allocation2 + $0x80] sm:$0xff] %v673
        %690 = vst [vmem:[#allocation2 + $0x88] sm:$0xff] %v674
        %691 = vst [vmem:[#allocation2 + $0x90] sm:$0xff] %v675
        %692 = vst [vmem:[#allocation2 + $0x98] sm:$0xff] %v676
        %693 = vst [vmem:[#allocation2 + $0xa0] sm:$0xff] %v677
        %694 = vst [vmem:[#allocation2 + $0xa8] sm:$0xff] %v678
        %695 = vst [vmem:[#allocation2 + $0xb0] sm:$0xff] %v679
        %696 = vst [vmem:[#allocation2 + $0xb8] sm:$0xff] %v680
        %v697 = vld [vmem:[#allocation2] sm:$0xff]
        %v698 = vld [vmem:[#allocation2 + $0x8] sm:$0xff]
        %v699 = vld [vmem:[#allocation2 + $0x10] sm:$0xff]
        %v700 = vld [vmem:[#allocation2 + $0x18] sm:$0xff]
        %v701 = vld [vmem:[#allocation2 + $0x20] sm:$0xff]
        %v702 = vld [vmem:[#allocation2 + $0x28] sm:$0xff]
        %v703 = vld [vmem:[#allocation2 + $0x30] sm:$0xff]
        %v704 = vld [vmem:[#allocation2 + $0x38] sm:$0xff]
        %v705 = vld [vmem:[#allocation2 + $0x40] sm:$0xff]
        %v706 = vld [vmem:[#allocation2 + $0x48] sm:$0xff]
        %v707 = vld [vmem:[#allocation2 + $0x50] sm:$0xff]
        %v708 = vld [vmem:[#allocation2 + $0x58] sm:$0xff]
        %v709 = vld [vmem:[#allocation2 + $0x60] sm:$0xff]
        %v710 = vld [vmem:[#allocation2 + $0x68] sm:$0xff]
        %v711 = vld [vmem:[#allocation2 + $0x70] sm:$0xff]
        %v712 = vld [vmem:[#allocation2 + $0x78] sm:$0xff]
        %v713 = vld [vmem:[#allocation2 + $0x80] sm:$0xff]
        %v714 = vld [vmem:[#allocation2 + $0x88] sm:$0xff]
        %v715 = vld [vmem:[#allocation2 + $0x90] sm:$0xff]
        %v716 = vld [vmem:[#allocation2 + $0x98] sm:$0xff]
        %v717 = vld [vmem:[#allocation2 + $0xa0] sm:$0xff]
        %v718 = vld [vmem:[#allocation2 + $0xa8] sm:$0xff]
        %v719 = vld [vmem:[#allocation2 + $0xb0] sm:$0xff]
        %v720 = vld [vmem:[#allocation2 + $0xb8] sm:$0xff]
        %722 = vset.pattern.permute.xlu0 0
        %723 = vperm.xlu0 %722, %v307
        %v724 = vpop.permute.xlu0 %723
        %727 = vset.pattern.permute.xlu0 0
        %728 = vperm.xlu0 %727, %v308
        %v729 = vpop.permute.xlu0 %728
        %732 = vset.pattern.permute.xlu0 0
        %733 = vperm.xlu0 %732, %v309
        %v734 = vpop.permute.xlu0 %733
        %737 = vset.pattern.permute.xlu0 0
        %738 = vperm.xlu0 %737, %v310
        %v739 = vpop.permute.xlu0 %738
        %v745 = vunpack.c.l.b16 %v303
        %v746 = vunpack.c.l.b16 %v304
        %v747 = vunpack.c.l.b16 %v305
        %v748 = vunpack.c.l.b16 %v306
        %v749 = vpack.c.b16 %v746, %v745
        %v750 = vpack.c.b16 %v748, %v747
        %v775 = vunpack.c.l.b16 %v697
        %v776 = vunpack.c.h.b16 %v697
        %v777 = vunpack.c.l.b16 %v698
        %v778 = vunpack.c.h.b16 %v698
        %v779 = vunpack.c.l.b16 %v699
        %v780 = vunpack.c.h.b16 %v699
        %v781 = vunpack.c.l.b16 %v700
        %v782 = vunpack.c.h.b16 %v700
        %v783 = vunpack.c.l.b16 %v701
        %v784 = vunpack.c.h.b16 %v701
        %v785 = vunpack.c.l.b16 %v702
        %v786 = vunpack.c.h.b16 %v702
        %v787 = vunpack.c.l.b16 %v703
        %v788 = vunpack.c.h.b16 %v703
        %v789 = vunpack.c.l.b16 %v704
        %v790 = vunpack.c.h.b16 %v704
        %v791 = vunpack.c.l.b16 %v705
        %v792 = vunpack.c.h.b16 %v705
        %v793 = vunpack.c.l.b16 %v706
        %v794 = vunpack.c.h.b16 %v706
        %v795 = vunpack.c.l.b16 %v707
        %v796 = vunpack.c.h.b16 %v707
        %v797 = vunpack.c.l.b16 %v708
        %v798 = vunpack.c.h.b16 %v708
        %v799 = vunpack.c.l.b16 %v709
        %v800 = vunpack.c.h.b16 %v709
        %v801 = vunpack.c.l.b16 %v710
        %v802 = vunpack.c.h.b16 %v710
        %v803 = vunpack.c.l.b16 %v711
        %v804 = vunpack.c.h.b16 %v711
        %v805 = vunpack.c.l.b16 %v712
        %v806 = vunpack.c.h.b16 %v712
        %v807 = vunpack.c.l.b16 %v713
        %v808 = vunpack.c.h.b16 %v713
        %v809 = vunpack.c.l.b16 %v714
        %v810 = vunpack.c.h.b16 %v714
        %v811 = vunpack.c.l.b16 %v715
        %v812 = vunpack.c.h.b16 %v715
        %v813 = vunpack.c.l.b16 %v716
        %v814 = vunpack.c.h.b16 %v716
        %v815 = vunpack.c.l.b16 %v717
        %v816 = vunpack.c.h.b16 %v717
        %v817 = vunpack.c.l.b16 %v718
        %v818 = vunpack.c.h.b16 %v718
        %v819 = vunpack.c.l.b16 %v719
        %v820 = vunpack.c.h.b16 %v719
        %v821 = vunpack.c.l.b16 %v720
        %v822 = vunpack.c.h.b16 %v720
        %v823 = vpack.c.b16 %v779, %v775
        %v824 = vpack.c.b16 %v780, %v776
        %v825 = vpack.c.b16 %v781, %v777
        %v826 = vpack.c.b16 %v782, %v778
        %v827 = vpack.c.b16 %v787, %v783
        %v828 = vpack.c.b16 %v788, %v784
        %v829 = vpack.c.b16 %v789, %v785
        %v830 = vpack.c.b16 %v790, %v786
        %v831 = vpack.c.b16 %v795, %v791
        %v832 = vpack.c.b16 %v796, %v792
        %v833 = vpack.c.b16 %v797, %v793
        %v834 = vpack.c.b16 %v798, %v794
        %v835 = vpack.c.b16 %v803, %v799
        %v836 = vpack.c.b16 %v804, %v800
        %v837 = vpack.c.b16 %v805, %v801
        %v838 = vpack.c.b16 %v806, %v802
        %v839 = vpack.c.b16 %v811, %v807
        %v840 = vpack.c.b16 %v812, %v808
        %v841 = vpack.c.b16 %v813, %v809
        %v842 = vpack.c.b16 %v814, %v810
        %v843 = vpack.c.b16 %v819, %v815
        %v844 = vpack.c.b16 %v820, %v816
        %v845 = vpack.c.b16 %v821, %v817
        %v846 = vpack.c.b16 %v822, %v818
        %vm871 = vcmask 785408
        %v873 = vsel %vm871, %v749, 0
        %v876 = vsel %vm871, %v750, 0
        %878 = vmatprep.subr.bf16.mxu0 0
        %879 = vmatpush1.bf16.msra.mxu0 0
        %880 = vmatprep.subr.bf16.mxu0 0
        %881 = vmatpush1.bf16.msra.mxu0 0
        %882 = vmatprep.subr.bf16.mxu0 %v844
        %883 = vmatpush1.bf16.msra.mxu0 %v843
        %884 = vmatprep.subr.bf16.mxu0 %v840
        %885 = vmatpush1.bf16.msra.mxu0 %v839
        %886 = vmatprep.subr.bf16.mxu0 %v836
        %887 = vmatpush1.bf16.msra.mxu0 %v835
        %888 = vmatprep.subr.bf16.mxu0 %v832
        %889 = vmatpush1.bf16.msra.mxu0 %v831
        %890 = vmatprep.subr.bf16.mxu0 %v828
        %891 = vmatpush1.bf16.msra.mxu0 %v827
        %892 = vmatprep.subr.bf16.mxu0 %v824
        %893 = vmatpush1.bf16.msra.mxu0 %v823
        %894 = vmatprep.subr.bf16.mxu0 0
        %895 = vmatpush2.bf16.msra.mxu0 0
        %896 = vmatprep.subr.bf16.mxu0 0
        %897 = vmatpush2.bf16.msra.mxu0 0
        %898 = vmatprep.subr.bf16.mxu0 0
        %899 = vmatpush2.bf16.msra.mxu0 0
        %900 = vmatprep.subr.bf16.mxu0 0
        %901 = vmatpush2.bf16.msra.mxu0 0
        %902 = vmatprep.subr.bf16.mxu0 0
        %903 = vmatpush2.bf16.msra.mxu0 0
        %904 = vmatprep.subr.bf16.mxu0 0
        %905 = vmatpush2.bf16.msra.mxu0 0
        %906 = vmatprep.subr.bf16.mxu0 0
        %907 = vmatpush2.bf16.msra.mxu0 0
        %908 = vmatprep.subr.bf16.mxu0 0
        %909 = vmatpush2.bf16.msra.mxu0 0
        %910 = vmatprep.mubr.bf16.mxu0 0
        %911 = vmatmul.mubr.bf16.gmra.mxu0 %v873
        %v912 = vpop.f32.mrf.mxu0
        %v913 = vadd.f32 %v724, %v912
        %v914 = vpop.f32.mrf.mxu0
        %v915 = vadd.f32 %v724, %v914
        %v916 = vpop.f32.mrf.mxu0
        %v917 = vadd.f32 %v729, %v916
        %v918 = vpop.f32.mrf.mxu0
        %v919 = vadd.f32 %v729, %v918
        %920 = vmatprep.mubr.bf16.mxu0 0
        %921 = vmatmul.mubr.bf16.gmra.mxu0 %v876
        %v922 = vpop.f32.mrf.mxu0
        %v923 = vadd.f32 %v734, %v922
        %v924 = vpop.f32.mrf.mxu0
        %v925 = vadd.f32 %v734, %v924
        %v926 = vpop.f32.mrf.mxu0
        %v927 = vadd.f32 %v739, %v926
        %v928 = vpop.f32.mrf.mxu0
        %v929 = vadd.f32 %v739, %v928
        %930 = vdwg.mxu0
        %931 = vmatprep.subr.bf16.mxu0 0
        %932 = vmatpush1.bf16.msra.mxu0 0
        %933 = vmatprep.subr.bf16.mxu0 0
        %934 = vmatpush1.bf16.msra.mxu0 0
        %935 = vmatprep.subr.bf16.mxu0 %v846
        %936 = vmatpush1.bf16.msra.mxu0 %v845
        %937 = vmatprep.subr.bf16.mxu0 %v842
        %938 = vmatpush1.bf16.msra.mxu0 %v841
        %939 = vmatprep.subr.bf16.mxu0 %v838
        %940 = vmatpush1.bf16.msra.mxu0 %v837
        %941 = vmatprep.subr.bf16.mxu0 %v834
        %942 = vmatpush1.bf16.msra.mxu0 %v833
        %943 = vmatprep.subr.bf16.mxu0 %v830
        %944 = vmatpush1.bf16.msra.mxu0 %v829
        %945 = vmatprep.subr.bf16.mxu0 %v826
        %946 = vmatpush1.bf16.msra.mxu0 %v825
        %947 = vmatprep.subr.bf16.mxu0 0
        %948 = vmatpush2.bf16.msra.mxu0 0
        %949 = vmatprep.subr.bf16.mxu0 0
        %950 = vmatpush2.bf16.msra.mxu0 0
        %951 = vmatprep.subr.bf16.mxu0 0
        %952 = vmatpush2.bf16.msra.mxu0 0
        %953 = vmatprep.subr.bf16.mxu0 0
        %954 = vmatpush2.bf16.msra.mxu0 0
        %955 = vmatprep.subr.bf16.mxu0 0
        %956 = vmatpush2.bf16.msra.mxu0 0
        %957 = vmatprep.subr.bf16.mxu0 0
        %958 = vmatpush2.bf16.msra.mxu0 0
        %959 = vmatprep.subr.bf16.mxu0 0
        %960 = vmatpush2.bf16.msra.mxu0 0
        %961 = vmatprep.subr.bf16.mxu0 0
        %962 = vmatpush2.bf16.msra.mxu0 0
        %963 = vmatprep.mubr.bf16.mxu0 0
        %964 = vmatmul.mubr.bf16.gmra.mxu0 %v873
        %v965 = vpop.f32.mrf.mxu0
        %v966 = vadd.f32 %v724, %v965
        %v967 = vpop.f32.mrf.mxu0
        %v968 = vadd.f32 %v724, %v967
        %v969 = vpop.f32.mrf.mxu0
        %v970 = vadd.f32 %v729, %v969
        %v971 = vpop.f32.mrf.mxu0
        %v972 = vadd.f32 %v729, %v971
        %973 = vmatprep.mubr.bf16.mxu0 0
        %974 = vmatmul.mubr.bf16.gmra.mxu0 %v876
        %v975 = vpop.f32.mrf.mxu0
        %v976 = vadd.f32 %v734, %v975
        %v977 = vpop.f32.mrf.mxu0
        %v978 = vadd.f32 %v734, %v977
        %v979 = vpop.f32.mrf.mxu0
        %v980 = vadd.f32 %v739, %v979
        %v981 = vpop.f32.mrf.mxu0
        %v982 = vadd.f32 %v739, %v981
        %983 = vdwg.mxu0
        %s984 = scalar_lea.vmem [#allocation3], 16
        %v985 = vld [vmem:[%s984] sm:$0xf]
        %v986 = vld [vmem:[%s984 + $0x4] sm:$0xf]
        %v987 = vld [vmem:[%s984 + $0x8] sm:$0xf]
        %v988 = vld [vmem:[%s984 + $0xc] sm:$0xf]
        %s989 = scalar_lea.vmem %s3, 32
        %v990 = vld [vmem:[%s989] sm:$0xff]
        %v991 = vld [vmem:[%s989 + $0x8] sm:$0xff]
        %v992 = vld [vmem:[%s989 + $0x10] sm:$0xff]
        %v993 = vld [vmem:[%s989 + $0x18] sm:$0xff]
        %vm994 = vcmp.gt.f32.partialorder %v913, 0.0
        %vm995 = vcmp.gt.f32.partialorder %v915, 0.0
        %vm996 = vcmp.gt.f32.partialorder %v966, 0.0
        %vm997 = vcmp.gt.f32.partialorder %v968, 0.0
        %vm998 = vcmp.gt.f32.partialorder %v917, 0.0
        %vm999 = vcmp.gt.f32.partialorder %v919, 0.0
        %vm1000 = vcmp.gt.f32.partialorder %v970, 0.0
        %vm1001 = vcmp.gt.f32.partialorder %v972, 0.0
        %vm1002 = vcmp.gt.f32.partialorder %v923, 0.0
        %vm1003 = vcmp.gt.f32.partialorder %v925, 0.0
        %vm1004 = vcmp.gt.f32.partialorder %v976, 0.0
        %vm1005 = vcmp.gt.f32.partialorder %v978, 0.0
        %vm1006 = vcmp.gt.f32.partialorder %v927, 0.0
        %vm1007 = vcmp.gt.f32.partialorder %v929, 0.0
        %vm1008 = vcmp.gt.f32.partialorder %v980, 0.0
        %vm1009 = vcmp.gt.f32.partialorder %v982, 0.0
        %v1010 = vmul.f32 %v913, 0.1
        %v1011 = vmul.f32 %v915, 0.1
        %v1012 = vmul.f32 %v966, 0.1
        %v1013 = vmul.f32 %v968, 0.1
        %v1014 = vmul.f32 %v917, 0.1
        %v1015 = vmul.f32 %v919, 0.1
        %v1016 = vmul.f32 %v970, 0.1
        %v1017 = vmul.f32 %v972, 0.1
        %v1018 = vmul.f32 %v923, 0.1
        %v1019 = vmul.f32 %v925, 0.1
        %v1020 = vmul.f32 %v976, 0.1
        %v1021 = vmul.f32 %v978, 0.1
        %v1022 = vmul.f32 %v927, 0.1
        %v1023 = vmul.f32 %v929, 0.1
        %v1024 = vmul.f32 %v980, 0.1
        %v1025 = vmul.f32 %v982, 0.1
        %v1026 = vsel %vm994, %v913, %v1010
        %v1027 = vsel %vm995, %v915, %v1011
        %v1028 = vsel %vm996, %v966, %v1012
        %v1029 = vsel %vm997, %v968, %v1013
        %v1030 = vsel %vm998, %v917, %v1014
        %v1031 = vsel %vm999, %v919, %v1015
        %v1032 = vsel %vm1000, %v970, %v1016
        %v1033 = vsel %vm1001, %v972, %v1017
        %v1034 = vsel %vm1002, %v923, %v1018
        %v1035 = vsel %vm1003, %v925, %v1019
        %v1036 = vsel %vm1004, %v976, %v1020
        %v1037 = vsel %vm1005, %v978, %v1021
        %v1038 = vsel %vm1006, %v927, %v1022
        %v1039 = vsel %vm1007, %v929, %v1023
        %v1040 = vsel %vm1008, %v980, %v1024
        %v1041 = vsel %vm1009, %v982, %v1025
        %1042 = vrot.lane.b32.xlu0 %v1026, 2
        %v1043 = vpop.permute.xlu0 %1042
        %1044 = vrot.lane.b32.xlu0 %v1030, 2
        %v1045 = vpop.permute.xlu0 %1044
        %1046 = vrot.lane.b32.xlu0 %v1034, 2
        %v1047 = vpop.permute.xlu0 %1046
        %1048 = vrot.lane.b32.xlu0 %v1038, 2
        %v1049 = vpop.permute.xlu0 %1048
        %1050 = vrot.lane.b32.xlu0 %v1027, 2
        %v1051 = vpop.permute.xlu0 %1050
        %1052 = vrot.lane.b32.xlu0 %v1031, 2
        %v1053 = vpop.permute.xlu0 %1052
        %1054 = vrot.lane.b32.xlu0 %v1035, 2
        %v1055 = vpop.permute.xlu0 %1054
        %1056 = vrot.lane.b32.xlu0 %v1039, 2
        %v1057 = vpop.permute.xlu0 %1056
        %1058 = vrot.lane.b32.xlu0 %v1028, 2
        %v1059 = vpop.permute.xlu0 %1058
        %1060 = vrot.lane.b32.xlu0 %v1032, 2
        %v1061 = vpop.permute.xlu0 %1060
        %1062 = vrot.lane.b32.xlu0 %v1036, 2
        %v1063 = vpop.permute.xlu0 %1062
        %1064 = vrot.lane.b32.xlu0 %v1040, 2
        %v1065 = vpop.permute.xlu0 %1064
        %1066 = vrot.lane.b32.xlu0 %v1029, 2
        %v1067 = vpop.permute.xlu0 %1066
        %1068 = vrot.lane.b32.xlu0 %v1033, 2
        %v1069 = vpop.permute.xlu0 %1068
        %1070 = vrot.lane.b32.xlu0 %v1037, 2
        %v1071 = vpop.permute.xlu0 %1070
        %1072 = vrot.lane.b32.xlu0 %v1041, 2
        %v1073 = vpop.permute.xlu0 %1072
        %vm1074 = vcmp.lt.s32.totalorder %v251, 2
        %v1075 = vsel %vm1074, %v1059, %v1067
        %v1076 = vsel %vm1074, %v1061, %v1069
        %v1077 = vsel %vm1074, %v1063, %v1071
        %v1078 = vsel %vm1074, %v1065, %v1073
        %v1079 = vsel %vm1074, %v1051, %v1059
        %v1080 = vsel %vm1074, %v1053, %v1061
        %v1081 = vsel %vm1074, %v1055, %v1063
        %v1082 = vsel %vm1074, %v1057, %v1065
        %v1083 = vsel %vm1074, %v1043, %v1051
        %v1084 = vsel %vm1074, %v1045, %v1053
        %v1085 = vsel %vm1074, %v1047, %v1055
        %v1086 = vsel %vm1074, %v1049, %v1057
        %v1087 = vsel %vm1074, %v1067, %v1043
        %v1088 = vsel %vm1074, %v1069, %v1045
        %v1089 = vsel %vm1074, %v1071, %v1047
        %v1090 = vsel %vm1074, %v1073, %v1049
        %vm1091 = vcmp.ge.s32.totalorder %v299, 2
        %vm1092 = vcmp.ge.s32.totalorder %v300, 2
        %vm1093 = vcmp.ge.s32.totalorder %v301, 2
        %vm1094 = vcmp.ge.s32.totalorder %v302, 2
        %vm1095 = vmand %vm1091, %vm412
        %vm1096 = vmand %vm1092, %vm413
        %vm1097 = vmand %vm1093, %vm414
        %vm1098 = vmand %vm1094, %vm415
        %v1099 = vsel %vm1095, 1, 0
        %v1100 = vsel %vm1096, 1, 0
        %v1101 = vsel %vm1097, 1, 0
        %v1102 = vsel %vm1098, 1, 0
        %vm1103 = vcmp.eq.s32.totalorder %v1099, 1
        %vm1104 = vcmp.eq.s32.totalorder %v1100, 1
        %vm1105 = vcmp.eq.s32.totalorder %v1101, 1
        %vm1106 = vcmp.eq.s32.totalorder %v1102, 1
        %v1107 = vsel %vm1103, %v1087, 0.0
        %v1108 = vsel %vm1104, %v1083, 0.0
        %v1109 = vsel %vm1105, %v1079, 0.0
        %v1110 = vsel %vm1106, %v1075, 0.0
        %v1111 = vsel %vm1103, %v1088, 0.0
        %v1112 = vsel %vm1104, %v1084, 0.0
        %v1113 = vsel %vm1105, %v1080, 0.0
        %v1114 = vsel %vm1106, %v1076, 0.0
        %v1115 = vsel %vm1103, %v1089, 0.0
        %v1116 = vsel %vm1104, %v1085, 0.0
        %v1117 = vsel %vm1105, %v1081, 0.0
        %v1118 = vsel %vm1106, %v1077, 0.0
        %v1119 = vsel %vm1103, %v1090, 0.0
        %v1120 = vsel %vm1104, %v1086, 0.0
        %v1121 = vsel %vm1105, %v1082, 0.0
        %v1122 = vsel %vm1106, %v1078, 0.0
        %v1123 = vpack.c.bf16 %v1111, %v1107
        %v1124 = vpack.c.bf16 %v1112, %v1108
        %v1125 = vpack.c.bf16 %v1113, %v1109
        %v1126 = vpack.c.bf16 %v1114, %v1110
        %v1127 = vpack.c.bf16 %v1119, %v1115
        %v1128 = vpack.c.bf16 %v1120, %v1116
        %v1129 = vpack.c.bf16 %v1121, %v1117
        %v1130 = vpack.c.bf16 %v1122, %v1118
        %v1139 = vunpack.c.l.b16 %v1123
        %v1140 = vunpack.c.l.b16 %v1124
        %v1141 = vunpack.c.l.b16 %v1125
        %v1142 = vunpack.c.l.b16 %v1126
        %v1143 = vunpack.c.h.b16 %v1123
        %v1144 = vunpack.c.h.b16 %v1124
        %v1145 = vunpack.c.h.b16 %v1125
        %v1146 = vunpack.c.h.b16 %v1126
        %v1147 = vunpack.c.l.b16 %v1127
        %v1148 = vunpack.c.l.b16 %v1128
        %v1149 = vunpack.c.l.b16 %v1129
        %v1150 = vunpack.c.l.b16 %v1130
        %v1151 = vunpack.c.h.b16 %v1127
        %v1152 = vunpack.c.h.b16 %v1128
        %v1153 = vunpack.c.h.b16 %v1129
        %v1154 = vunpack.c.h.b16 %v1130
        %v1155 = vpack.c.b16 %v1140, %v1139
        %v1156 = vpack.c.b16 %v1142, %v1141
        %v1157 = vpack.c.b16 %v1144, %v1143
        %v1158 = vpack.c.b16 %v1146, %v1145
        %v1159 = vpack.c.b16 %v1148, %v1147
        %v1160 = vpack.c.b16 %v1150, %v1149
        %v1161 = vpack.c.b16 %v1152, %v1151
        %v1162 = vpack.c.b16 %v1154, %v1153
        %1171 = vst [vmem:[#allocation2] sm:$0xff] %v1155
        %1172 = vst [vmem:[#allocation2 + $0x8] sm:$0xff] %v1156
        %1173 = vst [vmem:[#allocation2 + $0x10] sm:$0xff] %v1157
        %1174 = vst [vmem:[#allocation2 + $0x18] sm:$0xff] %v1158
        %1175 = vst [vmem:[#allocation2 + $0x20] sm:$0xff] %v1159
        %1176 = vst [vmem:[#allocation2 + $0x28] sm:$0xff] %v1160
        %1177 = vst [vmem:[#allocation2 + $0x30] sm:$0xff] %v1161
        %1178 = vst [vmem:[#allocation2 + $0x38] sm:$0xff] %v1162
        %v1179 = vpack.c.bf16 %v1030, %v1026
        %v1180 = vpack.c.bf16 %v1031, %v1027
        %v1181 = vpack.c.bf16 %v1032, %v1028
        %v1182 = vpack.c.bf16 %v1033, %v1029
        %v1183 = vpack.c.bf16 %v1038, %v1034
        %v1184 = vpack.c.bf16 %v1039, %v1035
        %v1185 = vpack.c.bf16 %v1040, %v1036
        %v1186 = vpack.c.bf16 %v1041, %v1037
        %v1195 = vunpack.c.l.b16 %v1179
        %v1196 = vunpack.c.l.b16 %v1180
        %v1197 = vunpack.c.l.b16 %v1181
        %v1198 = vunpack.c.l.b16 %v1182
        %v1199 = vunpack.c.h.b16 %v1179
        %v1200 = vunpack.c.h.b16 %v1180
        %v1201 = vunpack.c.h.b16 %v1181
        %v1202 = vunpack.c.h.b16 %v1182
        %v1203 = vunpack.c.l.b16 %v1183
        %v1204 = vunpack.c.l.b16 %v1184
        %v1205 = vunpack.c.l.b16 %v1185
        %v1206 = vunpack.c.l.b16 %v1186
        %v1207 = vunpack.c.h.b16 %v1183
        %v1208 = vunpack.c.h.b16 %v1184
        %v1209 = vunpack.c.h.b16 %v1185
        %v1210 = vunpack.c.h.b16 %v1186
        %v1211 = vpack.c.b16 %v1196, %v1195
        %v1212 = vpack.c.b16 %v1198, %v1197
        %v1213 = vpack.c.b16 %v1200, %v1199
        %v1214 = vpack.c.b16 %v1202, %v1201
        %v1215 = vpack.c.b16 %v1204, %v1203
        %v1216 = vpack.c.b16 %v1206, %v1205
        %v1217 = vpack.c.b16 %v1208, %v1207
        %v1218 = vpack.c.b16 %v1210, %v1209
        %1227 = vst [vmem:[#allocation2 + $0x40] sm:$0xff] %v1211
        %1228 = vst [vmem:[#allocation2 + $0x48] sm:$0xff] %v1212
        %1229 = vst [vmem:[#allocation2 + $0x50] sm:$0xff] %v1213
        %1230 = vst [vmem:[#allocation2 + $0x58] sm:$0xff] %v1214
        %1231 = vst [vmem:[#allocation2 + $0x60] sm:$0xff] %v1215
        %1232 = vst [vmem:[#allocation2 + $0x68] sm:$0xff] %v1216
        %1233 = vst [vmem:[#allocation2 + $0x70] sm:$0xff] %v1217
        %1234 = vst [vmem:[#allocation2 + $0x78] sm:$0xff] %v1218
        %1235 = vrot.lane.b32.xlu0 %v1026, 126
        %v1236 = vpop.permute.xlu0 %1235
        %1237 = vrot.lane.b32.xlu0 %v1030, 126
        %v1238 = vpop.permute.xlu0 %1237
        %1239 = vrot.lane.b32.xlu0 %v1034, 126
        %v1240 = vpop.permute.xlu0 %1239
        %1241 = vrot.lane.b32.xlu0 %v1038, 126
        %v1242 = vpop.permute.xlu0 %1241
        %1243 = vrot.lane.b32.xlu0 %v1027, 126
        %v1244 = vpop.permute.xlu0 %1243
        %1245 = vrot.lane.b32.xlu0 %v1031, 126
        %v1246 = vpop.permute.xlu0 %1245
        %1247 = vrot.lane.b32.xlu0 %v1035, 126
        %v1248 = vpop.permute.xlu0 %1247
        %1249 = vrot.lane.b32.xlu0 %v1039, 126
        %v1250 = vpop.permute.xlu0 %1249
        %1251 = vrot.lane.b32.xlu0 %v1028, 126
        %v1252 = vpop.permute.xlu0 %1251
        %1253 = vrot.lane.b32.xlu0 %v1032, 126
        %v1254 = vpop.permute.xlu0 %1253
        %1255 = vrot.lane.b32.xlu0 %v1036, 126
        %v1256 = vpop.permute.xlu0 %1255
        %1257 = vrot.lane.b32.xlu0 %v1040, 126
        %v1258 = vpop.permute.xlu0 %1257
        %1259 = vrot.lane.b32.xlu0 %v1029, 126
        %v1260 = vpop.permute.xlu0 %1259
        %1261 = vrot.lane.b32.xlu0 %v1033, 126
        %v1262 = vpop.permute.xlu0 %1261
        %1263 = vrot.lane.b32.xlu0 %v1037, 126
        %v1264 = vpop.permute.xlu0 %1263
        %1265 = vrot.lane.b32.xlu0 %v1041, 126
        %v1266 = vpop.permute.xlu0 %1265
        %vm1267 = vcmp.lt.s32.totalorder %v251, 126
        %v1268 = vsel %vm1267, %v1252, %v1260
        %v1269 = vsel %vm1267, %v1254, %v1262
        %v1270 = vsel %vm1267, %v1256, %v1264
        %v1271 = vsel %vm1267, %v1258, %v1266
        %v1272 = vsel %vm1267, %v1244, %v1252
        %v1273 = vsel %vm1267, %v1246, %v1254
        %v1274 = vsel %vm1267, %v1248, %v1256
        %v1275 = vsel %vm1267, %v1250, %v1258
        %v1276 = vsel %vm1267, %v1236, %v1244
        %v1277 = vsel %vm1267, %v1238, %v1246
        %v1278 = vsel %vm1267, %v1240, %v1248
        %v1279 = vsel %vm1267, %v1242, %v1250
        %v1280 = vsel %vm1267, %v1260, %v1236
        %v1281 = vsel %vm1267, %v1262, %v1238
        %v1282 = vsel %vm1267, %v1264, %v1240
        %v1283 = vsel %vm1267, %v1266, %v1242
        %vm1284 = vcmp.lt.s32.totalorder %v299, 254
        %vm1285 = vcmp.lt.s32.totalorder %v300, 254
        %vm1286 = vcmp.lt.s32.totalorder %v301, 254
        %vm1287 = vcmp.lt.s32.totalorder %v302, 254
        %vm1288 = vmand %vm605, %vm1284
        %vm1289 = vmand %vm606, %vm1285
        %vm1290 = vmand %vm607, %vm1286
        %vm1291 = vmand %vm608, %vm1287
        %v1292 = vsel %vm1288, 1, 0
        %v1293 = vsel %vm1289, 1, 0
        %v1294 = vsel %vm1290, 1, 0
        %v1295 = vsel %vm1291, 1, 0
        %vm1296 = vcmp.eq.s32.totalorder %v1292, 1
        %vm1297 = vcmp.eq.s32.totalorder %v1293, 1
        %vm1298 = vcmp.eq.s32.totalorder %v1294, 1
        %vm1299 = vcmp.eq.s32.totalorder %v1295, 1
        %v1300 = vsel %vm1296, %v1276, 0.0
        %v1301 = vsel %vm1297, %v1272, 0.0
        %v1302 = vsel %vm1298, %v1268, 0.0
        %v1303 = vsel %vm1299, %v1280, 0.0
        %v1304 = vsel %vm1296, %v1277, 0.0
        %v1305 = vsel %vm1297, %v1273, 0.0
        %v1306 = vsel %vm1298, %v1269, 0.0
        %v1307 = vsel %vm1299, %v1281, 0.0
        %v1308 = vsel %vm1296, %v1278, 0.0
        %v1309 = vsel %vm1297, %v1274, 0.0
        %v1310 = vsel %vm1298, %v1270, 0.0
        %v1311 = vsel %vm1299, %v1282, 0.0
        %v1312 = vsel %vm1296, %v1279, 0.0
        %v1313 = vsel %vm1297, %v1275, 0.0
        %v1314 = vsel %vm1298, %v1271, 0.0
        %v1315 = vsel %vm1299, %v1283, 0.0
        %v1316 = vpack.c.bf16 %v1304, %v1300
        %v1317 = vpack.c.bf16 %v1305, %v1301
        %v1318 = vpack.c.bf16 %v1306, %v1302
        %v1319 = vpack.c.bf16 %v1307, %v1303
        %v1320 = vpack.c.bf16 %v1312, %v1308
        %v1321 = vpack.c.bf16 %v1313, %v1309
        %v1322 = vpack.c.bf16 %v1314, %v1310
        %v1323 = vpack.c.bf16 %v1315, %v1311
        %v1332 = vunpack.c.l.b16 %v1316
        %v1333 = vunpack.c.l.b16 %v1317
        %v1334 = vunpack.c.l.b16 %v1318
        %v1335 = vunpack.c.l.b16 %v1319
        %v1336 = vunpack.c.h.b16 %v1316
        %v1337 = vunpack.c.h.b16 %v1317
        %v1338 = vunpack.c.h.b16 %v1318
        %v1339 = vunpack.c.h.b16 %v1319
        %v1340 = vunpack.c.l.b16 %v1320
        %v1341 = vunpack.c.l.b16 %v1321
        %v1342 = vunpack.c.l.b16 %v1322
        %v1343 = vunpack.c.l.b16 %v1323
        %v1344 = vunpack.c.h.b16 %v1320
        %v1345 = vunpack.c.h.b16 %v1321
        %v1346 = vunpack.c.h.b16 %v1322
        %v1347 = vunpack.c.h.b16 %v1323
        %v1348 = vpack.c.b16 %v1333, %v1332
        %v1349 = vpack.c.b16 %v1335, %v1334
        %v1350 = vpack.c.b16 %v1337, %v1336
        %v1351 = vpack.c.b16 %v1339, %v1338
        %v1352 = vpack.c.b16 %v1341, %v1340
        %v1353 = vpack.c.b16 %v1343, %v1342
        %v1354 = vpack.c.b16 %v1345, %v1344
        %v1355 = vpack.c.b16 %v1347, %v1346
        %1364 = vst [vmem:[#allocation2 + $0x80] sm:$0xff] %v1348
        %1365 = vst [vmem:[#allocation2 + $0x88] sm:$0xff] %v1349
        %1366 = vst [vmem:[#allocation2 + $0x90] sm:$0xff] %v1350
        %1367 = vst [vmem:[#allocation2 + $0x98] sm:$0xff] %v1351
        %1368 = vst [vmem:[#allocation2 + $0xa0] sm:$0xff] %v1352
        %1369 = vst [vmem:[#allocation2 + $0xa8] sm:$0xff] %v1353
        %1370 = vst [vmem:[#allocation2 + $0xb0] sm:$0xff] %v1354
        %1371 = vst [vmem:[#allocation2 + $0xb8] sm:$0xff] %v1355
        %v1372 = vld [vmem:[#allocation2] sm:$0xff]
        %v1373 = vld [vmem:[#allocation2 + $0x8] sm:$0xff]
        %v1374 = vld [vmem:[#allocation2 + $0x10] sm:$0xff]
        %v1375 = vld [vmem:[#allocation2 + $0x18] sm:$0xff]
        %v1376 = vld [vmem:[#allocation2 + $0x20] sm:$0xff]
        %v1377 = vld [vmem:[#allocation2 + $0x28] sm:$0xff]
        %v1378 = vld [vmem:[#allocation2 + $0x30] sm:$0xff]
        %v1379 = vld [vmem:[#allocation2 + $0x38] sm:$0xff]
        %v1380 = vld [vmem:[#allocation2 + $0x40] sm:$0xff]
        %v1381 = vld [vmem:[#allocation2 + $0x48] sm:$0xff]
        %v1382 = vld [vmem:[#allocation2 + $0x50] sm:$0xff]
        %v1383 = vld [vmem:[#allocation2 + $0x58] sm:$0xff]
        %v1384 = vld [vmem:[#allocation2 + $0x60] sm:$0xff]
        %v1385 = vld [vmem:[#allocation2 + $0x68] sm:$0xff]
        %v1386 = vld [vmem:[#allocation2 + $0x70] sm:$0xff]
        %v1387 = vld [vmem:[#allocation2 + $0x78] sm:$0xff]
        %v1388 = vld [vmem:[#allocation2 + $0x80] sm:$0xff]
        %v1389 = vld [vmem:[#allocation2 + $0x88] sm:$0xff]
        %v1390 = vld [vmem:[#allocation2 + $0x90] sm:$0xff]
        %v1391 = vld [vmem:[#allocation2 + $0x98] sm:$0xff]
        %v1392 = vld [vmem:[#allocation2 + $0xa0] sm:$0xff]
        %v1393 = vld [vmem:[#allocation2 + $0xa8] sm:$0xff]
        %v1394 = vld [vmem:[#allocation2 + $0xb0] sm:$0xff]
        %v1395 = vld [vmem:[#allocation2 + $0xb8] sm:$0xff]
        %1397 = vset.pattern.permute.xlu0 0
        %1398 = vperm.xlu0 %1397, %v990
        %v1399 = vpop.permute.xlu0 %1398
        %1402 = vset.pattern.permute.xlu0 0
        %1403 = vperm.xlu0 %1402, %v991
        %v1404 = vpop.permute.xlu0 %1403
        %1407 = vset.pattern.permute.xlu0 0
        %1408 = vperm.xlu0 %1407, %v992
        %v1409 = vpop.permute.xlu0 %1408
        %1412 = vset.pattern.permute.xlu0 0
        %1413 = vperm.xlu0 %1412, %v993
        %v1414 = vpop.permute.xlu0 %1413
        %v1420 = vunpack.c.l.b16 %v985
        %v1421 = vunpack.c.l.b16 %v986
        %v1422 = vunpack.c.l.b16 %v987
        %v1423 = vunpack.c.l.b16 %v988
        %v1424 = vpack.c.b16 %v1421, %v1420
        %v1425 = vpack.c.b16 %v1423, %v1422
        %v1450 = vunpack.c.l.b16 %v1372
        %v1451 = vunpack.c.h.b16 %v1372
        %v1452 = vunpack.c.l.b16 %v1373
        %v1453 = vunpack.c.h.b16 %v1373
        %v1454 = vunpack.c.l.b16 %v1374
        %v1455 = vunpack.c.h.b16 %v1374
        %v1456 = vunpack.c.l.b16 %v1375
        %v1457 = vunpack.c.h.b16 %v1375
        %v1458 = vunpack.c.l.b16 %v1376
        %v1459 = vunpack.c.h.b16 %v1376
        %v1460 = vunpack.c.l.b16 %v1377
        %v1461 = vunpack.c.h.b16 %v1377
        %v1462 = vunpack.c.l.b16 %v1378
        %v1463 = vunpack.c.h.b16 %v1378
        %v1464 = vunpack.c.l.b16 %v1379
        %v1465 = vunpack.c.h.b16 %v1379
        %v1466 = vunpack.c.l.b16 %v1380
        %v1467 = vunpack.c.h.b16 %v1380
        %v1468 = vunpack.c.l.b16 %v1381
        %v1469 = vunpack.c.h.b16 %v1381
        %v1470 = vunpack.c.l.b16 %v1382
        %v1471 = vunpack.c.h.b16 %v1382
        %v1472 = vunpack.c.l.b16 %v1383
        %v1473 = vunpack.c.h.b16 %v1383
        %v1474 = vunpack.c.l.b16 %v1384
        %v1475 = vunpack.c.h.b16 %v1384
        %v1476 = vunpack.c.l.b16 %v1385
        %v1477 = vunpack.c.h.b16 %v1385
        %v1478 = vunpack.c.l.b16 %v1386
        %v1479 = vunpack.c.h.b16 %v1386
        %v1480 = vunpack.c.l.b16 %v1387
        %v1481 = vunpack.c.h.b16 %v1387
        %v1482 = vunpack.c.l.b16 %v1388
        %v1483 = vunpack.c.h.b16 %v1388
        %v1484 = vunpack.c.l.b16 %v1389
        %v1485 = vunpack.c.h.b16 %v1389
        %v1486 = vunpack.c.l.b16 %v1390
        %v1487 = vunpack.c.h.b16 %v1390
        %v1488 = vunpack.c.l.b16 %v1391
        %v1489 = vunpack.c.h.b16 %v1391
        %v1490 = vunpack.c.l.b16 %v1392
        %v1491 = vunpack.c.h.b16 %v1392
        %v1492 = vunpack.c.l.b16 %v1393
        %v1493 = vunpack.c.h.b16 %v1393
        %v1494 = vunpack.c.l.b16 %v1394
        %v1495 = vunpack.c.h.b16 %v1394
        %v1496 = vunpack.c.l.b16 %v1395
        %v1497 = vunpack.c.h.b16 %v1395
        %v1498 = vpack.c.b16 %v1454, %v1450
        %v1499 = vpack.c.b16 %v1455, %v1451
        %v1500 = vpack.c.b16 %v1456, %v1452
        %v1501 = vpack.c.b16 %v1457, %v1453
        %v1502 = vpack.c.b16 %v1462, %v1458
        %v1503 = vpack.c.b16 %v1463, %v1459
        %v1504 = vpack.c.b16 %v1464, %v1460
        %v1505 = vpack.c.b16 %v1465, %v1461
        %v1506 = vpack.c.b16 %v1470, %v1466
        %v1507 = vpack.c.b16 %v1471, %v1467
        %v1508 = vpack.c.b16 %v1472, %v1468
        %v1509 = vpack.c.b16 %v1473, %v1469
        %v1510 = vpack.c.b16 %v1478, %v1474
        %v1511 = vpack.c.b16 %v1479, %v1475
        %v1512 = vpack.c.b16 %v1480, %v1476
        %v1513 = vpack.c.b16 %v1481, %v1477
        %v1514 = vpack.c.b16 %v1486, %v1482
        %v1515 = vpack.c.b16 %v1487, %v1483
        %v1516 = vpack.c.b16 %v1488, %v1484
        %v1517 = vpack.c.b16 %v1489, %v1485
        %v1518 = vpack.c.b16 %v1494, %v1490
        %v1519 = vpack.c.b16 %v1495, %v1491
        %v1520 = vpack.c.b16 %v1496, %v1492
        %v1521 = vpack.c.b16 %v1497, %v1493
        %v1547 = vsel %vm871, %v1424, 0
        %v1550 = vsel %vm871, %v1425, 0
        %1552 = vmatprep.subr.bf16.mxu0 0
        %1553 = vmatpush1.bf16.msra.mxu0 0
        %1554 = vmatprep.subr.bf16.mxu0 0
        %1555 = vmatpush1.bf16.msra.mxu0 0
        %1556 = vmatprep.subr.bf16.mxu0 %v1519
        %1557 = vmatpush1.bf16.msra.mxu0 %v1518
        %1558 = vmatprep.subr.bf16.mxu0 %v1515
        %1559 = vmatpush1.bf16.msra.mxu0 %v1514
        %1560 = vmatprep.subr.bf16.mxu0 %v1511
        %1561 = vmatpush1.bf16.msra.mxu0 %v1510
        %1562 = vmatprep.subr.bf16.mxu0 %v1507
        %1563 = vmatpush1.bf16.msra.mxu0 %v1506
        %1564 = vmatprep.subr.bf16.mxu0 %v1503
        %1565 = vmatpush1.bf16.msra.mxu0 %v1502
        %1566 = vmatprep.subr.bf16.mxu0 %v1499
        %1567 = vmatpush1.bf16.msra.mxu0 %v1498
        %1568 = vmatprep.subr.bf16.mxu0 0
        %1569 = vmatpush2.bf16.msra.mxu0 0
        %1570 = vmatprep.subr.bf16.mxu0 0
        %1571 = vmatpush2.bf16.msra.mxu0 0
        %1572 = vmatprep.subr.bf16.mxu0 0
        %1573 = vmatpush2.bf16.msra.mxu0 0
        %1574 = vmatprep.subr.bf16.mxu0 0
        %1575 = vmatpush2.bf16.msra.mxu0 0
        %1576 = vmatprep.subr.bf16.mxu0 0
        %1577 = vmatpush2.bf16.msra.mxu0 0
        %1578 = vmatprep.subr.bf16.mxu0 0
        %1579 = vmatpush2.bf16.msra.mxu0 0
        %1580 = vmatprep.subr.bf16.mxu0 0
        %1581 = vmatpush2.bf16.msra.mxu0 0
        %1582 = vmatprep.subr.bf16.mxu0 0
        %1583 = vmatpush2.bf16.msra.mxu0 0
        %1584 = vmatprep.mubr.bf16.mxu0 0
        %1585 = vmatmul.mubr.bf16.gmra.mxu0 %v1547
        %v1586 = vpop.f32.mrf.mxu0
        %v1587 = vadd.f32 %v1399, %v1586
        %v1588 = vpop.f32.mrf.mxu0
        %v1589 = vadd.f32 %v1399, %v1588
        %v1590 = vpop.f32.mrf.mxu0
        %v1591 = vadd.f32 %v1404, %v1590
        %v1592 = vpop.f32.mrf.mxu0
        %v1593 = vadd.f32 %v1404, %v1592
        %1594 = vmatprep.mubr.bf16.mxu0 0
        %1595 = vmatmul.mubr.bf16.gmra.mxu0 %v1550
        %v1596 = vpop.f32.mrf.mxu0
        %v1597 = vadd.f32 %v1409, %v1596
        %v1598 = vpop.f32.mrf.mxu0
        %v1599 = vadd.f32 %v1409, %v1598
        %v1600 = vpop.f32.mrf.mxu0
        %v1601 = vadd.f32 %v1414, %v1600
        %v1602 = vpop.f32.mrf.mxu0
        %v1603 = vadd.f32 %v1414, %v1602
        %1604 = vdwg.mxu0
        %1605 = vmatprep.subr.bf16.mxu0 0
        %1606 = vmatpush1.bf16.msra.mxu0 0
        %1607 = vmatprep.subr.bf16.mxu0 0
        %1608 = vmatpush1.bf16.msra.mxu0 0
        %1609 = vmatprep.subr.bf16.mxu0 %v1521
        %1610 = vmatpush1.bf16.msra.mxu0 %v1520
        %1611 = vmatprep.subr.bf16.mxu0 %v1517
        %1612 = vmatpush1.bf16.msra.mxu0 %v1516
        %1613 = vmatprep.subr.bf16.mxu0 %v1513
        %1614 = vmatpush1.bf16.msra.mxu0 %v1512
        %1615 = vmatprep.subr.bf16.mxu0 %v1509
        %1616 = vmatpush1.bf16.msra.mxu0 %v1508
        %1617 = vmatprep.subr.bf16.mxu0 %v1505
        %1618 = vmatpush1.bf16.msra.mxu0 %v1504
        %1619 = vmatprep.subr.bf16.mxu0 %v1501
        %1620 = vmatpush1.bf16.msra.mxu0 %v1500
        %1621 = vmatprep.subr.bf16.mxu0 0
        %1622 = vmatpush2.bf16.msra.mxu0 0
        %1623 = vmatprep.subr.bf16.mxu0 0
        %1624 = vmatpush2.bf16.msra.mxu0 0
        %1625 = vmatprep.subr.bf16.mxu0 0
        %1626 = vmatpush2.bf16.msra.mxu0 0
        %1627 = vmatprep.subr.bf16.mxu0 0
        %1628 = vmatpush2.bf16.msra.mxu0 0
        %1629 = vmatprep.subr.bf16.mxu0 0
        %1630 = vmatpush2.bf16.msra.mxu0 0
        %1631 = vmatprep.subr.bf16.mxu0 0
        %1632 = vmatpush2.bf16.msra.mxu0 0
        %1633 = vmatprep.subr.bf16.mxu0 0
        %1634 = vmatpush2.bf16.msra.mxu0 0
        %1635 = vmatprep.subr.bf16.mxu0 0
        %1636 = vmatpush2.bf16.msra.mxu0 0
        %1637 = vmatprep.mubr.bf16.mxu0 0
        %1638 = vmatmul.mubr.bf16.gmra.mxu0 %v1547
        %v1639 = vpop.f32.mrf.mxu0
        %v1640 = vadd.f32 %v1399, %v1639
        %v1641 = vpop.f32.mrf.mxu0
        %v1642 = vadd.f32 %v1399, %v1641
        %v1643 = vpop.f32.mrf.mxu0
        %v1644 = vadd.f32 %v1404, %v1643
        %v1645 = vpop.f32.mrf.mxu0
        %v1646 = vadd.f32 %v1404, %v1645
        %1647 = vmatprep.mubr.bf16.mxu0 0
        %1648 = vmatmul.mubr.bf16.gmra.mxu0 %v1550
        %v1649 = vpop.f32.mrf.mxu0
        %v1650 = vadd.f32 %v1409, %v1649
        %v1651 = vpop.f32.mrf.mxu0
        %v1652 = vadd.f32 %v1409, %v1651
        %v1653 = vpop.f32.mrf.mxu0
        %v1654 = vadd.f32 %v1414, %v1653
        %v1655 = vpop.f32.mrf.mxu0
        %v1656 = vadd.f32 %v1414, %v1655
        %1657 = vdwg.mxu0
        %v1658 = vadd.f32 %v233, %v1587
        %v1659 = vadd.f32 %v234, %v1589
        %v1660 = vadd.f32 %v242, %v1640
        %v1661 = vadd.f32 %v243, %v1642
        %v1662 = vadd.f32 %v235, %v1591
        %v1663 = vadd.f32 %v236, %v1593
        %v1664 = vadd.f32 %v244, %v1644
        %v1665 = vadd.f32 %v245, %v1646
        %v1666 = vadd.f32 %v237, %v1597
        %v1667 = vadd.f32 %v238, %v1599
        %v1668 = vadd.f32 %v246, %v1650
        %v1669 = vadd.f32 %v247, %v1652
        %v1670 = vadd.f32 %v239, %v1601
        %v1671 = vadd.f32 %v240, %v1603
        %v1672 = vadd.f32 %v248, %v1654
        %v1673 = vadd.f32 %v249, %v1656
        %s1674 = scalar_lea.vmem [#allocation3], 32
        %v1675 = vld [vmem:[%s1674] sm:$0xf]
        %v1676 = vld [vmem:[%s1674 + $0x4] sm:$0xf]
        %v1677 = vld [vmem:[%s1674 + $0x8] sm:$0xf]
        %v1678 = vld [vmem:[%s1674 + $0xc] sm:$0xf]
        %s1679 = scalar_lea.vmem %s3, 64
        %v1680 = vld [vmem:[%s1679] sm:$0xff]
        %v1681 = vld [vmem:[%s1679 + $0x8] sm:$0xff]
        %v1682 = vld [vmem:[%s1679 + $0x10] sm:$0xff]
        %v1683 = vld [vmem:[%s1679 + $0x18] sm:$0xff]
        %vm1684 = vcmp.gt.f32.partialorder %v1658, 0.0
        %vm1685 = vcmp.gt.f32.partialorder %v1659, 0.0
        %vm1686 = vcmp.gt.f32.partialorder %v1660, 0.0
        %vm1687 = vcmp.gt.f32.partialorder %v1661, 0.0
        %vm1688 = vcmp.gt.f32.partialorder %v1662, 0.0
        %vm1689 = vcmp.gt.f32.partialorder %v1663, 0.0
        %vm1690 = vcmp.gt.f32.partialorder %v1664, 0.0
        %vm1691 = vcmp.gt.f32.partialorder %v1665, 0.0
        %vm1692 = vcmp.gt.f32.partialorder %v1666, 0.0
        %vm1693 = vcmp.gt.f32.partialorder %v1667, 0.0
        %vm1694 = vcmp.gt.f32.partialorder %v1668, 0.0
        %vm1695 = vcmp.gt.f32.partialorder %v1669, 0.0
        %vm1696 = vcmp.gt.f32.partialorder %v1670, 0.0
        %vm1697 = vcmp.gt.f32.partialorder %v1671, 0.0
        %vm1698 = vcmp.gt.f32.partialorder %v1672, 0.0
        %vm1699 = vcmp.gt.f32.partialorder %v1673, 0.0
        %v1700 = vmul.f32 %v1658, 0.1
        %v1701 = vmul.f32 %v1659, 0.1
        %v1702 = vmul.f32 %v1660, 0.1
        %v1703 = vmul.f32 %v1661, 0.1
        %v1704 = vmul.f32 %v1662, 0.1
        %v1705 = vmul.f32 %v1663, 0.1
        %v1706 = vmul.f32 %v1664, 0.1
        %v1707 = vmul.f32 %v1665, 0.1
        %v1708 = vmul.f32 %v1666, 0.1
        %v1709 = vmul.f32 %v1667, 0.1
        %v1710 = vmul.f32 %v1668, 0.1
        %v1711 = vmul.f32 %v1669, 0.1
        %v1712 = vmul.f32 %v1670, 0.1
        %v1713 = vmul.f32 %v1671, 0.1
        %v1714 = vmul.f32 %v1672, 0.1
        %v1715 = vmul.f32 %v1673, 0.1
        %v1716 = vsel %vm1684, %v1658, %v1700
        %v1717 = vsel %vm1685, %v1659, %v1701
        %v1718 = vsel %vm1686, %v1660, %v1702
        %v1719 = vsel %vm1687, %v1661, %v1703
        %v1720 = vsel %vm1688, %v1662, %v1704
        %v1721 = vsel %vm1689, %v1663, %v1705
        %v1722 = vsel %vm1690, %v1664, %v1706
        %v1723 = vsel %vm1691, %v1665, %v1707
        %v1724 = vsel %vm1692, %v1666, %v1708
        %v1725 = vsel %vm1693, %v1667, %v1709
        %v1726 = vsel %vm1694, %v1668, %v1710
        %v1727 = vsel %vm1695, %v1669, %v1711
        %v1728 = vsel %vm1696, %v1670, %v1712
        %v1729 = vsel %vm1697, %v1671, %v1713
        %v1730 = vsel %vm1698, %v1672, %v1714
        %v1731 = vsel %vm1699, %v1673, %v1715
        %1732 = vrot.lane.b32.xlu0 %v1716, 3
        %v1733 = vpop.permute.xlu0 %1732
        %1734 = vrot.lane.b32.xlu0 %v1720, 3
        %v1735 = vpop.permute.xlu0 %1734
        %1736 = vrot.lane.b32.xlu0 %v1724, 3
        %v1737 = vpop.permute.xlu0 %1736
        %1738 = vrot.lane.b32.xlu0 %v1728, 3
        %v1739 = vpop.permute.xlu0 %1738
        %1740 = vrot.lane.b32.xlu0 %v1717, 3
        %v1741 = vpop.permute.xlu0 %1740
        %1742 = vrot.lane.b32.xlu0 %v1721, 3
        %v1743 = vpop.permute.xlu0 %1742
        %1744 = vrot.lane.b32.xlu0 %v1725, 3
        %v1745 = vpop.permute.xlu0 %1744
        %1746 = vrot.lane.b32.xlu0 %v1729, 3
        %v1747 = vpop.permute.xlu0 %1746
        %1748 = vrot.lane.b32.xlu0 %v1718, 3
        %v1749 = vpop.permute.xlu0 %1748
        %1750 = vrot.lane.b32.xlu0 %v1722, 3
        %v1751 = vpop.permute.xlu0 %1750
        %1752 = vrot.lane.b32.xlu0 %v1726, 3
        %v1753 = vpop.permute.xlu0 %1752
        %1754 = vrot.lane.b32.xlu0 %v1730, 3
        %v1755 = vpop.permute.xlu0 %1754
        %1756 = vrot.lane.b32.xlu0 %v1719, 3
        %v1757 = vpop.permute.xlu0 %1756
        %1758 = vrot.lane.b32.xlu0 %v1723, 3
        %v1759 = vpop.permute.xlu0 %1758
        %1760 = vrot.lane.b32.xlu0 %v1727, 3
        %v1761 = vpop.permute.xlu0 %1760
        %1762 = vrot.lane.b32.xlu0 %v1731, 3
        %v1763 = vpop.permute.xlu0 %1762
        %vm1764 = vcmp.lt.s32.totalorder %v251, 3
        %v1765 = vsel %vm1764, %v1749, %v1757
        %v1766 = vsel %vm1764, %v1751, %v1759
        %v1767 = vsel %vm1764, %v1753, %v1761
        %v1768 = vsel %vm1764, %v1755, %v1763
        %v1769 = vsel %vm1764, %v1741, %v1749
        %v1770 = vsel %vm1764, %v1743, %v1751
        %v1771 = vsel %vm1764, %v1745, %v1753
        %v1772 = vsel %vm1764, %v1747, %v1755
        %v1773 = vsel %vm1764, %v1733, %v1741
        %v1774 = vsel %vm1764, %v1735, %v1743
        %v1775 = vsel %vm1764, %v1737, %v1745
        %v1776 = vsel %vm1764, %v1739, %v1747
        %v1777 = vsel %vm1764, %v1757, %v1733
        %v1778 = vsel %vm1764, %v1759, %v1735
        %v1779 = vsel %vm1764, %v1761, %v1737
        %v1780 = vsel %vm1764, %v1763, %v1739
        %vm1781 = vcmp.ge.s32.totalorder %v299, 3
        %vm1782 = vcmp.ge.s32.totalorder %v300, 3
        %vm1783 = vcmp.ge.s32.totalorder %v301, 3
        %vm1784 = vcmp.ge.s32.totalorder %v302, 3
        %vm1785 = vmand %vm1781, %vm412
        %vm1786 = vmand %vm1782, %vm413
        %vm1787 = vmand %vm1783, %vm414
        %vm1788 = vmand %vm1784, %vm415
        %v1789 = vsel %vm1785, 1, 0
        %v1790 = vsel %vm1786, 1, 0
        %v1791 = vsel %vm1787, 1, 0
        %v1792 = vsel %vm1788, 1, 0
        %vm1793 = vcmp.eq.s32.totalorder %v1789, 1
        %vm1794 = vcmp.eq.s32.totalorder %v1790, 1
        %vm1795 = vcmp.eq.s32.totalorder %v1791, 1
        %vm1796 = vcmp.eq.s32.totalorder %v1792, 1
        %v1797 = vsel %vm1793, %v1777, 0.0
        %v1798 = vsel %vm1794, %v1773, 0.0
        %v1799 = vsel %vm1795, %v1769, 0.0
        %v1800 = vsel %vm1796, %v1765, 0.0
        %v1801 = vsel %vm1793, %v1778, 0.0
        %v1802 = vsel %vm1794, %v1774, 0.0
        %v1803 = vsel %vm1795, %v1770, 0.0
        %v1804 = vsel %vm1796, %v1766, 0.0
        %v1805 = vsel %vm1793, %v1779, 0.0
        %v1806 = vsel %vm1794, %v1775, 0.0
        %v1807 = vsel %vm1795, %v1771, 0.0
        %v1808 = vsel %vm1796, %v1767, 0.0
        %v1809 = vsel %vm1793, %v1780, 0.0
        %v1810 = vsel %vm1794, %v1776, 0.0
        %v1811 = vsel %vm1795, %v1772, 0.0
        %v1812 = vsel %vm1796, %v1768, 0.0
        %v1813 = vpack.c.bf16 %v1801, %v1797
        %v1814 = vpack.c.bf16 %v1802, %v1798
        %v1815 = vpack.c.bf16 %v1803, %v1799
        %v1816 = vpack.c.bf16 %v1804, %v1800
        %v1817 = vpack.c.bf16 %v1809, %v1805
        %v1818 = vpack.c.bf16 %v1810, %v1806
        %v1819 = vpack.c.bf16 %v1811, %v1807
        %v1820 = vpack.c.bf16 %v1812, %v1808
        %v1829 = vunpack.c.l.b16 %v1813
        %v1830 = vunpack.c.l.b16 %v1814
        %v1831 = vunpack.c.l.b16 %v1815
        %v1832 = vunpack.c.l.b16 %v1816
        %v1833 = vunpack.c.h.b16 %v1813
        %v1834 = vunpack.c.h.b16 %v1814
        %v1835 = vunpack.c.h.b16 %v1815
        %v1836 = vunpack.c.h.b16 %v1816
        %v1837 = vunpack.c.l.b16 %v1817
        %v1838 = vunpack.c.l.b16 %v1818
        %v1839 = vunpack.c.l.b16 %v1819
        %v1840 = vunpack.c.l.b16 %v1820
        %v1841 = vunpack.c.h.b16 %v1817
        %v1842 = vunpack.c.h.b16 %v1818
        %v1843 = vunpack.c.h.b16 %v1819
        %v1844 = vunpack.c.h.b16 %v1820
        %v1845 = vpack.c.b16 %v1830, %v1829
        %v1846 = vpack.c.b16 %v1832, %v1831
        %v1847 = vpack.c.b16 %v1834, %v1833
        %v1848 = vpack.c.b16 %v1836, %v1835
        %v1849 = vpack.c.b16 %v1838, %v1837
        %v1850 = vpack.c.b16 %v1840, %v1839
        %v1851 = vpack.c.b16 %v1842, %v1841
        %v1852 = vpack.c.b16 %v1844, %v1843
        %1861 = vst [vmem:[#allocation2] sm:$0xff] %v1845
        %1862 = vst [vmem:[#allocation2 + $0x8] sm:$0xff] %v1846
        %1863 = vst [vmem:[#allocation2 + $0x10] sm:$0xff] %v1847
        %1864 = vst [vmem:[#allocation2 + $0x18] sm:$0xff] %v1848
        %1865 = vst [vmem:[#allocation2 + $0x20] sm:$0xff] %v1849
        %1866 = vst [vmem:[#allocation2 + $0x28] sm:$0xff] %v1850
        %1867 = vst [vmem:[#allocation2 + $0x30] sm:$0xff] %v1851
        %1868 = vst [vmem:[#allocation2 + $0x38] sm:$0xff] %v1852
        %v1869 = vpack.c.bf16 %v1720, %v1716
        %v1870 = vpack.c.bf16 %v1721, %v1717
        %v1871 = vpack.c.bf16 %v1722, %v1718
        %v1872 = vpack.c.bf16 %v1723, %v1719
        %v1873 = vpack.c.bf16 %v1728, %v1724
        %v1874 = vpack.c.bf16 %v1729, %v1725
        %v1875 = vpack.c.bf16 %v1730, %v1726
        %v1876 = vpack.c.bf16 %v1731, %v1727
        %v1885 = vunpack.c.l.b16 %v1869
        %v1886 = vunpack.c.l.b16 %v1870
        %v1887 = vunpack.c.l.b16 %v1871
        %v1888 = vunpack.c.l.b16 %v1872
        %v1889 = vunpack.c.h.b16 %v1869
        %v1890 = vunpack.c.h.b16 %v1870
        %v1891 = vunpack.c.h.b16 %v1871
        %v1892 = vunpack.c.h.b16 %v1872
        %v1893 = vunpack.c.l.b16 %v1873
        %v1894 = vunpack.c.l.b16 %v1874
        %v1895 = vunpack.c.l.b16 %v1875
        %v1896 = vunpack.c.l.b16 %v1876
        %v1897 = vunpack.c.h.b16 %v1873
        %v1898 = vunpack.c.h.b16 %v1874
        %v1899 = vunpack.c.h.b16 %v1875
        %v1900 = vunpack.c.h.b16 %v1876
        %v1901 = vpack.c.b16 %v1886, %v1885
        %v1902 = vpack.c.b16 %v1888, %v1887
        %v1903 = vpack.c.b16 %v1890, %v1889
        %v1904 = vpack.c.b16 %v1892, %v1891
        %v1905 = vpack.c.b16 %v1894, %v1893
        %v1906 = vpack.c.b16 %v1896, %v1895
        %v1907 = vpack.c.b16 %v1898, %v1897
        %v1908 = vpack.c.b16 %v1900, %v1899
        %1917 = vst [vmem:[#allocation2 + $0x40] sm:$0xff] %v1901
        %1918 = vst [vmem:[#allocation2 + $0x48] sm:$0xff] %v1902
        %1919 = vst [vmem:[#allocation2 + $0x50] sm:$0xff] %v1903
        %1920 = vst [vmem:[#allocation2 + $0x58] sm:$0xff] %v1904
        %1921 = vst [vmem:[#allocation2 + $0x60] sm:$0xff] %v1905
        %1922 = vst [vmem:[#allocation2 + $0x68] sm:$0xff] %v1906
        %1923 = vst [vmem:[#allocation2 + $0x70] sm:$0xff] %v1907
        %1924 = vst [vmem:[#allocation2 + $0x78] sm:$0xff] %v1908
        %1925 = vrot.lane.b32.xlu0 %v1716, 125
        %v1926 = vpop.permute.xlu0 %1925
        %1927 = vrot.lane.b32.xlu0 %v1720, 125
        %v1928 = vpop.permute.xlu0 %1927
        %1929 = vrot.lane.b32.xlu0 %v1724, 125
        %v1930 = vpop.permute.xlu0 %1929
        %1931 = vrot.lane.b32.xlu0 %v1728, 125
        %v1932 = vpop.permute.xlu0 %1931
        %1933 = vrot.lane.b32.xlu0 %v1717, 125
        %v1934 = vpop.permute.xlu0 %1933
        %1935 = vrot.lane.b32.xlu0 %v1721, 125
        %v1936 = vpop.permute.xlu0 %1935
        %1937 = vrot.lane.b32.xlu0 %v1725, 125
        %v1938 = vpop.permute.xlu0 %1937
        %1939 = vrot.lane.b32.xlu0 %v1729, 125
        %v1940 = vpop.permute.xlu0 %1939
        %1941 = vrot.lane.b32.xlu0 %v1718, 125
        %v1942 = vpop.permute.xlu0 %1941
        %1943 = vrot.lane.b32.xlu0 %v1722, 125
        %v1944 = vpop.permute.xlu0 %1943
        %1945 = vrot.lane.b32.xlu0 %v1726, 125
        %v1946 = vpop.permute.xlu0 %1945
        %1947 = vrot.lane.b32.xlu0 %v1730, 125
        %v1948 = vpop.permute.xlu0 %1947
        %1949 = vrot.lane.b32.xlu0 %v1719, 125
        %v1950 = vpop.permute.xlu0 %1949
        %1951 = vrot.lane.b32.xlu0 %v1723, 125
        %v1952 = vpop.permute.xlu0 %1951
        %1953 = vrot.lane.b32.xlu0 %v1727, 125
        %v1954 = vpop.permute.xlu0 %1953
        %1955 = vrot.lane.b32.xlu0 %v1731, 125
        %v1956 = vpop.permute.xlu0 %1955
        %vm1957 = vcmp.lt.s32.totalorder %v251, 125
        %v1958 = vsel %vm1957, %v1942, %v1950
        %v1959 = vsel %vm1957, %v1944, %v1952
        %v1960 = vsel %vm1957, %v1946, %v1954
        %v1961 = vsel %vm1957, %v1948, %v1956
        %v1962 = vsel %vm1957, %v1934, %v1942
        %v1963 = vsel %vm1957, %v1936, %v1944
        %v1964 = vsel %vm1957, %v1938, %v1946
        %v1965 = vsel %vm1957, %v1940, %v1948
        %v1966 = vsel %vm1957, %v1926, %v1934
        %v1967 = vsel %vm1957, %v1928, %v1936
        %v1968 = vsel %vm1957, %v1930, %v1938
        %v1969 = vsel %vm1957, %v1932, %v1940
        %v1970 = vsel %vm1957, %v1950, %v1926
        %v1971 = vsel %vm1957, %v1952, %v1928
        %v1972 = vsel %vm1957, %v1954, %v1930
        %v1973 = vsel %vm1957, %v1956, %v1932
        %vm1974 = vcmp.lt.s32.totalorder %v299, 253
        %vm1975 = vcmp.lt.s32.totalorder %v300, 253
        %vm1976 = vcmp.lt.s32.totalorder %v301, 253
        %vm1977 = vcmp.lt.s32.totalorder %v302, 253
        %vm1978 = vmand %vm605, %vm1974
        %vm1979 = vmand %vm606, %vm1975
        %vm1980 = vmand %vm607, %vm1976
        %vm1981 = vmand %vm608, %vm1977
        %v1982 = vsel %vm1978, 1, 0
        %v1983 = vsel %vm1979, 1, 0
        %v1984 = vsel %vm1980, 1, 0
        %v1985 = vsel %vm1981, 1, 0
        %vm1986 = vcmp.eq.s32.totalorder %v1982, 1
        %vm1987 = vcmp.eq.s32.totalorder %v1983, 1
        %vm1988 = vcmp.eq.s32.totalorder %v1984, 1
        %vm1989 = vcmp.eq.s32.totalorder %v1985, 1
        %v1990 = vsel %vm1986, %v1966, 0.0
        %v1991 = vsel %vm1987, %v1962, 0.0
        %v1992 = vsel %vm1988, %v1958, 0.0
        %v1993 = vsel %vm1989, %v1970, 0.0
        %v1994 = vsel %vm1986, %v1967, 0.0
        %v1995 = vsel %vm1987, %v1963, 0.0
        %v1996 = vsel %vm1988, %v1959, 0.0
        %v1997 = vsel %vm1989, %v1971, 0.0
        %v1998 = vsel %vm1986, %v1968, 0.0
        %v1999 = vsel %vm1987, %v1964, 0.0
        %v2000 = vsel %vm1988, %v1960, 0.0
        %v2001 = vsel %vm1989, %v1972, 0.0
        %v2002 = vsel %vm1986, %v1969, 0.0
        %v2003 = vsel %vm1987, %v1965, 0.0
        %v2004 = vsel %vm1988, %v1961, 0.0
        %v2005 = vsel %vm1989, %v1973, 0.0
        %v2006 = vpack.c.bf16 %v1994, %v1990
        %v2007 = vpack.c.bf16 %v1995, %v1991
        %v2008 = vpack.c.bf16 %v1996, %v1992
        %v2009 = vpack.c.bf16 %v1997, %v1993
        %v2010 = vpack.c.bf16 %v2002, %v1998
        %v2011 = vpack.c.bf16 %v2003, %v1999
        %v2012 = vpack.c.bf16 %v2004, %v2000
        %v2013 = vpack.c.bf16 %v2005, %v2001
        %v2022 = vunpack.c.l.b16 %v2006
        %v2023 = vunpack.c.l.b16 %v2007
        %v2024 = vunpack.c.l.b16 %v2008
        %v2025 = vunpack.c.l.b16 %v2009
        %v2026 = vunpack.c.h.b16 %v2006
        %v2027 = vunpack.c.h.b16 %v2007
        %v2028 = vunpack.c.h.b16 %v2008
        %v2029 = vunpack.c.h.b16 %v2009
        %v2030 = vunpack.c.l.b16 %v2010
        %v2031 = vunpack.c.l.b16 %v2011
        %v2032 = vunpack.c.l.b16 %v2012
        %v2033 = vunpack.c.l.b16 %v2013
        %v2034 = vunpack.c.h.b16 %v2010
        %v2035 = vunpack.c.h.b16 %v2011
        %v2036 = vunpack.c.h.b16 %v2012
        %v2037 = vunpack.c.h.b16 %v2013
        %v2038 = vpack.c.b16 %v2023, %v2022
        %v2039 = vpack.c.b16 %v2025, %v2024
        %v2040 = vpack.c.b16 %v2027, %v2026
        %v2041 = vpack.c.b16 %v2029, %v2028
        %v2042 = vpack.c.b16 %v2031, %v2030
        %v2043 = vpack.c.b16 %v2033, %v2032
        %v2044 = vpack.c.b16 %v2035, %v2034
        %v2045 = vpack.c.b16 %v2037, %v2036
        %2054 = vst [vmem:[#allocation2 + $0x80] sm:$0xff] %v2038
        %2055 = vst [vmem:[#allocation2 + $0x88] sm:$0xff] %v2039
        %2056 = vst [vmem:[#allocation2 + $0x90] sm:$0xff] %v2040
        %2057 = vst [vmem:[#allocation2 + $0x98] sm:$0xff] %v2041
        %2058 = vst [vmem:[#allocation2 + $0xa0] sm:$0xff] %v2042
        %2059 = vst [vmem:[#allocation2 + $0xa8] sm:$0xff] %v2043
        %2060 = vst [vmem:[#allocation2 + $0xb0] sm:$0xff] %v2044
        %2061 = vst [vmem:[#allocation2 + $0xb8] sm:$0xff] %v2045
        %v2062 = vld [vmem:[#allocation2] sm:$0xff]
        %v2063 = vld [vmem:[#allocation2 + $0x8] sm:$0xff]
        %v2064 = vld [vmem:[#allocation2 + $0x10] sm:$0xff]
        %v2065 = vld [vmem:[#allocation2 + $0x18] sm:$0xff]
        %v2066 = vld [vmem:[#allocation2 + $0x20] sm:$0xff]
        %v2067 = vld [vmem:[#allocation2 + $0x28] sm:$0xff]
        %v2068 = vld [vmem:[#allocation2 + $0x30] sm:$0xff]
        %v2069 = vld [vmem:[#allocation2 + $0x38] sm:$0xff]
        %v2070 = vld [vmem:[#allocation2 + $0x40] sm:$0xff]
        %v2071 = vld [vmem:[#allocation2 + $0x48] sm:$0xff]
        %v2072 = vld [vmem:[#allocation2 + $0x50] sm:$0xff]
        %v2073 = vld [vmem:[#allocation2 + $0x58] sm:$0xff]
        %v2074 = vld [vmem:[#allocation2 + $0x60] sm:$0xff]
        %v2075 = vld [vmem:[#allocation2 + $0x68] sm:$0xff]
        %v2076 = vld [vmem:[#allocation2 + $0x70] sm:$0xff]
        %v2077 = vld [vmem:[#allocation2 + $0x78] sm:$0xff]
        %v2078 = vld [vmem:[#allocation2 + $0x80] sm:$0xff]
        %v2079 = vld [vmem:[#allocation2 + $0x88] sm:$0xff]
        %v2080 = vld [vmem:[#allocation2 + $0x90] sm:$0xff]
        %v2081 = vld [vmem:[#allocation2 + $0x98] sm:$0xff]
        %v2082 = vld [vmem:[#allocation2 + $0xa0] sm:$0xff]
        %v2083 = vld [vmem:[#allocation2 + $0xa8] sm:$0xff]
        %v2084 = vld [vmem:[#allocation2 + $0xb0] sm:$0xff]
        %v2085 = vld [vmem:[#allocation2 + $0xb8] sm:$0xff]
        %2087 = vset.pattern.permute.xlu0 0
        %2088 = vperm.xlu0 %2087, %v1680
        %v2089 = vpop.permute.xlu0 %2088
        %2092 = vset.pattern.permute.xlu0 0
        %2093 = vperm.xlu0 %2092, %v1681
        %v2094 = vpop.permute.xlu0 %2093
        %2097 = vset.pattern.permute.xlu0 0
        %2098 = vperm.xlu0 %2097, %v1682
        %v2099 = vpop.permute.xlu0 %2098
        %2102 = vset.pattern.permute.xlu0 0
        %2103 = vperm.xlu0 %2102, %v1683
        %v2104 = vpop.permute.xlu0 %2103
        %v2110 = vunpack.c.l.b16 %v1675
        %v2111 = vunpack.c.l.b16 %v1676
        %v2112 = vunpack.c.l.b16 %v1677
        %v2113 = vunpack.c.l.b16 %v1678
        %v2114 = vpack.c.b16 %v2111, %v2110
        %v2115 = vpack.c.b16 %v2113, %v2112
        %v2140 = vunpack.c.l.b16 %v2062
        %v2141 = vunpack.c.h.b16 %v2062
        %v2142 = vunpack.c.l.b16 %v2063
        %v2143 = vunpack.c.h.b16 %v2063
        %v2144 = vunpack.c.l.b16 %v2064
        %v2145 = vunpack.c.h.b16 %v2064
        %v2146 = vunpack.c.l.b16 %v2065
        %v2147 = vunpack.c.h.b16 %v2065
        %v2148 = vunpack.c.l.b16 %v2066
        %v2149 = vunpack.c.h.b16 %v2066
        %v2150 = vunpack.c.l.b16 %v2067
        %v2151 = vunpack.c.h.b16 %v2067
        %v2152 = vunpack.c.l.b16 %v2068
        %v2153 = vunpack.c.h.b16 %v2068
        %v2154 = vunpack.c.l.b16 %v2069
        %v2155 = vunpack.c.h.b16 %v2069
        %v2156 = vunpack.c.l.b16 %v2070
        %v2157 = vunpack.c.h.b16 %v2070
        %v2158 = vunpack.c.l.b16 %v2071
        %v2159 = vunpack.c.h.b16 %v2071
        %v2160 = vunpack.c.l.b16 %v2072
        %v2161 = vunpack.c.h.b16 %v2072
        %v2162 = vunpack.c.l.b16 %v2073
        %v2163 = vunpack.c.h.b16 %v2073
        %v2164 = vunpack.c.l.b16 %v2074
        %v2165 = vunpack.c.h.b16 %v2074
        %v2166 = vunpack.c.l.b16 %v2075
        %v2167 = vunpack.c.h.b16 %v2075
        %v2168 = vunpack.c.l.b16 %v2076
        %v2169 = vunpack.c.h.b16 %v2076
        %v2170 = vunpack.c.l.b16 %v2077
        %v2171 = vunpack.c.h.b16 %v2077
        %v2172 = vunpack.c.l.b16 %v2078
        %v2173 = vunpack.c.h.b16 %v2078
        %v2174 = vunpack.c.l.b16 %v2079
        %v2175 = vunpack.c.h.b16 %v2079
        %v2176 = vunpack.c.l.b16 %v2080
        %v2177 = vunpack.c.h.b16 %v2080
        %v2178 = vunpack.c.l.b16 %v2081
        %v2179 = vunpack.c.h.b16 %v2081
        %v2180 = vunpack.c.l.b16 %v2082
        %v2181 = vunpack.c.h.b16 %v2082
        %v2182 = vunpack.c.l.b16 %v2083
        %v2183 = vunpack.c.h.b16 %v2083
        %v2184 = vunpack.c.l.b16 %v2084
        %v2185 = vunpack.c.h.b16 %v2084
        %v2186 = vunpack.c.l.b16 %v2085
        %v2187 = vunpack.c.h.b16 %v2085
        %v2188 = vpack.c.b16 %v2144, %v2140
        %v2189 = vpack.c.b16 %v2145, %v2141
        %v2190 = vpack.c.b16 %v2146, %v2142
        %v2191 = vpack.c.b16 %v2147, %v2143
        %v2192 = vpack.c.b16 %v2152, %v2148
        %v2193 = vpack.c.b16 %v2153, %v2149
        %v2194 = vpack.c.b16 %v2154, %v2150
        %v2195 = vpack.c.b16 %v2155, %v2151
        %v2196 = vpack.c.b16 %v2160, %v2156
        %v2197 = vpack.c.b16 %v2161, %v2157
        %v2198 = vpack.c.b16 %v2162, %v2158
        %v2199 = vpack.c.b16 %v2163, %v2159
        %v2200 = vpack.c.b16 %v2168, %v2164
        %v2201 = vpack.c.b16 %v2169, %v2165
        %v2202 = vpack.c.b16 %v2170, %v2166
        %v2203 = vpack.c.b16 %v2171, %v2167
        %v2204 = vpack.c.b16 %v2176, %v2172
        %v2205 = vpack.c.b16 %v2177, %v2173
        %v2206 = vpack.c.b16 %v2178, %v2174
        %v2207 = vpack.c.b16 %v2179, %v2175
        %v2208 = vpack.c.b16 %v2184, %v2180
        %v2209 = vpack.c.b16 %v2185, %v2181
        %v2210 = vpack.c.b16 %v2186, %v2182
        %v2211 = vpack.c.b16 %v2187, %v2183
        %v2237 = vsel %vm871, %v2114, 0
        %v2240 = vsel %vm871, %v2115, 0
        %2242 = vmatprep.subr.bf16.mxu0 0
        %2243 = vmatpush1.bf16.msra.mxu0 0
        %2244 = vmatprep.subr.bf16.mxu0 0
        %2245 = vmatpush1.bf16.msra.mxu0 0
        %2246 = vmatprep.subr.bf16.mxu0 %v2209
        %2247 = vmatpush1.bf16.msra.mxu0 %v2208
        %2248 = vmatprep.subr.bf16.mxu0 %v2205
        %2249 = vmatpush1.bf16.msra.mxu0 %v2204
        %2250 = vmatprep.subr.bf16.mxu0 %v2201
        %2251 = vmatpush1.bf16.msra.mxu0 %v2200
        %2252 = vmatprep.subr.bf16.mxu0 %v2197
        %2253 = vmatpush1.bf16.msra.mxu0 %v2196
        %2254 = vmatprep.subr.bf16.mxu0 %v2193
        %2255 = vmatpush1.bf16.msra.mxu0 %v2192
        %2256 = vmatprep.subr.bf16.mxu0 %v2189
        %2257 = vmatpush1.bf16.msra.mxu0 %v2188
        %2258 = vmatprep.subr.bf16.mxu0 0
        %2259 = vmatpush2.bf16.msra.mxu0 0
        %2260 = vmatprep.subr.bf16.mxu0 0
        %2261 = vmatpush2.bf16.msra.mxu0 0
        %2262 = vmatprep.subr.bf16.mxu0 0
        %2263 = vmatpush2.bf16.msra.mxu0 0
        %2264 = vmatprep.subr.bf16.mxu0 0
        %2265 = vmatpush2.bf16.msra.mxu0 0
        %2266 = vmatprep.subr.bf16.mxu0 0
        %2267 = vmatpush2.bf16.msra.mxu0 0
        %2268 = vmatprep.subr.bf16.mxu0 0
        %2269 = vmatpush2.bf16.msra.mxu0 0
        %2270 = vmatprep.subr.bf16.mxu0 0
        %2271 = vmatpush2.bf16.msra.mxu0 0
        %2272 = vmatprep.subr.bf16.mxu0 0
        %2273 = vmatpush2.bf16.msra.mxu0 0
        %2274 = vmatprep.mubr.bf16.mxu0 0
        %2275 = vmatmul.mubr.bf16.gmra.mxu0 %v2237
        %v2276 = vpop.f32.mrf.mxu0
        %v2277 = vadd.f32 %v2089, %v2276
        %v2278 = vpop.f32.mrf.mxu0
        %v2279 = vadd.f32 %v2089, %v2278
        %v2280 = vpop.f32.mrf.mxu0
        %v2281 = vadd.f32 %v2094, %v2280
        %v2282 = vpop.f32.mrf.mxu0
        %v2283 = vadd.f32 %v2094, %v2282
        %2284 = vmatprep.mubr.bf16.mxu0 0
        %2285 = vmatmul.mubr.bf16.gmra.mxu0 %v2240
        %v2286 = vpop.f32.mrf.mxu0
        %v2287 = vadd.f32 %v2099, %v2286
        %v2288 = vpop.f32.mrf.mxu0
        %v2289 = vadd.f32 %v2099, %v2288
        %v2290 = vpop.f32.mrf.mxu0
        %v2291 = vadd.f32 %v2104, %v2290
        %v2292 = vpop.f32.mrf.mxu0
        %v2293 = vadd.f32 %v2104, %v2292
        %2294 = vdwg.mxu0
        %2295 = vmatprep.subr.bf16.mxu0 0
        %2296 = vmatpush1.bf16.msra.mxu0 0
        %2297 = vmatprep.subr.bf16.mxu0 0
        %2298 = vmatpush1.bf16.msra.mxu0 0
        %2299 = vmatprep.subr.bf16.mxu0 %v2211
        %2300 = vmatpush1.bf16.msra.mxu0 %v2210
        %2301 = vmatprep.subr.bf16.mxu0 %v2207
        %2302 = vmatpush1.bf16.msra.mxu0 %v2206
        %2303 = vmatprep.subr.bf16.mxu0 %v2203
        %2304 = vmatpush1.bf16.msra.mxu0 %v2202
        %2305 = vmatprep.subr.bf16.mxu0 %v2199
        %2306 = vmatpush1.bf16.msra.mxu0 %v2198
        %2307 = vmatprep.subr.bf16.mxu0 %v2195
        %2308 = vmatpush1.bf16.msra.mxu0 %v2194
        %2309 = vmatprep.subr.bf16.mxu0 %v2191
        %2310 = vmatpush1.bf16.msra.mxu0 %v2190
        %2311 = vmatprep.subr.bf16.mxu0 0
        %2312 = vmatpush2.bf16.msra.mxu0 0
        %2313 = vmatprep.subr.bf16.mxu0 0
        %2314 = vmatpush2.bf16.msra.mxu0 0
        %2315 = vmatprep.subr.bf16.mxu0 0
        %2316 = vmatpush2.bf16.msra.mxu0 0
        %2317 = vmatprep.subr.bf16.mxu0 0
        %2318 = vmatpush2.bf16.msra.mxu0 0
        %2319 = vmatprep.subr.bf16.mxu0 0
        %2320 = vmatpush2.bf16.msra.mxu0 0
        %2321 = vmatprep.subr.bf16.mxu0 0
        %2322 = vmatpush2.bf16.msra.mxu0 0
        %2323 = vmatprep.subr.bf16.mxu0 0
        %2324 = vmatpush2.bf16.msra.mxu0 0
        %2325 = vmatprep.subr.bf16.mxu0 0
        %2326 = vmatpush2.bf16.msra.mxu0 0
        %2327 = vmatprep.mubr.bf16.mxu0 0
        %2328 = vmatmul.mubr.bf16.gmra.mxu0 %v2237
        %v2329 = vpop.f32.mrf.mxu0
        %v2330 = vadd.f32 %v2089, %v2329
        %v2331 = vpop.f32.mrf.mxu0
        %v2332 = vadd.f32 %v2089, %v2331
        %v2333 = vpop.f32.mrf.mxu0
        %v2334 = vadd.f32 %v2094, %v2333
        %v2335 = vpop.f32.mrf.mxu0
        %v2336 = vadd.f32 %v2094, %v2335
        %2337 = vmatprep.mubr.bf16.mxu0 0
        %2338 = vmatmul.mubr.bf16.gmra.mxu0 %v2240
        %v2339 = vpop.f32.mrf.mxu0
        %v2340 = vadd.f32 %v2099, %v2339
        %v2341 = vpop.f32.mrf.mxu0
        %v2342 = vadd.f32 %v2099, %v2341
        %v2343 = vpop.f32.mrf.mxu0
        %v2344 = vadd.f32 %v2104, %v2343
        %v2345 = vpop.f32.mrf.mxu0
        %v2346 = vadd.f32 %v2104, %v2345
        %2347 = vdwg.mxu0
        %s2348 = scalar_lea.vmem [#allocation3], 48
        %v2349 = vld [vmem:[%s2348] sm:$0xf]
        %v2350 = vld [vmem:[%s2348 + $0x4] sm:$0xf]
        %v2351 = vld [vmem:[%s2348 + $0x8] sm:$0xf]
        %v2352 = vld [vmem:[%s2348 + $0xc] sm:$0xf]
        %s2353 = scalar_lea.vmem %s3, 96
        %v2354 = vld [vmem:[%s2353] sm:$0xff]
        %v2355 = vld [vmem:[%s2353 + $0x8] sm:$0xff]
        %v2356 = vld [vmem:[%s2353 + $0x10] sm:$0xff]
        %v2357 = vld [vmem:[%s2353 + $0x18] sm:$0xff]
        %vm2358 = vcmp.gt.f32.partialorder %v2277, 0.0
        %vm2359 = vcmp.gt.f32.partialorder %v2279, 0.0
        %vm2360 = vcmp.gt.f32.partialorder %v2330, 0.0
        %vm2361 = vcmp.gt.f32.partialorder %v2332, 0.0
        %vm2362 = vcmp.gt.f32.partialorder %v2281, 0.0
        %vm2363 = vcmp.gt.f32.partialorder %v2283, 0.0
        %vm2364 = vcmp.gt.f32.partialorder %v2334, 0.0
        %vm2365 = vcmp.gt.f32.partialorder %v2336, 0.0
        %vm2366 = vcmp.gt.f32.partialorder %v2287, 0.0
        %vm2367 = vcmp.gt.f32.partialorder %v2289, 0.0
        %vm2368 = vcmp.gt.f32.partialorder %v2340, 0.0
        %vm2369 = vcmp.gt.f32.partialorder %v2342, 0.0
        %vm2370 = vcmp.gt.f32.partialorder %v2291, 0.0
        %vm2371 = vcmp.gt.f32.partialorder %v2293, 0.0
        %vm2372 = vcmp.gt.f32.partialorder %v2344, 0.0
        %vm2373 = vcmp.gt.f32.partialorder %v2346, 0.0
        %v2374 = vmul.f32 %v2277, 0.1
        %v2375 = vmul.f32 %v2279, 0.1
        %v2376 = vmul.f32 %v2330, 0.1
        %v2377 = vmul.f32 %v2332, 0.1
        %v2378 = vmul.f32 %v2281, 0.1
        %v2379 = vmul.f32 %v2283, 0.1
        %v2380 = vmul.f32 %v2334, 0.1
        %v2381 = vmul.f32 %v2336, 0.1
        %v2382 = vmul.f32 %v2287, 0.1
        %v2383 = vmul.f32 %v2289, 0.1
        %v2384 = vmul.f32 %v2340, 0.1
        %v2385 = vmul.f32 %v2342, 0.1
        %v2386 = vmul.f32 %v2291, 0.1
        %v2387 = vmul.f32 %v2293, 0.1
        %v2388 = vmul.f32 %v2344, 0.1
        %v2389 = vmul.f32 %v2346, 0.1
        %v2390 = vsel %vm2358, %v2277, %v2374
        %v2391 = vsel %vm2359, %v2279, %v2375
        %v2392 = vsel %vm2360, %v2330, %v2376
        %v2393 = vsel %vm2361, %v2332, %v2377
        %v2394 = vsel %vm2362, %v2281, %v2378
        %v2395 = vsel %vm2363, %v2283, %v2379
        %v2396 = vsel %vm2364, %v2334, %v2380
        %v2397 = vsel %vm2365, %v2336, %v2381
        %v2398 = vsel %vm2366, %v2287, %v2382
        %v2399 = vsel %vm2367, %v2289, %v2383
        %v2400 = vsel %vm2368, %v2340, %v2384
        %v2401 = vsel %vm2369, %v2342, %v2385
        %v2402 = vsel %vm2370, %v2291, %v2386
        %v2403 = vsel %vm2371, %v2293, %v2387
        %v2404 = vsel %vm2372, %v2344, %v2388
        %v2405 = vsel %vm2373, %v2346, %v2389
        %2406 = vrot.lane.b32.xlu0 %v2390, 1
        %v2407 = vpop.permute.xlu0 %2406
        %2408 = vrot.lane.b32.xlu0 %v2394, 1
        %v2409 = vpop.permute.xlu0 %2408
        %2410 = vrot.lane.b32.xlu0 %v2398, 1
        %v2411 = vpop.permute.xlu0 %2410
        %2412 = vrot.lane.b32.xlu0 %v2402, 1
        %v2413 = vpop.permute.xlu0 %2412
        %2414 = vrot.lane.b32.xlu0 %v2391, 1
        %v2415 = vpop.permute.xlu0 %2414
        %2416 = vrot.lane.b32.xlu0 %v2395, 1
        %v2417 = vpop.permute.xlu0 %2416
        %2418 = vrot.lane.b32.xlu0 %v2399, 1
        %v2419 = vpop.permute.xlu0 %2418
        %2420 = vrot.lane.b32.xlu0 %v2403, 1
        %v2421 = vpop.permute.xlu0 %2420
        %2422 = vrot.lane.b32.xlu0 %v2392, 1
        %v2423 = vpop.permute.xlu0 %2422
        %2424 = vrot.lane.b32.xlu0 %v2396, 1
        %v2425 = vpop.permute.xlu0 %2424
        %2426 = vrot.lane.b32.xlu0 %v2400, 1
        %v2427 = vpop.permute.xlu0 %2426
        %2428 = vrot.lane.b32.xlu0 %v2404, 1
        %v2429 = vpop.permute.xlu0 %2428
        %2430 = vrot.lane.b32.xlu0 %v2393, 1
        %v2431 = vpop.permute.xlu0 %2430
        %2432 = vrot.lane.b32.xlu0 %v2397, 1
        %v2433 = vpop.permute.xlu0 %2432
        %2434 = vrot.lane.b32.xlu0 %v2401, 1
        %v2435 = vpop.permute.xlu0 %2434
        %2436 = vrot.lane.b32.xlu0 %v2405, 1
        %v2437 = vpop.permute.xlu0 %2436
        %v2438 = vsel %vm391, %v2423, %v2431
        %v2439 = vsel %vm391, %v2425, %v2433
        %v2440 = vsel %vm391, %v2427, %v2435
        %v2441 = vsel %vm391, %v2429, %v2437
        %v2442 = vsel %vm391, %v2415, %v2423
        %v2443 = vsel %vm391, %v2417, %v2425
        %v2444 = vsel %vm391, %v2419, %v2427
        %v2445 = vsel %vm391, %v2421, %v2429
        %v2446 = vsel %vm391, %v2407, %v2415
        %v2447 = vsel %vm391, %v2409, %v2417
        %v2448 = vsel %vm391, %v2411, %v2419
        %v2449 = vsel %vm391, %v2413, %v2421
        %v2450 = vsel %vm391, %v2431, %v2407
        %v2451 = vsel %vm391, %v2433, %v2409
        %v2452 = vsel %vm391, %v2435, %v2411
        %v2453 = vsel %vm391, %v2437, %v2413
        %v2454 = vsel %vm424, %v2450, 0.0
        %v2455 = vsel %vm425, %v2446, 0.0
        %v2456 = vsel %vm426, %v2442, 0.0
        %v2457 = vsel %vm427, %v2438, 0.0
        %v2458 = vsel %vm424, %v2451, 0.0
        %v2459 = vsel %vm425, %v2447, 0.0
        %v2460 = vsel %vm426, %v2443, 0.0
        %v2461 = vsel %vm427, %v2439, 0.0
        %v2462 = vsel %vm424, %v2452, 0.0
        %v2463 = vsel %vm425, %v2448, 0.0
        %v2464 = vsel %vm426, %v2444, 0.0
        %v2465 = vsel %vm427, %v2440, 0.0
        %v2466 = vsel %vm424, %v2453, 0.0
        %v2467 = vsel %vm425, %v2449, 0.0
        %v2468 = vsel %vm426, %v2445, 0.0
        %v2469 = vsel %vm427, %v2441, 0.0
        %v2470 = vpack.c.bf16 %v2458, %v2454
        %v2471 = vpack.c.bf16 %v2459, %v2455
        %v2472 = vpack.c.bf16 %v2460, %v2456
        %v2473 = vpack.c.bf16 %v2461, %v2457
        %v2474 = vpack.c.bf16 %v2466, %v2462
        %v2475 = vpack.c.bf16 %v2467, %v2463
        %v2476 = vpack.c.bf16 %v2468, %v2464
        %v2477 = vpack.c.bf16 %v2469, %v2465
        %v2486 = vunpack.c.l.b16 %v2470
        %v2487 = vunpack.c.l.b16 %v2471
        %v2488 = vunpack.c.l.b16 %v2472
        %v2489 = vunpack.c.l.b16 %v2473
        %v2490 = vunpack.c.h.b16 %v2470
        %v2491 = vunpack.c.h.b16 %v2471
        %v2492 = vunpack.c.h.b16 %v2472
        %v2493 = vunpack.c.h.b16 %v2473
        %v2494 = vunpack.c.l.b16 %v2474
        %v2495 = vunpack.c.l.b16 %v2475
        %v2496 = vunpack.c.l.b16 %v2476
        %v2497 = vunpack.c.l.b16 %v2477
        %v2498 = vunpack.c.h.b16 %v2474
        %v2499 = vunpack.c.h.b16 %v2475
        %v2500 = vunpack.c.h.b16 %v2476
        %v2501 = vunpack.c.h.b16 %v2477
        %v2502 = vpack.c.b16 %v2487, %v2486
        %v2503 = vpack.c.b16 %v2489, %v2488
        %v2504 = vpack.c.b16 %v2491, %v2490
        %v2505 = vpack.c.b16 %v2493, %v2492
        %v2506 = vpack.c.b16 %v2495, %v2494
        %v2507 = vpack.c.b16 %v2497, %v2496
        %v2508 = vpack.c.b16 %v2499, %v2498
        %v2509 = vpack.c.b16 %v2501, %v2500
        %2518 = vst [vmem:[#allocation2] sm:$0xff] %v2502
        %2519 = vst [vmem:[#allocation2 + $0x8] sm:$0xff] %v2503
        %2520 = vst [vmem:[#allocation2 + $0x10] sm:$0xff] %v2504
        %2521 = vst [vmem:[#allocation2 + $0x18] sm:$0xff] %v2505
        %2522 = vst [vmem:[#allocation2 + $0x20] sm:$0xff] %v2506
        %2523 = vst [vmem:[#allocation2 + $0x28] sm:$0xff] %v2507
        %2524 = vst [vmem:[#allocation2 + $0x30] sm:$0xff] %v2508
        %2525 = vst [vmem:[#allocation2 + $0x38] sm:$0xff] %v2509
        %v2526 = vpack.c.bf16 %v2394, %v2390
        %v2527 = vpack.c.bf16 %v2395, %v2391
        %v2528 = vpack.c.bf16 %v2396, %v2392
        %v2529 = vpack.c.bf16 %v2397, %v2393
        %v2530 = vpack.c.bf16 %v2402, %v2398
        %v2531 = vpack.c.bf16 %v2403, %v2399
        %v2532 = vpack.c.bf16 %v2404, %v2400
        %v2533 = vpack.c.bf16 %v2405, %v2401
        %v2542 = vunpack.c.l.b16 %v2526
        %v2543 = vunpack.c.l.b16 %v2527
        %v2544 = vunpack.c.l.b16 %v2528
        %v2545 = vunpack.c.l.b16 %v2529
        %v2546 = vunpack.c.h.b16 %v2526
        %v2547 = vunpack.c.h.b16 %v2527
        %v2548 = vunpack.c.h.b16 %v2528
        %v2549 = vunpack.c.h.b16 %v2529
        %v2550 = vunpack.c.l.b16 %v2530
        %v2551 = vunpack.c.l.b16 %v2531
        %v2552 = vunpack.c.l.b16 %v2532
        %v2553 = vunpack.c.l.b16 %v2533
        %v2554 = vunpack.c.h.b16 %v2530
        %v2555 = vunpack.c.h.b16 %v2531
        %v2556 = vunpack.c.h.b16 %v2532
        %v2557 = vunpack.c.h.b16 %v2533
        %v2558 = vpack.c.b16 %v2543, %v2542
        %v2559 = vpack.c.b16 %v2545, %v2544
        %v2560 = vpack.c.b16 %v2547, %v2546
        %v2561 = vpack.c.b16 %v2549, %v2548
        %v2562 = vpack.c.b16 %v2551, %v2550
        %v2563 = vpack.c.b16 %v2553, %v2552
        %v2564 = vpack.c.b16 %v2555, %v2554
        %v2565 = vpack.c.b16 %v2557, %v2556
        %2574 = vst [vmem:[#allocation2 + $0x40] sm:$0xff] %v2558
        %2575 = vst [vmem:[#allocation2 + $0x48] sm:$0xff] %v2559
        %2576 = vst [vmem:[#allocation2 + $0x50] sm:$0xff] %v2560
        %2577 = vst [vmem:[#allocation2 + $0x58] sm:$0xff] %v2561
        %2578 = vst [vmem:[#allocation2 + $0x60] sm:$0xff] %v2562
        %2579 = vst [vmem:[#allocation2 + $0x68] sm:$0xff] %v2563
        %2580 = vst [vmem:[#allocation2 + $0x70] sm:$0xff] %v2564
        %2581 = vst [vmem:[#allocation2 + $0x78] sm:$0xff] %v2565
        %2582 = vrot.lane.b32.xlu0 %v2390, 127
        %v2583 = vpop.permute.xlu0 %2582
        %2584 = vrot.lane.b32.xlu0 %v2394, 127
        %v2585 = vpop.permute.xlu0 %2584
        %2586 = vrot.lane.b32.xlu0 %v2398, 127
        %v2587 = vpop.permute.xlu0 %2586
        %2588 = vrot.lane.b32.xlu0 %v2402, 127
        %v2589 = vpop.permute.xlu0 %2588
        %2590 = vrot.lane.b32.xlu0 %v2391, 127
        %v2591 = vpop.permute.xlu0 %2590
        %2592 = vrot.lane.b32.xlu0 %v2395, 127
        %v2593 = vpop.permute.xlu0 %2592
        %2594 = vrot.lane.b32.xlu0 %v2399, 127
        %v2595 = vpop.permute.xlu0 %2594
        %2596 = vrot.lane.b32.xlu0 %v2403, 127
        %v2597 = vpop.permute.xlu0 %2596
        %2598 = vrot.lane.b32.xlu0 %v2392, 127
        %v2599 = vpop.permute.xlu0 %2598
        %2600 = vrot.lane.b32.xlu0 %v2396, 127
        %v2601 = vpop.permute.xlu0 %2600
        %2602 = vrot.lane.b32.xlu0 %v2400, 127
        %v2603 = vpop.permute.xlu0 %2602
        %2604 = vrot.lane.b32.xlu0 %v2404, 127
        %v2605 = vpop.permute.xlu0 %2604
        %2606 = vrot.lane.b32.xlu0 %v2393, 127
        %v2607 = vpop.permute.xlu0 %2606
        %2608 = vrot.lane.b32.xlu0 %v2397, 127
        %v2609 = vpop.permute.xlu0 %2608
        %2610 = vrot.lane.b32.xlu0 %v2401, 127
        %v2611 = vpop.permute.xlu0 %2610
        %2612 = vrot.lane.b32.xlu0 %v2405, 127
        %v2613 = vpop.permute.xlu0 %2612
        %v2614 = vsel %vm588, %v2599, %v2607
        %v2615 = vsel %vm588, %v2601, %v2609
        %v2616 = vsel %vm588, %v2603, %v2611
        %v2617 = vsel %vm588, %v2605, %v2613
        %v2618 = vsel %vm588, %v2591, %v2599
        %v2619 = vsel %vm588, %v2593, %v2601
        %v2620 = vsel %vm588, %v2595, %v2603
        %v2621 = vsel %vm588, %v2597, %v2605
        %v2622 = vsel %vm588, %v2583, %v2591
        %v2623 = vsel %vm588, %v2585, %v2593
        %v2624 = vsel %vm588, %v2587, %v2595
        %v2625 = vsel %vm588, %v2589, %v2597
        %v2626 = vsel %vm588, %v2607, %v2583
        %v2627 = vsel %vm588, %v2609, %v2585
        %v2628 = vsel %vm588, %v2611, %v2587
        %v2629 = vsel %vm588, %v2613, %v2589
        %v2630 = vsel %vm621, %v2622, 0.0
        %v2631 = vsel %vm622, %v2618, 0.0
        %v2632 = vsel %vm623, %v2614, 0.0
        %v2633 = vsel %vm624, %v2626, 0.0
        %v2634 = vsel %vm621, %v2623, 0.0
        %v2635 = vsel %vm622, %v2619, 0.0
        %v2636 = vsel %vm623, %v2615, 0.0
        %v2637 = vsel %vm624, %v2627, 0.0
        %v2638 = vsel %vm621, %v2624, 0.0
        %v2639 = vsel %vm622, %v2620, 0.0
        %v2640 = vsel %vm623, %v2616, 0.0
        %v2641 = vsel %vm624, %v2628, 0.0
        %v2642 = vsel %vm621, %v2625, 0.0
        %v2643 = vsel %vm622, %v2621, 0.0
        %v2644 = vsel %vm623, %v2617, 0.0
        %v2645 = vsel %vm624, %v2629, 0.0
        %v2646 = vpack.c.bf16 %v2634, %v2630
        %v2647 = vpack.c.bf16 %v2635, %v2631
        %v2648 = vpack.c.bf16 %v2636, %v2632
        %v2649 = vpack.c.bf16 %v2637, %v2633
        %v2650 = vpack.c.bf16 %v2642, %v2638
        %v2651 = vpack.c.bf16 %v2643, %v2639
        %v2652 = vpack.c.bf16 %v2644, %v2640
        %v2653 = vpack.c.bf16 %v2645, %v2641
        %v2662 = vunpack.c.l.b16 %v2646
        %v2663 = vunpack.c.l.b16 %v2647
        %v2664 = vunpack.c.l.b16 %v2648
        %v2665 = vunpack.c.l.b16 %v2649
        %v2666 = vunpack.c.h.b16 %v2646
        %v2667 = vunpack.c.h.b16 %v2647
        %v2668 = vunpack.c.h.b16 %v2648
        %v2669 = vunpack.c.h.b16 %v2649
        %v2670 = vunpack.c.l.b16 %v2650
        %v2671 = vunpack.c.l.b16 %v2651
        %v2672 = vunpack.c.l.b16 %v2652
        %v2673 = vunpack.c.l.b16 %v2653
        %v2674 = vunpack.c.h.b16 %v2650
        %v2675 = vunpack.c.h.b16 %v2651
        %v2676 = vunpack.c.h.b16 %v2652
        %v2677 = vunpack.c.h.b16 %v2653
        %v2678 = vpack.c.b16 %v2663, %v2662
        %v2679 = vpack.c.b16 %v2665, %v2664
        %v2680 = vpack.c.b16 %v2667, %v2666
        %v2681 = vpack.c.b16 %v2669, %v2668
        %v2682 = vpack.c.b16 %v2671, %v2670
        %v2683 = vpack.c.b16 %v2673, %v2672
        %v2684 = vpack.c.b16 %v2675, %v2674
        %v2685 = vpack.c.b16 %v2677, %v2676
        %2694 = vst [vmem:[#allocation2 + $0x80] sm:$0xff] %v2678
        %2695 = vst [vmem:[#allocation2 + $0x88] sm:$0xff] %v2679
        %2696 = vst [vmem:[#allocation2 + $0x90] sm:$0xff] %v2680
        %2697 = vst [vmem:[#allocation2 + $0x98] sm:$0xff] %v2681
        %2698 = vst [vmem:[#allocation2 + $0xa0] sm:$0xff] %v2682
        %2699 = vst [vmem:[#allocation2 + $0xa8] sm:$0xff] %v2683
        %2700 = vst [vmem:[#allocation2 + $0xb0] sm:$0xff] %v2684
        %2701 = vst [vmem:[#allocation2 + $0xb8] sm:$0xff] %v2685
        %v2702 = vld [vmem:[#allocation2] sm:$0xff]
        %v2703 = vld [vmem:[#allocation2 + $0x8] sm:$0xff]
        %v2704 = vld [vmem:[#allocation2 + $0x10] sm:$0xff]
        %v2705 = vld [vmem:[#allocation2 + $0x18] sm:$0xff]
        %v2706 = vld [vmem:[#allocation2 + $0x20] sm:$0xff]
        %v2707 = vld [vmem:[#allocation2 + $0x28] sm:$0xff]
        %v2708 = vld [vmem:[#allocation2 + $0x30] sm:$0xff]
        %v2709 = vld [vmem:[#allocation2 + $0x38] sm:$0xff]
        %v2710 = vld [vmem:[#allocation2 + $0x40] sm:$0xff]
        %v2711 = vld [vmem:[#allocation2 + $0x48] sm:$0xff]
        %v2712 = vld [vmem:[#allocation2 + $0x50] sm:$0xff]
        %v2713 = vld [vmem:[#allocation2 + $0x58] sm:$0xff]
        %v2714 = vld [vmem:[#allocation2 + $0x60] sm:$0xff]
        %v2715 = vld [vmem:[#allocation2 + $0x68] sm:$0xff]
        %v2716 = vld [vmem:[#allocation2 + $0x70] sm:$0xff]
        %v2717 = vld [vmem:[#allocation2 + $0x78] sm:$0xff]
        %v2718 = vld [vmem:[#allocation2 + $0x80] sm:$0xff]
        %v2719 = vld [vmem:[#allocation2 + $0x88] sm:$0xff]
        %v2720 = vld [vmem:[#allocation2 + $0x90] sm:$0xff]
        %v2721 = vld [vmem:[#allocation2 + $0x98] sm:$0xff]
        %v2722 = vld [vmem:[#allocation2 + $0xa0] sm:$0xff]
        %v2723 = vld [vmem:[#allocation2 + $0xa8] sm:$0xff]
        %v2724 = vld [vmem:[#allocation2 + $0xb0] sm:$0xff]
        %v2725 = vld [vmem:[#allocation2 + $0xb8] sm:$0xff]
        %2727 = vset.pattern.permute.xlu0 0
        %2728 = vperm.xlu0 %2727, %v2354
        %v2729 = vpop.permute.xlu0 %2728
        %2732 = vset.pattern.permute.xlu0 0
        %2733 = vperm.xlu0 %2732, %v2355
        %v2734 = vpop.permute.xlu0 %2733
        %2737 = vset.pattern.permute.xlu0 0
        %2738 = vperm.xlu0 %2737, %v2356
        %v2739 = vpop.permute.xlu0 %2738
        %2742 = vset.pattern.permute.xlu0 0
        %2743 = vperm.xlu0 %2742, %v2357
        %v2744 = vpop.permute.xlu0 %2743
        %v2750 = vunpack.c.l.b16 %v2349
        %v2751 = vunpack.c.l.b16 %v2350
        %v2752 = vunpack.c.l.b16 %v2351
        %v2753 = vunpack.c.l.b16 %v2352
        %v2754 = vpack.c.b16 %v2751, %v2750
        %v2755 = vpack.c.b16 %v2753, %v2752
        %v2780 = vunpack.c.l.b16 %v2702
        %v2781 = vunpack.c.h.b16 %v2702
        %v2782 = vunpack.c.l.b16 %v2703
        %v2783 = vunpack.c.h.b16 %v2703
        %v2784 = vunpack.c.l.b16 %v2704
        %v2785 = vunpack.c.h.b16 %v2704
        %v2786 = vunpack.c.l.b16 %v2705
        %v2787 = vunpack.c.h.b16 %v2705
        %v2788 = vunpack.c.l.b16 %v2706
        %v2789 = vunpack.c.h.b16 %v2706
        %v2790 = vunpack.c.l.b16 %v2707
        %v2791 = vunpack.c.h.b16 %v2707
        %v2792 = vunpack.c.l.b16 %v2708
        %v2793 = vunpack.c.h.b16 %v2708
        %v2794 = vunpack.c.l.b16 %v2709
        %v2795 = vunpack.c.h.b16 %v2709
        %v2796 = vunpack.c.l.b16 %v2710
        %v2797 = vunpack.c.h.b16 %v2710
        %v2798 = vunpack.c.l.b16 %v2711
        %v2799 = vunpack.c.h.b16 %v2711
        %v2800 = vunpack.c.l.b16 %v2712
        %v2801 = vunpack.c.h.b16 %v2712
        %v2802 = vunpack.c.l.b16 %v2713
        %v2803 = vunpack.c.h.b16 %v2713
        %v2804 = vunpack.c.l.b16 %v2714
        %v2805 = vunpack.c.h.b16 %v2714
        %v2806 = vunpack.c.l.b16 %v2715
        %v2807 = vunpack.c.h.b16 %v2715
        %v2808 = vunpack.c.l.b16 %v2716
        %v2809 = vunpack.c.h.b16 %v2716
        %v2810 = vunpack.c.l.b16 %v2717
        %v2811 = vunpack.c.h.b16 %v2717
        %v2812 = vunpack.c.l.b16 %v2718
        %v2813 = vunpack.c.h.b16 %v2718
        %v2814 = vunpack.c.l.b16 %v2719
        %v2815 = vunpack.c.h.b16 %v2719
        %v2816 = vunpack.c.l.b16 %v2720
        %v2817 = vunpack.c.h.b16 %v2720
        %v2818 = vunpack.c.l.b16 %v2721
        %v2819 = vunpack.c.h.b16 %v2721
        %v2820 = vunpack.c.l.b16 %v2722
        %v2821 = vunpack.c.h.b16 %v2722
        %v2822 = vunpack.c.l.b16 %v2723
        %v2823 = vunpack.c.h.b16 %v2723
        %v2824 = vunpack.c.l.b16 %v2724
        %v2825 = vunpack.c.h.b16 %v2724
        %v2826 = vunpack.c.l.b16 %v2725
        %v2827 = vunpack.c.h.b16 %v2725
        %v2828 = vpack.c.b16 %v2784, %v2780
        %v2829 = vpack.c.b16 %v2785, %v2781
        %v2830 = vpack.c.b16 %v2786, %v2782
        %v2831 = vpack.c.b16 %v2787, %v2783
        %v2832 = vpack.c.b16 %v2792, %v2788
        %v2833 = vpack.c.b16 %v2793, %v2789
        %v2834 = vpack.c.b16 %v2794, %v2790
        %v2835 = vpack.c.b16 %v2795, %v2791
        %v2836 = vpack.c.b16 %v2800, %v2796
        %v2837 = vpack.c.b16 %v2801, %v2797
        %v2838 = vpack.c.b16 %v2802, %v2798
        %v2839 = vpack.c.b16 %v2803, %v2799
        %v2840 = vpack.c.b16 %v2808, %v2804
        %v2841 = vpack.c.b16 %v2809, %v2805
        %v2842 = vpack.c.b16 %v2810, %v2806
        %v2843 = vpack.c.b16 %v2811, %v2807
        %v2844 = vpack.c.b16 %v2816, %v2812
        %v2845 = vpack.c.b16 %v2817, %v2813
        %v2846 = vpack.c.b16 %v2818, %v2814
        %v2847 = vpack.c.b16 %v2819, %v2815
        %v2848 = vpack.c.b16 %v2824, %v2820
        %v2849 = vpack.c.b16 %v2825, %v2821
        %v2850 = vpack.c.b16 %v2826, %v2822
        %v2851 = vpack.c.b16 %v2827, %v2823
        %v2877 = vsel %vm871, %v2754, 0
        %v2880 = vsel %vm871, %v2755, 0
        %2882 = vmatprep.subr.bf16.mxu0 0
        %2883 = vmatpush1.bf16.msra.mxu0 0
        %2884 = vmatprep.subr.bf16.mxu0 0
        %2885 = vmatpush1.bf16.msra.mxu0 0
        %2886 = vmatprep.subr.bf16.mxu0 %v2849
        %2887 = vmatpush1.bf16.msra.mxu0 %v2848
        %2888 = vmatprep.subr.bf16.mxu0 %v2845
        %2889 = vmatpush1.bf16.msra.mxu0 %v2844
        %2890 = vmatprep.subr.bf16.mxu0 %v2841
        %2891 = vmatpush1.bf16.msra.mxu0 %v2840
        %2892 = vmatprep.subr.bf16.mxu0 %v2837
        %2893 = vmatpush1.bf16.msra.mxu0 %v2836
        %2894 = vmatprep.subr.bf16.mxu0 %v2833
        %2895 = vmatpush1.bf16.msra.mxu0 %v2832
        %2896 = vmatprep.subr.bf16.mxu0 %v2829
        %2897 = vmatpush1.bf16.msra.mxu0 %v2828
        %2898 = vmatprep.subr.bf16.mxu0 0
        %2899 = vmatpush2.bf16.msra.mxu0 0
        %2900 = vmatprep.subr.bf16.mxu0 0
        %2901 = vmatpush2.bf16.msra.mxu0 0
        %2902 = vmatprep.subr.bf16.mxu0 0
        %2903 = vmatpush2.bf16.msra.mxu0 0
        %2904 = vmatprep.subr.bf16.mxu0 0
        %2905 = vmatpush2.bf16.msra.mxu0 0
        %2906 = vmatprep.subr.bf16.mxu0 0
        %2907 = vmatpush2.bf16.msra.mxu0 0
        %2908 = vmatprep.subr.bf16.mxu0 0
        %2909 = vmatpush2.bf16.msra.mxu0 0
        %2910 = vmatprep.subr.bf16.mxu0 0
        %2911 = vmatpush2.bf16.msra.mxu0 0
        %2912 = vmatprep.subr.bf16.mxu0 0
        %2913 = vmatpush2.bf16.msra.mxu0 0
        %2914 = vmatprep.mubr.bf16.mxu0 0
        %2915 = vmatmul.mubr.bf16.gmra.mxu0 %v2877
        %v2916 = vpop.f32.mrf.mxu0
        %v2917 = vadd.f32 %v2729, %v2916
        %v2918 = vpop.f32.mrf.mxu0
        %v2919 = vadd.f32 %v2729, %v2918
        %v2920 = vpop.f32.mrf.mxu0
        %v2921 = vadd.f32 %v2734, %v2920
        %v2922 = vpop.f32.mrf.mxu0
        %v2923 = vadd.f32 %v2734, %v2922
        %2924 = vmatprep.mubr.bf16.mxu0 0
        %2925 = vmatmul.mubr.bf16.gmra.mxu0 %v2880
        %v2926 = vpop.f32.mrf.mxu0
        %v2927 = vadd.f32 %v2739, %v2926
        %v2928 = vpop.f32.mrf.mxu0
        %v2929 = vadd.f32 %v2739, %v2928
        %v2930 = vpop.f32.mrf.mxu0
        %v2931 = vadd.f32 %v2744, %v2930
        %v2932 = vpop.f32.mrf.mxu0
        %v2933 = vadd.f32 %v2744, %v2932
        %2934 = vdwg.mxu0
        %2935 = vmatprep.subr.bf16.mxu0 0
        %2936 = vmatpush1.bf16.msra.mxu0 0
        %2937 = vmatprep.subr.bf16.mxu0 0
        %2938 = vmatpush1.bf16.msra.mxu0 0
        %2939 = vmatprep.subr.bf16.mxu0 %v2851
        %2940 = vmatpush1.bf16.msra.mxu0 %v2850
        %2941 = vmatprep.subr.bf16.mxu0 %v2847
        %2942 = vmatpush1.bf16.msra.mxu0 %v2846
        %2943 = vmatprep.subr.bf16.mxu0 %v2843
        %2944 = vmatpush1.bf16.msra.mxu0 %v2842
        %2945 = vmatprep.subr.bf16.mxu0 %v2839
        %2946 = vmatpush1.bf16.msra.mxu0 %v2838
        %2947 = vmatprep.subr.bf16.mxu0 %v2835
        %2948 = vmatpush1.bf16.msra.mxu0 %v2834
        %2949 = vmatprep.subr.bf16.mxu0 %v2831
        %2950 = vmatpush1.bf16.msra.mxu0 %v2830
        %2951 = vmatprep.subr.bf16.mxu0 0
        %2952 = vmatpush2.bf16.msra.mxu0 0
        %2953 = vmatprep.subr.bf16.mxu0 0
        %2954 = vmatpush2.bf16.msra.mxu0 0
        %2955 = vmatprep.subr.bf16.mxu0 0
        %2956 = vmatpush2.bf16.msra.mxu0 0
        %2957 = vmatprep.subr.bf16.mxu0 0
        %2958 = vmatpush2.bf16.msra.mxu0 0
        %2959 = vmatprep.subr.bf16.mxu0 0
        %2960 = vmatpush2.bf16.msra.mxu0 0
        %2961 = vmatprep.subr.bf16.mxu0 0
        %2962 = vmatpush2.bf16.msra.mxu0 0
        %2963 = vmatprep.subr.bf16.mxu0 0
        %2964 = vmatpush2.bf16.msra.mxu0 0
        %2965 = vmatprep.subr.bf16.mxu0 0
        %2966 = vmatpush2.bf16.msra.mxu0 0
        %2967 = vmatprep.mubr.bf16.mxu0 0
        %2968 = vmatmul.mubr.bf16.gmra.mxu0 %v2877
        %v2969 = vpop.f32.mrf.mxu0
        %v2970 = vadd.f32 %v2729, %v2969
        %v2971 = vpop.f32.mrf.mxu0
        %v2972 = vadd.f32 %v2729, %v2971
        %v2973 = vpop.f32.mrf.mxu0
        %v2974 = vadd.f32 %v2734, %v2973
        %v2975 = vpop.f32.mrf.mxu0
        %v2976 = vadd.f32 %v2734, %v2975
        %2977 = vmatprep.mubr.bf16.mxu0 0
        %2978 = vmatmul.mubr.bf16.gmra.mxu0 %v2880
        %v2979 = vpop.f32.mrf.mxu0
        %v2980 = vadd.f32 %v2739, %v2979
        %v2981 = vpop.f32.mrf.mxu0
        %v2982 = vadd.f32 %v2739, %v2981
        %v2983 = vpop.f32.mrf.mxu0
        %v2984 = vadd.f32 %v2744, %v2983
        %v2985 = vpop.f32.mrf.mxu0
        %v2986 = vadd.f32 %v2744, %v2985
        %2987 = vdwg.mxu0
        %v2988 = vadd.f32 %v1658, %v2917
        %v2989 = vadd.f32 %v1659, %v2919
        %v2990 = vadd.f32 %v1660, %v2970
        %v2991 = vadd.f32 %v1661, %v2972
        %v2992 = vadd.f32 %v1662, %v2921
        %v2993 = vadd.f32 %v1663, %v2923
        %v2994 = vadd.f32 %v1664, %v2974
        %v2995 = vadd.f32 %v1665, %v2976
        %v2996 = vadd.f32 %v1666, %v2927
        %v2997 = vadd.f32 %v1667, %v2929
        %v2998 = vadd.f32 %v1668, %v2980
        %v2999 = vadd.f32 %v1669, %v2982
        %v3000 = vadd.f32 %v1670, %v2931
        %v3001 = vadd.f32 %v1671, %v2933
        %v3002 = vadd.f32 %v1672, %v2984
        %v3003 = vadd.f32 %v1673, %v2986
        %v3004 = vld [vmem:[#allocation6] sm:$0xff]
        %v3005 = vld [vmem:[#allocation6 + $0x8] sm:$0xff]
        %v3006 = vld [vmem:[#allocation6 + $0x10] sm:$0xff]
        %v3007 = vld [vmem:[#allocation6 + $0x18] sm:$0xff]
        %s3008 = scalar_lea.vmem %s3, 128
        %v3009 = vld [vmem:[%s3008] sm:$0xff]
        %v3010 = vld [vmem:[%s3008 + $0x8] sm:$0xff]
        %v3011 = vld [vmem:[%s3008 + $0x10] sm:$0xff]
        %v3012 = vld [vmem:[%s3008 + $0x18] sm:$0xff]
        %3013 = vrot.lane.b32.xlu0 %v343, 2
        %v3014 = vpop.permute.xlu0 %3013
        %3015 = vrot.lane.b32.xlu0 %v347, 2
        %v3016 = vpop.permute.xlu0 %3015
        %3017 = vrot.lane.b32.xlu0 %v351, 2
        %v3018 = vpop.permute.xlu0 %3017
        %3019 = vrot.lane.b32.xlu0 %v355, 2
        %v3020 = vpop.permute.xlu0 %3019
        %3021 = vrot.lane.b32.xlu0 %v344, 2
        %v3022 = vpop.permute.xlu0 %3021
        %3023 = vrot.lane.b32.xlu0 %v348, 2
        %v3024 = vpop.permute.xlu0 %3023
        %3025 = vrot.lane.b32.xlu0 %v352, 2
        %v3026 = vpop.permute.xlu0 %3025
        %3027 = vrot.lane.b32.xlu0 %v356, 2
        %v3028 = vpop.permute.xlu0 %3027
        %3029 = vrot.lane.b32.xlu0 %v345, 2
        %v3030 = vpop.permute.xlu0 %3029
        %3031 = vrot.lane.b32.xlu0 %v349, 2
        %v3032 = vpop.permute.xlu0 %3031
        %3033 = vrot.lane.b32.xlu0 %v353, 2
        %v3034 = vpop.permute.xlu0 %3033
        %3035 = vrot.lane.b32.xlu0 %v357, 2
        %v3036 = vpop.permute.xlu0 %3035
        %3037 = vrot.lane.b32.xlu0 %v346, 2
        %v3038 = vpop.permute.xlu0 %3037
        %3039 = vrot.lane.b32.xlu0 %v350, 2
        %v3040 = vpop.permute.xlu0 %3039
        %3041 = vrot.lane.b32.xlu0 %v354, 2
        %v3042 = vpop.permute.xlu0 %3041
        %3043 = vrot.lane.b32.xlu0 %v358, 2
        %v3044 = vpop.permute.xlu0 %3043
        %v3045 = vsel %vm1074, %v3030, %v3038
        %v3046 = vsel %vm1074, %v3032, %v3040
        %v3047 = vsel %vm1074, %v3034, %v3042
        %v3048 = vsel %vm1074, %v3036, %v3044
        %v3049 = vsel %vm1074, %v3022, %v3030
        %v3050 = vsel %vm1074, %v3024, %v3032
        %v3051 = vsel %vm1074, %v3026, %v3034
        %v3052 = vsel %vm1074, %v3028, %v3036
        %v3053 = vsel %vm1074, %v3014, %v3022
        %v3054 = vsel %vm1074, %v3016, %v3024
        %v3055 = vsel %vm1074, %v3018, %v3026
        %v3056 = vsel %vm1074, %v3020, %v3028
        %v3057 = vsel %vm1074, %v3038, %v3014
        %v3058 = vsel %vm1074, %v3040, %v3016
        %v3059 = vsel %vm1074, %v3042, %v3018
        %v3060 = vsel %vm1074, %v3044, %v3020
        %v3061 = vsel %vm1103, %v3057, 0.0
        %v3062 = vsel %vm1104, %v3053, 0.0
        %v3063 = vsel %vm1105, %v3049, 0.0
        %v3064 = vsel %vm1106, %v3045, 0.0
        %v3065 = vsel %vm1103, %v3058, 0.0
        %v3066 = vsel %vm1104, %v3054, 0.0
        %v3067 = vsel %vm1105, %v3050, 0.0
        %v3068 = vsel %vm1106, %v3046, 0.0
        %v3069 = vsel %vm1103, %v3059, 0.0
        %v3070 = vsel %vm1104, %v3055, 0.0
        %v3071 = vsel %vm1105, %v3051, 0.0
        %v3072 = vsel %vm1106, %v3047, 0.0
        %v3073 = vsel %vm1103, %v3060, 0.0
        %v3074 = vsel %vm1104, %v3056, 0.0
        %v3075 = vsel %vm1105, %v3052, 0.0
        %v3076 = vsel %vm1106, %v3048, 0.0
        %v3077 = vpack.c.bf16 %v3065, %v3061
        %v3078 = vpack.c.bf16 %v3066, %v3062
        %v3079 = vpack.c.bf16 %v3067, %v3063
        %v3080 = vpack.c.bf16 %v3068, %v3064
        %v3081 = vpack.c.bf16 %v3073, %v3069
        %v3082 = vpack.c.bf16 %v3074, %v3070
        %v3083 = vpack.c.bf16 %v3075, %v3071
        %v3084 = vpack.c.bf16 %v3076, %v3072
        %v3093 = vunpack.c.l.b16 %v3077
        %v3094 = vunpack.c.l.b16 %v3078
        %v3095 = vunpack.c.l.b16 %v3079
        %v3096 = vunpack.c.l.b16 %v3080
        %v3097 = vunpack.c.h.b16 %v3077
        %v3098 = vunpack.c.h.b16 %v3078
        %v3099 = vunpack.c.h.b16 %v3079
        %v3100 = vunpack.c.h.b16 %v3080
        %v3101 = vunpack.c.l.b16 %v3081
        %v3102 = vunpack.c.l.b16 %v3082
        %v3103 = vunpack.c.l.b16 %v3083
        %v3104 = vunpack.c.l.b16 %v3084
        %v3105 = vunpack.c.h.b16 %v3081
        %v3106 = vunpack.c.h.b16 %v3082
        %v3107 = vunpack.c.h.b16 %v3083
        %v3108 = vunpack.c.h.b16 %v3084
        %v3109 = vpack.c.b16 %v3094, %v3093
        %v3110 = vpack.c.b16 %v3096, %v3095
        %v3111 = vpack.c.b16 %v3098, %v3097
        %v3112 = vpack.c.b16 %v3100, %v3099
        %v3113 = vpack.c.b16 %v3102, %v3101
        %v3114 = vpack.c.b16 %v3104, %v3103
        %v3115 = vpack.c.b16 %v3106, %v3105
        %v3116 = vpack.c.b16 %v3108, %v3107
        %3125 = vst [vmem:[#allocation2] sm:$0xff] %v3109
        %3126 = vst [vmem:[#allocation2 + $0x8] sm:$0xff] %v3110
        %3127 = vst [vmem:[#allocation2 + $0x10] sm:$0xff] %v3111
        %3128 = vst [vmem:[#allocation2 + $0x18] sm:$0xff] %v3112
        %3129 = vst [vmem:[#allocation2 + $0x20] sm:$0xff] %v3113
        %3130 = vst [vmem:[#allocation2 + $0x28] sm:$0xff] %v3114
        %3131 = vst [vmem:[#allocation2 + $0x30] sm:$0xff] %v3115
        %3132 = vst [vmem:[#allocation2 + $0x38] sm:$0xff] %v3116
        %3133 = vst [vmem:[#allocation2 + $0x40] sm:$0xff] %v476
        %3134 = vst [vmem:[#allocation2 + $0x48] sm:$0xff] %v477
        %3135 = vst [vmem:[#allocation2 + $0x50] sm:$0xff] %v478
        %3136 = vst [vmem:[#allocation2 + $0x58] sm:$0xff] %v479
        %3137 = vst [vmem:[#allocation2 + $0x60] sm:$0xff] %v480
        %3138 = vst [vmem:[#allocation2 + $0x68] sm:$0xff] %v481
        %3139 = vst [vmem:[#allocation2 + $0x70] sm:$0xff] %v482
        %3140 = vst [vmem:[#allocation2 + $0x78] sm:$0xff] %v483
        %3141 = vst [vmem:[#allocation2 + $0x80] sm:$0xff] %v532
        %3142 = vst [vmem:[#allocation2 + $0x88] sm:$0xff] %v533
        %3143 = vst [vmem:[#allocation2 + $0x90] sm:$0xff] %v534
        %3144 = vst [vmem:[#allocation2 + $0x98] sm:$0xff] %v535
        %3145 = vst [vmem:[#allocation2 + $0xa0] sm:$0xff] %v536
        %3146 = vst [vmem:[#allocation2 + $0xa8] sm:$0xff] %v537
        %3147 = vst [vmem:[#allocation2 + $0xb0] sm:$0xff] %v538
        %3148 = vst [vmem:[#allocation2 + $0xb8] sm:$0xff] %v539
        %3149 = vst [vmem:[#allocation2 + $0xc0] sm:$0xff] %v673
        %3150 = vst [vmem:[#allocation2 + $0xc8] sm:$0xff] %v674
        %3151 = vst [vmem:[#allocation2 + $0xd0] sm:$0xff] %v675
        %3152 = vst [vmem:[#allocation2 + $0xd8] sm:$0xff] %v676
        %3153 = vst [vmem:[#allocation2 + $0xe0] sm:$0xff] %v677
        %3154 = vst [vmem:[#allocation2 + $0xe8] sm:$0xff] %v678
        %3155 = vst [vmem:[#allocation2 + $0xf0] sm:$0xff] %v679
        %3156 = vst [vmem:[#allocation2 + $0xf8] sm:$0xff] %v680
        %3157 = vrot.lane.b32.xlu0 %v343, 126
        %v3158 = vpop.permute.xlu0 %3157
        %3159 = vrot.lane.b32.xlu0 %v347, 126
        %v3160 = vpop.permute.xlu0 %3159
        %3161 = vrot.lane.b32.xlu0 %v351, 126
        %v3162 = vpop.permute.xlu0 %3161
        %3163 = vrot.lane.b32.xlu0 %v355, 126
        %v3164 = vpop.permute.xlu0 %3163
        %3165 = vrot.lane.b32.xlu0 %v344, 126
        %v3166 = vpop.permute.xlu0 %3165
        %3167 = vrot.lane.b32.xlu0 %v348, 126
        %v3168 = vpop.permute.xlu0 %3167
        %3169 = vrot.lane.b32.xlu0 %v352, 126
        %v3170 = vpop.permute.xlu0 %3169
        %3171 = vrot.lane.b32.xlu0 %v356, 126
        %v3172 = vpop.permute.xlu0 %3171
        %3173 = vrot.lane.b32.xlu0 %v345, 126
        %v3174 = vpop.permute.xlu0 %3173
        %3175 = vrot.lane.b32.xlu0 %v349, 126
        %v3176 = vpop.permute.xlu0 %3175
        %3177 = vrot.lane.b32.xlu0 %v353, 126
        %v3178 = vpop.permute.xlu0 %3177
        %3179 = vrot.lane.b32.xlu0 %v357, 126
        %v3180 = vpop.permute.xlu0 %3179
        %3181 = vrot.lane.b32.xlu0 %v346, 126
        %v3182 = vpop.permute.xlu0 %3181
        %3183 = vrot.lane.b32.xlu0 %v350, 126
        %v3184 = vpop.permute.xlu0 %3183
        %3185 = vrot.lane.b32.xlu0 %v354, 126
        %v3186 = vpop.permute.xlu0 %3185
        %3187 = vrot.lane.b32.xlu0 %v358, 126
        %v3188 = vpop.permute.xlu0 %3187
        %v3189 = vsel %vm1267, %v3174, %v3182
        %v3190 = vsel %vm1267, %v3176, %v3184
        %v3191 = vsel %vm1267, %v3178, %v3186
        %v3192 = vsel %vm1267, %v3180, %v3188
        %v3193 = vsel %vm1267, %v3166, %v3174
        %v3194 = vsel %vm1267, %v3168, %v3176
        %v3195 = vsel %vm1267, %v3170, %v3178
        %v3196 = vsel %vm1267, %v3172, %v3180
        %v3197 = vsel %vm1267, %v3158, %v3166
        %v3198 = vsel %vm1267, %v3160, %v3168
        %v3199 = vsel %vm1267, %v3162, %v3170
        %v3200 = vsel %vm1267, %v3164, %v3172
        %v3201 = vsel %vm1267, %v3182, %v3158
        %v3202 = vsel %vm1267, %v3184, %v3160
        %v3203 = vsel %vm1267, %v3186, %v3162
        %v3204 = vsel %vm1267, %v3188, %v3164
        %v3205 = vsel %vm1296, %v3197, 0.0
        %v3206 = vsel %vm1297, %v3193, 0.0
        %v3207 = vsel %vm1298, %v3189, 0.0
        %v3208 = vsel %vm1299, %v3201, 0.0
        %v3209 = vsel %vm1296, %v3198, 0.0
        %v3210 = vsel %vm1297, %v3194, 0.0
        %v3211 = vsel %vm1298, %v3190, 0.0
        %v3212 = vsel %vm1299, %v3202, 0.0
        %v3213 = vsel %vm1296, %v3199, 0.0
        %v3214 = vsel %vm1297, %v3195, 0.0
        %v3215 = vsel %vm1298, %v3191, 0.0
        %v3216 = vsel %vm1299, %v3203, 0.0
        %v3217 = vsel %vm1296, %v3200, 0.0
        %v3218 = vsel %vm1297, %v3196, 0.0
        %v3219 = vsel %vm1298, %v3192, 0.0
        %v3220 = vsel %vm1299, %v3204, 0.0
        %v3221 = vpack.c.bf16 %v3209, %v3205
        %v3222 = vpack.c.bf16 %v3210, %v3206
        %v3223 = vpack.c.bf16 %v3211, %v3207
        %v3224 = vpack.c.bf16 %v3212, %v3208
        %v3225 = vpack.c.bf16 %v3217, %v3213
        %v3226 = vpack.c.bf16 %v3218, %v3214
        %v3227 = vpack.c.bf16 %v3219, %v3215
        %v3228 = vpack.c.bf16 %v3220, %v3216
        %v3237 = vunpack.c.l.b16 %v3221
        %v3238 = vunpack.c.l.b16 %v3222
        %v3239 = vunpack.c.l.b16 %v3223
        %v3240 = vunpack.c.l.b16 %v3224
        %v3241 = vunpack.c.h.b16 %v3221
        %v3242 = vunpack.c.h.b16 %v3222
        %v3243 = vunpack.c.h.b16 %v3223
        %v3244 = vunpack.c.h.b16 %v3224
        %v3245 = vunpack.c.l.b16 %v3225
        %v3246 = vunpack.c.l.b16 %v3226
        %v3247 = vunpack.c.l.b16 %v3227
        %v3248 = vunpack.c.l.b16 %v3228
        %v3249 = vunpack.c.h.b16 %v3225
        %v3250 = vunpack.c.h.b16 %v3226
        %v3251 = vunpack.c.h.b16 %v3227
        %v3252 = vunpack.c.h.b16 %v3228
        %v3253 = vpack.c.b16 %v3238, %v3237
        %v3254 = vpack.c.b16 %v3240, %v3239
        %v3255 = vpack.c.b16 %v3242, %v3241
        %v3256 = vpack.c.b16 %v3244, %v3243
        %v3257 = vpack.c.b16 %v3246, %v3245
        %v3258 = vpack.c.b16 %v3248, %v3247
        %v3259 = vpack.c.b16 %v3250, %v3249
        %v3260 = vpack.c.b16 %v3252, %v3251
        %3269 = vst [vmem:[#allocation2 + $0x100] sm:$0xff] %v3253
        %3270 = vst [vmem:[#allocation2 + $0x108] sm:$0xff] %v3254
        %3271 = vst [vmem:[#allocation2 + $0x110] sm:$0xff] %v3255
        %3272 = vst [vmem:[#allocation2 + $0x118] sm:$0xff] %v3256
        %3273 = vst [vmem:[#allocation2 + $0x120] sm:$0xff] %v3257
        %3274 = vst [vmem:[#allocation2 + $0x128] sm:$0xff] %v3258
        %3275 = vst [vmem:[#allocation2 + $0x130] sm:$0xff] %v3259
        %3276 = vst [vmem:[#allocation2 + $0x138] sm:$0xff] %v3260
        %v3277 = vld [vmem:[#allocation2] sm:$0xff]
        %v3278 = vld [vmem:[#allocation2 + $0x8] sm:$0xff]
        %v3279 = vld [vmem:[#allocation2 + $0x10] sm:$0xff]
        %v3280 = vld [vmem:[#allocation2 + $0x18] sm:$0xff]
        %v3281 = vld [vmem:[#allocation2 + $0x20] sm:$0xff]
        %v3282 = vld [vmem:[#allocation2 + $0x28] sm:$0xff]
        %v3283 = vld [vmem:[#allocation2 + $0x30] sm:$0xff]
        %v3284 = vld [vmem:[#allocation2 + $0x38] sm:$0xff]
        %v3285 = vld [vmem:[#allocation2 + $0x40] sm:$0xff]
        %v3286 = vld [vmem:[#allocation2 + $0x48] sm:$0xff]
        %v3287 = vld [vmem:[#allocation2 + $0x50] sm:$0xff]
        %v3288 = vld [vmem:[#allocation2 + $0x58] sm:$0xff]
        %v3289 = vld [vmem:[#allocation2 + $0x60] sm:$0xff]
        %v3290 = vld [vmem:[#allocation2 + $0x68] sm:$0xff]
        %v3291 = vld [vmem:[#allocation2 + $0x70] sm:$0xff]
        %v3292 = vld [vmem:[#allocation2 + $0x78] sm:$0xff]
        %v3293 = vld [vmem:[#allocation2 + $0x80] sm:$0xff]
        %v3294 = vld [vmem:[#allocation2 + $0x88] sm:$0xff]
        %v3295 = vld [vmem:[#allocation2 + $0x90] sm:$0xff]
        %v3296 = vld [vmem:[#allocation2 + $0x98] sm:$0xff]
        %v3297 = vld [vmem:[#allocation2 + $0xa0] sm:$0xff]
        %v3298 = vld [vmem:[#allocation2 + $0xa8] sm:$0xff]
        %v3299 = vld [vmem:[#allocation2 + $0xb0] sm:$0xff]
        %v3300 = vld [vmem:[#allocation2 + $0xb8] sm:$0xff]
        %v3301 = vld [vmem:[#allocation2 + $0xc0] sm:$0xff]
        %v3302 = vld [vmem:[#allocation2 + $0xc8] sm:$0xff]
        %v3303 = vld [vmem:[#allocation2 + $0xd0] sm:$0xff]
        %v3304 = vld [vmem:[#allocation2 + $0xd8] sm:$0xff]
        %v3305 = vld [vmem:[#allocation2 + $0xe0] sm:$0xff]
        %v3306 = vld [vmem:[#allocation2 + $0xe8] sm:$0xff]
        %v3307 = vld [vmem:[#allocation2 + $0xf0] sm:$0xff]
        %v3308 = vld [vmem:[#allocation2 + $0xf8] sm:$0xff]
        %v3309 = vld [vmem:[#allocation2 + $0x100] sm:$0xff]
        %v3310 = vld [vmem:[#allocation2 + $0x108] sm:$0xff]
        %v3311 = vld [vmem:[#allocation2 + $0x110] sm:$0xff]
        %v3312 = vld [vmem:[#allocation2 + $0x118] sm:$0xff]
        %v3313 = vld [vmem:[#allocation2 + $0x120] sm:$0xff]
        %v3314 = vld [vmem:[#allocation2 + $0x128] sm:$0xff]
        %v3315 = vld [vmem:[#allocation2 + $0x130] sm:$0xff]
        %v3316 = vld [vmem:[#allocation2 + $0x138] sm:$0xff]
        %3318 = vset.pattern.permute.xlu0 0
        %3319 = vperm.xlu0 %3318, %v3009
        %v3320 = vpop.permute.xlu0 %3319
        %3323 = vset.pattern.permute.xlu0 0
        %3324 = vperm.xlu0 %3323, %v3010
        %v3325 = vpop.permute.xlu0 %3324
        %3328 = vset.pattern.permute.xlu0 0
        %3329 = vperm.xlu0 %3328, %v3011
        %v3330 = vpop.permute.xlu0 %3329
        %3333 = vset.pattern.permute.xlu0 0
        %3334 = vperm.xlu0 %3333, %v3012
        %v3335 = vpop.permute.xlu0 %3334
        %v3341 = vunpack.c.l.b16 %v3004
        %v3342 = vunpack.c.h.b16 %v3004
        %v3343 = vunpack.c.l.b16 %v3005
        %v3344 = vunpack.c.h.b16 %v3005
        %v3345 = vunpack.c.l.b16 %v3006
        %v3346 = vunpack.c.h.b16 %v3006
        %v3347 = vunpack.c.l.b16 %v3007
        %v3348 = vunpack.c.h.b16 %v3007
        %v3349 = vpack.c.b16 %v3343, %v3341
        %v3350 = vpack.c.b16 %v3344, %v3342
        %v3351 = vpack.c.b16 %v3347, %v3345
        %v3352 = vpack.c.b16 %v3348, %v3346
        %v3395 = vunpack.c.l.b16 %v3277
        %v3396 = vunpack.c.h.b16 %v3277
        %v3397 = vunpack.c.l.b16 %v3278
        %v3398 = vunpack.c.h.b16 %v3278
        %v3399 = vunpack.c.l.b16 %v3279
        %v3400 = vunpack.c.h.b16 %v3279
        %v3401 = vunpack.c.l.b16 %v3280
        %v3402 = vunpack.c.h.b16 %v3280
        %v3403 = vunpack.c.l.b16 %v3281
        %v3404 = vunpack.c.h.b16 %v3281
        %v3405 = vunpack.c.l.b16 %v3282
        %v3406 = vunpack.c.h.b16 %v3282
        %v3407 = vunpack.c.l.b16 %v3283
        %v3408 = vunpack.c.h.b16 %v3283
        %v3409 = vunpack.c.l.b16 %v3284
        %v3410 = vunpack.c.h.b16 %v3284
        %v3411 = vunpack.c.l.b16 %v3285
        %v3412 = vunpack.c.h.b16 %v3285
        %v3413 = vunpack.c.l.b16 %v3286
        %v3414 = vunpack.c.h.b16 %v3286
        %v3415 = vunpack.c.l.b16 %v3287
        %v3416 = vunpack.c.h.b16 %v3287
        %v3417 = vunpack.c.l.b16 %v3288
        %v3418 = vunpack.c.h.b16 %v3288
        %v3419 = vunpack.c.l.b16 %v3289
        %v3420 = vunpack.c.h.b16 %v3289
        %v3421 = vunpack.c.l.b16 %v3290
        %v3422 = vunpack.c.h.b16 %v3290
        %v3423 = vunpack.c.l.b16 %v3291
        %v3424 = vunpack.c.h.b16 %v3291
        %v3425 = vunpack.c.l.b16 %v3292
        %v3426 = vunpack.c.h.b16 %v3292
        %v3427 = vunpack.c.l.b16 %v3293
        %v3428 = vunpack.c.h.b16 %v3293
        %v3429 = vunpack.c.l.b16 %v3294
        %v3430 = vunpack.c.h.b16 %v3294
        %v3431 = vunpack.c.l.b16 %v3295
        %v3432 = vunpack.c.h.b16 %v3295
        %v3433 = vunpack.c.l.b16 %v3296
        %v3434 = vunpack.c.h.b16 %v3296
        %v3435 = vunpack.c.l.b16 %v3297
        %v3436 = vunpack.c.h.b16 %v3297
        %v3437 = vunpack.c.l.b16 %v3298
        %v3438 = vunpack.c.h.b16 %v3298
        %v3439 = vunpack.c.l.b16 %v3299
        %v3440 = vunpack.c.h.b16 %v3299
        %v3441 = vunpack.c.l.b16 %v3300
        %v3442 = vunpack.c.h.b16 %v3300
        %v3443 = vunpack.c.l.b16 %v3301
        %v3444 = vunpack.c.h.b16 %v3301
        %v3445 = vunpack.c.l.b16 %v3302
        %v3446 = vunpack.c.h.b16 %v3302
        %v3447 = vunpack.c.l.b16 %v3303
        %v3448 = vunpack.c.h.b16 %v3303
        %v3449 = vunpack.c.l.b16 %v3304
        %v3450 = vunpack.c.h.b16 %v3304
        %v3451 = vunpack.c.l.b16 %v3305
        %v3452 = vunpack.c.h.b16 %v3305
        %v3453 = vunpack.c.l.b16 %v3306
        %v3454 = vunpack.c.h.b16 %v3306
        %v3455 = vunpack.c.l.b16 %v3307
        %v3456 = vunpack.c.h.b16 %v3307
        %v3457 = vunpack.c.l.b16 %v3308
        %v3458 = vunpack.c.h.b16 %v3308
        %v3459 = vunpack.c.l.b16 %v3309
        %v3460 = vunpack.c.h.b16 %v3309
        %v3461 = vunpack.c.l.b16 %v3310
        %v3462 = vunpack.c.h.b16 %v3310
        %v3463 = vunpack.c.l.b16 %v3311
        %v3464 = vunpack.c.h.b16 %v3311
        %v3465 = vunpack.c.l.b16 %v3312
        %v3466 = vunpack.c.h.b16 %v3312
        %v3467 = vunpack.c.l.b16 %v3313
        %v3468 = vunpack.c.h.b16 %v3313
        %v3469 = vunpack.c.l.b16 %v3314
        %v3470 = vunpack.c.h.b16 %v3314
        %v3471 = vunpack.c.l.b16 %v3315
        %v3472 = vunpack.c.h.b16 %v3315
        %v3473 = vunpack.c.l.b16 %v3316
        %v3474 = vunpack.c.h.b16 %v3316
        %v3475 = vpack.c.b16 %v3399, %v3395
        %v3476 = vpack.c.b16 %v3400, %v3396
        %v3477 = vpack.c.b16 %v3401, %v3397
        %v3478 = vpack.c.b16 %v3402, %v3398
        %v3479 = vpack.c.b16 %v3407, %v3403
        %v3480 = vpack.c.b16 %v3408, %v3404
        %v3481 = vpack.c.b16 %v3409, %v3405
        %v3482 = vpack.c.b16 %v3410, %v3406
        %v3483 = vpack.c.b16 %v3415, %v3411
        %v3484 = vpack.c.b16 %v3416, %v3412
        %v3485 = vpack.c.b16 %v3417, %v3413
        %v3486 = vpack.c.b16 %v3418, %v3414
        %v3487 = vpack.c.b16 %v3423, %v3419
        %v3488 = vpack.c.b16 %v3424, %v3420
        %v3489 = vpack.c.b16 %v3425, %v3421
        %v3490 = vpack.c.b16 %v3426, %v3422
        %v3491 = vpack.c.b16 %v3431, %v3427
        %v3492 = vpack.c.b16 %v3432, %v3428
        %v3493 = vpack.c.b16 %v3433, %v3429
        %v3494 = vpack.c.b16 %v3434, %v3430
        %v3495 = vpack.c.b16 %v3439, %v3435
        %v3496 = vpack.c.b16 %v3440, %v3436
        %v3497 = vpack.c.b16 %v3441, %v3437
        %v3498 = vpack.c.b16 %v3442, %v3438
        %v3499 = vpack.c.b16 %v3447, %v3443
        %v3500 = vpack.c.b16 %v3448, %v3444
        %v3501 = vpack.c.b16 %v3449, %v3445
        %v3502 = vpack.c.b16 %v3450, %v3446
        %v3503 = vpack.c.b16 %v3455, %v3451
        %v3504 = vpack.c.b16 %v3456, %v3452
        %v3505 = vpack.c.b16 %v3457, %v3453
        %v3506 = vpack.c.b16 %v3458, %v3454
        %v3507 = vpack.c.b16 %v3463, %v3459
        %v3508 = vpack.c.b16 %v3464, %v3460
        %v3509 = vpack.c.b16 %v3465, %v3461
        %v3510 = vpack.c.b16 %v3466, %v3462
        %v3511 = vpack.c.b16 %v3471, %v3467
        %v3512 = vpack.c.b16 %v3472, %v3468
        %v3513 = vpack.c.b16 %v3473, %v3469
        %v3514 = vpack.c.b16 %v3474, %v3470
        %vm3555 = vcmask 261120
        %v3557 = vsel %vm3555, %v3350, 0
        %v3560 = vsel %vm3555, %v3352, 0
        %3562 = vmatprep.subr.bf16.mxu0 %v3504
        %3563 = vmatpush1.bf16.msra.mxu0 %v3503
        %3564 = vmatprep.subr.bf16.mxu0 %v3500
        %3565 = vmatpush1.bf16.msra.mxu0 %v3499
        %3566 = vmatprep.subr.bf16.mxu0 %v3496
        %3567 = vmatpush1.bf16.msra.mxu0 %v3495
        %3568 = vmatprep.subr.bf16.mxu0 %v3492
        %3569 = vmatpush1.bf16.msra.mxu0 %v3491
        %3570 = vmatprep.subr.bf16.mxu0 %v3488
        %3571 = vmatpush1.bf16.msra.mxu0 %v3487
        %3572 = vmatprep.subr.bf16.mxu0 %v3484
        %3573 = vmatpush1.bf16.msra.mxu0 %v3483
        %3574 = vmatprep.subr.bf16.mxu0 %v3480
        %3575 = vmatpush1.bf16.msra.mxu0 %v3479
        %3576 = vmatprep.subr.bf16.mxu0 %v3476
        %3577 = vmatpush1.bf16.msra.mxu0 %v3475
        %3578 = vmatprep.subr.bf16.mxu0 0
        %3579 = vmatpush2.bf16.msra.mxu0 0
        %3580 = vmatprep.subr.bf16.mxu0 0
        %3581 = vmatpush2.bf16.msra.mxu0 0
        %3582 = vmatprep.subr.bf16.mxu0 0
        %3583 = vmatpush2.bf16.msra.mxu0 0
        %3584 = vmatprep.subr.bf16.mxu0 0
        %3585 = vmatpush2.bf16.msra.mxu0 0
        %3586 = vmatprep.subr.bf16.mxu0 0
        %3587 = vmatpush2.bf16.msra.mxu0 0
        %3588 = vmatprep.subr.bf16.mxu0 0
        %3589 = vmatpush2.bf16.msra.mxu0 0
        %3590 = vmatprep.subr.bf16.mxu0 %v3512
        %3591 = vmatpush2.bf16.msra.mxu0 %v3511
        %3592 = vmatprep.subr.bf16.mxu0 %v3508
        %3593 = vmatpush2.bf16.msra.mxu0 %v3507
        %3594 = vmatprep.mubr.bf16.mxu0 %v3557
        %3595 = vmatmul.mubr.bf16.gmra.mxu0 %v3349
        %v3596 = vpop.f32.mrf.mxu0
        %v3597 = vadd.f32 %v3320, %v3596
        %v3598 = vpop.f32.mrf.mxu0
        %v3599 = vadd.f32 %v3320, %v3598
        %v3600 = vpop.f32.mrf.mxu0
        %v3601 = vadd.f32 %v3325, %v3600
        %v3602 = vpop.f32.mrf.mxu0
        %v3603 = vadd.f32 %v3325, %v3602
        %3604 = vmatprep.mubr.bf16.mxu0 %v3560
        %3605 = vmatmul.mubr.bf16.gmra.mxu0 %v3351
        %v3606 = vpop.f32.mrf.mxu0
        %v3607 = vadd.f32 %v3330, %v3606
        %v3608 = vpop.f32.mrf.mxu0
        %v3609 = vadd.f32 %v3330, %v3608
        %v3610 = vpop.f32.mrf.mxu0
        %v3611 = vadd.f32 %v3335, %v3610
        %v3612 = vpop.f32.mrf.mxu0
        %v3613 = vadd.f32 %v3335, %v3612
        %3614 = vdwg.mxu0
        %3615 = vmatprep.subr.bf16.mxu0 %v3506
        %3616 = vmatpush1.bf16.msra.mxu0 %v3505
        %3617 = vmatprep.subr.bf16.mxu0 %v3502
        %3618 = vmatpush1.bf16.msra.mxu0 %v3501
        %3619 = vmatprep.subr.bf16.mxu0 %v3498
        %3620 = vmatpush1.bf16.msra.mxu0 %v3497
        %3621 = vmatprep.subr.bf16.mxu0 %v3494
        %3622 = vmatpush1.bf16.msra.mxu0 %v3493
        %3623 = vmatprep.subr.bf16.mxu0 %v3490
        %3624 = vmatpush1.bf16.msra.mxu0 %v3489
        %3625 = vmatprep.subr.bf16.mxu0 %v3486
        %3626 = vmatpush1.bf16.msra.mxu0 %v3485
        %3627 = vmatprep.subr.bf16.mxu0 %v3482
        %3628 = vmatpush1.bf16.msra.mxu0 %v3481
        %3629 = vmatprep.subr.bf16.mxu0 %v3478
        %3630 = vmatpush1.bf16.msra.mxu0 %v3477
        %3631 = vmatprep.subr.bf16.mxu0 0
        %3632 = vmatpush2.bf16.msra.mxu0 0
        %3633 = vmatprep.subr.bf16.mxu0 0
        %3634 = vmatpush2.bf16.msra.mxu0 0
        %3635 = vmatprep.subr.bf16.mxu0 0
        %3636 = vmatpush2.bf16.msra.mxu0 0
        %3637 = vmatprep.subr.bf16.mxu0 0
        %3638 = vmatpush2.bf16.msra.mxu0 0
        %3639 = vmatprep.subr.bf16.mxu0 0
        %3640 = vmatpush2.bf16.msra.mxu0 0
        %3641 = vmatprep.subr.bf16.mxu0 0
        %3642 = vmatpush2.bf16.msra.mxu0 0
        %3643 = vmatprep.subr.bf16.mxu0 %v3514
        %3644 = vmatpush2.bf16.msra.mxu0 %v3513
        %3645 = vmatprep.subr.bf16.mxu0 %v3510
        %3646 = vmatpush2.bf16.msra.mxu0 %v3509
        %3647 = vmatprep.mubr.bf16.mxu0 %v3557
        %3648 = vmatmul.mubr.bf16.gmra.mxu0 %v3349
        %v3649 = vpop.f32.mrf.mxu0
        %v3650 = vadd.f32 %v3320, %v3649
        %v3651 = vpop.f32.mrf.mxu0
        %v3652 = vadd.f32 %v3320, %v3651
        %v3653 = vpop.f32.mrf.mxu0
        %v3654 = vadd.f32 %v3325, %v3653
        %v3655 = vpop.f32.mrf.mxu0
        %v3656 = vadd.f32 %v3325, %v3655
        %3657 = vmatprep.mubr.bf16.mxu0 %v3560
        %3658 = vmatmul.mubr.bf16.gmra.mxu0 %v3351
        %v3659 = vpop.f32.mrf.mxu0
        %v3660 = vadd.f32 %v3330, %v3659
        %v3661 = vpop.f32.mrf.mxu0
        %v3662 = vadd.f32 %v3330, %v3661
        %v3663 = vpop.f32.mrf.mxu0
        %v3664 = vadd.f32 %v3335, %v3663
        %v3665 = vpop.f32.mrf.mxu0
        %v3666 = vadd.f32 %v3335, %v3665
        %3667 = vdwg.mxu0
        %s3668 = scalar_lea.vmem [#allocation6], 32
        %v3669 = vld [vmem:[%s3668] sm:$0xff]
        %v3670 = vld [vmem:[%s3668 + $0x8] sm:$0xff]
        %v3671 = vld [vmem:[%s3668 + $0x10] sm:$0xff]
        %v3672 = vld [vmem:[%s3668 + $0x18] sm:$0xff]
        %s3673 = scalar_lea.vmem %s3, 160
        %v3674 = vld [vmem:[%s3673] sm:$0xff]
        %v3675 = vld [vmem:[%s3673 + $0x8] sm:$0xff]
        %v3676 = vld [vmem:[%s3673 + $0x10] sm:$0xff]
        %v3677 = vld [vmem:[%s3673 + $0x18] sm:$0xff]
        %vm3678 = vcmp.gt.f32.partialorder %v3597, 0.0
        %vm3679 = vcmp.gt.f32.partialorder %v3599, 0.0
        %vm3680 = vcmp.gt.f32.partialorder %v3650, 0.0
        %vm3681 = vcmp.gt.f32.partialorder %v3652, 0.0
        %vm3682 = vcmp.gt.f32.partialorder %v3601, 0.0
        %vm3683 = vcmp.gt.f32.partialorder %v3603, 0.0
        %vm3684 = vcmp.gt.f32.partialorder %v3654, 0.0
        %vm3685 = vcmp.gt.f32.partialorder %v3656, 0.0
        %vm3686 = vcmp.gt.f32.partialorder %v3607, 0.0
        %vm3687 = vcmp.gt.f32.partialorder %v3609, 0.0
        %vm3688 = vcmp.gt.f32.partialorder %v3660, 0.0
        %vm3689 = vcmp.gt.f32.partialorder %v3662, 0.0
        %vm3690 = vcmp.gt.f32.partialorder %v3611, 0.0
        %vm3691 = vcmp.gt.f32.partialorder %v3613, 0.0
        %vm3692 = vcmp.gt.f32.partialorder %v3664, 0.0
        %vm3693 = vcmp.gt.f32.partialorder %v3666, 0.0
        %v3694 = vmul.f32 %v3597, 0.1
        %v3695 = vmul.f32 %v3599, 0.1
        %v3696 = vmul.f32 %v3650, 0.1
        %v3697 = vmul.f32 %v3652, 0.1
        %v3698 = vmul.f32 %v3601, 0.1
        %v3699 = vmul.f32 %v3603, 0.1
        %v3700 = vmul.f32 %v3654, 0.1
        %v3701 = vmul.f32 %v3656, 0.1
        %v3702 = vmul.f32 %v3607, 0.1
        %v3703 = vmul.f32 %v3609, 0.1
        %v3704 = vmul.f32 %v3660, 0.1
        %v3705 = vmul.f32 %v3662, 0.1
        %v3706 = vmul.f32 %v3611, 0.1
        %v3707 = vmul.f32 %v3613, 0.1
        %v3708 = vmul.f32 %v3664, 0.1
        %v3709 = vmul.f32 %v3666, 0.1
        %v3710 = vsel %vm3678, %v3597, %v3694
        %v3711 = vsel %vm3679, %v3599, %v3695
        %v3712 = vsel %vm3680, %v3650, %v3696
        %v3713 = vsel %vm3681, %v3652, %v3697
        %v3714 = vsel %vm3682, %v3601, %v3698
        %v3715 = vsel %vm3683, %v3603, %v3699
        %v3716 = vsel %vm3684, %v3654, %v3700
        %v3717 = vsel %vm3685, %v3656, %v3701
        %v3718 = vsel %vm3686, %v3607, %v3702
        %v3719 = vsel %vm3687, %v3609, %v3703
        %v3720 = vsel %vm3688, %v3660, %v3704
        %v3721 = vsel %vm3689, %v3662, %v3705
        %v3722 = vsel %vm3690, %v3611, %v3706
        %v3723 = vsel %vm3691, %v3613, %v3707
        %v3724 = vsel %vm3692, %v3664, %v3708
        %v3725 = vsel %vm3693, %v3666, %v3709
        %3726 = vrot.lane.b32.xlu0 %v3710, 2
        %v3727 = vpop.permute.xlu0 %3726
        %3728 = vrot.lane.b32.xlu0 %v3714, 2
        %v3729 = vpop.permute.xlu0 %3728
        %3730 = vrot.lane.b32.xlu0 %v3718, 2
        %v3731 = vpop.permute.xlu0 %3730
        %3732 = vrot.lane.b32.xlu0 %v3722, 2
        %v3733 = vpop.permute.xlu0 %3732
        %3734 = vrot.lane.b32.xlu0 %v3711, 2
        %v3735 = vpop.permute.xlu0 %3734
        %3736 = vrot.lane.b32.xlu0 %v3715, 2
        %v3737 = vpop.permute.xlu0 %3736
        %3738 = vrot.lane.b32.xlu0 %v3719, 2
        %v3739 = vpop.permute.xlu0 %3738
        %3740 = vrot.lane.b32.xlu0 %v3723, 2
        %v3741 = vpop.permute.xlu0 %3740
        %3742 = vrot.lane.b32.xlu0 %v3712, 2
        %v3743 = vpop.permute.xlu0 %3742
        %3744 = vrot.lane.b32.xlu0 %v3716, 2
        %v3745 = vpop.permute.xlu0 %3744
        %3746 = vrot.lane.b32.xlu0 %v3720, 2
        %v3747 = vpop.permute.xlu0 %3746
        %3748 = vrot.lane.b32.xlu0 %v3724, 2
        %v3749 = vpop.permute.xlu0 %3748
        %3750 = vrot.lane.b32.xlu0 %v3713, 2
        %v3751 = vpop.permute.xlu0 %3750
        %3752 = vrot.lane.b32.xlu0 %v3717, 2
        %v3753 = vpop.permute.xlu0 %3752
        %3754 = vrot.lane.b32.xlu0 %v3721, 2
        %v3755 = vpop.permute.xlu0 %3754
        %3756 = vrot.lane.b32.xlu0 %v3725, 2
        %v3757 = vpop.permute.xlu0 %3756
        %v3758 = vsel %vm1074, %v3743, %v3751
        %v3759 = vsel %vm1074, %v3745, %v3753
        %v3760 = vsel %vm1074, %v3747, %v3755
        %v3761 = vsel %vm1074, %v3749, %v3757
        %v3762 = vsel %vm1074, %v3735, %v3743
        %v3763 = vsel %vm1074, %v3737, %v3745
        %v3764 = vsel %vm1074, %v3739, %v3747
        %v3765 = vsel %vm1074, %v3741, %v3749
        %v3766 = vsel %vm1074, %v3727, %v3735
        %v3767 = vsel %vm1074, %v3729, %v3737
        %v3768 = vsel %vm1074, %v3731, %v3739
        %v3769 = vsel %vm1074, %v3733, %v3741
        %v3770 = vsel %vm1074, %v3751, %v3727
        %v3771 = vsel %vm1074, %v3753, %v3729
        %v3772 = vsel %vm1074, %v3755, %v3731
        %v3773 = vsel %vm1074, %v3757, %v3733
        %v3774 = vsel %vm1103, %v3770, 0.0
        %v3775 = vsel %vm1104, %v3766, 0.0
        %v3776 = vsel %vm1105, %v3762, 0.0
        %v3777 = vsel %vm1106, %v3758, 0.0
        %v3778 = vsel %vm1103, %v3771, 0.0
        %v3779 = vsel %vm1104, %v3767, 0.0
        %v3780 = vsel %vm1105, %v3763, 0.0
        %v3781 = vsel %vm1106, %v3759, 0.0
        %v3782 = vsel %vm1103, %v3772, 0.0
        %v3783 = vsel %vm1104, %v3768, 0.0
        %v3784 = vsel %vm1105, %v3764, 0.0
        %v3785 = vsel %vm1106, %v3760, 0.0
        %v3786 = vsel %vm1103, %v3773, 0.0
        %v3787 = vsel %vm1104, %v3769, 0.0
        %v3788 = vsel %vm1105, %v3765, 0.0
        %v3789 = vsel %vm1106, %v3761, 0.0
        %v3790 = vpack.c.bf16 %v3778, %v3774
        %v3791 = vpack.c.bf16 %v3779, %v3775
        %v3792 = vpack.c.bf16 %v3780, %v3776
        %v3793 = vpack.c.bf16 %v3781, %v3777
        %v3794 = vpack.c.bf16 %v3786, %v3782
        %v3795 = vpack.c.bf16 %v3787, %v3783
        %v3796 = vpack.c.bf16 %v3788, %v3784
        %v3797 = vpack.c.bf16 %v3789, %v3785
        %v3806 = vunpack.c.l.b16 %v3790
        %v3807 = vunpack.c.l.b16 %v3791
        %v3808 = vunpack.c.l.b16 %v3792
        %v3809 = vunpack.c.l.b16 %v3793
        %v3810 = vunpack.c.h.b16 %v3790
        %v3811 = vunpack.c.h.b16 %v3791
        %v3812 = vunpack.c.h.b16 %v3792
        %v3813 = vunpack.c.h.b16 %v3793
        %v3814 = vunpack.c.l.b16 %v3794
        %v3815 = vunpack.c.l.b16 %v3795
        %v3816 = vunpack.c.l.b16 %v3796
        %v3817 = vunpack.c.l.b16 %v3797
        %v3818 = vunpack.c.h.b16 %v3794
        %v3819 = vunpack.c.h.b16 %v3795
        %v3820 = vunpack.c.h.b16 %v3796
        %v3821 = vunpack.c.h.b16 %v3797
        %v3822 = vpack.c.b16 %v3807, %v3806
        %v3823 = vpack.c.b16 %v3809, %v3808
        %v3824 = vpack.c.b16 %v3811, %v3810
        %v3825 = vpack.c.b16 %v3813, %v3812
        %v3826 = vpack.c.b16 %v3815, %v3814
        %v3827 = vpack.c.b16 %v3817, %v3816
        %v3828 = vpack.c.b16 %v3819, %v3818
        %v3829 = vpack.c.b16 %v3821, %v3820
        %3838 = vst [vmem:[#allocation2] sm:$0xff] %v3822
        %3839 = vst [vmem:[#allocation2 + $0x8] sm:$0xff] %v3823
        %3840 = vst [vmem:[#allocation2 + $0x10] sm:$0xff] %v3824
        %3841 = vst [vmem:[#allocation2 + $0x18] sm:$0xff] %v3825
        %3842 = vst [vmem:[#allocation2 + $0x20] sm:$0xff] %v3826
        %3843 = vst [vmem:[#allocation2 + $0x28] sm:$0xff] %v3827
        %3844 = vst [vmem:[#allocation2 + $0x30] sm:$0xff] %v3828
        %3845 = vst [vmem:[#allocation2 + $0x38] sm:$0xff] %v3829
        %3846 = vrot.lane.b32.xlu0 %v3710, 1
        %v3847 = vpop.permute.xlu0 %3846
        %3848 = vrot.lane.b32.xlu0 %v3714, 1
        %v3849 = vpop.permute.xlu0 %3848
        %3850 = vrot.lane.b32.xlu0 %v3718, 1
        %v3851 = vpop.permute.xlu0 %3850
        %3852 = vrot.lane.b32.xlu0 %v3722, 1
        %v3853 = vpop.permute.xlu0 %3852
        %3854 = vrot.lane.b32.xlu0 %v3711, 1
        %v3855 = vpop.permute.xlu0 %3854
        %3856 = vrot.lane.b32.xlu0 %v3715, 1
        %v3857 = vpop.permute.xlu0 %3856
        %3858 = vrot.lane.b32.xlu0 %v3719, 1
        %v3859 = vpop.permute.xlu0 %3858
        %3860 = vrot.lane.b32.xlu0 %v3723, 1
        %v3861 = vpop.permute.xlu0 %3860
        %3862 = vrot.lane.b32.xlu0 %v3712, 1
        %v3863 = vpop.permute.xlu0 %3862
        %3864 = vrot.lane.b32.xlu0 %v3716, 1
        %v3865 = vpop.permute.xlu0 %3864
        %3866 = vrot.lane.b32.xlu0 %v3720, 1
        %v3867 = vpop.permute.xlu0 %3866
        %3868 = vrot.lane.b32.xlu0 %v3724, 1
        %v3869 = vpop.permute.xlu0 %3868
        %3870 = vrot.lane.b32.xlu0 %v3713, 1
        %v3871 = vpop.permute.xlu0 %3870
        %3872 = vrot.lane.b32.xlu0 %v3717, 1
        %v3873 = vpop.permute.xlu0 %3872
        %3874 = vrot.lane.b32.xlu0 %v3721, 1
        %v3875 = vpop.permute.xlu0 %3874
        %3876 = vrot.lane.b32.xlu0 %v3725, 1
        %v3877 = vpop.permute.xlu0 %3876
        %v3878 = vsel %vm391, %v3863, %v3871
        %v3879 = vsel %vm391, %v3865, %v3873
        %v3880 = vsel %vm391, %v3867, %v3875
        %v3881 = vsel %vm391, %v3869, %v3877
        %v3882 = vsel %vm391, %v3855, %v3863
        %v3883 = vsel %vm391, %v3857, %v3865
        %v3884 = vsel %vm391, %v3859, %v3867
        %v3885 = vsel %vm391, %v3861, %v3869
        %v3886 = vsel %vm391, %v3847, %v3855
        %v3887 = vsel %vm391, %v3849, %v3857
        %v3888 = vsel %vm391, %v3851, %v3859
        %v3889 = vsel %vm391, %v3853, %v3861
        %v3890 = vsel %vm391, %v3871, %v3847
        %v3891 = vsel %vm391, %v3873, %v3849
        %v3892 = vsel %vm391, %v3875, %v3851
        %v3893 = vsel %vm391, %v3877, %v3853
        %v3894 = vsel %vm424, %v3890, 0.0
        %v3895 = vsel %vm425, %v3886, 0.0
        %v3896 = vsel %vm426, %v3882, 0.0
        %v3897 = vsel %vm427, %v3878, 0.0
        %v3898 = vsel %vm424, %v3891, 0.0
        %v3899 = vsel %vm425, %v3887, 0.0
        %v3900 = vsel %vm426, %v3883, 0.0
        %v3901 = vsel %vm427, %v3879, 0.0
        %v3902 = vsel %vm424, %v3892, 0.0
        %v3903 = vsel %vm425, %v3888, 0.0
        %v3904 = vsel %vm426, %v3884, 0.0
        %v3905 = vsel %vm427, %v3880, 0.0
        %v3906 = vsel %vm424, %v3893, 0.0
        %v3907 = vsel %vm425, %v3889, 0.0
        %v3908 = vsel %vm426, %v3885, 0.0
        %v3909 = vsel %vm427, %v3881, 0.0
        %v3910 = vpack.c.bf16 %v3898, %v3894
        %v3911 = vpack.c.bf16 %v3899, %v3895
        %v3912 = vpack.c.bf16 %v3900, %v3896
        %v3913 = vpack.c.bf16 %v3901, %v3897
        %v3914 = vpack.c.bf16 %v3906, %v3902
        %v3915 = vpack.c.bf16 %v3907, %v3903
        %v3916 = vpack.c.bf16 %v3908, %v3904
        %v3917 = vpack.c.bf16 %v3909, %v3905
        %v3926 = vunpack.c.l.b16 %v3910
        %v3927 = vunpack.c.l.b16 %v3911
        %v3928 = vunpack.c.l.b16 %v3912
        %v3929 = vunpack.c.l.b16 %v3913
        %v3930 = vunpack.c.h.b16 %v3910
        %v3931 = vunpack.c.h.b16 %v3911
        %v3932 = vunpack.c.h.b16 %v3912
        %v3933 = vunpack.c.h.b16 %v3913
        %v3934 = vunpack.c.l.b16 %v3914
        %v3935 = vunpack.c.l.b16 %v3915
        %v3936 = vunpack.c.l.b16 %v3916
        %v3937 = vunpack.c.l.b16 %v3917
        %v3938 = vunpack.c.h.b16 %v3914
        %v3939 = vunpack.c.h.b16 %v3915
        %v3940 = vunpack.c.h.b16 %v3916
        %v3941 = vunpack.c.h.b16 %v3917
        %v3942 = vpack.c.b16 %v3927, %v3926
        %v3943 = vpack.c.b16 %v3929, %v3928
        %v3944 = vpack.c.b16 %v3931, %v3930
        %v3945 = vpack.c.b16 %v3933, %v3932
        %v3946 = vpack.c.b16 %v3935, %v3934
        %v3947 = vpack.c.b16 %v3937, %v3936
        %v3948 = vpack.c.b16 %v3939, %v3938
        %v3949 = vpack.c.b16 %v3941, %v3940
        %3958 = vst [vmem:[#allocation2 + $0x40] sm:$0xff] %v3942
        %3959 = vst [vmem:[#allocation2 + $0x48] sm:$0xff] %v3943
        %3960 = vst [vmem:[#allocation2 + $0x50] sm:$0xff] %v3944
        %3961 = vst [vmem:[#allocation2 + $0x58] sm:$0xff] %v3945
        %3962 = vst [vmem:[#allocation2 + $0x60] sm:$0xff] %v3946
        %3963 = vst [vmem:[#allocation2 + $0x68] sm:$0xff] %v3947
        %3964 = vst [vmem:[#allocation2 + $0x70] sm:$0xff] %v3948
        %3965 = vst [vmem:[#allocation2 + $0x78] sm:$0xff] %v3949
        %v3966 = vpack.c.bf16 %v3714, %v3710
        %v3967 = vpack.c.bf16 %v3715, %v3711
        %v3968 = vpack.c.bf16 %v3716, %v3712
        %v3969 = vpack.c.bf16 %v3717, %v3713
        %v3970 = vpack.c.bf16 %v3722, %v3718
        %v3971 = vpack.c.bf16 %v3723, %v3719
        %v3972 = vpack.c.bf16 %v3724, %v3720
        %v3973 = vpack.c.bf16 %v3725, %v3721
        %v3982 = vunpack.c.l.b16 %v3966
        %v3983 = vunpack.c.l.b16 %v3967
        %v3984 = vunpack.c.l.b16 %v3968
        %v3985 = vunpack.c.l.b16 %v3969
        %v3986 = vunpack.c.h.b16 %v3966
        %v3987 = vunpack.c.h.b16 %v3967
        %v3988 = vunpack.c.h.b16 %v3968
        %v3989 = vunpack.c.h.b16 %v3969
        %v3990 = vunpack.c.l.b16 %v3970
        %v3991 = vunpack.c.l.b16 %v3971
        %v3992 = vunpack.c.l.b16 %v3972
        %v3993 = vunpack.c.l.b16 %v3973
        %v3994 = vunpack.c.h.b16 %v3970
        %v3995 = vunpack.c.h.b16 %v3971
        %v3996 = vunpack.c.h.b16 %v3972
        %v3997 = vunpack.c.h.b16 %v3973
        %v3998 = vpack.c.b16 %v3983, %v3982
        %v3999 = vpack.c.b16 %v3985, %v3984
        %v4000 = vpack.c.b16 %v3987, %v3986
        %v4001 = vpack.c.b16 %v3989, %v3988
        %v4002 = vpack.c.b16 %v3991, %v3990
        %v4003 = vpack.c.b16 %v3993, %v3992
        %v4004 = vpack.c.b16 %v3995, %v3994
        %v4005 = vpack.c.b16 %v3997, %v3996
        %4014 = vst [vmem:[#allocation2 + $0x80] sm:$0xff] %v3998
        %4015 = vst [vmem:[#allocation2 + $0x88] sm:$0xff] %v3999
        %4016 = vst [vmem:[#allocation2 + $0x90] sm:$0xff] %v4000
        %4017 = vst [vmem:[#allocation2 + $0x98] sm:$0xff] %v4001
        %4018 = vst [vmem:[#allocation2 + $0xa0] sm:$0xff] %v4002
        %4019 = vst [vmem:[#allocation2 + $0xa8] sm:$0xff] %v4003
        %4020 = vst [vmem:[#allocation2 + $0xb0] sm:$0xff] %v4004
        %4021 = vst [vmem:[#allocation2 + $0xb8] sm:$0xff] %v4005
        %4022 = vrot.lane.b32.xlu0 %v3710, 127
        %v4023 = vpop.permute.xlu0 %4022
        %4024 = vrot.lane.b32.xlu0 %v3714, 127
        %v4025 = vpop.permute.xlu0 %4024
        %4026 = vrot.lane.b32.xlu0 %v3718, 127
        %v4027 = vpop.permute.xlu0 %4026
        %4028 = vrot.lane.b32.xlu0 %v3722, 127
        %v4029 = vpop.permute.xlu0 %4028
        %4030 = vrot.lane.b32.xlu0 %v3711, 127
        %v4031 = vpop.permute.xlu0 %4030
        %4032 = vrot.lane.b32.xlu0 %v3715, 127
        %v4033 = vpop.permute.xlu0 %4032
        %4034 = vrot.lane.b32.xlu0 %v3719, 127
        %v4035 = vpop.permute.xlu0 %4034
        %4036 = vrot.lane.b32.xlu0 %v3723, 127
        %v4037 = vpop.permute.xlu0 %4036
        %4038 = vrot.lane.b32.xlu0 %v3712, 127
        %v4039 = vpop.permute.xlu0 %4038
        %4040 = vrot.lane.b32.xlu0 %v3716, 127
        %v4041 = vpop.permute.xlu0 %4040
        %4042 = vrot.lane.b32.xlu0 %v3720, 127
        %v4043 = vpop.permute.xlu0 %4042
        %4044 = vrot.lane.b32.xlu0 %v3724, 127
        %v4045 = vpop.permute.xlu0 %4044
        %4046 = vrot.lane.b32.xlu0 %v3713, 127
        %v4047 = vpop.permute.xlu0 %4046
        %4048 = vrot.lane.b32.xlu0 %v3717, 127
        %v4049 = vpop.permute.xlu0 %4048
        %4050 = vrot.lane.b32.xlu0 %v3721, 127
        %v4051 = vpop.permute.xlu0 %4050
        %4052 = vrot.lane.b32.xlu0 %v3725, 127
        %v4053 = vpop.permute.xlu0 %4052
        %v4054 = vsel %vm588, %v4039, %v4047
        %v4055 = vsel %vm588, %v4041, %v4049
        %v4056 = vsel %vm588, %v4043, %v4051
        %v4057 = vsel %vm588, %v4045, %v4053
        %v4058 = vsel %vm588, %v4031, %v4039
        %v4059 = vsel %vm588, %v4033, %v4041
        %v4060 = vsel %vm588, %v4035, %v4043
        %v4061 = vsel %vm588, %v4037, %v4045
        %v4062 = vsel %vm588, %v4023, %v4031
        %v4063 = vsel %vm588, %v4025, %v4033
        %v4064 = vsel %vm588, %v4027, %v4035
        %v4065 = vsel %vm588, %v4029, %v4037
        %v4066 = vsel %vm588, %v4047, %v4023
        %v4067 = vsel %vm588, %v4049, %v4025
        %v4068 = vsel %vm588, %v4051, %v4027
        %v4069 = vsel %vm588, %v4053, %v4029
        %v4070 = vsel %vm621, %v4062, 0.0
        %v4071 = vsel %vm622, %v4058, 0.0
        %v4072 = vsel %vm623, %v4054, 0.0
        %v4073 = vsel %vm624, %v4066, 0.0
        %v4074 = vsel %vm621, %v4063, 0.0
        %v4075 = vsel %vm622, %v4059, 0.0
        %v4076 = vsel %vm623, %v4055, 0.0
        %v4077 = vsel %vm624, %v4067, 0.0
        %v4078 = vsel %vm621, %v4064, 0.0
        %v4079 = vsel %vm622, %v4060, 0.0
        %v4080 = vsel %vm623, %v4056, 0.0
        %v4081 = vsel %vm624, %v4068, 0.0
        %v4082 = vsel %vm621, %v4065, 0.0
        %v4083 = vsel %vm622, %v4061, 0.0
        %v4084 = vsel %vm623, %v4057, 0.0
        %v4085 = vsel %vm624, %v4069, 0.0
        %v4086 = vpack.c.bf16 %v4074, %v4070
        %v4087 = vpack.c.bf16 %v4075, %v4071
        %v4088 = vpack.c.bf16 %v4076, %v4072
        %v4089 = vpack.c.bf16 %v4077, %v4073
        %v4090 = vpack.c.bf16 %v4082, %v4078
        %v4091 = vpack.c.bf16 %v4083, %v4079
        %v4092 = vpack.c.bf16 %v4084, %v4080
        %v4093 = vpack.c.bf16 %v4085, %v4081
        %v4102 = vunpack.c.l.b16 %v4086
        %v4103 = vunpack.c.l.b16 %v4087
        %v4104 = vunpack.c.l.b16 %v4088
        %v4105 = vunpack.c.l.b16 %v4089
        %v4106 = vunpack.c.h.b16 %v4086
        %v4107 = vunpack.c.h.b16 %v4087
        %v4108 = vunpack.c.h.b16 %v4088
        %v4109 = vunpack.c.h.b16 %v4089
        %v4110 = vunpack.c.l.b16 %v4090
        %v4111 = vunpack.c.l.b16 %v4091
        %v4112 = vunpack.c.l.b16 %v4092
        %v4113 = vunpack.c.l.b16 %v4093
        %v4114 = vunpack.c.h.b16 %v4090
        %v4115 = vunpack.c.h.b16 %v4091
        %v4116 = vunpack.c.h.b16 %v4092
        %v4117 = vunpack.c.h.b16 %v4093
        %v4118 = vpack.c.b16 %v4103, %v4102
        %v4119 = vpack.c.b16 %v4105, %v4104
        %v4120 = vpack.c.b16 %v4107, %v4106
        %v4121 = vpack.c.b16 %v4109, %v4108
        %v4122 = vpack.c.b16 %v4111, %v4110
        %v4123 = vpack.c.b16 %v4113, %v4112
        %v4124 = vpack.c.b16 %v4115, %v4114
        %v4125 = vpack.c.b16 %v4117, %v4116
        %4134 = vst [vmem:[#allocation2 + $0xc0] sm:$0xff] %v4118
        %4135 = vst [vmem:[#allocation2 + $0xc8] sm:$0xff] %v4119
        %4136 = vst [vmem:[#allocation2 + $0xd0] sm:$0xff] %v4120
        %4137 = vst [vmem:[#allocation2 + $0xd8] sm:$0xff] %v4121
        %4138 = vst [vmem:[#allocation2 + $0xe0] sm:$0xff] %v4122
        %4139 = vst [vmem:[#allocation2 + $0xe8] sm:$0xff] %v4123
        %4140 = vst [vmem:[#allocation2 + $0xf0] sm:$0xff] %v4124
        %4141 = vst [vmem:[#allocation2 + $0xf8] sm:$0xff] %v4125
        %4142 = vrot.lane.b32.xlu0 %v3710, 126
        %v4143 = vpop.permute.xlu0 %4142
        %4144 = vrot.lane.b32.xlu0 %v3714, 126
        %v4145 = vpop.permute.xlu0 %4144
        %4146 = vrot.lane.b32.xlu0 %v3718, 126
        %v4147 = vpop.permute.xlu0 %4146
        %4148 = vrot.lane.b32.xlu0 %v3722, 126
        %v4149 = vpop.permute.xlu0 %4148
        %4150 = vrot.lane.b32.xlu0 %v3711, 126
        %v4151 = vpop.permute.xlu0 %4150
        %4152 = vrot.lane.b32.xlu0 %v3715, 126
        %v4153 = vpop.permute.xlu0 %4152
        %4154 = vrot.lane.b32.xlu0 %v3719, 126
        %v4155 = vpop.permute.xlu0 %4154
        %4156 = vrot.lane.b32.xlu0 %v3723, 126
        %v4157 = vpop.permute.xlu0 %4156
        %4158 = vrot.lane.b32.xlu0 %v3712, 126
        %v4159 = vpop.permute.xlu0 %4158
        %4160 = vrot.lane.b32.xlu0 %v3716, 126
        %v4161 = vpop.permute.xlu0 %4160
        %4162 = vrot.lane.b32.xlu0 %v3720, 126
        %v4163 = vpop.permute.xlu0 %4162
        %4164 = vrot.lane.b32.xlu0 %v3724, 126
        %v4165 = vpop.permute.xlu0 %4164
        %4166 = vrot.lane.b32.xlu0 %v3713, 126
        %v4167 = vpop.permute.xlu0 %4166
        %4168 = vrot.lane.b32.xlu0 %v3717, 126
        %v4169 = vpop.permute.xlu0 %4168
        %4170 = vrot.lane.b32.xlu0 %v3721, 126
        %v4171 = vpop.permute.xlu0 %4170
        %4172 = vrot.lane.b32.xlu0 %v3725, 126
        %v4173 = vpop.permute.xlu0 %4172
        %v4174 = vsel %vm1267, %v4159, %v4167
        %v4175 = vsel %vm1267, %v4161, %v4169
        %v4176 = vsel %vm1267, %v4163, %v4171
        %v4177 = vsel %vm1267, %v4165, %v4173
        %v4178 = vsel %vm1267, %v4151, %v4159
        %v4179 = vsel %vm1267, %v4153, %v4161
        %v4180 = vsel %vm1267, %v4155, %v4163
        %v4181 = vsel %vm1267, %v4157, %v4165
        %v4182 = vsel %vm1267, %v4143, %v4151
        %v4183 = vsel %vm1267, %v4145, %v4153
        %v4184 = vsel %vm1267, %v4147, %v4155
        %v4185 = vsel %vm1267, %v4149, %v4157
        %v4186 = vsel %vm1267, %v4167, %v4143
        %v4187 = vsel %vm1267, %v4169, %v4145
        %v4188 = vsel %vm1267, %v4171, %v4147
        %v4189 = vsel %vm1267, %v4173, %v4149
        %v4190 = vsel %vm1296, %v4182, 0.0
        %v4191 = vsel %vm1297, %v4178, 0.0
        %v4192 = vsel %vm1298, %v4174, 0.0
        %v4193 = vsel %vm1299, %v4186, 0.0
        %v4194 = vsel %vm1296, %v4183, 0.0
        %v4195 = vsel %vm1297, %v4179, 0.0
        %v4196 = vsel %vm1298, %v4175, 0.0
        %v4197 = vsel %vm1299, %v4187, 0.0
        %v4198 = vsel %vm1296, %v4184, 0.0
        %v4199 = vsel %vm1297, %v4180, 0.0
        %v4200 = vsel %vm1298, %v4176, 0.0
        %v4201 = vsel %vm1299, %v4188, 0.0
        %v4202 = vsel %vm1296, %v4185, 0.0
        %v4203 = vsel %vm1297, %v4181, 0.0
        %v4204 = vsel %vm1298, %v4177, 0.0
        %v4205 = vsel %vm1299, %v4189, 0.0
        %v4206 = vpack.c.bf16 %v4194, %v4190
        %v4207 = vpack.c.bf16 %v4195, %v4191
        %v4208 = vpack.c.bf16 %v4196, %v4192
        %v4209 = vpack.c.bf16 %v4197, %v4193
        %v4210 = vpack.c.bf16 %v4202, %v4198
        %v4211 = vpack.c.bf16 %v4203, %v4199
        %v4212 = vpack.c.bf16 %v4204, %v4200
        %v4213 = vpack.c.bf16 %v4205, %v4201
        %v4222 = vunpack.c.l.b16 %v4206
        %v4223 = vunpack.c.l.b16 %v4207
        %v4224 = vunpack.c.l.b16 %v4208
        %v4225 = vunpack.c.l.b16 %v4209
        %v4226 = vunpack.c.h.b16 %v4206
        %v4227 = vunpack.c.h.b16 %v4207
        %v4228 = vunpack.c.h.b16 %v4208
        %v4229 = vunpack.c.h.b16 %v4209
        %v4230 = vunpack.c.l.b16 %v4210
        %v4231 = vunpack.c.l.b16 %v4211
        %v4232 = vunpack.c.l.b16 %v4212
        %v4233 = vunpack.c.l.b16 %v4213
        %v4234 = vunpack.c.h.b16 %v4210
        %v4235 = vunpack.c.h.b16 %v4211
        %v4236 = vunpack.c.h.b16 %v4212
        %v4237 = vunpack.c.h.b16 %v4213
        %v4238 = vpack.c.b16 %v4223, %v4222
        %v4239 = vpack.c.b16 %v4225, %v4224
        %v4240 = vpack.c.b16 %v4227, %v4226
        %v4241 = vpack.c.b16 %v4229, %v4228
        %v4242 = vpack.c.b16 %v4231, %v4230
        %v4243 = vpack.c.b16 %v4233, %v4232
        %v4244 = vpack.c.b16 %v4235, %v4234
        %v4245 = vpack.c.b16 %v4237, %v4236
        %4254 = vst [vmem:[#allocation2 + $0x100] sm:$0xff] %v4238
        %4255 = vst [vmem:[#allocation2 + $0x108] sm:$0xff] %v4239
        %4256 = vst [vmem:[#allocation2 + $0x110] sm:$0xff] %v4240
        %4257 = vst [vmem:[#allocation2 + $0x118] sm:$0xff] %v4241
        %4258 = vst [vmem:[#allocation2 + $0x120] sm:$0xff] %v4242
        %4259 = vst [vmem:[#allocation2 + $0x128] sm:$0xff] %v4243
        %4260 = vst [vmem:[#allocation2 + $0x130] sm:$0xff] %v4244
        %4261 = vst [vmem:[#allocation2 + $0x138] sm:$0xff] %v4245
        %v4262 = vld [vmem:[#allocation2] sm:$0xff]
        %v4263 = vld [vmem:[#allocation2 + $0x8] sm:$0xff]
        %v4264 = vld [vmem:[#allocation2 + $0x10] sm:$0xff]
        %v4265 = vld [vmem:[#allocation2 + $0x18] sm:$0xff]
        %v4266 = vld [vmem:[#allocation2 + $0x20] sm:$0xff]
        %v4267 = vld [vmem:[#allocation2 + $0x28] sm:$0xff]
        %v4268 = vld [vmem:[#allocation2 + $0x30] sm:$0xff]
        %v4269 = vld [vmem:[#allocation2 + $0x38] sm:$0xff]
        %v4270 = vld [vmem:[#allocation2 + $0x40] sm:$0xff]
        %v4271 = vld [vmem:[#allocation2 + $0x48] sm:$0xff]
        %v4272 = vld [vmem:[#allocation2 + $0x50] sm:$0xff]
        %v4273 = vld [vmem:[#allocation2 + $0x58] sm:$0xff]
        %v4274 = vld [vmem:[#allocation2 + $0x60] sm:$0xff]
        %v4275 = vld [vmem:[#allocation2 + $0x68] sm:$0xff]
        %v4276 = vld [vmem:[#allocation2 + $0x70] sm:$0xff]
        %v4277 = vld [vmem:[#allocation2 + $0x78] sm:$0xff]
        %v4278 = vld [vmem:[#allocation2 + $0x80] sm:$0xff]
        %v4279 = vld [vmem:[#allocation2 + $0x88] sm:$0xff]
        %v4280 = vld [vmem:[#allocation2 + $0x90] sm:$0xff]
        %v4281 = vld [vmem:[#allocation2 + $0x98] sm:$0xff]
        %v4282 = vld [vmem:[#allocation2 + $0xa0] sm:$0xff]
        %v4283 = vld [vmem:[#allocation2 + $0xa8] sm:$0xff]
        %v4284 = vld [vmem:[#allocation2 + $0xb0] sm:$0xff]
        %v4285 = vld [vmem:[#allocation2 + $0xb8] sm:$0xff]
        %v4286 = vld [vmem:[#allocation2 + $0xc0] sm:$0xff]
        %v4287 = vld [vmem:[#allocation2 + $0xc8] sm:$0xff]
        %v4288 = vld [vmem:[#allocation2 + $0xd0] sm:$0xff]
        %v4289 = vld [vmem:[#allocation2 + $0xd8] sm:$0xff]
        %v4290 = vld [vmem:[#allocation2 + $0xe0] sm:$0xff]
        %v4291 = vld [vmem:[#allocation2 + $0xe8] sm:$0xff]
        %v4292 = vld [vmem:[#allocation2 + $0xf0] sm:$0xff]
        %v4293 = vld [vmem:[#allocation2 + $0xf8] sm:$0xff]
        %v4294 = vld [vmem:[#allocation2 + $0x100] sm:$0xff]
        %v4295 = vld [vmem:[#allocation2 + $0x108] sm:$0xff]
        %v4296 = vld [vmem:[#allocation2 + $0x110] sm:$0xff]
        %v4297 = vld [vmem:[#allocation2 + $0x118] sm:$0xff]
        %v4298 = vld [vmem:[#allocation2 + $0x120] sm:$0xff]
        %v4299 = vld [vmem:[#allocation2 + $0x128] sm:$0xff]
        %v4300 = vld [vmem:[#allocation2 + $0x130] sm:$0xff]
        %v4301 = vld [vmem:[#allocation2 + $0x138] sm:$0xff]
        %4303 = vset.pattern.permute.xlu0 0
        %4304 = vperm.xlu0 %4303, %v3674
        %v4305 = vpop.permute.xlu0 %4304
        %4308 = vset.pattern.permute.xlu0 0
        %4309 = vperm.xlu0 %4308, %v3675
        %v4310 = vpop.permute.xlu0 %4309
        %4313 = vset.pattern.permute.xlu0 0
        %4314 = vperm.xlu0 %4313, %v3676
        %v4315 = vpop.permute.xlu0 %4314
        %4318 = vset.pattern.permute.xlu0 0
        %4319 = vperm.xlu0 %4318, %v3677
        %v4320 = vpop.permute.xlu0 %4319
        %v4326 = vunpack.c.l.b16 %v3669
        %v4327 = vunpack.c.h.b16 %v3669
        %v4328 = vunpack.c.l.b16 %v3670
        %v4329 = vunpack.c.h.b16 %v3670
        %v4330 = vunpack.c.l.b16 %v3671
        %v4331 = vunpack.c.h.b16 %v3671
        %v4332 = vunpack.c.l.b16 %v3672
        %v4333 = vunpack.c.h.b16 %v3672
        %v4334 = vpack.c.b16 %v4328, %v4326
        %v4335 = vpack.c.b16 %v4329, %v4327
        %v4336 = vpack.c.b16 %v4332, %v4330
        %v4337 = vpack.c.b16 %v4333, %v4331
        %v4380 = vunpack.c.l.b16 %v4262
        %v4381 = vunpack.c.h.b16 %v4262
        %v4382 = vunpack.c.l.b16 %v4263
        %v4383 = vunpack.c.h.b16 %v4263
        %v4384 = vunpack.c.l.b16 %v4264
        %v4385 = vunpack.c.h.b16 %v4264
        %v4386 = vunpack.c.l.b16 %v4265
        %v4387 = vunpack.c.h.b16 %v4265
        %v4388 = vunpack.c.l.b16 %v4266
        %v4389 = vunpack.c.h.b16 %v4266
        %v4390 = vunpack.c.l.b16 %v4267
        %v4391 = vunpack.c.h.b16 %v4267
        %v4392 = vunpack.c.l.b16 %v4268
        %v4393 = vunpack.c.h.b16 %v4268
        %v4394 = vunpack.c.l.b16 %v4269
        %v4395 = vunpack.c.h.b16 %v4269
        %v4396 = vunpack.c.l.b16 %v4270
        %v4397 = vunpack.c.h.b16 %v4270
        %v4398 = vunpack.c.l.b16 %v4271
        %v4399 = vunpack.c.h.b16 %v4271
        %v4400 = vunpack.c.l.b16 %v4272
        %v4401 = vunpack.c.h.b16 %v4272
        %v4402 = vunpack.c.l.b16 %v4273
        %v4403 = vunpack.c.h.b16 %v4273
        %v4404 = vunpack.c.l.b16 %v4274
        %v4405 = vunpack.c.h.b16 %v4274
        %v4406 = vunpack.c.l.b16 %v4275
        %v4407 = vunpack.c.h.b16 %v4275
        %v4408 = vunpack.c.l.b16 %v4276
        %v4409 = vunpack.c.h.b16 %v4276
        %v4410 = vunpack.c.l.b16 %v4277
        %v4411 = vunpack.c.h.b16 %v4277
        %v4412 = vunpack.c.l.b16 %v4278
        %v4413 = vunpack.c.h.b16 %v4278
        %v4414 = vunpack.c.l.b16 %v4279
        %v4415 = vunpack.c.h.b16 %v4279
        %v4416 = vunpack.c.l.b16 %v4280
        %v4417 = vunpack.c.h.b16 %v4280
        %v4418 = vunpack.c.l.b16 %v4281
        %v4419 = vunpack.c.h.b16 %v4281
        %v4420 = vunpack.c.l.b16 %v4282
        %v4421 = vunpack.c.h.b16 %v4282
        %v4422 = vunpack.c.l.b16 %v4283
        %v4423 = vunpack.c.h.b16 %v4283
        %v4424 = vunpack.c.l.b16 %v4284
        %v4425 = vunpack.c.h.b16 %v4284
        %v4426 = vunpack.c.l.b16 %v4285
        %v4427 = vunpack.c.h.b16 %v4285
        %v4428 = vunpack.c.l.b16 %v4286
        %v4429 = vunpack.c.h.b16 %v4286
        %v4430 = vunpack.c.l.b16 %v4287
        %v4431 = vunpack.c.h.b16 %v4287
        %v4432 = vunpack.c.l.b16 %v4288
        %v4433 = vunpack.c.h.b16 %v4288
        %v4434 = vunpack.c.l.b16 %v4289
        %v4435 = vunpack.c.h.b16 %v4289
        %v4436 = vunpack.c.l.b16 %v4290
        %v4437 = vunpack.c.h.b16 %v4290
        %v4438 = vunpack.c.l.b16 %v4291
        %v4439 = vunpack.c.h.b16 %v4291
        %v4440 = vunpack.c.l.b16 %v4292
        %v4441 = vunpack.c.h.b16 %v4292
        %v4442 = vunpack.c.l.b16 %v4293
        %v4443 = vunpack.c.h.b16 %v4293
        %v4444 = vunpack.c.l.b16 %v4294
        %v4445 = vunpack.c.h.b16 %v4294
        %v4446 = vunpack.c.l.b16 %v4295
        %v4447 = vunpack.c.h.b16 %v4295
        %v4448 = vunpack.c.l.b16 %v4296
        %v4449 = vunpack.c.h.b16 %v4296
        %v4450 = vunpack.c.l.b16 %v4297
        %v4451 = vunpack.c.h.b16 %v4297
        %v4452 = vunpack.c.l.b16 %v4298
        %v4453 = vunpack.c.h.b16 %v4298
        %v4454 = vunpack.c.l.b16 %v4299
        %v4455 = vunpack.c.h.b16 %v4299
        %v4456 = vunpack.c.l.b16 %v4300
        %v4457 = vunpack.c.h.b16 %v4300
        %v4458 = vunpack.c.l.b16 %v4301
        %v4459 = vunpack.c.h.b16 %v4301
        %v4460 = vpack.c.b16 %v4384, %v4380
        %v4461 = vpack.c.b16 %v4385, %v4381
        %v4462 = vpack.c.b16 %v4386, %v4382
        %v4463 = vpack.c.b16 %v4387, %v4383
        %v4464 = vpack.c.b16 %v4392, %v4388
        %v4465 = vpack.c.b16 %v4393, %v4389
        %v4466 = vpack.c.b16 %v4394, %v4390
        %v4467 = vpack.c.b16 %v4395, %v4391
        %v4468 = vpack.c.b16 %v4400, %v4396
        %v4469 = vpack.c.b16 %v4401, %v4397
        %v4470 = vpack.c.b16 %v4402, %v4398
        %v4471 = vpack.c.b16 %v4403, %v4399
        %v4472 = vpack.c.b16 %v4408, %v4404
        %v4473 = vpack.c.b16 %v4409, %v4405
        %v4474 = vpack.c.b16 %v4410, %v4406
        %v4475 = vpack.c.b16 %v4411, %v4407
        %v4476 = vpack.c.b16 %v4416, %v4412
        %v4477 = vpack.c.b16 %v4417, %v4413
        %v4478 = vpack.c.b16 %v4418, %v4414
        %v4479 = vpack.c.b16 %v4419, %v4415
        %v4480 = vpack.c.b16 %v4424, %v4420
        %v4481 = vpack.c.b16 %v4425, %v4421
        %v4482 = vpack.c.b16 %v4426, %v4422
        %v4483 = vpack.c.b16 %v4427, %v4423
        %v4484 = vpack.c.b16 %v4432, %v4428
        %v4485 = vpack.c.b16 %v4433, %v4429
        %v4486 = vpack.c.b16 %v4434, %v4430
        %v4487 = vpack.c.b16 %v4435, %v4431
        %v4488 = vpack.c.b16 %v4440, %v4436
        %v4489 = vpack.c.b16 %v4441, %v4437
        %v4490 = vpack.c.b16 %v4442, %v4438
        %v4491 = vpack.c.b16 %v4443, %v4439
        %v4492 = vpack.c.b16 %v4448, %v4444
        %v4493 = vpack.c.b16 %v4449, %v4445
        %v4494 = vpack.c.b16 %v4450, %v4446
        %v4495 = vpack.c.b16 %v4451, %v4447
        %v4496 = vpack.c.b16 %v4456, %v4452
        %v4497 = vpack.c.b16 %v4457, %v4453
        %v4498 = vpack.c.b16 %v4458, %v4454
        %v4499 = vpack.c.b16 %v4459, %v4455
        %v4541 = vsel %vm3555, %v4335, 0
        %v4544 = vsel %vm3555, %v4337, 0
        %4546 = vmatprep.subr.bf16.mxu0 %v4489
        %4547 = vmatpush1.bf16.msra.mxu0 %v4488
        %4548 = vmatprep.subr.bf16.mxu0 %v4485
        %4549 = vmatpush1.bf16.msra.mxu0 %v4484
        %4550 = vmatprep.subr.bf16.mxu0 %v4481
        %4551 = vmatpush1.bf16.msra.mxu0 %v4480
        %4552 = vmatprep.subr.bf16.mxu0 %v4477
        %4553 = vmatpush1.bf16.msra.mxu0 %v4476
        %4554 = vmatprep.subr.bf16.mxu0 %v4473
        %4555 = vmatpush1.bf16.msra.mxu0 %v4472
        %4556 = vmatprep.subr.bf16.mxu0 %v4469
        %4557 = vmatpush1.bf16.msra.mxu0 %v4468
        %4558 = vmatprep.subr.bf16.mxu0 %v4465
        %4559 = vmatpush1.bf16.msra.mxu0 %v4464
        %4560 = vmatprep.subr.bf16.mxu0 %v4461
        %4561 = vmatpush1.bf16.msra.mxu0 %v4460
        %4562 = vmatprep.subr.bf16.mxu0 0
        %4563 = vmatpush2.bf16.msra.mxu0 0
        %4564 = vmatprep.subr.bf16.mxu0 0
        %4565 = vmatpush2.bf16.msra.mxu0 0
        %4566 = vmatprep.subr.bf16.mxu0 0
        %4567 = vmatpush2.bf16.msra.mxu0 0
        %4568 = vmatprep.subr.bf16.mxu0 0
        %4569 = vmatpush2.bf16.msra.mxu0 0
        %4570 = vmatprep.subr.bf16.mxu0 0
        %4571 = vmatpush2.bf16.msra.mxu0 0
        %4572 = vmatprep.subr.bf16.mxu0 0
        %4573 = vmatpush2.bf16.msra.mxu0 0
        %4574 = vmatprep.subr.bf16.mxu0 %v4497
        %4575 = vmatpush2.bf16.msra.mxu0 %v4496
        %4576 = vmatprep.subr.bf16.mxu0 %v4493
        %4577 = vmatpush2.bf16.msra.mxu0 %v4492
        %4578 = vmatprep.mubr.bf16.mxu0 %v4541
        %4579 = vmatmul.mubr.bf16.gmra.mxu0 %v4334
        %v4580 = vpop.f32.mrf.mxu0
        %v4581 = vadd.f32 %v4305, %v4580
        %v4582 = vpop.f32.mrf.mxu0
        %v4583 = vadd.f32 %v4305, %v4582
        %v4584 = vpop.f32.mrf.mxu0
        %v4585 = vadd.f32 %v4310, %v4584
        %v4586 = vpop.f32.mrf.mxu0
        %v4587 = vadd.f32 %v4310, %v4586
        %4588 = vmatprep.mubr.bf16.mxu0 %v4544
        %4589 = vmatmul.mubr.bf16.gmra.mxu0 %v4336
        %v4590 = vpop.f32.mrf.mxu0
        %v4591 = vadd.f32 %v4315, %v4590
        %v4592 = vpop.f32.mrf.mxu0
        %v4593 = vadd.f32 %v4315, %v4592
        %v4594 = vpop.f32.mrf.mxu0
        %v4595 = vadd.f32 %v4320, %v4594
        %v4596 = vpop.f32.mrf.mxu0
        %v4597 = vadd.f32 %v4320, %v4596
        %4598 = vdwg.mxu0
        %4599 = vmatprep.subr.bf16.mxu0 %v4491
        %4600 = vmatpush1.bf16.msra.mxu0 %v4490
        %4601 = vmatprep.subr.bf16.mxu0 %v4487
        %4602 = vmatpush1.bf16.msra.mxu0 %v4486
        %4603 = vmatprep.subr.bf16.mxu0 %v4483
        %4604 = vmatpush1.bf16.msra.mxu0 %v4482
        %4605 = vmatprep.subr.bf16.mxu0 %v4479
        %4606 = vmatpush1.bf16.msra.mxu0 %v4478
        %4607 = vmatprep.subr.bf16.mxu0 %v4475
        %4608 = vmatpush1.bf16.msra.mxu0 %v4474
        %4609 = vmatprep.subr.bf16.mxu0 %v4471
        %4610 = vmatpush1.bf16.msra.mxu0 %v4470
        %4611 = vmatprep.subr.bf16.mxu0 %v4467
        %4612 = vmatpush1.bf16.msra.mxu0 %v4466
        %4613 = vmatprep.subr.bf16.mxu0 %v4463
        %4614 = vmatpush1.bf16.msra.mxu0 %v4462
        %4615 = vmatprep.subr.bf16.mxu0 0
        %4616 = vmatpush2.bf16.msra.mxu0 0
        %4617 = vmatprep.subr.bf16.mxu0 0
        %4618 = vmatpush2.bf16.msra.mxu0 0
        %4619 = vmatprep.subr.bf16.mxu0 0
        %4620 = vmatpush2.bf16.msra.mxu0 0
        %4621 = vmatprep.subr.bf16.mxu0 0
        %4622 = vmatpush2.bf16.msra.mxu0 0
        %4623 = vmatprep.subr.bf16.mxu0 0
        %4624 = vmatpush2.bf16.msra.mxu0 0
        %4625 = vmatprep.subr.bf16.mxu0 0
        %4626 = vmatpush2.bf16.msra.mxu0 0
        %4627 = vmatprep.subr.bf16.mxu0 %v4499
        %4628 = vmatpush2.bf16.msra.mxu0 %v4498
        %4629 = vmatprep.subr.bf16.mxu0 %v4495
        %4630 = vmatpush2.bf16.msra.mxu0 %v4494
        %4631 = vmatprep.mubr.bf16.mxu0 %v4541
        %4632 = vmatmul.mubr.bf16.gmra.mxu0 %v4334
        %v4633 = vpop.f32.mrf.mxu0
        %v4634 = vadd.f32 %v4305, %v4633
        %v4635 = vpop.f32.mrf.mxu0
        %v4636 = vadd.f32 %v4305, %v4635
        %v4637 = vpop.f32.mrf.mxu0
        %v4638 = vadd.f32 %v4310, %v4637
        %v4639 = vpop.f32.mrf.mxu0
        %v4640 = vadd.f32 %v4310, %v4639
        %4641 = vmatprep.mubr.bf16.mxu0 %v4544
        %4642 = vmatmul.mubr.bf16.gmra.mxu0 %v4336
        %v4643 = vpop.f32.mrf.mxu0
        %v4644 = vadd.f32 %v4315, %v4643
        %v4645 = vpop.f32.mrf.mxu0
        %v4646 = vadd.f32 %v4315, %v4645
        %v4647 = vpop.f32.mrf.mxu0
        %v4648 = vadd.f32 %v4320, %v4647
        %v4649 = vpop.f32.mrf.mxu0
        %v4650 = vadd.f32 %v4320, %v4649
        %4651 = vdwg.mxu0
        %v4652 = vadd.f32 %v233, %v4581
        %v4653 = vadd.f32 %v234, %v4583
        %v4654 = vadd.f32 %v242, %v4634
        %v4655 = vadd.f32 %v243, %v4636
        %v4656 = vadd.f32 %v235, %v4585
        %v4657 = vadd.f32 %v236, %v4587
        %v4658 = vadd.f32 %v244, %v4638
        %v4659 = vadd.f32 %v245, %v4640
        %v4660 = vadd.f32 %v237, %v4591
        %v4661 = vadd.f32 %v238, %v4593
        %v4662 = vadd.f32 %v246, %v4644
        %v4663 = vadd.f32 %v247, %v4646
        %v4664 = vadd.f32 %v239, %v4595
        %v4665 = vadd.f32 %v240, %v4597
        %v4666 = vadd.f32 %v248, %v4648
        %v4667 = vadd.f32 %v249, %v4650
        %s4668 = scalar_lea.vmem [#allocation6], 64
        %v4669 = vld [vmem:[%s4668] sm:$0xff]
        %v4670 = vld [vmem:[%s4668 + $0x8] sm:$0xff]
        %v4671 = vld [vmem:[%s4668 + $0x10] sm:$0xff]
        %v4672 = vld [vmem:[%s4668 + $0x18] sm:$0xff]
        %s4673 = scalar_lea.vmem %s3, 192
        %v4674 = vld [vmem:[%s4673] sm:$0xff]
        %v4675 = vld [vmem:[%s4673 + $0x8] sm:$0xff]
        %v4676 = vld [vmem:[%s4673 + $0x10] sm:$0xff]
        %v4677 = vld [vmem:[%s4673 + $0x18] sm:$0xff]
        %vm4678 = vcmp.gt.f32.partialorder %v4652, 0.0
        %vm4679 = vcmp.gt.f32.partialorder %v4653, 0.0
        %vm4680 = vcmp.gt.f32.partialorder %v4654, 0.0
        %vm4681 = vcmp.gt.f32.partialorder %v4655, 0.0
        %vm4682 = vcmp.gt.f32.partialorder %v4656, 0.0
        %vm4683 = vcmp.gt.f32.partialorder %v4657, 0.0
        %vm4684 = vcmp.gt.f32.partialorder %v4658, 0.0
        %vm4685 = vcmp.gt.f32.partialorder %v4659, 0.0
        %vm4686 = vcmp.gt.f32.partialorder %v4660, 0.0
        %vm4687 = vcmp.gt.f32.partialorder %v4661, 0.0
        %vm4688 = vcmp.gt.f32.partialorder %v4662, 0.0
        %vm4689 = vcmp.gt.f32.partialorder %v4663, 0.0
        %vm4690 = vcmp.gt.f32.partialorder %v4664, 0.0
        %vm4691 = vcmp.gt.f32.partialorder %v4665, 0.0
        %vm4692 = vcmp.gt.f32.partialorder %v4666, 0.0
        %vm4693 = vcmp.gt.f32.partialorder %v4667, 0.0
        %v4694 = vmul.f32 %v4652, 0.1
        %v4695 = vmul.f32 %v4653, 0.1
        %v4696 = vmul.f32 %v4654, 0.1
        %v4697 = vmul.f32 %v4655, 0.1
        %v4698 = vmul.f32 %v4656, 0.1
        %v4699 = vmul.f32 %v4657, 0.1
        %v4700 = vmul.f32 %v4658, 0.1
        %v4701 = vmul.f32 %v4659, 0.1
        %v4702 = vmul.f32 %v4660, 0.1
        %v4703 = vmul.f32 %v4661, 0.1
        %v4704 = vmul.f32 %v4662, 0.1
        %v4705 = vmul.f32 %v4663, 0.1
        %v4706 = vmul.f32 %v4664, 0.1
        %v4707 = vmul.f32 %v4665, 0.1
        %v4708 = vmul.f32 %v4666, 0.1
        %v4709 = vmul.f32 %v4667, 0.1
        %v4710 = vsel %vm4678, %v4652, %v4694
        %v4711 = vsel %vm4679, %v4653, %v4695
        %v4712 = vsel %vm4680, %v4654, %v4696
        %v4713 = vsel %vm4681, %v4655, %v4697
        %v4714 = vsel %vm4682, %v4656, %v4698
        %v4715 = vsel %vm4683, %v4657, %v4699
        %v4716 = vsel %vm4684, %v4658, %v4700
        %v4717 = vsel %vm4685, %v4659, %v4701
        %v4718 = vsel %vm4686, %v4660, %v4702
        %v4719 = vsel %vm4687, %v4661, %v4703
        %v4720 = vsel %vm4688, %v4662, %v4704
        %v4721 = vsel %vm4689, %v4663, %v4705
        %v4722 = vsel %vm4690, %v4664, %v4706
        %v4723 = vsel %vm4691, %v4665, %v4707
        %v4724 = vsel %vm4692, %v4666, %v4708
        %v4725 = vsel %vm4693, %v4667, %v4709
        %4726 = vrot.lane.b32.xlu0 %v4710, 4
        %v4727 = vpop.permute.xlu0 %4726
        %4728 = vrot.lane.b32.xlu0 %v4714, 4
        %v4729 = vpop.permute.xlu0 %4728
        %4730 = vrot.lane.b32.xlu0 %v4718, 4
        %v4731 = vpop.permute.xlu0 %4730
        %4732 = vrot.lane.b32.xlu0 %v4722, 4
        %v4733 = vpop.permute.xlu0 %4732
        %4734 = vrot.lane.b32.xlu0 %v4711, 4
        %v4735 = vpop.permute.xlu0 %4734
        %4736 = vrot.lane.b32.xlu0 %v4715, 4
        %v4737 = vpop.permute.xlu0 %4736
        %4738 = vrot.lane.b32.xlu0 %v4719, 4
        %v4739 = vpop.permute.xlu0 %4738
        %4740 = vrot.lane.b32.xlu0 %v4723, 4
        %v4741 = vpop.permute.xlu0 %4740
        %4742 = vrot.lane.b32.xlu0 %v4712, 4
        %v4743 = vpop.permute.xlu0 %4742
        %4744 = vrot.lane.b32.xlu0 %v4716, 4
        %v4745 = vpop.permute.xlu0 %4744
        %4746 = vrot.lane.b32.xlu0 %v4720, 4
        %v4747 = vpop.permute.xlu0 %4746
        %4748 = vrot.lane.b32.xlu0 %v4724, 4
        %v4749 = vpop.permute.xlu0 %4748
        %4750 = vrot.lane.b32.xlu0 %v4713, 4
        %v4751 = vpop.permute.xlu0 %4750
        %4752 = vrot.lane.b32.xlu0 %v4717, 4
        %v4753 = vpop.permute.xlu0 %4752
        %4754 = vrot.lane.b32.xlu0 %v4721, 4
        %v4755 = vpop.permute.xlu0 %4754
        %4756 = vrot.lane.b32.xlu0 %v4725, 4
        %v4757 = vpop.permute.xlu0 %4756
        %vm4758 = vcmp.lt.s32.totalorder %v251, 4
        %v4759 = vsel %vm4758, %v4743, %v4751
        %v4760 = vsel %vm4758, %v4745, %v4753
        %v4761 = vsel %vm4758, %v4747, %v4755
        %v4762 = vsel %vm4758, %v4749, %v4757
        %v4763 = vsel %vm4758, %v4735, %v4743
        %v4764 = vsel %vm4758, %v4737, %v4745
        %v4765 = vsel %vm4758, %v4739, %v4747
        %v4766 = vsel %vm4758, %v4741, %v4749
        %v4767 = vsel %vm4758, %v4727, %v4735
        %v4768 = vsel %vm4758, %v4729, %v4737
        %v4769 = vsel %vm4758, %v4731, %v4739
        %v4770 = vsel %vm4758, %v4733, %v4741
        %v4771 = vsel %vm4758, %v4751, %v4727
        %v4772 = vsel %vm4758, %v4753, %v4729
        %v4773 = vsel %vm4758, %v4755, %v4731
        %v4774 = vsel %vm4758, %v4757, %v4733
        %vm4775 = vcmp.ge.s32.totalorder %v299, 4
        %vm4776 = vcmp.ge.s32.totalorder %v300, 4
        %vm4777 = vcmp.ge.s32.totalorder %v301, 4
        %vm4778 = vcmp.ge.s32.totalorder %v302, 4
        %vm4779 = vmand %vm4775, %vm412
        %vm4780 = vmand %vm4776, %vm413
        %vm4781 = vmand %vm4777, %vm414
        %vm4782 = vmand %vm4778, %vm415
        %v4783 = vsel %vm4779, 1, 0
        %v4784 = vsel %vm4780, 1, 0
        %v4785 = vsel %vm4781, 1, 0
        %v4786 = vsel %vm4782, 1, 0
        %vm4787 = vcmp.eq.s32.totalorder %v4783, 1
        %vm4788 = vcmp.eq.s32.totalorder %v4784, 1
        %vm4789 = vcmp.eq.s32.totalorder %v4785, 1
        %vm4790 = vcmp.eq.s32.totalorder %v4786, 1
        %v4791 = vsel %vm4787, %v4771, 0.0
        %v4792 = vsel %vm4788, %v4767, 0.0
        %v4793 = vsel %vm4789, %v4763, 0.0
        %v4794 = vsel %vm4790, %v4759, 0.0
        %v4795 = vsel %vm4787, %v4772, 0.0
        %v4796 = vsel %vm4788, %v4768, 0.0
        %v4797 = vsel %vm4789, %v4764, 0.0
        %v4798 = vsel %vm4790, %v4760, 0.0
        %v4799 = vsel %vm4787, %v4773, 0.0
        %v4800 = vsel %vm4788, %v4769, 0.0
        %v4801 = vsel %vm4789, %v4765, 0.0
        %v4802 = vsel %vm4790, %v4761, 0.0
        %v4803 = vsel %vm4787, %v4774, 0.0
        %v4804 = vsel %vm4788, %v4770, 0.0
        %v4805 = vsel %vm4789, %v4766, 0.0
        %v4806 = vsel %vm4790, %v4762, 0.0
        %v4807 = vpack.c.bf16 %v4795, %v4791
        %v4808 = vpack.c.bf16 %v4796, %v4792
        %v4809 = vpack.c.bf16 %v4797, %v4793
        %v4810 = vpack.c.bf16 %v4798, %v4794
        %v4811 = vpack.c.bf16 %v4803, %v4799
        %v4812 = vpack.c.bf16 %v4804, %v4800
        %v4813 = vpack.c.bf16 %v4805, %v4801
        %v4814 = vpack.c.bf16 %v4806, %v4802
        %v4823 = vunpack.c.l.b16 %v4807
        %v4824 = vunpack.c.l.b16 %v4808
        %v4825 = vunpack.c.l.b16 %v4809
        %v4826 = vunpack.c.l.b16 %v4810
        %v4827 = vunpack.c.h.b16 %v4807
        %v4828 = vunpack.c.h.b16 %v4808
        %v4829 = vunpack.c.h.b16 %v4809
        %v4830 = vunpack.c.h.b16 %v4810
        %v4831 = vunpack.c.l.b16 %v4811
        %v4832 = vunpack.c.l.b16 %v4812
        %v4833 = vunpack.c.l.b16 %v4813
        %v4834 = vunpack.c.l.b16 %v4814
        %v4835 = vunpack.c.h.b16 %v4811
        %v4836 = vunpack.c.h.b16 %v4812
        %v4837 = vunpack.c.h.b16 %v4813
        %v4838 = vunpack.c.h.b16 %v4814
        %v4839 = vpack.c.b16 %v4824, %v4823
        %v4840 = vpack.c.b16 %v4826, %v4825
        %v4841 = vpack.c.b16 %v4828, %v4827
        %v4842 = vpack.c.b16 %v4830, %v4829
        %v4843 = vpack.c.b16 %v4832, %v4831
        %v4844 = vpack.c.b16 %v4834, %v4833
        %v4845 = vpack.c.b16 %v4836, %v4835
        %v4846 = vpack.c.b16 %v4838, %v4837
        %4855 = vst [vmem:[#allocation2] sm:$0xff] %v4839
        %4856 = vst [vmem:[#allocation2 + $0x8] sm:$0xff] %v4840
        %4857 = vst [vmem:[#allocation2 + $0x10] sm:$0xff] %v4841
        %4858 = vst [vmem:[#allocation2 + $0x18] sm:$0xff] %v4842
        %4859 = vst [vmem:[#allocation2 + $0x20] sm:$0xff] %v4843
        %4860 = vst [vmem:[#allocation2 + $0x28] sm:$0xff] %v4844
        %4861 = vst [vmem:[#allocation2 + $0x30] sm:$0xff] %v4845
        %4862 = vst [vmem:[#allocation2 + $0x38] sm:$0xff] %v4846
        %4863 = vrot.lane.b32.xlu0 %v4710, 2
        %v4864 = vpop.permute.xlu0 %4863
        %4865 = vrot.lane.b32.xlu0 %v4714, 2
        %v4866 = vpop.permute.xlu0 %4865
        %4867 = vrot.lane.b32.xlu0 %v4718, 2
        %v4868 = vpop.permute.xlu0 %4867
        %4869 = vrot.lane.b32.xlu0 %v4722, 2
        %v4870 = vpop.permute.xlu0 %4869
        %4871 = vrot.lane.b32.xlu0 %v4711, 2
        %v4872 = vpop.permute.xlu0 %4871
        %4873 = vrot.lane.b32.xlu0 %v4715, 2
        %v4874 = vpop.permute.xlu0 %4873
        %4875 = vrot.lane.b32.xlu0 %v4719, 2
        %v4876 = vpop.permute.xlu0 %4875
        %4877 = vrot.lane.b32.xlu0 %v4723, 2
        %v4878 = vpop.permute.xlu0 %4877
        %4879 = vrot.lane.b32.xlu0 %v4712, 2
        %v4880 = vpop.permute.xlu0 %4879
        %4881 = vrot.lane.b32.xlu0 %v4716, 2
        %v4882 = vpop.permute.xlu0 %4881
        %4883 = vrot.lane.b32.xlu0 %v4720, 2
        %v4884 = vpop.permute.xlu0 %4883
        %4885 = vrot.lane.b32.xlu0 %v4724, 2
        %v4886 = vpop.permute.xlu0 %4885
        %4887 = vrot.lane.b32.xlu0 %v4713, 2
        %v4888 = vpop.permute.xlu0 %4887
        %4889 = vrot.lane.b32.xlu0 %v4717, 2
        %v4890 = vpop.permute.xlu0 %4889
        %4891 = vrot.lane.b32.xlu0 %v4721, 2
        %v4892 = vpop.permute.xlu0 %4891
        %4893 = vrot.lane.b32.xlu0 %v4725, 2
        %v4894 = vpop.permute.xlu0 %4893
        %v4895 = vsel %vm1074, %v4880, %v4888
        %v4896 = vsel %vm1074, %v4882, %v4890
        %v4897 = vsel %vm1074, %v4884, %v4892
        %v4898 = vsel %vm1074, %v4886, %v4894
        %v4899 = vsel %vm1074, %v4872, %v4880
        %v4900 = vsel %vm1074, %v4874, %v4882
        %v4901 = vsel %vm1074, %v4876, %v4884
        %v4902 = vsel %vm1074, %v4878, %v4886
        %v4903 = vsel %vm1074, %v4864, %v4872
        %v4904 = vsel %vm1074, %v4866, %v4874
        %v4905 = vsel %vm1074, %v4868, %v4876
        %v4906 = vsel %vm1074, %v4870, %v4878
        %v4907 = vsel %vm1074, %v4888, %v4864
        %v4908 = vsel %vm1074, %v4890, %v4866
        %v4909 = vsel %vm1074, %v4892, %v4868
        %v4910 = vsel %vm1074, %v4894, %v4870
        %v4911 = vsel %vm1103, %v4907, 0.0
        %v4912 = vsel %vm1104, %v4903, 0.0
        %v4913 = vsel %vm1105, %v4899, 0.0
        %v4914 = vsel %vm1106, %v4895, 0.0
        %v4915 = vsel %vm1103, %v4908, 0.0
        %v4916 = vsel %vm1104, %v4904, 0.0
        %v4917 = vsel %vm1105, %v4900, 0.0
        %v4918 = vsel %vm1106, %v4896, 0.0
        %v4919 = vsel %vm1103, %v4909, 0.0
        %v4920 = vsel %vm1104, %v4905, 0.0
        %v4921 = vsel %vm1105, %v4901, 0.0
        %v4922 = vsel %vm1106, %v4897, 0.0
        %v4923 = vsel %vm1103, %v4910, 0.0
        %v4924 = vsel %vm1104, %v4906, 0.0
        %v4925 = vsel %vm1105, %v4902, 0.0
        %v4926 = vsel %vm1106, %v4898, 0.0
        %v4927 = vpack.c.bf16 %v4915, %v4911
        %v4928 = vpack.c.bf16 %v4916, %v4912
        %v4929 = vpack.c.bf16 %v4917, %v4913
        %v4930 = vpack.c.bf16 %v4918, %v4914
        %v4931 = vpack.c.bf16 %v4923, %v4919
        %v4932 = vpack.c.bf16 %v4924, %v4920
        %v4933 = vpack.c.bf16 %v4925, %v4921
        %v4934 = vpack.c.bf16 %v4926, %v4922
        %v4943 = vunpack.c.l.b16 %v4927
        %v4944 = vunpack.c.l.b16 %v4928
        %v4945 = vunpack.c.l.b16 %v4929
        %v4946 = vunpack.c.l.b16 %v4930
        %v4947 = vunpack.c.h.b16 %v4927
        %v4948 = vunpack.c.h.b16 %v4928
        %v4949 = vunpack.c.h.b16 %v4929
        %v4950 = vunpack.c.h.b16 %v4930
        %v4951 = vunpack.c.l.b16 %v4931
        %v4952 = vunpack.c.l.b16 %v4932
        %v4953 = vunpack.c.l.b16 %v4933
        %v4954 = vunpack.c.l.b16 %v4934
        %v4955 = vunpack.c.h.b16 %v4931
        %v4956 = vunpack.c.h.b16 %v4932
        %v4957 = vunpack.c.h.b16 %v4933
        %v4958 = vunpack.c.h.b16 %v4934
        %v4959 = vpack.c.b16 %v4944, %v4943
        %v4960 = vpack.c.b16 %v4946, %v4945
        %v4961 = vpack.c.b16 %v4948, %v4947
        %v4962 = vpack.c.b16 %v4950, %v4949
        %v4963 = vpack.c.b16 %v4952, %v4951
        %v4964 = vpack.c.b16 %v4954, %v4953
        %v4965 = vpack.c.b16 %v4956, %v4955
        %v4966 = vpack.c.b16 %v4958, %v4957
        %4975 = vst [vmem:[#allocation2 + $0x40] sm:$0xff] %v4959
        %4976 = vst [vmem:[#allocation2 + $0x48] sm:$0xff] %v4960
        %4977 = vst [vmem:[#allocation2 + $0x50] sm:$0xff] %v4961
        %4978 = vst [vmem:[#allocation2 + $0x58] sm:$0xff] %v4962
        %4979 = vst [vmem:[#allocation2 + $0x60] sm:$0xff] %v4963
        %4980 = vst [vmem:[#allocation2 + $0x68] sm:$0xff] %v4964
        %4981 = vst [vmem:[#allocation2 + $0x70] sm:$0xff] %v4965
        %4982 = vst [vmem:[#allocation2 + $0x78] sm:$0xff] %v4966
        %v4983 = vpack.c.bf16 %v4714, %v4710
        %v4984 = vpack.c.bf16 %v4715, %v4711
        %v4985 = vpack.c.bf16 %v4716, %v4712
        %v4986 = vpack.c.bf16 %v4717, %v4713
        %v4987 = vpack.c.bf16 %v4722, %v4718
        %v4988 = vpack.c.bf16 %v4723, %v4719
        %v4989 = vpack.c.bf16 %v4724, %v4720
        %v4990 = vpack.c.bf16 %v4725, %v4721
        %v4999 = vunpack.c.l.b16 %v4983
        %v5000 = vunpack.c.l.b16 %v4984
        %v5001 = vunpack.c.l.b16 %v4985
        %v5002 = vunpack.c.l.b16 %v4986
        %v5003 = vunpack.c.h.b16 %v4983
        %v5004 = vunpack.c.h.b16 %v4984
        %v5005 = vunpack.c.h.b16 %v4985
        %v5006 = vunpack.c.h.b16 %v4986
        %v5007 = vunpack.c.l.b16 %v4987
        %v5008 = vunpack.c.l.b16 %v4988
        %v5009 = vunpack.c.l.b16 %v4989
        %v5010 = vunpack.c.l.b16 %v4990
        %v5011 = vunpack.c.h.b16 %v4987
        %v5012 = vunpack.c.h.b16 %v4988
        %v5013 = vunpack.c.h.b16 %v4989
        %v5014 = vunpack.c.h.b16 %v4990
        %v5015 = vpack.c.b16 %v5000, %v4999
        %v5016 = vpack.c.b16 %v5002, %v5001
        %v5017 = vpack.c.b16 %v5004, %v5003
        %v5018 = vpack.c.b16 %v5006, %v5005
        %v5019 = vpack.c.b16 %v5008, %v5007
        %v5020 = vpack.c.b16 %v5010, %v5009
        %v5021 = vpack.c.b16 %v5012, %v5011
        %v5022 = vpack.c.b16 %v5014, %v5013
        %5031 = vst [vmem:[#allocation2 + $0x80] sm:$0xff] %v5015
        %5032 = vst [vmem:[#allocation2 + $0x88] sm:$0xff] %v5016
        %5033 = vst [vmem:[#allocation2 + $0x90] sm:$0xff] %v5017
        %5034 = vst [vmem:[#allocation2 + $0x98] sm:$0xff] %v5018
        %5035 = vst [vmem:[#allocation2 + $0xa0] sm:$0xff] %v5019
        %5036 = vst [vmem:[#allocation2 + $0xa8] sm:$0xff] %v5020
        %5037 = vst [vmem:[#allocation2 + $0xb0] sm:$0xff] %v5021
        %5038 = vst [vmem:[#allocation2 + $0xb8] sm:$0xff] %v5022
        %5039 = vrot.lane.b32.xlu0 %v4710, 126
        %v5040 = vpop.permute.xlu0 %5039
        %5041 = vrot.lane.b32.xlu0 %v4714, 126
        %v5042 = vpop.permute.xlu0 %5041
        %5043 = vrot.lane.b32.xlu0 %v4718, 126
        %v5044 = vpop.permute.xlu0 %5043
        %5045 = vrot.lane.b32.xlu0 %v4722, 126
        %v5046 = vpop.permute.xlu0 %5045
        %5047 = vrot.lane.b32.xlu0 %v4711, 126
        %v5048 = vpop.permute.xlu0 %5047
        %5049 = vrot.lane.b32.xlu0 %v4715, 126
        %v5050 = vpop.permute.xlu0 %5049
        %5051 = vrot.lane.b32.xlu0 %v4719, 126
        %v5052 = vpop.permute.xlu0 %5051
        %5053 = vrot.lane.b32.xlu0 %v4723, 126
        %v5054 = vpop.permute.xlu0 %5053
        %5055 = vrot.lane.b32.xlu0 %v4712, 126
        %v5056 = vpop.permute.xlu0 %5055
        %5057 = vrot.lane.b32.xlu0 %v4716, 126
        %v5058 = vpop.permute.xlu0 %5057
        %5059 = vrot.lane.b32.xlu0 %v4720, 126
        %v5060 = vpop.permute.xlu0 %5059
        %5061 = vrot.lane.b32.xlu0 %v4724, 126
        %v5062 = vpop.permute.xlu0 %5061
        %5063 = vrot.lane.b32.xlu0 %v4713, 126
        %v5064 = vpop.permute.xlu0 %5063
        %5065 = vrot.lane.b32.xlu0 %v4717, 126
        %v5066 = vpop.permute.xlu0 %5065
        %5067 = vrot.lane.b32.xlu0 %v4721, 126
        %v5068 = vpop.permute.xlu0 %5067
        %5069 = vrot.lane.b32.xlu0 %v4725, 126
        %v5070 = vpop.permute.xlu0 %5069
        %v5071 = vsel %vm1267, %v5056, %v5064
        %v5072 = vsel %vm1267, %v5058, %v5066
        %v5073 = vsel %vm1267, %v5060, %v5068
        %v5074 = vsel %vm1267, %v5062, %v5070
        %v5075 = vsel %vm1267, %v5048, %v5056
        %v5076 = vsel %vm1267, %v5050, %v5058
        %v5077 = vsel %vm1267, %v5052, %v5060
        %v5078 = vsel %vm1267, %v5054, %v5062
        %v5079 = vsel %vm1267, %v5040, %v5048
        %v5080 = vsel %vm1267, %v5042, %v5050
        %v5081 = vsel %vm1267, %v5044, %v5052
        %v5082 = vsel %vm1267, %v5046, %v5054
        %v5083 = vsel %vm1267, %v5064, %v5040
        %v5084 = vsel %vm1267, %v5066, %v5042
        %v5085 = vsel %vm1267, %v5068, %v5044
        %v5086 = vsel %vm1267, %v5070, %v5046
        %v5087 = vsel %vm1296, %v5079, 0.0
        %v5088 = vsel %vm1297, %v5075, 0.0
        %v5089 = vsel %vm1298, %v5071, 0.0
        %v5090 = vsel %vm1299, %v5083, 0.0
        %v5091 = vsel %vm1296, %v5080, 0.0
        %v5092 = vsel %vm1297, %v5076, 0.0
        %v5093 = vsel %vm1298, %v5072, 0.0
        %v5094 = vsel %vm1299, %v5084, 0.0
        %v5095 = vsel %vm1296, %v5081, 0.0
        %v5096 = vsel %vm1297, %v5077, 0.0
        %v5097 = vsel %vm1298, %v5073, 0.0
        %v5098 = vsel %vm1299, %v5085, 0.0
        %v5099 = vsel %vm1296, %v5082, 0.0
        %v5100 = vsel %vm1297, %v5078, 0.0
        %v5101 = vsel %vm1298, %v5074, 0.0
        %v5102 = vsel %vm1299, %v5086, 0.0
        %v5103 = vpack.c.bf16 %v5091, %v5087
        %v5104 = vpack.c.bf16 %v5092, %v5088
        %v5105 = vpack.c.bf16 %v5093, %v5089
        %v5106 = vpack.c.bf16 %v5094, %v5090
        %v5107 = vpack.c.bf16 %v5099, %v5095
        %v5108 = vpack.c.bf16 %v5100, %v5096
        %v5109 = vpack.c.bf16 %v5101, %v5097
        %v5110 = vpack.c.bf16 %v5102, %v5098
        %v5119 = vunpack.c.l.b16 %v5103
        %v5120 = vunpack.c.l.b16 %v5104
        %v5121 = vunpack.c.l.b16 %v5105
        %v5122 = vunpack.c.l.b16 %v5106
        %v5123 = vunpack.c.h.b16 %v5103
        %v5124 = vunpack.c.h.b16 %v5104
        %v5125 = vunpack.c.h.b16 %v5105
        %v5126 = vunpack.c.h.b16 %v5106
        %v5127 = vunpack.c.l.b16 %v5107
        %v5128 = vunpack.c.l.b16 %v5108
        %v5129 = vunpack.c.l.b16 %v5109
        %v5130 = vunpack.c.l.b16 %v5110
        %v5131 = vunpack.c.h.b16 %v5107
        %v5132 = vunpack.c.h.b16 %v5108
        %v5133 = vunpack.c.h.b16 %v5109
        %v5134 = vunpack.c.h.b16 %v5110
        %v5135 = vpack.c.b16 %v5120, %v5119
        %v5136 = vpack.c.b16 %v5122, %v5121
        %v5137 = vpack.c.b16 %v5124, %v5123
        %v5138 = vpack.c.b16 %v5126, %v5125
        %v5139 = vpack.c.b16 %v5128, %v5127
        %v5140 = vpack.c.b16 %v5130, %v5129
        %v5141 = vpack.c.b16 %v5132, %v5131
        %v5142 = vpack.c.b16 %v5134, %v5133
        %5151 = vst [vmem:[#allocation2 + $0xc0] sm:$0xff] %v5135
        %5152 = vst [vmem:[#allocation2 + $0xc8] sm:$0xff] %v5136
        %5153 = vst [vmem:[#allocation2 + $0xd0] sm:$0xff] %v5137
        %5154 = vst [vmem:[#allocation2 + $0xd8] sm:$0xff] %v5138
        %5155 = vst [vmem:[#allocation2 + $0xe0] sm:$0xff] %v5139
        %5156 = vst [vmem:[#allocation2 + $0xe8] sm:$0xff] %v5140
        %5157 = vst [vmem:[#allocation2 + $0xf0] sm:$0xff] %v5141
        %5158 = vst [vmem:[#allocation2 + $0xf8] sm:$0xff] %v5142
        %5159 = vrot.lane.b32.xlu0 %v4710, 124
        %v5160 = vpop.permute.xlu0 %5159
        %5161 = vrot.lane.b32.xlu0 %v4714, 124
        %v5162 = vpop.permute.xlu0 %5161
        %5163 = vrot.lane.b32.xlu0 %v4718, 124
        %v5164 = vpop.permute.xlu0 %5163
        %5165 = vrot.lane.b32.xlu0 %v4722, 124
        %v5166 = vpop.permute.xlu0 %5165
        %5167 = vrot.lane.b32.xlu0 %v4711, 124
        %v5168 = vpop.permute.xlu0 %5167
        %5169 = vrot.lane.b32.xlu0 %v4715, 124
        %v5170 = vpop.permute.xlu0 %5169
        %5171 = vrot.lane.b32.xlu0 %v4719, 124
        %v5172 = vpop.permute.xlu0 %5171
        %5173 = vrot.lane.b32.xlu0 %v4723, 124
        %v5174 = vpop.permute.xlu0 %5173
        %5175 = vrot.lane.b32.xlu0 %v4712, 124
        %v5176 = vpop.permute.xlu0 %5175
        %5177 = vrot.lane.b32.xlu0 %v4716, 124
        %v5178 = vpop.permute.xlu0 %5177
        %5179 = vrot.lane.b32.xlu0 %v4720, 124
        %v5180 = vpop.permute.xlu0 %5179
        %5181 = vrot.lane.b32.xlu0 %v4724, 124
        %v5182 = vpop.permute.xlu0 %5181
        %5183 = vrot.lane.b32.xlu0 %v4713, 124
        %v5184 = vpop.permute.xlu0 %5183
        %5185 = vrot.lane.b32.xlu0 %v4717, 124
        %v5186 = vpop.permute.xlu0 %5185
        %5187 = vrot.lane.b32.xlu0 %v4721, 124
        %v5188 = vpop.permute.xlu0 %5187
        %5189 = vrot.lane.b32.xlu0 %v4725, 124
        %v5190 = vpop.permute.xlu0 %5189
        %vm5191 = vcmp.lt.s32.totalorder %v251, 124
        %v5192 = vsel %vm5191, %v5176, %v5184
        %v5193 = vsel %vm5191, %v5178, %v5186
        %v5194 = vsel %vm5191, %v5180, %v5188
        %v5195 = vsel %vm5191, %v5182, %v5190
        %v5196 = vsel %vm5191, %v5168, %v5176
        %v5197 = vsel %vm5191, %v5170, %v5178
        %v5198 = vsel %vm5191, %v5172, %v5180
        %v5199 = vsel %vm5191, %v5174, %v5182
        %v5200 = vsel %vm5191, %v5160, %v5168
        %v5201 = vsel %vm5191, %v5162, %v5170
        %v5202 = vsel %vm5191, %v5164, %v5172
        %v5203 = vsel %vm5191, %v5166, %v5174
        %v5204 = vsel %vm5191, %v5184, %v5160
        %v5205 = vsel %vm5191, %v5186, %v5162
        %v5206 = vsel %vm5191, %v5188, %v5164
        %v5207 = vsel %vm5191, %v5190, %v5166
        %vm5208 = vcmp.lt.s32.totalorder %v299, 252
        %vm5209 = vcmp.lt.s32.totalorder %v300, 252
        %vm5210 = vcmp.lt.s32.totalorder %v301, 252
        %vm5211 = vcmp.lt.s32.totalorder %v302, 252
        %vm5212 = vmand %vm605, %vm5208
        %vm5213 = vmand %vm606, %vm5209
        %vm5214 = vmand %vm607, %vm5210
        %vm5215 = vmand %vm608, %vm5211
        %v5216 = vsel %vm5212, 1, 0
        %v5217 = vsel %vm5213, 1, 0
        %v5218 = vsel %vm5214, 1, 0
        %v5219 = vsel %vm5215, 1, 0
        %vm5220 = vcmp.eq.s32.totalorder %v5216, 1
        %vm5221 = vcmp.eq.s32.totalorder %v5217, 1
        %vm5222 = vcmp.eq.s32.totalorder %v5218, 1
        %vm5223 = vcmp.eq.s32.totalorder %v5219, 1
        %v5224 = vsel %vm5220, %v5200, 0.0
        %v5225 = vsel %vm5221, %v5196, 0.0
        %v5226 = vsel %vm5222, %v5192, 0.0
        %v5227 = vsel %vm5223, %v5204, 0.0
        %v5228 = vsel %vm5220, %v5201, 0.0
        %v5229 = vsel %vm5221, %v5197, 0.0
        %v5230 = vsel %vm5222, %v5193, 0.0
        %v5231 = vsel %vm5223, %v5205, 0.0
        %v5232 = vsel %vm5220, %v5202, 0.0
        %v5233 = vsel %vm5221, %v5198, 0.0
        %v5234 = vsel %vm5222, %v5194, 0.0
        %v5235 = vsel %vm5223, %v5206, 0.0
        %v5236 = vsel %vm5220, %v5203, 0.0
        %v5237 = vsel %vm5221, %v5199, 0.0
        %v5238 = vsel %vm5222, %v5195, 0.0
        %v5239 = vsel %vm5223, %v5207, 0.0
        %v5240 = vpack.c.bf16 %v5228, %v5224
        %v5241 = vpack.c.bf16 %v5229, %v5225
        %v5242 = vpack.c.bf16 %v5230, %v5226
        %v5243 = vpack.c.bf16 %v5231, %v5227
        %v5244 = vpack.c.bf16 %v5236, %v5232
        %v5245 = vpack.c.bf16 %v5237, %v5233
        %v5246 = vpack.c.bf16 %v5238, %v5234
        %v5247 = vpack.c.bf16 %v5239, %v5235
        %v5256 = vunpack.c.l.b16 %v5240
        %v5257 = vunpack.c.l.b16 %v5241
        %v5258 = vunpack.c.l.b16 %v5242
        %v5259 = vunpack.c.l.b16 %v5243
        %v5260 = vunpack.c.h.b16 %v5240
        %v5261 = vunpack.c.h.b16 %v5241
        %v5262 = vunpack.c.h.b16 %v5242
        %v5263 = vunpack.c.h.b16 %v5243
        %v5264 = vunpack.c.l.b16 %v5244
        %v5265 = vunpack.c.l.b16 %v5245
        %v5266 = vunpack.c.l.b16 %v5246
        %v5267 = vunpack.c.l.b16 %v5247
        %v5268 = vunpack.c.h.b16 %v5244
        %v5269 = vunpack.c.h.b16 %v5245
        %v5270 = vunpack.c.h.b16 %v5246
        %v5271 = vunpack.c.h.b16 %v5247
        %v5272 = vpack.c.b16 %v5257, %v5256
        %v5273 = vpack.c.b16 %v5259, %v5258
        %v5274 = vpack.c.b16 %v5261, %v5260
        %v5275 = vpack.c.b16 %v5263, %v5262
        %v5276 = vpack.c.b16 %v5265, %v5264
        %v5277 = vpack.c.b16 %v5267, %v5266
        %v5278 = vpack.c.b16 %v5269, %v5268
        %v5279 = vpack.c.b16 %v5271, %v5270
        %5288 = vst [vmem:[#allocation2 + $0x100] sm:$0xff] %v5272
        %5289 = vst [vmem:[#allocation2 + $0x108] sm:$0xff] %v5273
        %5290 = vst [vmem:[#allocation2 + $0x110] sm:$0xff] %v5274
        %5291 = vst [vmem:[#allocation2 + $0x118] sm:$0xff] %v5275
        %5292 = vst [vmem:[#allocation2 + $0x120] sm:$0xff] %v5276
        %5293 = vst [vmem:[#allocation2 + $0x128] sm:$0xff] %v5277
        %5294 = vst [vmem:[#allocation2 + $0x130] sm:$0xff] %v5278
        %5295 = vst [vmem:[#allocation2 + $0x138] sm:$0xff] %v5279
        %v5296 = vld [vmem:[#allocation2] sm:$0xff]
        %v5297 = vld [vmem:[#allocation2 + $0x8] sm:$0xff]
        %v5298 = vld [vmem:[#allocation2 + $0x10] sm:$0xff]
        %v5299 = vld [vmem:[#allocation2 + $0x18] sm:$0xff]
        %v5300 = vld [vmem:[#allocation2 + $0x20] sm:$0xff]
        %v5301 = vld [vmem:[#allocation2 + $0x28] sm:$0xff]
        %v5302 = vld [vmem:[#allocation2 + $0x30] sm:$0xff]
        %v5303 = vld [vmem:[#allocation2 + $0x38] sm:$0xff]
        %v5304 = vld [vmem:[#allocation2 + $0x40] sm:$0xff]
        %v5305 = vld [vmem:[#allocation2 + $0x48] sm:$0xff]
        %v5306 = vld [vmem:[#allocation2 + $0x50] sm:$0xff]
        %v5307 = vld [vmem:[#allocation2 + $0x58] sm:$0xff]
        %v5308 = vld [vmem:[#allocation2 + $0x60] sm:$0xff]
        %v5309 = vld [vmem:[#allocation2 + $0x68] sm:$0xff]
        %v5310 = vld [vmem:[#allocation2 + $0x70] sm:$0xff]
        %v5311 = vld [vmem:[#allocation2 + $0x78] sm:$0xff]
        %v5312 = vld [vmem:[#allocation2 + $0x80] sm:$0xff]
        %v5313 = vld [vmem:[#allocation2 + $0x88] sm:$0xff]
        %v5314 = vld [vmem:[#allocation2 + $0x90] sm:$0xff]
        %v5315 = vld [vmem:[#allocation2 + $0x98] sm:$0xff]
        %v5316 = vld [vmem:[#allocation2 + $0xa0] sm:$0xff]
        %v5317 = vld [vmem:[#allocation2 + $0xa8] sm:$0xff]
        %v5318 = vld [vmem:[#allocation2 + $0xb0] sm:$0xff]
        %v5319 = vld [vmem:[#allocation2 + $0xb8] sm:$0xff]
        %v5320 = vld [vmem:[#allocation2 + $0xc0] sm:$0xff]
        %v5321 = vld [vmem:[#allocation2 + $0xc8] sm:$0xff]
        %v5322 = vld [vmem:[#allocation2 + $0xd0] sm:$0xff]
        %v5323 = vld [vmem:[#allocation2 + $0xd8] sm:$0xff]
        %v5324 = vld [vmem:[#allocation2 + $0xe0] sm:$0xff]
        %v5325 = vld [vmem:[#allocation2 + $0xe8] sm:$0xff]
        %v5326 = vld [vmem:[#allocation2 + $0xf0] sm:$0xff]
        %v5327 = vld [vmem:[#allocation2 + $0xf8] sm:$0xff]
        %v5328 = vld [vmem:[#allocation2 + $0x100] sm:$0xff]
        %v5329 = vld [vmem:[#allocation2 + $0x108] sm:$0xff]
        %v5330 = vld [vmem:[#allocation2 + $0x110] sm:$0xff]
        %v5331 = vld [vmem:[#allocation2 + $0x118] sm:$0xff]
        %v5332 = vld [vmem:[#allocation2 + $0x120] sm:$0xff]
        %v5333 = vld [vmem:[#allocation2 + $0x128] sm:$0xff]
        %v5334 = vld [vmem:[#allocation2 + $0x130] sm:$0xff]
        %v5335 = vld [vmem:[#allocation2 + $0x138] sm:$0xff]
        %5337 = vset.pattern.permute.xlu0 0
        %5338 = vperm.xlu0 %5337, %v4674
        %v5339 = vpop.permute.xlu0 %5338
        %5342 = vset.pattern.permute.xlu0 0
        %5343 = vperm.xlu0 %5342, %v4675
        %v5344 = vpop.permute.xlu0 %5343
        %5347 = vset.pattern.permute.xlu0 0
        %5348 = vperm.xlu0 %5347, %v4676
        %v5349 = vpop.permute.xlu0 %5348
        %5352 = vset.pattern.permute.xlu0 0
        %5353 = vperm.xlu0 %5352, %v4677
        %v5354 = vpop.permute.xlu0 %5353
        %v5360 = vunpack.c.l.b16 %v4669
        %v5361 = vunpack.c.h.b16 %v4669
        %v5362 = vunpack.c.l.b16 %v4670
        %v5363 = vunpack.c.h.b16 %v4670
        %v5364 = vunpack.c.l.b16 %v4671
        %v5365 = vunpack.c.h.b16 %v4671
        %v5366 = vunpack.c.l.b16 %v4672
        %v5367 = vunpack.c.h.b16 %v4672
        %v5368 = vpack.c.b16 %v5362, %v5360
        %v5369 = vpack.c.b16 %v5363, %v5361
        %v5370 = vpack.c.b16 %v5366, %v5364
        %v5371 = vpack.c.b16 %v5367, %v5365
        %v5414 = vunpack.c.l.b16 %v5296
        %v5415 = vunpack.c.h.b16 %v5296
        %v5416 = vunpack.c.l.b16 %v5297
        %v5417 = vunpack.c.h.b16 %v5297
        %v5418 = vunpack.c.l.b16 %v5298
        %v5419 = vunpack.c.h.b16 %v5298
        %v5420 = vunpack.c.l.b16 %v5299
        %v5421 = vunpack.c.h.b16 %v5299
        %v5422 = vunpack.c.l.b16 %v5300
        %v5423 = vunpack.c.h.b16 %v5300
        %v5424 = vunpack.c.l.b16 %v5301
        %v5425 = vunpack.c.h.b16 %v5301
        %v5426 = vunpack.c.l.b16 %v5302
        %v5427 = vunpack.c.h.b16 %v5302
        %v5428 = vunpack.c.l.b16 %v5303
        %v5429 = vunpack.c.h.b16 %v5303
        %v5430 = vunpack.c.l.b16 %v5304
        %v5431 = vunpack.c.h.b16 %v5304
        %v5432 = vunpack.c.l.b16 %v5305
        %v5433 = vunpack.c.h.b16 %v5305
        %v5434 = vunpack.c.l.b16 %v5306
        %v5435 = vunpack.c.h.b16 %v5306
        %v5436 = vunpack.c.l.b16 %v5307
        %v5437 = vunpack.c.h.b16 %v5307
        %v5438 = vunpack.c.l.b16 %v5308
        %v5439 = vunpack.c.h.b16 %v5308
        %v5440 = vunpack.c.l.b16 %v5309
        %v5441 = vunpack.c.h.b16 %v5309
        %v5442 = vunpack.c.l.b16 %v5310
        %v5443 = vunpack.c.h.b16 %v5310
        %v5444 = vunpack.c.l.b16 %v5311
        %v5445 = vunpack.c.h.b16 %v5311
        %v5446 = vunpack.c.l.b16 %v5312
        %v5447 = vunpack.c.h.b16 %v5312
        %v5448 = vunpack.c.l.b16 %v5313
        %v5449 = vunpack.c.h.b16 %v5313
        %v5450 = vunpack.c.l.b16 %v5314
        %v5451 = vunpack.c.h.b16 %v5314
        %v5452 = vunpack.c.l.b16 %v5315
        %v5453 = vunpack.c.h.b16 %v5315
        %v5454 = vunpack.c.l.b16 %v5316
        %v5455 = vunpack.c.h.b16 %v5316
        %v5456 = vunpack.c.l.b16 %v5317
        %v5457 = vunpack.c.h.b16 %v5317
        %v5458 = vunpack.c.l.b16 %v5318
        %v5459 = vunpack.c.h.b16 %v5318
        %v5460 = vunpack.c.l.b16 %v5319
        %v5461 = vunpack.c.h.b16 %v5319
        %v5462 = vunpack.c.l.b16 %v5320
        %v5463 = vunpack.c.h.b16 %v5320
        %v5464 = vunpack.c.l.b16 %v5321
        %v5465 = vunpack.c.h.b16 %v5321
        %v5466 = vunpack.c.l.b16 %v5322
        %v5467 = vunpack.c.h.b16 %v5322
        %v5468 = vunpack.c.l.b16 %v5323
        %v5469 = vunpack.c.h.b16 %v5323
        %v5470 = vunpack.c.l.b16 %v5324
        %v5471 = vunpack.c.h.b16 %v5324
        %v5472 = vunpack.c.l.b16 %v5325
        %v5473 = vunpack.c.h.b16 %v5325
        %v5474 = vunpack.c.l.b16 %v5326
        %v5475 = vunpack.c.h.b16 %v5326
        %v5476 = vunpack.c.l.b16 %v5327
        %v5477 = vunpack.c.h.b16 %v5327
        %v5478 = vunpack.c.l.b16 %v5328
        %v5479 = vunpack.c.h.b16 %v5328
        %v5480 = vunpack.c.l.b16 %v5329
        %v5481 = vunpack.c.h.b16 %v5329
        %v5482 = vunpack.c.l.b16 %v5330
        %v5483 = vunpack.c.h.b16 %v5330
        %v5484 = vunpack.c.l.b16 %v5331
        %v5485 = vunpack.c.h.b16 %v5331
        %v5486 = vunpack.c.l.b16 %v5332
        %v5487 = vunpack.c.h.b16 %v5332
        %v5488 = vunpack.c.l.b16 %v5333
        %v5489 = vunpack.c.h.b16 %v5333
        %v5490 = vunpack.c.l.b16 %v5334
        %v5491 = vunpack.c.h.b16 %v5334
        %v5492 = vunpack.c.l.b16 %v5335
        %v5493 = vunpack.c.h.b16 %v5335
        %v5494 = vpack.c.b16 %v5418, %v5414
        %v5495 = vpack.c.b16 %v5419, %v5415
        %v5496 = vpack.c.b16 %v5420, %v5416
        %v5497 = vpack.c.b16 %v5421, %v5417
        %v5498 = vpack.c.b16 %v5426, %v5422
        %v5499 = vpack.c.b16 %v5427, %v5423
        %v5500 = vpack.c.b16 %v5428, %v5424
        %v5501 = vpack.c.b16 %v5429, %v5425
        %v5502 = vpack.c.b16 %v5434, %v5430
        %v5503 = vpack.c.b16 %v5435, %v5431
        %v5504 = vpack.c.b16 %v5436, %v5432
        %v5505 = vpack.c.b16 %v5437, %v5433
        %v5506 = vpack.c.b16 %v5442, %v5438
        %v5507 = vpack.c.b16 %v5443, %v5439
        %v5508 = vpack.c.b16 %v5444, %v5440
        %v5509 = vpack.c.b16 %v5445, %v5441
        %v5510 = vpack.c.b16 %v5450, %v5446
        %v5511 = vpack.c.b16 %v5451, %v5447
        %v5512 = vpack.c.b16 %v5452, %v5448
        %v5513 = vpack.c.b16 %v5453, %v5449
        %v5514 = vpack.c.b16 %v5458, %v5454
        %v5515 = vpack.c.b16 %v5459, %v5455
        %v5516 = vpack.c.b16 %v5460, %v5456
        %v5517 = vpack.c.b16 %v5461, %v5457
        %v5518 = vpack.c.b16 %v5466, %v5462
        %v5519 = vpack.c.b16 %v5467, %v5463
        %v5520 = vpack.c.b16 %v5468, %v5464
        %v5521 = vpack.c.b16 %v5469, %v5465
        %v5522 = vpack.c.b16 %v5474, %v5470
        %v5523 = vpack.c.b16 %v5475, %v5471
        %v5524 = vpack.c.b16 %v5476, %v5472
        %v5525 = vpack.c.b16 %v5477, %v5473
        %v5526 = vpack.c.b16 %v5482, %v5478
        %v5527 = vpack.c.b16 %v5483, %v5479
        %v5528 = vpack.c.b16 %v5484, %v5480
        %v5529 = vpack.c.b16 %v5485, %v5481
        %v5530 = vpack.c.b16 %v5490, %v5486
        %v5531 = vpack.c.b16 %v5491, %v5487
        %v5532 = vpack.c.b16 %v5492, %v5488
        %v5533 = vpack.c.b16 %v5493, %v5489
        %v5575 = vsel %vm3555, %v5369, 0
        %v5578 = vsel %vm3555, %v5371, 0
        %5580 = vmatprep.subr.bf16.mxu0 %v5523
        %5581 = vmatpush1.bf16.msra.mxu0 %v5522
        %5582 = vmatprep.subr.bf16.mxu0 %v5519
        %5583 = vmatpush1.bf16.msra.mxu0 %v5518
        %5584 = vmatprep.subr.bf16.mxu0 %v5515
        %5585 = vmatpush1.bf16.msra.mxu0 %v5514
        %5586 = vmatprep.subr.bf16.mxu0 %v5511
        %5587 = vmatpush1.bf16.msra.mxu0 %v5510
        %5588 = vmatprep.subr.bf16.mxu0 %v5507
        %5589 = vmatpush1.bf16.msra.mxu0 %v5506
        %5590 = vmatprep.subr.bf16.mxu0 %v5503
        %5591 = vmatpush1.bf16.msra.mxu0 %v5502
        %5592 = vmatprep.subr.bf16.mxu0 %v5499
        %5593 = vmatpush1.bf16.msra.mxu0 %v5498
        %5594 = vmatprep.subr.bf16.mxu0 %v5495
        %5595 = vmatpush1.bf16.msra.mxu0 %v5494
        %5596 = vmatprep.subr.bf16.mxu0 0
        %5597 = vmatpush2.bf16.msra.mxu0 0
        %5598 = vmatprep.subr.bf16.mxu0 0
        %5599 = vmatpush2.bf16.msra.mxu0 0
        %5600 = vmatprep.subr.bf16.mxu0 0
        %5601 = vmatpush2.bf16.msra.mxu0 0
        %5602 = vmatprep.subr.bf16.mxu0 0
        %5603 = vmatpush2.bf16.msra.mxu0 0
        %5604 = vmatprep.subr.bf16.mxu0 0
        %5605 = vmatpush2.bf16.msra.mxu0 0
        %5606 = vmatprep.subr.bf16.mxu0 0
        %5607 = vmatpush2.bf16.msra.mxu0 0
        %5608 = vmatprep.subr.bf16.mxu0 %v5531
        %5609 = vmatpush2.bf16.msra.mxu0 %v5530
        %5610 = vmatprep.subr.bf16.mxu0 %v5527
        %5611 = vmatpush2.bf16.msra.mxu0 %v5526
        %5612 = vmatprep.mubr.bf16.mxu0 %v5575
        %5613 = vmatmul.mubr.bf16.gmra.mxu0 %v5368
        %v5614 = vpop.f32.mrf.mxu0
        %v5615 = vadd.f32 %v5339, %v5614
        %v5616 = vpop.f32.mrf.mxu0
        %v5617 = vadd.f32 %v5339, %v5616
        %v5618 = vpop.f32.mrf.mxu0
        %v5619 = vadd.f32 %v5344, %v5618
        %v5620 = vpop.f32.mrf.mxu0
        %v5621 = vadd.f32 %v5344, %v5620
        %5622 = vmatprep.mubr.bf16.mxu0 %v5578
        %5623 = vmatmul.mubr.bf16.gmra.mxu0 %v5370
        %v5624 = vpop.f32.mrf.mxu0
        %v5625 = vadd.f32 %v5349, %v5624
        %v5626 = vpop.f32.mrf.mxu0
        %v5627 = vadd.f32 %v5349, %v5626
        %v5628 = vpop.f32.mrf.mxu0
        %v5629 = vadd.f32 %v5354, %v5628
        %v5630 = vpop.f32.mrf.mxu0
        %v5631 = vadd.f32 %v5354, %v5630
        %5632 = vdwg.mxu0
        %5633 = vmatprep.subr.bf16.mxu0 %v5525
        %5634 = vmatpush1.bf16.msra.mxu0 %v5524
        %5635 = vmatprep.subr.bf16.mxu0 %v5521
        %5636 = vmatpush1.bf16.msra.mxu0 %v5520
        %5637 = vmatprep.subr.bf16.mxu0 %v5517
        %5638 = vmatpush1.bf16.msra.mxu0 %v5516
        %5639 = vmatprep.subr.bf16.mxu0 %v5513
        %5640 = vmatpush1.bf16.msra.mxu0 %v5512
        %5641 = vmatprep.subr.bf16.mxu0 %v5509
        %5642 = vmatpush1.bf16.msra.mxu0 %v5508
        %5643 = vmatprep.subr.bf16.mxu0 %v5505
        %5644 = vmatpush1.bf16.msra.mxu0 %v5504
        %5645 = vmatprep.subr.bf16.mxu0 %v5501
        %5646 = vmatpush1.bf16.msra.mxu0 %v5500
        %5647 = vmatprep.subr.bf16.mxu0 %v5497
        %5648 = vmatpush1.bf16.msra.mxu0 %v5496
        %5649 = vmatprep.subr.bf16.mxu0 0
        %5650 = vmatpush2.bf16.msra.mxu0 0
        %5651 = vmatprep.subr.bf16.mxu0 0
        %5652 = vmatpush2.bf16.msra.mxu0 0
        %5653 = vmatprep.subr.bf16.mxu0 0
        %5654 = vmatpush2.bf16.msra.mxu0 0
        %5655 = vmatprep.subr.bf16.mxu0 0
        %5656 = vmatpush2.bf16.msra.mxu0 0
        %5657 = vmatprep.subr.bf16.mxu0 0
        %5658 = vmatpush2.bf16.msra.mxu0 0
        %5659 = vmatprep.subr.bf16.mxu0 0
        %5660 = vmatpush2.bf16.msra.mxu0 0
        %5661 = vmatprep.subr.bf16.mxu0 %v5533
        %5662 = vmatpush2.bf16.msra.mxu0 %v5532
        %5663 = vmatprep.subr.bf16.mxu0 %v5529
        %5664 = vmatpush2.bf16.msra.mxu0 %v5528
        %5665 = vmatprep.mubr.bf16.mxu0 %v5575
        %5666 = vmatmul.mubr.bf16.gmra.mxu0 %v5368
        %v5667 = vpop.f32.mrf.mxu0
        %v5668 = vadd.f32 %v5339, %v5667
        %v5669 = vpop.f32.mrf.mxu0
        %v5670 = vadd.f32 %v5339, %v5669
        %v5671 = vpop.f32.mrf.mxu0
        %v5672 = vadd.f32 %v5344, %v5671
        %v5673 = vpop.f32.mrf.mxu0
        %v5674 = vadd.f32 %v5344, %v5673
        %5675 = vmatprep.mubr.bf16.mxu0 %v5578
        %5676 = vmatmul.mubr.bf16.gmra.mxu0 %v5370
        %v5677 = vpop.f32.mrf.mxu0
        %v5678 = vadd.f32 %v5349, %v5677
        %v5679 = vpop.f32.mrf.mxu0
        %v5680 = vadd.f32 %v5349, %v5679
        %v5681 = vpop.f32.mrf.mxu0
        %v5682 = vadd.f32 %v5354, %v5681
        %v5683 = vpop.f32.mrf.mxu0
        %v5684 = vadd.f32 %v5354, %v5683
        %5685 = vdwg.mxu0
        %s5686 = scalar_lea.vmem [#allocation6], 96
        %v5687 = vld [vmem:[%s5686] sm:$0xff]
        %v5688 = vld [vmem:[%s5686 + $0x8] sm:$0xff]
        %v5689 = vld [vmem:[%s5686 + $0x10] sm:$0xff]
        %v5690 = vld [vmem:[%s5686 + $0x18] sm:$0xff]
        %s5691 = scalar_lea.vmem %s3, 224
        %v5692 = vld [vmem:[%s5691] sm:$0xff]
        %v5693 = vld [vmem:[%s5691 + $0x8] sm:$0xff]
        %v5694 = vld [vmem:[%s5691 + $0x10] sm:$0xff]
        %v5695 = vld [vmem:[%s5691 + $0x18] sm:$0xff]
        %vm5696 = vcmp.gt.f32.partialorder %v5615, 0.0
        %vm5697 = vcmp.gt.f32.partialorder %v5617, 0.0
        %vm5698 = vcmp.gt.f32.partialorder %v5668, 0.0
        %vm5699 = vcmp.gt.f32.partialorder %v5670, 0.0
        %vm5700 = vcmp.gt.f32.partialorder %v5619, 0.0
        %vm5701 = vcmp.gt.f32.partialorder %v5621, 0.0
        %vm5702 = vcmp.gt.f32.partialorder %v5672, 0.0
        %vm5703 = vcmp.gt.f32.partialorder %v5674, 0.0
        %vm5704 = vcmp.gt.f32.partialorder %v5625, 0.0
        %vm5705 = vcmp.gt.f32.partialorder %v5627, 0.0
        %vm5706 = vcmp.gt.f32.partialorder %v5678, 0.0
        %vm5707 = vcmp.gt.f32.partialorder %v5680, 0.0
        %vm5708 = vcmp.gt.f32.partialorder %v5629, 0.0
        %vm5709 = vcmp.gt.f32.partialorder %v5631, 0.0
        %vm5710 = vcmp.gt.f32.partialorder %v5682, 0.0
        %vm5711 = vcmp.gt.f32.partialorder %v5684, 0.0
        %v5712 = vmul.f32 %v5615, 0.1
        %v5713 = vmul.f32 %v5617, 0.1
        %v5714 = vmul.f32 %v5668, 0.1
        %v5715 = vmul.f32 %v5670, 0.1
        %v5716 = vmul.f32 %v5619, 0.1
        %v5717 = vmul.f32 %v5621, 0.1
        %v5718 = vmul.f32 %v5672, 0.1
        %v5719 = vmul.f32 %v5674, 0.1
        %v5720 = vmul.f32 %v5625, 0.1
        %v5721 = vmul.f32 %v5627, 0.1
        %v5722 = vmul.f32 %v5678, 0.1
        %v5723 = vmul.f32 %v5680, 0.1
        %v5724 = vmul.f32 %v5629, 0.1
        %v5725 = vmul.f32 %v5631, 0.1
        %v5726 = vmul.f32 %v5682, 0.1
        %v5727 = vmul.f32 %v5684, 0.1
        %v5728 = vsel %vm5696, %v5615, %v5712
        %v5729 = vsel %vm5697, %v5617, %v5713
        %v5730 = vsel %vm5698, %v5668, %v5714
        %v5731 = vsel %vm5699, %v5670, %v5715
        %v5732 = vsel %vm5700, %v5619, %v5716
        %v5733 = vsel %vm5701, %v5621, %v5717
        %v5734 = vsel %vm5702, %v5672, %v5718
        %v5735 = vsel %vm5703, %v5674, %v5719
        %v5736 = vsel %vm5704, %v5625, %v5720
        %v5737 = vsel %vm5705, %v5627, %v5721
        %v5738 = vsel %vm5706, %v5678, %v5722
        %v5739 = vsel %vm5707, %v5680, %v5723
        %v5740 = vsel %vm5708, %v5629, %v5724
        %v5741 = vsel %vm5709, %v5631, %v5725
        %v5742 = vsel %vm5710, %v5682, %v5726
        %v5743 = vsel %vm5711, %v5684, %v5727
        %5744 = vrot.lane.b32.xlu0 %v5728, 2
        %v5745 = vpop.permute.xlu0 %5744
        %5746 = vrot.lane.b32.xlu0 %v5732, 2
        %v5747 = vpop.permute.xlu0 %5746
        %5748 = vrot.lane.b32.xlu0 %v5736, 2
        %v5749 = vpop.permute.xlu0 %5748
        %5750 = vrot.lane.b32.xlu0 %v5740, 2
        %v5751 = vpop.permute.xlu0 %5750
        %5752 = vrot.lane.b32.xlu0 %v5729, 2
        %v5753 = vpop.permute.xlu0 %5752
        %5754 = vrot.lane.b32.xlu0 %v5733, 2
        %v5755 = vpop.permute.xlu0 %5754
        %5756 = vrot.lane.b32.xlu0 %v5737, 2
        %v5757 = vpop.permute.xlu0 %5756
        %5758 = vrot.lane.b32.xlu0 %v5741, 2
        %v5759 = vpop.permute.xlu0 %5758
        %5760 = vrot.lane.b32.xlu0 %v5730, 2
        %v5761 = vpop.permute.xlu0 %5760
        %5762 = vrot.lane.b32.xlu0 %v5734, 2
        %v5763 = vpop.permute.xlu0 %5762
        %5764 = vrot.lane.b32.xlu0 %v5738, 2
        %v5765 = vpop.permute.xlu0 %5764
        %5766 = vrot.lane.b32.xlu0 %v5742, 2
        %v5767 = vpop.permute.xlu0 %5766
        %5768 = vrot.lane.b32.xlu0 %v5731, 2
        %v5769 = vpop.permute.xlu0 %5768
        %5770 = vrot.lane.b32.xlu0 %v5735, 2
        %v5771 = vpop.permute.xlu0 %5770
        %5772 = vrot.lane.b32.xlu0 %v5739, 2
        %v5773 = vpop.permute.xlu0 %5772
        %5774 = vrot.lane.b32.xlu0 %v5743, 2
        %v5775 = vpop.permute.xlu0 %5774
        %v5776 = vsel %vm1074, %v5761, %v5769
        %v5777 = vsel %vm1074, %v5763, %v5771
        %v5778 = vsel %vm1074, %v5765, %v5773
        %v5779 = vsel %vm1074, %v5767, %v5775
        %v5780 = vsel %vm1074, %v5753, %v5761
        %v5781 = vsel %vm1074, %v5755, %v5763
        %v5782 = vsel %vm1074, %v5757, %v5765
        %v5783 = vsel %vm1074, %v5759, %v5767
        %v5784 = vsel %vm1074, %v5745, %v5753
        %v5785 = vsel %vm1074, %v5747, %v5755
        %v5786 = vsel %vm1074, %v5749, %v5757
        %v5787 = vsel %vm1074, %v5751, %v5759
        %v5788 = vsel %vm1074, %v5769, %v5745
        %v5789 = vsel %vm1074, %v5771, %v5747
        %v5790 = vsel %vm1074, %v5773, %v5749
        %v5791 = vsel %vm1074, %v5775, %v5751
        %v5792 = vsel %vm1103, %v5788, 0.0
        %v5793 = vsel %vm1104, %v5784, 0.0
        %v5794 = vsel %vm1105, %v5780, 0.0
        %v5795 = vsel %vm1106, %v5776, 0.0
        %v5796 = vsel %vm1103, %v5789, 0.0
        %v5797 = vsel %vm1104, %v5785, 0.0
        %v5798 = vsel %vm1105, %v5781, 0.0
        %v5799 = vsel %vm1106, %v5777, 0.0
        %v5800 = vsel %vm1103, %v5790, 0.0
        %v5801 = vsel %vm1104, %v5786, 0.0
        %v5802 = vsel %vm1105, %v5782, 0.0
        %v5803 = vsel %vm1106, %v5778, 0.0
        %v5804 = vsel %vm1103, %v5791, 0.0
        %v5805 = vsel %vm1104, %v5787, 0.0
        %v5806 = vsel %vm1105, %v5783, 0.0
        %v5807 = vsel %vm1106, %v5779, 0.0
        %v5808 = vpack.c.bf16 %v5796, %v5792
        %v5809 = vpack.c.bf16 %v5797, %v5793
        %v5810 = vpack.c.bf16 %v5798, %v5794
        %v5811 = vpack.c.bf16 %v5799, %v5795
        %v5812 = vpack.c.bf16 %v5804, %v5800
        %v5813 = vpack.c.bf16 %v5805, %v5801
        %v5814 = vpack.c.bf16 %v5806, %v5802
        %v5815 = vpack.c.bf16 %v5807, %v5803
        %v5824 = vunpack.c.l.b16 %v5808
        %v5825 = vunpack.c.l.b16 %v5809
        %v5826 = vunpack.c.l.b16 %v5810
        %v5827 = vunpack.c.l.b16 %v5811
        %v5828 = vunpack.c.h.b16 %v5808
        %v5829 = vunpack.c.h.b16 %v5809
        %v5830 = vunpack.c.h.b16 %v5810
        %v5831 = vunpack.c.h.b16 %v5811
        %v5832 = vunpack.c.l.b16 %v5812
        %v5833 = vunpack.c.l.b16 %v5813
        %v5834 = vunpack.c.l.b16 %v5814
        %v5835 = vunpack.c.l.b16 %v5815
        %v5836 = vunpack.c.h.b16 %v5812
        %v5837 = vunpack.c.h.b16 %v5813
        %v5838 = vunpack.c.h.b16 %v5814
        %v5839 = vunpack.c.h.b16 %v5815
        %v5840 = vpack.c.b16 %v5825, %v5824
        %v5841 = vpack.c.b16 %v5827, %v5826
        %v5842 = vpack.c.b16 %v5829, %v5828
        %v5843 = vpack.c.b16 %v5831, %v5830
        %v5844 = vpack.c.b16 %v5833, %v5832
        %v5845 = vpack.c.b16 %v5835, %v5834
        %v5846 = vpack.c.b16 %v5837, %v5836
        %v5847 = vpack.c.b16 %v5839, %v5838
        %5856 = vst [vmem:[#allocation2] sm:$0xff] %v5840
        %5857 = vst [vmem:[#allocation2 + $0x8] sm:$0xff] %v5841
        %5858 = vst [vmem:[#allocation2 + $0x10] sm:$0xff] %v5842
        %5859 = vst [vmem:[#allocation2 + $0x18] sm:$0xff] %v5843
        %5860 = vst [vmem:[#allocation2 + $0x20] sm:$0xff] %v5844
        %5861 = vst [vmem:[#allocation2 + $0x28] sm:$0xff] %v5845
        %5862 = vst [vmem:[#allocation2 + $0x30] sm:$0xff] %v5846
        %5863 = vst [vmem:[#allocation2 + $0x38] sm:$0xff] %v5847
        %5864 = vrot.lane.b32.xlu0 %v5728, 1
        %v5865 = vpop.permute.xlu0 %5864
        %5866 = vrot.lane.b32.xlu0 %v5732, 1
        %v5867 = vpop.permute.xlu0 %5866
        %5868 = vrot.lane.b32.xlu0 %v5736, 1
        %v5869 = vpop.permute.xlu0 %5868
        %5870 = vrot.lane.b32.xlu0 %v5740, 1
        %v5871 = vpop.permute.xlu0 %5870
        %5872 = vrot.lane.b32.xlu0 %v5729, 1
        %v5873 = vpop.permute.xlu0 %5872
        %5874 = vrot.lane.b32.xlu0 %v5733, 1
        %v5875 = vpop.permute.xlu0 %5874
        %5876 = vrot.lane.b32.xlu0 %v5737, 1
        %v5877 = vpop.permute.xlu0 %5876
        %5878 = vrot.lane.b32.xlu0 %v5741, 1
        %v5879 = vpop.permute.xlu0 %5878
        %5880 = vrot.lane.b32.xlu0 %v5730, 1
        %v5881 = vpop.permute.xlu0 %5880
        %5882 = vrot.lane.b32.xlu0 %v5734, 1
        %v5883 = vpop.permute.xlu0 %5882
        %5884 = vrot.lane.b32.xlu0 %v5738, 1
        %v5885 = vpop.permute.xlu0 %5884
        %5886 = vrot.lane.b32.xlu0 %v5742, 1
        %v5887 = vpop.permute.xlu0 %5886
        %5888 = vrot.lane.b32.xlu0 %v5731, 1
        %v5889 = vpop.permute.xlu0 %5888
        %5890 = vrot.lane.b32.xlu0 %v5735, 1
        %v5891 = vpop.permute.xlu0 %5890
        %5892 = vrot.lane.b32.xlu0 %v5739, 1
        %v5893 = vpop.permute.xlu0 %5892
        %5894 = vrot.lane.b32.xlu0 %v5743, 1
        %v5895 = vpop.permute.xlu0 %5894
        %v5896 = vsel %vm391, %v5881, %v5889
        %v5897 = vsel %vm391, %v5883, %v5891
        %v5898 = vsel %vm391, %v5885, %v5893
        %v5899 = vsel %vm391, %v5887, %v5895
        %v5900 = vsel %vm391, %v5873, %v5881
        %v5901 = vsel %vm391, %v5875, %v5883
        %v5902 = vsel %vm391, %v5877, %v5885
        %v5903 = vsel %vm391, %v5879, %v5887
        %v5904 = vsel %vm391, %v5865, %v5873
        %v5905 = vsel %vm391, %v5867, %v5875
        %v5906 = vsel %vm391, %v5869, %v5877
        %v5907 = vsel %vm391, %v5871, %v5879
        %v5908 = vsel %vm391, %v5889, %v5865
        %v5909 = vsel %vm391, %v5891, %v5867
        %v5910 = vsel %vm391, %v5893, %v5869
        %v5911 = vsel %vm391, %v5895, %v5871
        %v5912 = vsel %vm424, %v5908, 0.0
        %v5913 = vsel %vm425, %v5904, 0.0
        %v5914 = vsel %vm426, %v5900, 0.0
        %v5915 = vsel %vm427, %v5896, 0.0
        %v5916 = vsel %vm424, %v5909, 0.0
        %v5917 = vsel %vm425, %v5905, 0.0
        %v5918 = vsel %vm426, %v5901, 0.0
        %v5919 = vsel %vm427, %v5897, 0.0
        %v5920 = vsel %vm424, %v5910, 0.0
        %v5921 = vsel %vm425, %v5906, 0.0
        %v5922 = vsel %vm426, %v5902, 0.0
        %v5923 = vsel %vm427, %v5898, 0.0
        %v5924 = vsel %vm424, %v5911, 0.0
        %v5925 = vsel %vm425, %v5907, 0.0
        %v5926 = vsel %vm426, %v5903, 0.0
        %v5927 = vsel %vm427, %v5899, 0.0
        %v5928 = vpack.c.bf16 %v5916, %v5912
        %v5929 = vpack.c.bf16 %v5917, %v5913
        %v5930 = vpack.c.bf16 %v5918, %v5914
        %v5931 = vpack.c.bf16 %v5919, %v5915
        %v5932 = vpack.c.bf16 %v5924, %v5920
        %v5933 = vpack.c.bf16 %v5925, %v5921
        %v5934 = vpack.c.bf16 %v5926, %v5922
        %v5935 = vpack.c.bf16 %v5927, %v5923
        %v5944 = vunpack.c.l.b16 %v5928
        %v5945 = vunpack.c.l.b16 %v5929
        %v5946 = vunpack.c.l.b16 %v5930
        %v5947 = vunpack.c.l.b16 %v5931
        %v5948 = vunpack.c.h.b16 %v5928
        %v5949 = vunpack.c.h.b16 %v5929
        %v5950 = vunpack.c.h.b16 %v5930
        %v5951 = vunpack.c.h.b16 %v5931
        %v5952 = vunpack.c.l.b16 %v5932
        %v5953 = vunpack.c.l.b16 %v5933
        %v5954 = vunpack.c.l.b16 %v5934
        %v5955 = vunpack.c.l.b16 %v5935
        %v5956 = vunpack.c.h.b16 %v5932
        %v5957 = vunpack.c.h.b16 %v5933
        %v5958 = vunpack.c.h.b16 %v5934
        %v5959 = vunpack.c.h.b16 %v5935
        %v5960 = vpack.c.b16 %v5945, %v5944
        %v5961 = vpack.c.b16 %v5947, %v5946
        %v5962 = vpack.c.b16 %v5949, %v5948
        %v5963 = vpack.c.b16 %v5951, %v5950
        %v5964 = vpack.c.b16 %v5953, %v5952
        %v5965 = vpack.c.b16 %v5955, %v5954
        %v5966 = vpack.c.b16 %v5957, %v5956
        %v5967 = vpack.c.b16 %v5959, %v5958
        %5976 = vst [vmem:[#allocation2 + $0x40] sm:$0xff] %v5960
        %5977 = vst [vmem:[#allocation2 + $0x48] sm:$0xff] %v5961
        %5978 = vst [vmem:[#allocation2 + $0x50] sm:$0xff] %v5962
        %5979 = vst [vmem:[#allocation2 + $0x58] sm:$0xff] %v5963
        %5980 = vst [vmem:[#allocation2 + $0x60] sm:$0xff] %v5964
        %5981 = vst [vmem:[#allocation2 + $0x68] sm:$0xff] %v5965
        %5982 = vst [vmem:[#allocation2 + $0x70] sm:$0xff] %v5966
        %5983 = vst [vmem:[#allocation2 + $0x78] sm:$0xff] %v5967
        %v5984 = vpack.c.bf16 %v5732, %v5728
        %v5985 = vpack.c.bf16 %v5733, %v5729
        %v5986 = vpack.c.bf16 %v5734, %v5730
        %v5987 = vpack.c.bf16 %v5735, %v5731
        %v5988 = vpack.c.bf16 %v5740, %v5736
        %v5989 = vpack.c.bf16 %v5741, %v5737
        %v5990 = vpack.c.bf16 %v5742, %v5738
        %v5991 = vpack.c.bf16 %v5743, %v5739
        %v6000 = vunpack.c.l.b16 %v5984
        %v6001 = vunpack.c.l.b16 %v5985
        %v6002 = vunpack.c.l.b16 %v5986
        %v6003 = vunpack.c.l.b16 %v5987
        %v6004 = vunpack.c.h.b16 %v5984
        %v6005 = vunpack.c.h.b16 %v5985
        %v6006 = vunpack.c.h.b16 %v5986
        %v6007 = vunpack.c.h.b16 %v5987
        %v6008 = vunpack.c.l.b16 %v5988
        %v6009 = vunpack.c.l.b16 %v5989
        %v6010 = vunpack.c.l.b16 %v5990
        %v6011 = vunpack.c.l.b16 %v5991
        %v6012 = vunpack.c.h.b16 %v5988
        %v6013 = vunpack.c.h.b16 %v5989
        %v6014 = vunpack.c.h.b16 %v5990
        %v6015 = vunpack.c.h.b16 %v5991
        %v6016 = vpack.c.b16 %v6001, %v6000
        %v6017 = vpack.c.b16 %v6003, %v6002
        %v6018 = vpack.c.b16 %v6005, %v6004
        %v6019 = vpack.c.b16 %v6007, %v6006
        %v6020 = vpack.c.b16 %v6009, %v6008
        %v6021 = vpack.c.b16 %v6011, %v6010
        %v6022 = vpack.c.b16 %v6013, %v6012
        %v6023 = vpack.c.b16 %v6015, %v6014
        %6032 = vst [vmem:[#allocation2 + $0x80] sm:$0xff] %v6016
        %6033 = vst [vmem:[#allocation2 + $0x88] sm:$0xff] %v6017
        %6034 = vst [vmem:[#allocation2 + $0x90] sm:$0xff] %v6018
        %6035 = vst [vmem:[#allocation2 + $0x98] sm:$0xff] %v6019
        %6036 = vst [vmem:[#allocation2 + $0xa0] sm:$0xff] %v6020
        %6037 = vst [vmem:[#allocation2 + $0xa8] sm:$0xff] %v6021
        %6038 = vst [vmem:[#allocation2 + $0xb0] sm:$0xff] %v6022
        %6039 = vst [vmem:[#allocation2 + $0xb8] sm:$0xff] %v6023
        %6040 = vrot.lane.b32.xlu0 %v5728, 127
        %v6041 = vpop.permute.xlu0 %6040
        %6042 = vrot.lane.b32.xlu0 %v5732, 127
        %v6043 = vpop.permute.xlu0 %6042
        %6044 = vrot.lane.b32.xlu0 %v5736, 127
        %v6045 = vpop.permute.xlu0 %6044
        %6046 = vrot.lane.b32.xlu0 %v5740, 127
        %v6047 = vpop.permute.xlu0 %6046
        %6048 = vrot.lane.b32.xlu0 %v5729, 127
        %v6049 = vpop.permute.xlu0 %6048
        %6050 = vrot.lane.b32.xlu0 %v5733, 127
        %v6051 = vpop.permute.xlu0 %6050
        %6052 = vrot.lane.b32.xlu0 %v5737, 127
        %v6053 = vpop.permute.xlu0 %6052
        %6054 = vrot.lane.b32.xlu0 %v5741, 127
        %v6055 = vpop.permute.xlu0 %6054
        %6056 = vrot.lane.b32.xlu0 %v5730, 127
        %v6057 = vpop.permute.xlu0 %6056
        %6058 = vrot.lane.b32.xlu0 %v5734, 127
        %v6059 = vpop.permute.xlu0 %6058
        %6060 = vrot.lane.b32.xlu0 %v5738, 127
        %v6061 = vpop.permute.xlu0 %6060
        %6062 = vrot.lane.b32.xlu0 %v5742, 127
        %v6063 = vpop.permute.xlu0 %6062
        %6064 = vrot.lane.b32.xlu0 %v5731, 127
        %v6065 = vpop.permute.xlu0 %6064
        %6066 = vrot.lane.b32.xlu0 %v5735, 127
        %v6067 = vpop.permute.xlu0 %6066
        %6068 = vrot.lane.b32.xlu0 %v5739, 127
        %v6069 = vpop.permute.xlu0 %6068
        %6070 = vrot.lane.b32.xlu0 %v5743, 127
        %v6071 = vpop.permute.xlu0 %6070
        %v6072 = vsel %vm588, %v6057, %v6065
        %v6073 = vsel %vm588, %v6059, %v6067
        %v6074 = vsel %vm588, %v6061, %v6069
        %v6075 = vsel %vm588, %v6063, %v6071
        %v6076 = vsel %vm588, %v6049, %v6057
        %v6077 = vsel %vm588, %v6051, %v6059
        %v6078 = vsel %vm588, %v6053, %v6061
        %v6079 = vsel %vm588, %v6055, %v6063
        %v6080 = vsel %vm588, %v6041, %v6049
        %v6081 = vsel %vm588, %v6043, %v6051
        %v6082 = vsel %vm588, %v6045, %v6053
        %v6083 = vsel %vm588, %v6047, %v6055
        %v6084 = vsel %vm588, %v6065, %v6041
        %v6085 = vsel %vm588, %v6067, %v6043
        %v6086 = vsel %vm588, %v6069, %v6045
        %v6087 = vsel %vm588, %v6071, %v6047
        %v6088 = vsel %vm621, %v6080, 0.0
        %v6089 = vsel %vm622, %v6076, 0.0
        %v6090 = vsel %vm623, %v6072, 0.0
        %v6091 = vsel %vm624, %v6084, 0.0
        %v6092 = vsel %vm621, %v6081, 0.0
        %v6093 = vsel %vm622, %v6077, 0.0
        %v6094 = vsel %vm623, %v6073, 0.0
        %v6095 = vsel %vm624, %v6085, 0.0
        %v6096 = vsel %vm621, %v6082, 0.0
        %v6097 = vsel %vm622, %v6078, 0.0
        %v6098 = vsel %vm623, %v6074, 0.0
        %v6099 = vsel %vm624, %v6086, 0.0
        %v6100 = vsel %vm621, %v6083, 0.0
        %v6101 = vsel %vm622, %v6079, 0.0
        %v6102 = vsel %vm623, %v6075, 0.0
        %v6103 = vsel %vm624, %v6087, 0.0
        %v6104 = vpack.c.bf16 %v6092, %v6088
        %v6105 = vpack.c.bf16 %v6093, %v6089
        %v6106 = vpack.c.bf16 %v6094, %v6090
        %v6107 = vpack.c.bf16 %v6095, %v6091
        %v6108 = vpack.c.bf16 %v6100, %v6096
        %v6109 = vpack.c.bf16 %v6101, %v6097
        %v6110 = vpack.c.bf16 %v6102, %v6098
        %v6111 = vpack.c.bf16 %v6103, %v6099
        %v6120 = vunpack.c.l.b16 %v6104
        %v6121 = vunpack.c.l.b16 %v6105
        %v6122 = vunpack.c.l.b16 %v6106
        %v6123 = vunpack.c.l.b16 %v6107
        %v6124 = vunpack.c.h.b16 %v6104
        %v6125 = vunpack.c.h.b16 %v6105
        %v6126 = vunpack.c.h.b16 %v6106
        %v6127 = vunpack.c.h.b16 %v6107
        %v6128 = vunpack.c.l.b16 %v6108
        %v6129 = vunpack.c.l.b16 %v6109
        %v6130 = vunpack.c.l.b16 %v6110
        %v6131 = vunpack.c.l.b16 %v6111
        %v6132 = vunpack.c.h.b16 %v6108
        %v6133 = vunpack.c.h.b16 %v6109
        %v6134 = vunpack.c.h.b16 %v6110
        %v6135 = vunpack.c.h.b16 %v6111
        %v6136 = vpack.c.b16 %v6121, %v6120
        %v6137 = vpack.c.b16 %v6123, %v6122
        %v6138 = vpack.c.b16 %v6125, %v6124
        %v6139 = vpack.c.b16 %v6127, %v6126
        %v6140 = vpack.c.b16 %v6129, %v6128
        %v6141 = vpack.c.b16 %v6131, %v6130
        %v6142 = vpack.c.b16 %v6133, %v6132
        %v6143 = vpack.c.b16 %v6135, %v6134
        %6152 = vst [vmem:[#allocation2 + $0xc0] sm:$0xff] %v6136
        %6153 = vst [vmem:[#allocation2 + $0xc8] sm:$0xff] %v6137
        %6154 = vst [vmem:[#allocation2 + $0xd0] sm:$0xff] %v6138
        %6155 = vst [vmem:[#allocation2 + $0xd8] sm:$0xff] %v6139
        %6156 = vst [vmem:[#allocation2 + $0xe0] sm:$0xff] %v6140
        %6157 = vst [vmem:[#allocation2 + $0xe8] sm:$0xff] %v6141
        %6158 = vst [vmem:[#allocation2 + $0xf0] sm:$0xff] %v6142
        %6159 = vst [vmem:[#allocation2 + $0xf8] sm:$0xff] %v6143
        %6160 = vrot.lane.b32.xlu0 %v5728, 126
        %v6161 = vpop.permute.xlu0 %6160
        %6162 = vrot.lane.b32.xlu0 %v5732, 126
        %v6163 = vpop.permute.xlu0 %6162
        %6164 = vrot.lane.b32.xlu0 %v5736, 126
        %v6165 = vpop.permute.xlu0 %6164
        %6166 = vrot.lane.b32.xlu0 %v5740, 126
        %v6167 = vpop.permute.xlu0 %6166
        %6168 = vrot.lane.b32.xlu0 %v5729, 126
        %v6169 = vpop.permute.xlu0 %6168
        %6170 = vrot.lane.b32.xlu0 %v5733, 126
        %v6171 = vpop.permute.xlu0 %6170
        %6172 = vrot.lane.b32.xlu0 %v5737, 126
        %v6173 = vpop.permute.xlu0 %6172
        %6174 = vrot.lane.b32.xlu0 %v5741, 126
        %v6175 = vpop.permute.xlu0 %6174
        %6176 = vrot.lane.b32.xlu0 %v5730, 126
        %v6177 = vpop.permute.xlu0 %6176
        %6178 = vrot.lane.b32.xlu0 %v5734, 126
        %v6179 = vpop.permute.xlu0 %6178
        %6180 = vrot.lane.b32.xlu0 %v5738, 126
        %v6181 = vpop.permute.xlu0 %6180
        %6182 = vrot.lane.b32.xlu0 %v5742, 126
        %v6183 = vpop.permute.xlu0 %6182
        %6184 = vrot.lane.b32.xlu0 %v5731, 126
        %v6185 = vpop.permute.xlu0 %6184
        %6186 = vrot.lane.b32.xlu0 %v5735, 126
        %v6187 = vpop.permute.xlu0 %6186
        %6188 = vrot.lane.b32.xlu0 %v5739, 126
        %v6189 = vpop.permute.xlu0 %6188
        %6190 = vrot.lane.b32.xlu0 %v5743, 126
        %v6191 = vpop.permute.xlu0 %6190
        %v6192 = vsel %vm1267, %v6177, %v6185
        %v6193 = vsel %vm1267, %v6179, %v6187
        %v6194 = vsel %vm1267, %v6181, %v6189
        %v6195 = vsel %vm1267, %v6183, %v6191
        %v6196 = vsel %vm1267, %v6169, %v6177
        %v6197 = vsel %vm1267, %v6171, %v6179
        %v6198 = vsel %vm1267, %v6173, %v6181
        %v6199 = vsel %vm1267, %v6175, %v6183
        %v6200 = vsel %vm1267, %v6161, %v6169
        %v6201 = vsel %vm1267, %v6163, %v6171
        %v6202 = vsel %vm1267, %v6165, %v6173
        %v6203 = vsel %vm1267, %v6167, %v6175
        %v6204 = vsel %vm1267, %v6185, %v6161
        %v6205 = vsel %vm1267, %v6187, %v6163
        %v6206 = vsel %vm1267, %v6189, %v6165
        %v6207 = vsel %vm1267, %v6191, %v6167
        %v6208 = vsel %vm1296, %v6200, 0.0
        %v6209 = vsel %vm1297, %v6196, 0.0
        %v6210 = vsel %vm1298, %v6192, 0.0
        %v6211 = vsel %vm1299, %v6204, 0.0
        %v6212 = vsel %vm1296, %v6201, 0.0
        %v6213 = vsel %vm1297, %v6197, 0.0
        %v6214 = vsel %vm1298, %v6193, 0.0
        %v6215 = vsel %vm1299, %v6205, 0.0
        %v6216 = vsel %vm1296, %v6202, 0.0
        %v6217 = vsel %vm1297, %v6198, 0.0
        %v6218 = vsel %vm1298, %v6194, 0.0
        %v6219 = vsel %vm1299, %v6206, 0.0
        %v6220 = vsel %vm1296, %v6203, 0.0
        %v6221 = vsel %vm1297, %v6199, 0.0
        %v6222 = vsel %vm1298, %v6195, 0.0
        %v6223 = vsel %vm1299, %v6207, 0.0
        %v6224 = vpack.c.bf16 %v6212, %v6208
        %v6225 = vpack.c.bf16 %v6213, %v6209
        %v6226 = vpack.c.bf16 %v6214, %v6210
        %v6227 = vpack.c.bf16 %v6215, %v6211
        %v6228 = vpack.c.bf16 %v6220, %v6216
        %v6229 = vpack.c.bf16 %v6221, %v6217
        %v6230 = vpack.c.bf16 %v6222, %v6218
        %v6231 = vpack.c.bf16 %v6223, %v6219
        %v6240 = vunpack.c.l.b16 %v6224
        %v6241 = vunpack.c.l.b16 %v6225
        %v6242 = vunpack.c.l.b16 %v6226
        %v6243 = vunpack.c.l.b16 %v6227
        %v6244 = vunpack.c.h.b16 %v6224
        %v6245 = vunpack.c.h.b16 %v6225
        %v6246 = vunpack.c.h.b16 %v6226
        %v6247 = vunpack.c.h.b16 %v6227
        %v6248 = vunpack.c.l.b16 %v6228
        %v6249 = vunpack.c.l.b16 %v6229
        %v6250 = vunpack.c.l.b16 %v6230
        %v6251 = vunpack.c.l.b16 %v6231
        %v6252 = vunpack.c.h.b16 %v6228
        %v6253 = vunpack.c.h.b16 %v6229
        %v6254 = vunpack.c.h.b16 %v6230
        %v6255 = vunpack.c.h.b16 %v6231
        %v6256 = vpack.c.b16 %v6241, %v6240
        %v6257 = vpack.c.b16 %v6243, %v6242
        %v6258 = vpack.c.b16 %v6245, %v6244
        %v6259 = vpack.c.b16 %v6247, %v6246
        %v6260 = vpack.c.b16 %v6249, %v6248
        %v6261 = vpack.c.b16 %v6251, %v6250
        %v6262 = vpack.c.b16 %v6253, %v6252
        %v6263 = vpack.c.b16 %v6255, %v6254
        %6272 = vst [vmem:[#allocation2 + $0x100] sm:$0xff] %v6256
        %6273 = vst [vmem:[#allocation2 + $0x108] sm:$0xff] %v6257
        %6274 = vst [vmem:[#allocation2 + $0x110] sm:$0xff] %v6258
        %6275 = vst [vmem:[#allocation2 + $0x118] sm:$0xff] %v6259
        %6276 = vst [vmem:[#allocation2 + $0x120] sm:$0xff] %v6260
        %6277 = vst [vmem:[#allocation2 + $0x128] sm:$0xff] %v6261
        %6278 = vst [vmem:[#allocation2 + $0x130] sm:$0xff] %v6262
        %6279 = vst [vmem:[#allocation2 + $0x138] sm:$0xff] %v6263
        %v6280 = vld [vmem:[#allocation2] sm:$0xff]
        %v6281 = vld [vmem:[#allocation2 + $0x8] sm:$0xff]
        %v6282 = vld [vmem:[#allocation2 + $0x10] sm:$0xff]
        %v6283 = vld [vmem:[#allocation2 + $0x18] sm:$0xff]
        %v6284 = vld [vmem:[#allocation2 + $0x20] sm:$0xff]
        %v6285 = vld [vmem:[#allocation2 + $0x28] sm:$0xff]
        %v6286 = vld [vmem:[#allocation2 + $0x30] sm:$0xff]
        %v6287 = vld [vmem:[#allocation2 + $0x38] sm:$0xff]
        %v6288 = vld [vmem:[#allocation2 + $0x40] sm:$0xff]
        %v6289 = vld [vmem:[#allocation2 + $0x48] sm:$0xff]
        %v6290 = vld [vmem:[#allocation2 + $0x50] sm:$0xff]
        %v6291 = vld [vmem:[#allocation2 + $0x58] sm:$0xff]
        %v6292 = vld [vmem:[#allocation2 + $0x60] sm:$0xff]
        %v6293 = vld [vmem:[#allocation2 + $0x68] sm:$0xff]
        %v6294 = vld [vmem:[#allocation2 + $0x70] sm:$0xff]
        %v6295 = vld [vmem:[#allocation2 + $0x78] sm:$0xff]
        %v6296 = vld [vmem:[#allocation2 + $0x80] sm:$0xff]
        %v6297 = vld [vmem:[#allocation2 + $0x88] sm:$0xff]
        %v6298 = vld [vmem:[#allocation2 + $0x90] sm:$0xff]
        %v6299 = vld [vmem:[#allocation2 + $0x98] sm:$0xff]
        %v6300 = vld [vmem:[#allocation2 + $0xa0] sm:$0xff]
        %v6301 = vld [vmem:[#allocation2 + $0xa8] sm:$0xff]
        %v6302 = vld [vmem:[#allocation2 + $0xb0] sm:$0xff]
        %v6303 = vld [vmem:[#allocation2 + $0xb8] sm:$0xff]
        %v6304 = vld [vmem:[#allocation2 + $0xc0] sm:$0xff]
        %v6305 = vld [vmem:[#allocation2 + $0xc8] sm:$0xff]
        %v6306 = vld [vmem:[#allocation2 + $0xd0] sm:$0xff]
        %v6307 = vld [vmem:[#allocation2 + $0xd8] sm:$0xff]
        %v6308 = vld [vmem:[#allocation2 + $0xe0] sm:$0xff]
        %v6309 = vld [vmem:[#allocation2 + $0xe8] sm:$0xff]
        %v6310 = vld [vmem:[#allocation2 + $0xf0] sm:$0xff]
        %v6311 = vld [vmem:[#allocation2 + $0xf8] sm:$0xff]
        %v6312 = vld [vmem:[#allocation2 + $0x100] sm:$0xff]
        %v6313 = vld [vmem:[#allocation2 + $0x108] sm:$0xff]
        %v6314 = vld [vmem:[#allocation2 + $0x110] sm:$0xff]
        %v6315 = vld [vmem:[#allocation2 + $0x118] sm:$0xff]
        %v6316 = vld [vmem:[#allocation2 + $0x120] sm:$0xff]
        %v6317 = vld [vmem:[#allocation2 + $0x128] sm:$0xff]
        %v6318 = vld [vmem:[#allocation2 + $0x130] sm:$0xff]
        %v6319 = vld [vmem:[#allocation2 + $0x138] sm:$0xff]
        %6321 = vset.pattern.permute.xlu0 0
        %6322 = vperm.xlu0 %6321, %v5692
        %v6323 = vpop.permute.xlu0 %6322
        %6326 = vset.pattern.permute.xlu0 0
        %6327 = vperm.xlu0 %6326, %v5693
        %v6328 = vpop.permute.xlu0 %6327
        %6331 = vset.pattern.permute.xlu0 0
        %6332 = vperm.xlu0 %6331, %v5694
        %v6333 = vpop.permute.xlu0 %6332
        %6336 = vset.pattern.permute.xlu0 0
        %6337 = vperm.xlu0 %6336, %v5695
        %v6338 = vpop.permute.xlu0 %6337
        %v6344 = vunpack.c.l.b16 %v5687
        %v6345 = vunpack.c.h.b16 %v5687
        %v6346 = vunpack.c.l.b16 %v5688
        %v6347 = vunpack.c.h.b16 %v5688
        %v6348 = vunpack.c.l.b16 %v5689
        %v6349 = vunpack.c.h.b16 %v5689
        %v6350 = vunpack.c.l.b16 %v5690
        %v6351 = vunpack.c.h.b16 %v5690
        %v6352 = vpack.c.b16 %v6346, %v6344
        %v6353 = vpack.c.b16 %v6347, %v6345
        %v6354 = vpack.c.b16 %v6350, %v6348
        %v6355 = vpack.c.b16 %v6351, %v6349
        %v6398 = vunpack.c.l.b16 %v6280
        %v6399 = vunpack.c.h.b16 %v6280
        %v6400 = vunpack.c.l.b16 %v6281
        %v6401 = vunpack.c.h.b16 %v6281
        %v6402 = vunpack.c.l.b16 %v6282
        %v6403 = vunpack.c.h.b16 %v6282
        %v6404 = vunpack.c.l.b16 %v6283
        %v6405 = vunpack.c.h.b16 %v6283
        %v6406 = vunpack.c.l.b16 %v6284
        %v6407 = vunpack.c.h.b16 %v6284
        %v6408 = vunpack.c.l.b16 %v6285
        %v6409 = vunpack.c.h.b16 %v6285
        %v6410 = vunpack.c.l.b16 %v6286
        %v6411 = vunpack.c.h.b16 %v6286
        %v6412 = vunpack.c.l.b16 %v6287
        %v6413 = vunpack.c.h.b16 %v6287
        %v6414 = vunpack.c.l.b16 %v6288
        %v6415 = vunpack.c.h.b16 %v6288
        %v6416 = vunpack.c.l.b16 %v6289
        %v6417 = vunpack.c.h.b16 %v6289
        %v6418 = vunpack.c.l.b16 %v6290
        %v6419 = vunpack.c.h.b16 %v6290
        %v6420 = vunpack.c.l.b16 %v6291
        %v6421 = vunpack.c.h.b16 %v6291
        %v6422 = vunpack.c.l.b16 %v6292
        %v6423 = vunpack.c.h.b16 %v6292
        %v6424 = vunpack.c.l.b16 %v6293
        %v6425 = vunpack.c.h.b16 %v6293
        %v6426 = vunpack.c.l.b16 %v6294
        %v6427 = vunpack.c.h.b16 %v6294
        %v6428 = vunpack.c.l.b16 %v6295
        %v6429 = vunpack.c.h.b16 %v6295
        %v6430 = vunpack.c.l.b16 %v6296
        %v6431 = vunpack.c.h.b16 %v6296
        %v6432 = vunpack.c.l.b16 %v6297
        %v6433 = vunpack.c.h.b16 %v6297
        %v6434 = vunpack.c.l.b16 %v6298
        %v6435 = vunpack.c.h.b16 %v6298
        %v6436 = vunpack.c.l.b16 %v6299
        %v6437 = vunpack.c.h.b16 %v6299
        %v6438 = vunpack.c.l.b16 %v6300
        %v6439 = vunpack.c.h.b16 %v6300
        %v6440 = vunpack.c.l.b16 %v6301
        %v6441 = vunpack.c.h.b16 %v6301
        %v6442 = vunpack.c.l.b16 %v6302
        %v6443 = vunpack.c.h.b16 %v6302
        %v6444 = vunpack.c.l.b16 %v6303
        %v6445 = vunpack.c.h.b16 %v6303
        %v6446 = vunpack.c.l.b16 %v6304
        %v6447 = vunpack.c.h.b16 %v6304
        %v6448 = vunpack.c.l.b16 %v6305
        %v6449 = vunpack.c.h.b16 %v6305
        %v6450 = vunpack.c.l.b16 %v6306
        %v6451 = vunpack.c.h.b16 %v6306
        %v6452 = vunpack.c.l.b16 %v6307
        %v6453 = vunpack.c.h.b16 %v6307
        %v6454 = vunpack.c.l.b16 %v6308
        %v6455 = vunpack.c.h.b16 %v6308
        %v6456 = vunpack.c.l.b16 %v6309
        %v6457 = vunpack.c.h.b16 %v6309
        %v6458 = vunpack.c.l.b16 %v6310
        %v6459 = vunpack.c.h.b16 %v6310
        %v6460 = vunpack.c.l.b16 %v6311
        %v6461 = vunpack.c.h.b16 %v6311
        %v6462 = vunpack.c.l.b16 %v6312
        %v6463 = vunpack.c.h.b16 %v6312
        %v6464 = vunpack.c.l.b16 %v6313
        %v6465 = vunpack.c.h.b16 %v6313
        %v6466 = vunpack.c.l.b16 %v6314
        %v6467 = vunpack.c.h.b16 %v6314
        %v6468 = vunpack.c.l.b16 %v6315
        %v6469 = vunpack.c.h.b16 %v6315
        %v6470 = vunpack.c.l.b16 %v6316
        %v6471 = vunpack.c.h.b16 %v6316
        %v6472 = vunpack.c.l.b16 %v6317
        %v6473 = vunpack.c.h.b16 %v6317
        %v6474 = vunpack.c.l.b16 %v6318
        %v6475 = vunpack.c.h.b16 %v6318
        %v6476 = vunpack.c.l.b16 %v6319
        %v6477 = vunpack.c.h.b16 %v6319
        %v6478 = vpack.c.b16 %v6402, %v6398
        %v6479 = vpack.c.b16 %v6403, %v6399
        %v6480 = vpack.c.b16 %v6404, %v6400
        %v6481 = vpack.c.b16 %v6405, %v6401
        %v6482 = vpack.c.b16 %v6410, %v6406
        %v6483 = vpack.c.b16 %v6411, %v6407
        %v6484 = vpack.c.b16 %v6412, %v6408
        %v6485 = vpack.c.b16 %v6413, %v6409
        %v6486 = vpack.c.b16 %v6418, %v6414
        %v6487 = vpack.c.b16 %v6419, %v6415
        %v6488 = vpack.c.b16 %v6420, %v6416
        %v6489 = vpack.c.b16 %v6421, %v6417
        %v6490 = vpack.c.b16 %v6426, %v6422
        %v6491 = vpack.c.b16 %v6427, %v6423
        %v6492 = vpack.c.b16 %v6428, %v6424
        %v6493 = vpack.c.b16 %v6429, %v6425
        %v6494 = vpack.c.b16 %v6434, %v6430
        %v6495 = vpack.c.b16 %v6435, %v6431
        %v6496 = vpack.c.b16 %v6436, %v6432
        %v6497 = vpack.c.b16 %v6437, %v6433
        %v6498 = vpack.c.b16 %v6442, %v6438
        %v6499 = vpack.c.b16 %v6443, %v6439
        %v6500 = vpack.c.b16 %v6444, %v6440
        %v6501 = vpack.c.b16 %v6445, %v6441
        %v6502 = vpack.c.b16 %v6450, %v6446
        %v6503 = vpack.c.b16 %v6451, %v6447
        %v6504 = vpack.c.b16 %v6452, %v6448
        %v6505 = vpack.c.b16 %v6453, %v6449
        %v6506 = vpack.c.b16 %v6458, %v6454
        %v6507 = vpack.c.b16 %v6459, %v6455
        %v6508 = vpack.c.b16 %v6460, %v6456
        %v6509 = vpack.c.b16 %v6461, %v6457
        %v6510 = vpack.c.b16 %v6466, %v6462
        %v6511 = vpack.c.b16 %v6467, %v6463
        %v6512 = vpack.c.b16 %v6468, %v6464
        %v6513 = vpack.c.b16 %v6469, %v6465
        %v6514 = vpack.c.b16 %v6474, %v6470
        %v6515 = vpack.c.b16 %v6475, %v6471
        %v6516 = vpack.c.b16 %v6476, %v6472
        %v6517 = vpack.c.b16 %v6477, %v6473
        %v6559 = vsel %vm3555, %v6353, 0
        %v6562 = vsel %vm3555, %v6355, 0
        %6564 = vmatprep.subr.bf16.mxu0 %v6507
        %6565 = vmatpush1.bf16.msra.mxu0 %v6506
        %6566 = vmatprep.subr.bf16.mxu0 %v6503
        %6567 = vmatpush1.bf16.msra.mxu0 %v6502
        %6568 = vmatprep.subr.bf16.mxu0 %v6499
        %6569 = vmatpush1.bf16.msra.mxu0 %v6498
        %6570 = vmatprep.subr.bf16.mxu0 %v6495
        %6571 = vmatpush1.bf16.msra.mxu0 %v6494
        %6572 = vmatprep.subr.bf16.mxu0 %v6491
        %6573 = vmatpush1.bf16.msra.mxu0 %v6490
        %6574 = vmatprep.subr.bf16.mxu0 %v6487
        %6575 = vmatpush1.bf16.msra.mxu0 %v6486
        %6576 = vmatprep.subr.bf16.mxu0 %v6483
        %6577 = vmatpush1.bf16.msra.mxu0 %v6482
        %6578 = vmatprep.subr.bf16.mxu0 %v6479
        %6579 = vmatpush1.bf16.msra.mxu0 %v6478
        %6580 = vmatprep.subr.bf16.mxu0 0
        %6581 = vmatpush2.bf16.msra.mxu0 0
        %6582 = vmatprep.subr.bf16.mxu0 0
        %6583 = vmatpush2.bf16.msra.mxu0 0
        %6584 = vmatprep.subr.bf16.mxu0 0
        %6585 = vmatpush2.bf16.msra.mxu0 0
        %6586 = vmatprep.subr.bf16.mxu0 0
        %6587 = vmatpush2.bf16.msra.mxu0 0
        %6588 = vmatprep.subr.bf16.mxu0 0
        %6589 = vmatpush2.bf16.msra.mxu0 0
        %6590 = vmatprep.subr.bf16.mxu0 0
        %6591 = vmatpush2.bf16.msra.mxu0 0
        %6592 = vmatprep.subr.bf16.mxu0 %v6515
        %6593 = vmatpush2.bf16.msra.mxu0 %v6514
        %6594 = vmatprep.subr.bf16.mxu0 %v6511
        %6595 = vmatpush2.bf16.msra.mxu0 %v6510
        %6596 = vmatprep.mubr.bf16.mxu0 %v6559
        %6597 = vmatmul.mubr.bf16.gmra.mxu0 %v6352
        %v6598 = vpop.f32.mrf.mxu0
        %v6599 = vadd.f32 %v6323, %v6598
        %v6600 = vpop.f32.mrf.mxu0
        %v6601 = vadd.f32 %v6323, %v6600
        %v6602 = vpop.f32.mrf.mxu0
        %v6603 = vadd.f32 %v6328, %v6602
        %v6604 = vpop.f32.mrf.mxu0
        %v6605 = vadd.f32 %v6328, %v6604
        %6606 = vmatprep.mubr.bf16.mxu0 %v6562
        %6607 = vmatmul.mubr.bf16.gmra.mxu0 %v6354
        %v6608 = vpop.f32.mrf.mxu0
        %v6609 = vadd.f32 %v6333, %v6608
        %v6610 = vpop.f32.mrf.mxu0
        %v6611 = vadd.f32 %v6333, %v6610
        %v6612 = vpop.f32.mrf.mxu0
        %v6613 = vadd.f32 %v6338, %v6612
        %v6614 = vpop.f32.mrf.mxu0
        %v6615 = vadd.f32 %v6338, %v6614
        %6616 = vdwg.mxu0
        %6617 = vmatprep.subr.bf16.mxu0 %v6509
        %6618 = vmatpush1.bf16.msra.mxu0 %v6508
        %6619 = vmatprep.subr.bf16.mxu0 %v6505
        %6620 = vmatpush1.bf16.msra.mxu0 %v6504
        %6621 = vmatprep.subr.bf16.mxu0 %v6501
        %6622 = vmatpush1.bf16.msra.mxu0 %v6500
        %6623 = vmatprep.subr.bf16.mxu0 %v6497
        %6624 = vmatpush1.bf16.msra.mxu0 %v6496
        %6625 = vmatprep.subr.bf16.mxu0 %v6493
        %6626 = vmatpush1.bf16.msra.mxu0 %v6492
        %6627 = vmatprep.subr.bf16.mxu0 %v6489
        %6628 = vmatpush1.bf16.msra.mxu0 %v6488
        %6629 = vmatprep.subr.bf16.mxu0 %v6485
        %6630 = vmatpush1.bf16.msra.mxu0 %v6484
        %6631 = vmatprep.subr.bf16.mxu0 %v6481
        %6632 = vmatpush1.bf16.msra.mxu0 %v6480
        %6633 = vmatprep.subr.bf16.mxu0 0
        %6634 = vmatpush2.bf16.msra.mxu0 0
        %6635 = vmatprep.subr.bf16.mxu0 0
        %6636 = vmatpush2.bf16.msra.mxu0 0
        %6637 = vmatprep.subr.bf16.mxu0 0
        %6638 = vmatpush2.bf16.msra.mxu0 0
        %6639 = vmatprep.subr.bf16.mxu0 0
        %6640 = vmatpush2.bf16.msra.mxu0 0
        %6641 = vmatprep.subr.bf16.mxu0 0
        %6642 = vmatpush2.bf16.msra.mxu0 0
        %6643 = vmatprep.subr.bf16.mxu0 0
        %6644 = vmatpush2.bf16.msra.mxu0 0
        %6645 = vmatprep.subr.bf16.mxu0 %v6517
        %6646 = vmatpush2.bf16.msra.mxu0 %v6516
        %6647 = vmatprep.subr.bf16.mxu0 %v6513
        %6648 = vmatpush2.bf16.msra.mxu0 %v6512
        %6649 = vmatprep.mubr.bf16.mxu0 %v6559
        %6650 = vmatmul.mubr.bf16.gmra.mxu0 %v6352
        %v6651 = vpop.f32.mrf.mxu0
        %v6652 = vadd.f32 %v6323, %v6651
        %v6653 = vpop.f32.mrf.mxu0
        %v6654 = vadd.f32 %v6323, %v6653
        %v6655 = vpop.f32.mrf.mxu0
        %v6656 = vadd.f32 %v6328, %v6655
        %v6657 = vpop.f32.mrf.mxu0
        %v6658 = vadd.f32 %v6328, %v6657
        %6659 = vmatprep.mubr.bf16.mxu0 %v6562
        %6660 = vmatmul.mubr.bf16.gmra.mxu0 %v6354
        %v6661 = vpop.f32.mrf.mxu0
        %v6662 = vadd.f32 %v6333, %v6661
        %v6663 = vpop.f32.mrf.mxu0
        %v6664 = vadd.f32 %v6333, %v6663
        %v6665 = vpop.f32.mrf.mxu0
        %v6666 = vadd.f32 %v6338, %v6665
        %v6667 = vpop.f32.mrf.mxu0
        %v6668 = vadd.f32 %v6338, %v6667
        %6669 = vdwg.mxu0
        %v6670 = vadd.f32 %v4652, %v6599
        %v6671 = vadd.f32 %v4653, %v6601
        %v6672 = vadd.f32 %v4654, %v6652
        %v6673 = vadd.f32 %v4655, %v6654
        %v6674 = vadd.f32 %v4656, %v6603
        %v6675 = vadd.f32 %v4657, %v6605
        %v6676 = vadd.f32 %v4658, %v6656
        %v6677 = vadd.f32 %v4659, %v6658
        %v6678 = vadd.f32 %v4660, %v6609
        %v6679 = vadd.f32 %v4661, %v6611
        %v6680 = vadd.f32 %v4662, %v6662
        %v6681 = vadd.f32 %v4663, %v6664
        %v6682 = vadd.f32 %v4664, %v6613
        %v6683 = vadd.f32 %v4665, %v6615
        %v6684 = vadd.f32 %v4666, %v6666
        %v6685 = vadd.f32 %v4667, %v6668
        %v6686 = vadd.f32 %v2988, %v6670
        %v6687 = vadd.f32 %v2989, %v6671
        %v6688 = vadd.f32 %v2990, %v6672
        %v6689 = vadd.f32 %v2991, %v6673
        %v6690 = vadd.f32 %v2992, %v6674
        %v6691 = vadd.f32 %v2993, %v6675
        %v6692 = vadd.f32 %v2994, %v6676
        %v6693 = vadd.f32 %v2995, %v6677
        %v6694 = vadd.f32 %v2996, %v6678
        %v6695 = vadd.f32 %v2997, %v6679
        %v6696 = vadd.f32 %v2998, %v6680
        %v6697 = vadd.f32 %v2999, %v6681
        %v6698 = vadd.f32 %v3000, %v6682
        %v6699 = vadd.f32 %v3001, %v6683
        %v6700 = vadd.f32 %v3002, %v6684
        %v6701 = vadd.f32 %v3003, %v6685
        %v6702 = vmul.f32 %v6686, 0.5
        %v6703 = vmul.f32 %v6687, 0.5
        %v6704 = vmul.f32 %v6688, 0.5
        %v6705 = vmul.f32 %v6689, 0.5
        %v6706 = vmul.f32 %v6690, 0.5
        %v6707 = vmul.f32 %v6691, 0.5
        %v6708 = vmul.f32 %v6692, 0.5
        %v6709 = vmul.f32 %v6693, 0.5
        %v6710 = vmul.f32 %v6694, 0.5
        %v6711 = vmul.f32 %v6695, 0.5
        %v6712 = vmul.f32 %v6696, 0.5
        %v6713 = vmul.f32 %v6697, 0.5
        %v6714 = vmul.f32 %v6698, 0.5
        %v6715 = vmul.f32 %v6699, 0.5
        %v6716 = vmul.f32 %v6700, 0.5
        %v6717 = vmul.f32 %v6701, 0.5
        %6718 = vst [vmem:[%s223] sm:$0xff] %v6702
        %6719 = vst [vmem:[%s223 + $0x8] sm:$0xff] %v6703
        %6720 = vst [vmem:[%s223 + $0x10] sm:$0xff] %v6706
        %6721 = vst [vmem:[%s223 + $0x18] sm:$0xff] %v6707
        %6722 = vst [vmem:[%s223 + $0x20] sm:$0xff] %v6710
        %6723 = vst [vmem:[%s223 + $0x28] sm:$0xff] %v6711
        %6724 = vst [vmem:[%s223 + $0x30] sm:$0xff] %v6714
        %6725 = vst [vmem:[%s223 + $0x38] sm:$0xff] %v6715
        %s6726 = scalar_lea.vmem %s223, 64 [#allocation8]
        %6727 = vst [vmem:[%s6726] sm:$0xff] %v6704
        %6728 = vst [vmem:[%s6726 + $0x8] sm:$0xff] %v6705
        %6729 = vst [vmem:[%s6726 + $0x10] sm:$0xff] %v6708
        %6730 = vst [vmem:[%s6726 + $0x18] sm:$0xff] %v6709
        %6731 = vst [vmem:[%s6726 + $0x20] sm:$0xff] %v6712
        %6732 = vst [vmem:[%s6726 + $0x28] sm:$0xff] %v6713
        %6733 = vst [vmem:[%s6726 + $0x30] sm:$0xff] %v6716
        %6734 = vst [vmem:[%s6726 + $0x38] sm:$0xff] %v6717
        %s6735 = sand.u32 %s117, 1
        %s6736 = scalar_lea.sflag [#allocation5], %s6735
        %s6737 = sand.u32 %s117, 1
        %s6738 = smul.addr %s6737, 128
        %s6739 = scalar_lea.vmem [#allocation8], %s6738
        // Predicated region
        $region45: #{tpu_custom_call.1} parent=35 // pred_check
          %p6740 = pneg %p127
        $region46: #{tpu_custom_call.1} parent=35 // pred_check_branch
          %6742 = sbr.rel (%p6740) target = $region48
        $region47: #{tpu_custom_call.1} parent=35 // pred_region
          %s6743 = smul.u32 2, %s20
          %s6745 = ssub.s32 2048, 2048
          %6746 = vsyncadd %s6736, %s6745
          %s6747 = smul.addr %s6743, 8
          %s6748 = smul.addr %s6747, 128
          %s6749 = scalar_lea.hbm %s4, %s6748
          %s6750 = sshll.u32 %s6739, 4
          %s6751 = int_to_ptr.vmem [resolvable:$true] %s6750
          %6756 = dma.vmem_to_hbm [thread:$0]  %s6751, 2048, %s6749, %s6736, 256, 256, 16
        $region48: #{tpu_custom_call.1} parent=35 // pred_fallthru
          _
      $region36: #{tpu_custom_call.1} parent=5 // pred_fallthru
        _
      %p6757 = scmp.le.s32.totalorder 2, %s15
      // Predicated region
      $region49: #{tpu_custom_call.1} parent=5 // pred_check
        %p6758 = pneg %p6757
      $region50: #{tpu_custom_call.1} parent=5 // pred_check_branch
        %6760 = sbr.rel (%p6758) target = $region52
      $region51: #{tpu_custom_call.1} parent=5 // pred_region
        %s6761 = ssub.s32 %s15, 2
        // Predicated region
        $region53: #{tpu_custom_call.1} parent=51 // pred_check
          %p6762 = pneg %p133
        $region54: #{tpu_custom_call.1} parent=51 // pred_check_branch
          %6764 = sbr.rel (%p6762) target = $region56
        $region55: #{tpu_custom_call.1} parent=51 // pred_region
          %s6765 = sand.u32 %s118, 1
          %s6766 = scalar_lea.sflag [#allocation5], %s6765
          %s6767 = sand.u32 %s118, 1
          %s6768 = smul.addr %s6767, 128
          %s6769 = scalar_lea.vmem [#allocation8], %s6768
          %6770 = dma.done %s6766, 2048
        $region56: #{tpu_custom_call.1} parent=51 // pred_fallthru
          _
      $region52: #{tpu_custom_call.1} parent=5 // pred_fallthru
        _
    $region6: #{tpu_custom_call.1} parent=1 // loop_footer
      %s19 = sadd.s32 1, %s15
    $region7: #{tpu_custom_call.1} parent=1 // loop_footer_branch
      %14 = sbr.rel target = $region3
    $region8: #{tpu_custom_call.1} parent=1 // loop_exit
      _
    %6771 = vsyncpa [#allocation4], 1
    %s6772 = scalar_lea.sflag [#allocation4], 1
    %6773 = vsyncpa %s6772, 1
    %6774 = vsyncpa [#allocation7], 1
    %6775 = vsyncpa [#allocation5], 1
    %s6776 = scalar_lea.sflag [#allocation5], 1
    %6777 = vsyncpa %s6776, 1

</llo_original>
